<compile_context>
chip_gen: v6e
topology: v6e:2x2x1
jax: 0.10.0
libtpu: 0.0.40
codegen_flags: <defaults>
</compile_context>

<pallas_src>
import functools

import jax
import jax.numpy as jnp
from jax.experimental import pallas as pl
from jax.experimental.pallas import tpu as pltpu


def _encoder_block_kernel(xq_ref, xf_ref, mask_ref,
                          wq_ref, bq_ref, wk_ref, bk_ref, wv_ref, bv_ref,
                          wo_ref, bo_ref,
                          g1_ref, beta1_ref,
                          w1_ref, b1_ref, w2_ref, b2_ref,
                          g2_ref, beta2_ref,
                          out_ref,
                          k_scr, v_scr,
                          *, n_heads, eps):
    xq = xq_ref[0]                         # (TQ, D) f32 — query rows / residual
    mask = mask_ref[0]                     # (TQ, S) bf16, 1 = keep, 0 = masked
    TQ, D = xq.shape
    S = k_scr.shape[1]
    dh = D // n_heads
    scale = 1.0 / jnp.sqrt(jnp.float32(dh))

    # --- K/V: computed once per batch (first query tile), cached in VMEM -----
    @pl.when(pl.program_id(1) == 0)
    def _compute_kv():
        xf = xf_ref[0]                     # (S, D) bf16 — full sequence
        k = jnp.dot(xf, wk_ref[...], preferred_element_type=jnp.float32) + bk_ref[...]
        v = jnp.dot(xf, wv_ref[...], preferred_element_type=jnp.float32) + bv_ref[...]
        kb = k.astype(jnp.bfloat16)
        vb = v.astype(jnp.bfloat16)
        for h in range(n_heads):           # per-head relayout, once per batch
            k_scr[h] = kb[:, h * dh:(h + 1) * dh]
            v_scr[h] = vb[:, h * dh:(h + 1) * dh]

    # --- Q projection for this query tile (bf16 MXU, f32 accumulation) -------
    xq_b = xq.astype(jnp.bfloat16)
    q = jnp.dot(xq_b, wq_ref[...], preferred_element_type=jnp.float32) + bq_ref[...]
    q = q * scale                          # fold 1/sqrt(dh) into Q
    qb = q.astype(jnp.bfloat16)
    q3 = jnp.stack([qb[:, h * dh:(h + 1) * dh] for h in range(n_heads)],
                   axis=0)                 # (H, TQ, dh) bf16

    # Additive mask bias, computed ONCE per tile (hoisted out of head math).
    bias = (mask.astype(jnp.float32) - 1.0) * 1e9        # (TQ, S): 0 keep / -1e9 masked

    # --- batched-head attention (K/V from VMEM scratch) -----------------------
    scores = jnp.einsum('hqd,hkd->hqk', q3, k_scr[...],
                        preferred_element_type=jnp.float32)      # (H, TQ, S)
    scores = scores + bias[None, :, :]
    m = jnp.max(scores, axis=-1, keepdims=True)
    p = jnp.exp(scores - m)                                      # un-normalized (f32; v5e-safe)
    denom = jnp.sum(p, axis=-1, keepdims=True)                   # (H, TQ, 1)
    ctx = jnp.einsum('hqk,hkd->hqd', p.astype(jnp.bfloat16), v_scr[...],
                     preferred_element_type=jnp.float32)         # (H, TQ, dh)
    ctx = ctx * pl.reciprocal(denom, approx=True)                # deferred normalization (EUP)

    ctx2 = jnp.concatenate([ctx[h] for h in range(n_heads)], axis=-1)   # (TQ, D)
    attn = jnp.dot(ctx2.astype(jnp.bfloat16), wo_ref[...],
                   preferred_element_type=jnp.float32) + bo_ref[...]

    # dropout1 == identity (inference)
    # --- residual + LayerNorm1 (fused mean / mean-of-squares) -----------------
    h1 = xq + attn
    mu1 = jnp.mean(h1, axis=-1, keepdims=True)
    ms1 = jnp.mean(h1 * h1, axis=-1, keepdims=True)
    h1 = (h1 - mu1) * jax.lax.rsqrt(ms1 - mu1 * mu1 + eps) * g1_ref[...] + beta1_ref[...]

    # --- position-wise feed-forward (bf16 MXU) ---------------------------------
    ff = jnp.dot(h1.astype(jnp.bfloat16), w1_ref[...],
                 preferred_element_type=jnp.float32) + b1_ref[...]
    ff = jnp.maximum(ff, 0.0)              # ReLU (inner dropout = identity)
    ff = jnp.dot(ff.astype(jnp.bfloat16), w2_ref[...],
                 preferred_element_type=jnp.float32) + b2_ref[...]

    # dropout2 == identity (inference)
    # --- residual + LayerNorm2 (fused) ----------------------------------------
    h2 = h1 + ff
    mu2 = jnp.mean(h2, axis=-1, keepdims=True)
    ms2 = jnp.mean(h2 * h2, axis=-1, keepdims=True)
    out = (h2 - mu2) * jax.lax.rsqrt(ms2 - mu2 * mu2 + eps) * g2_ref[...] + beta2_ref[...]

    out_ref[0] = out.astype(out_ref.dtype)


def _vmem_limit_bytes():
    """~48 MiB on v7x (64 MiB VMEM/TC), ~96 MiB on v5e/v6e (128 MiB VMEM)."""
    try:
        cap = int(pltpu.get_tpu_info().vmem_capacity_bytes)
    except Exception:
        cap = 64 * 1024 * 1024            # conservative (v7x-sized) fallback
    return max(32 * 1024 * 1024, min(3 * cap // 4, 100 * 1024 * 1024))


def encoder_block(x, mask, params, *, n_heads, eps=1e-6, q_tile=None,
                  single_buffer_weights=True):
    """x: (B, S, D) float32; mask: (B, 1, S, S) (1=keep, 0=mask)."""
    B, S, D = x.shape
    F = params["w1"].shape[1]
    assert D % n_heads == 0
    dh = D // n_heads

    if q_tile is None:                     # prefer MXU-width-friendly tiles
        tq = S
        for cand in (256, 128):
            if S % cand == 0:
                tq = cand
                break
    else:
        tq = q_tile
    assert S % tq == 0
    # bf16 mask blocks need sublane-tile-friendly TQ (16-aligned) unless TQ == S.
    assert tq == S or tq % 16 == 0
    nq = S // tq

    # Mask travels as bf16 (0/1 exact) — half the HBM traffic of f32.
    mask2d = mask.reshape(B, S, S).astype(jnp.bfloat16)
    # K/V source travels as bf16; the residual path keeps the f32 query block.
    x_kv = x.astype(jnp.bfloat16)

    bf = lambda a: a.astype(jnp.bfloat16)   # MXU weights
    f32 = lambda a: a.astype(jnp.float32)   # biases / LayerNorm params

    vmem_limit = _vmem_limit_bytes()

    flops = 2 * B * (4 * S * D * D + 2 * S * S * D + 2 * S * D * F)
    transcendentals = B * n_heads * S * S
    bytes_weights = 2 * (4 * D * D + 2 * D * F) + 4 * (9 * D + F)
    bytes_accessed = int(x.size * 4 + x.size * 2 + mask2d.size * 2
                         + B * S * D * 4 + bytes_weights)

    kernel = functools.partial(_encoder_block_kernel, n_heads=n_heads, eps=eps)

    def build(single):
        def const2d(shape):
            if single:
                return pl.BlockSpec(shape, lambda b, qi: (0, 0),
                                    pipeline_mode=pl.Buffered(1))
            return pl.BlockSpec(shape, lambda b, qi: (0, 0))

        grid_spec = pltpu.PrefetchScalarGridSpec(
            num_scalar_prefetch=0,
            grid=(B, nq),
            in_specs=[
                pl.BlockSpec((1, tq, D), lambda b, qi: (b, qi, 0)),  # x (f32, residual/Q)
                pl.BlockSpec((1, S, D), lambda b, qi: (b, 0, 0)),    # x (bf16, K/V source)
                pl.BlockSpec((1, tq, S), lambda b, qi: (b, qi, 0)),  # mask (bf16)
                const2d((D, D)), const2d((1, D)),                    # Wq, bq
                const2d((D, D)), const2d((1, D)),                    # Wk, bk
                const2d((D, D)), const2d((1, D)),                    # Wv, bv
                const2d((D, D)), const2d((1, D)),                    # Wo, bo
                const2d((1, D)), const2d((1, D)),                    # LN1 gamma, beta
                const2d((D, F)), const2d((1, F)),                    # W1, b1
                const2d((F, D)), const2d((1, D)),                    # W2, b2
                const2d((1, D)), const2d((1, D)),                    # LN2 gamma, beta
            ],
            out_specs=pl.BlockSpec((1, tq, D), lambda b, qi: (b, qi, 0)),
            scratch_shapes=[
                pltpu.VMEM((n_heads, S, dh), jnp.bfloat16),   # K cache (per-head)
                pltpu.VMEM((n_heads, S, dh), jnp.bfloat16),   # V cache (per-head)
            ],
        )
        return pl.pallas_call(
            kernel,
            out_shape=jax.ShapeDtypeStruct((B, S, D), x.dtype),
            grid_spec=grid_spec,
            compiler_params=pltpu.CompilerParams(
                # qi carries the K/V cache -> must be sequential ("arbitrary");
                # batch stays "parallel" so both v7x TensorCores get work.
                dimension_semantics=("parallel", "arbitrary"),
                vmem_limit_bytes=vmem_limit),
            cost_estimate=pl.CostEstimate(flops=flops,
                                          transcendentals=transcendentals,
                                          bytes_accessed=bytes_accessed),
        )

    args = (x, x_kv, mask2d,
            bf(params["wq"]), f32(params["bq"]), bf(params["wk"]), f32(params["bk"]),
            bf(params["wv"]), f32(params["bv"]), bf(params["wo"]), f32(params["bo"]),
            f32(params["ln1_g"]), f32(params["ln1_b"]),
            bf(params["w1"]), f32(params["b1"]), bf(params["w2"]), f32(params["b2"]),
            f32(params["ln2_g"]), f32(params["ln2_b"]))

    if single_buffer_weights:
        try:
            return build(True)(*args)
        except Exception:
            # Installed Pallas may reject pipeline_mode=pl.Buffered(1); fall back
            # to default double-buffered weight blocks (correctness unchanged).
            pass
    return build(False)(*args)


def _reference(x, mask, params, n_heads, eps=1e-6):
    """Pure-JAX f32 reference matching the PyTorch module semantics."""
    B, S, D = x.shape
    dh = D // n_heads
    m = mask.reshape(B, 1, S, S)
    q = x @ params["wq"] + params["bq"]
    k = x @ params["wk"] + params["bk"]
    v = x @ params["wv"] + params["bv"]

    def split(t):
        return t.reshape(B, S, n_heads, dh).transpose(0, 2, 1, 3)
    qh, kh, vh = split(q), split(k), split(v)
    scores = jnp.einsum("bhqd,bhkd->bhqk", qh, kh) / jnp.sqrt(jnp.float32(dh))
    scores = jnp.where(m == 0, -1e9, scores)
    p = jax.nn.softmax(scores, axis=-1)
    ctx = jnp.einsum("bhqk,bhkd->bhqd", p, vh).transpose(0, 2, 1, 3).reshape(B, S, D)
    attn = ctx @ params["wo"] + params["bo"]

    def ln(t, g, b):
        mu = t.mean(-1, keepdims=True)
        var = ((t - mu) ** 2).mean(-1, keepdims=True)
        return (t - mu) * jax.lax.rsqrt(var + eps) * g + b

    h1 = ln(x + attn, params["ln1_g"], params["ln1_b"])
    ff = jnp.maximum(h1 @ params["w1"] + params["b1"], 0.0) @ params["w2"] + params["b2"]
    return ln(h1 + ff, params["ln2_g"], params["ln2_b"])


def init_params(key, d_model, d_ff):
    ks = jax.random.split(key, 8)
    s = 0.02
    return {
        "wq": jax.random.normal(ks[0], (d_model, d_model), jnp.float32) * s,
        "wk": jax.random.normal(ks[1], (d_model, d_model), jnp.float32) * s,
        "wv": jax.random.normal(ks[2], (d_model, d_model), jnp.float32) * s,
        "wo": jax.random.normal(ks[3], (d_model, d_model), jnp.float32) * s,
        "bq": jnp.zeros((1, d_model), jnp.float32),
        "bk": jnp.zeros((1, d_model), jnp.float32),
        "bv": jnp.zeros((1, d_model), jnp.float32),
        "bo": jnp.zeros((1, d_model), jnp.float32),
        "w1": jax.random.normal(ks[4], (d_model, d_ff), jnp.float32) * s,
        "b1": jnp.zeros((1, d_ff), jnp.float32),
        "w2": jax.random.normal(ks[5], (d_ff, d_model), jnp.float32) * s,
        "b2": jnp.zeros((1, d_model), jnp.float32),
        "ln1_g": jnp.ones((1, d_model), jnp.float32),
        "ln1_b": jnp.zeros((1, d_model), jnp.float32),
        "ln2_g": jnp.ones((1, d_model), jnp.float32),
        "ln2_b": jnp.zeros((1, d_model), jnp.float32),
    }


if __name__ == "__main__":
    B, S, D, H, F = 2, 64, 128, 4, 256
    key = jax.random.PRNGKey(0)
    kx, kp = jax.random.split(key)
    x = jax.random.normal(kx, (B, S, D), jnp.float32)

    # Key-padding style mask (1 = attend): batch 0 keeps all keys, batch 1 masks last 16.
    lengths = jnp.array([S, S - 16])
    key_keep = (jnp.arange(S)[None, :] < lengths[:, None]).astype(jnp.float32)  # (B, S)
    mask = jnp.broadcast_to(key_keep[:, None, None, :], (B, 1, S, S)).astype(jnp.float32)

    params = init_params(kp, D, F)

    # q_tile=32 only because S=64 is tiny: it forces 2 query tiles per batch so the
    # K/V scratch carry is exercised.  Real runs should use the default (>=128/256).
    out = encoder_block(x, mask, params, n_heads=H, q_tile=32)
    out = jax.block_until_ready(out)

    ref = _reference(x, mask, params, H)
    assert out.shape == (B, S, D)
    max_err = float(jnp.max(jnp.abs(out - ref)))
    assert jnp.allclose(out, ref, atol=5e-2, rtol=5e-2), (
        f"mismatch vs reference (max abs err {max_err})")
    print("KERNEL_OK")
</pallas_src>

<mosaic_0001>
module attributes {stable_mosaic.version = 11 : i64} {
  func.func @_encoder_block_kernel(%arg0: i32, %arg1: i32, %arg2: memref<1x32x128xf32, #tpu.memory_space<vmem>>, %arg3: memref<1x64x128xbf16, #tpu.memory_space<vmem>>, %arg4: memref<1x32x64xbf16, #tpu.memory_space<vmem>>, %arg5: memref<128x128xbf16, #tpu.memory_space<vmem>>, %arg6: memref<1x128xf32, #tpu.memory_space<vmem>>, %arg7: memref<128x128xbf16, #tpu.memory_space<vmem>>, %arg8: memref<1x128xf32, #tpu.memory_space<vmem>>, %arg9: memref<128x128xbf16, #tpu.memory_space<vmem>>, %arg10: memref<1x128xf32, #tpu.memory_space<vmem>>, %arg11: memref<128x128xbf16, #tpu.memory_space<vmem>>, %arg12: memref<1x128xf32, #tpu.memory_space<vmem>>, %arg13: memref<1x128xf32, #tpu.memory_space<vmem>>, %arg14: memref<1x128xf32, #tpu.memory_space<vmem>>, %arg15: memref<128x256xbf16, #tpu.memory_space<vmem>>, %arg16: memref<1x256xf32, #tpu.memory_space<vmem>>, %arg17: memref<256x128xbf16, #tpu.memory_space<vmem>>, %arg18: memref<1x128xf32, #tpu.memory_space<vmem>>, %arg19: memref<1x128xf32, #tpu.memory_space<vmem>>, %arg20: memref<1x128xf32, #tpu.memory_space<vmem>>, %arg21: memref<1x32x128xf32, #tpu.memory_space<vmem>>, %arg22: memref<4x64x32xbf16, #tpu.memory_space<vmem>>, %arg23: memref<4x64x32xbf16, #tpu.memory_space<vmem>>) attributes {dimension_semantics = [#tpu.dimension_semantics<parallel>, #tpu.dimension_semantics<arbitrary>], iteration_bounds = array<i64: 2, 2>, scalar_prefetch = 0 : i64, scratch_operands = 2 : i64, tpu.core_type = #tpu.core_type<tc>, window_params = [{transform_indices = @transform_0, window_bounds = array<i64: 1, 32, 128>}, {transform_indices = @transform_1, window_bounds = array<i64: 1, 64, 128>}, {transform_indices = @transform_2, window_bounds = array<i64: 1, 32, 64>}, {pipeline_mode = #tpu.pipeline_mode<synchronous>, transform_indices = @transform_3, window_bounds = array<i64: 128, 128>}, {pipeline_mode = #tpu.pipeline_mode<synchronous>, transform_indices = @transform_4, window_bounds = array<i64: 1, 128>}, {pipeline_mode = #tpu.pipeline_mode<synchronous>, transform_indices = @transform_5, window_bounds = array<i64: 128, 128>}, {pipeline_mode = #tpu.pipeline_mode<synchronous>, transform_indices = @transform_6, window_bounds = array<i64: 1, 128>}, {pipeline_mode = #tpu.pipeline_mode<synchronous>, transform_indices = @transform_7, window_bounds = array<i64: 128, 128>}, {pipeline_mode = #tpu.pipeline_mode<synchronous>, transform_indices = @transform_8, window_bounds = array<i64: 1, 128>}, {pipeline_mode = #tpu.pipeline_mode<synchronous>, transform_indices = @transform_9, window_bounds = array<i64: 128, 128>}, {pipeline_mode = #tpu.pipeline_mode<synchronous>, transform_indices = @transform_10, window_bounds = array<i64: 1, 128>}, {pipeline_mode = #tpu.pipeline_mode<synchronous>, transform_indices = @transform_11, window_bounds = array<i64: 1, 128>}, {pipeline_mode = #tpu.pipeline_mode<synchronous>, transform_indices = @transform_12, window_bounds = array<i64: 1, 128>}, {pipeline_mode = #tpu.pipeline_mode<synchronous>, transform_indices = @transform_13, window_bounds = array<i64: 128, 256>}, {pipeline_mode = #tpu.pipeline_mode<synchronous>, transform_indices = @transform_14, window_bounds = array<i64: 1, 256>}, {pipeline_mode = #tpu.pipeline_mode<synchronous>, transform_indices = @transform_15, window_bounds = array<i64: 256, 128>}, {pipeline_mode = #tpu.pipeline_mode<synchronous>, transform_indices = @transform_16, window_bounds = array<i64: 1, 128>}, {pipeline_mode = #tpu.pipeline_mode<synchronous>, transform_indices = @transform_17, window_bounds = array<i64: 1, 128>}, {pipeline_mode = #tpu.pipeline_mode<synchronous>, transform_indices = @transform_18, window_bounds = array<i64: 1, 128>}, {transform_indices = @transform_19, window_bounds = array<i64: 1, 32, 128>}]} {
    %c0 = arith.constant 0 : index
    %c0_0 = arith.constant 0 : index
    %c0_1 = arith.constant 0 : index
    %0 = vector.load %arg2[%c0, %c0_0, %c0_1] : memref<1x32x128xf32, #tpu.memory_space<vmem>>, vector<1x32x128xf32>
    %1 = vector.shape_cast %0 : vector<1x32x128xf32> to vector<32x128xf32>
    %c0_2 = arith.constant 0 : index
    %c0_3 = arith.constant 0 : index
    %c0_4 = arith.constant 0 : index
    %2 = vector.load %arg4[%c0_2, %c0_3, %c0_4] : memref<1x32x64xbf16, #tpu.memory_space<vmem>>, vector<1x32x64xbf16>
    %3 = vector.shape_cast %2 : vector<1x32x64xbf16> to vector<32x64xbf16>
    %cst = arith.constant 3.200000e+01 : f32
    %4 = math.sqrt %cst : f32
    %cst_5 = arith.constant 1.000000e+00 : f32
    %5 = arith.divf %cst_5, %4 : f32
    %c0_i32 = arith.constant 0 : i32
    %6 = arith.cmpi eq, %arg1, %c0_i32 : i32
    %7 = arith.extui %6 : i1 to i32
    %c0_i32_6 = arith.constant 0 : i32
    %8 = arith.cmpi ne, %7, %c0_i32_6 : i32
    scf.if %8 {
      %c0_61 = arith.constant 0 : index
      %c0_62 = arith.constant 0 : index
      %c0_63 = arith.constant 0 : index
      %132 = vector.load %arg3[%c0_61, %c0_62, %c0_63] : memref<1x64x128xbf16, #tpu.memory_space<vmem>>, vector<1x64x128xbf16>
      %133 = vector.shape_cast %132 : vector<1x64x128xbf16> to vector<64x128xbf16>
      %c0_64 = arith.constant 0 : index
      %c0_65 = arith.constant 0 : index
      %134 = vector.load %arg7[%c0_64, %c0_65] : memref<128x128xbf16, #tpu.memory_space<vmem>>, vector<128x128xbf16>
      %cst_66 = arith.constant dense<0.000000e+00> : vector<64x128xf32>
      %135 = tpu.matmul %133, %134, %cst_66 {dimension_numbers = #tpu.dot_dimension_numbers<[1], [0], [0], [1], [0, 0, 1, 1], [], []>} : vector<64x128xbf16>, vector<128x128xbf16>, vector<64x128xf32> -> vector<64x128xf32>
      %c0_67 = arith.constant 0 : index
      %c0_68 = arith.constant 0 : index
      %136 = vector.load %arg8[%c0_67, %c0_68] : memref<1x128xf32, #tpu.memory_space<vmem>>, vector<1x128xf32>
      %137 = vector.broadcast %136 : vector<1x128xf32> to vector<64x128xf32>
      %138 = arith.addf %135, %137 : vector<64x128xf32>
      %c0_69 = arith.constant 0 : index
      %c0_70 = arith.constant 0 : index
      %139 = vector.load %arg9[%c0_69, %c0_70] : memref<128x128xbf16, #tpu.memory_space<vmem>>, vector<128x128xbf16>
      %cst_71 = arith.constant dense<0.000000e+00> : vector<64x128xf32>
      %140 = tpu.matmul %133, %139, %cst_71 {dimension_numbers = #tpu.dot_dimension_numbers<[1], [0], [0], [1], [0, 0, 1, 1], [], []>} : vector<64x128xbf16>, vector<128x128xbf16>, vector<64x128xf32> -> vector<64x128xf32>
      %c0_72 = arith.constant 0 : index
      %c0_73 = arith.constant 0 : index
      %141 = vector.load %arg10[%c0_72, %c0_73] : memref<1x128xf32, #tpu.memory_space<vmem>>, vector<1x128xf32>
      %142 = vector.broadcast %141 : vector<1x128xf32> to vector<64x128xf32>
      %143 = arith.addf %140, %142 : vector<64x128xf32>
      %144 = arith.truncf %138 : vector<64x128xf32> to vector<64x128xbf16>
      %145 = arith.truncf %143 : vector<64x128xf32> to vector<64x128xbf16>
      %146 = vector.extract_strided_slice %144 {offsets = [0, 0], sizes = [64, 32], strides = [1, 1]} : vector<64x128xbf16> to vector<64x32xbf16>
      %c0_74 = arith.constant 0 : index
      %c0_75 = arith.constant 0 : index
      %c0_76 = arith.constant 0 : index
      %147 = vector.load %arg22[%c0_74, %c0_75, %c0_76] : memref<4x64x32xbf16, #tpu.memory_space<vmem>>, vector<1x64x32xbf16>
      %148 = vector.shape_cast %147 : vector<1x64x32xbf16> to vector<64x32xbf16>
      %149 = vector.shape_cast %146 : vector<64x32xbf16> to vector<1x64x32xbf16>
      tpu.vector_store %arg22[%c0_74, %c0_75, %c0_76], %149 {strides = array<i32>} : memref<4x64x32xbf16, #tpu.memory_space<vmem>>, vector<1x64x32xbf16>,
      %150 = vector.extract_strided_slice %145 {offsets = [0, 0], sizes = [64, 32], strides = [1, 1]} : vector<64x128xbf16> to vector<64x32xbf16>
      %c0_77 = arith.constant 0 : index
      %c0_78 = arith.constant 0 : index
      %c0_79 = arith.constant 0 : index
      %151 = vector.load %arg23[%c0_77, %c0_78, %c0_79] : memref<4x64x32xbf16, #tpu.memory_space<vmem>>, vector<1x64x32xbf16>
      %152 = vector.shape_cast %151 : vector<1x64x32xbf16> to vector<64x32xbf16>
      %153 = vector.shape_cast %150 : vector<64x32xbf16> to vector<1x64x32xbf16>
      tpu.vector_store %arg23[%c0_77, %c0_78, %c0_79], %153 {strides = array<i32>} : memref<4x64x32xbf16, #tpu.memory_space<vmem>>, vector<1x64x32xbf16>,
      %154 = vector.extract_strided_slice %144 {offsets = [0, 32], sizes = [64, 32], strides = [1, 1]} : vector<64x128xbf16> to vector<64x32xbf16>
      %c1 = arith.constant 1 : index
      %c0_80 = arith.constant 0 : index
      %c0_81 = arith.constant 0 : index
      %155 = vector.load %arg22[%c1, %c0_80, %c0_81] : memref<4x64x32xbf16, #tpu.memory_space<vmem>>, vector<1x64x32xbf16>
      %156 = vector.shape_cast %155 : vector<1x64x32xbf16> to vector<64x32xbf16>
      %157 = vector.shape_cast %154 : vector<64x32xbf16> to vector<1x64x32xbf16>
      tpu.vector_store %arg22[%c1, %c0_80, %c0_81], %157 {strides = array<i32>} : memref<4x64x32xbf16, #tpu.memory_space<vmem>>, vector<1x64x32xbf16>,
      %158 = vector.extract_strided_slice %145 {offsets = [0, 32], sizes = [64, 32], strides = [1, 1]} : vector<64x128xbf16> to vector<64x32xbf16>
      %c1_82 = arith.constant 1 : index
      %c0_83 = arith.constant 0 : index
      %c0_84 = arith.constant 0 : index
      %159 = vector.load %arg23[%c1_82, %c0_83, %c0_84] : memref<4x64x32xbf16, #tpu.memory_space<vmem>>, vector<1x64x32xbf16>
      %160 = vector.shape_cast %159 : vector<1x64x32xbf16> to vector<64x32xbf16>
      %161 = vector.shape_cast %158 : vector<64x32xbf16> to vector<1x64x32xbf16>
      tpu.vector_store %arg23[%c1_82, %c0_83, %c0_84], %161 {strides = array<i32>} : memref<4x64x32xbf16, #tpu.memory_space<vmem>>, vector<1x64x32xbf16>,
      %162 = vector.extract_strided_slice %144 {offsets = [0, 64], sizes = [64, 32], strides = [1, 1]} : vector<64x128xbf16> to vector<64x32xbf16>
      %c2 = arith.constant 2 : index
      %c0_85 = arith.constant 0 : index
      %c0_86 = arith.constant 0 : index
      %163 = vector.load %arg22[%c2, %c0_85, %c0_86] : memref<4x64x32xbf16, #tpu.memory_space<vmem>>, vector<1x64x32xbf16>
      %164 = vector.shape_cast %163 : vector<1x64x32xbf16> to vector<64x32xbf16>
      %165 = vector.shape_cast %162 : vector<64x32xbf16> to vector<1x64x32xbf16>
      tpu.vector_store %arg22[%c2, %c0_85, %c0_86], %165 {strides = array<i32>} : memref<4x64x32xbf16, #tpu.memory_space<vmem>>, vector<1x64x32xbf16>,
      %166 = vector.extract_strided_slice %145 {offsets = [0, 64], sizes = [64, 32], strides = [1, 1]} : vector<64x128xbf16> to vector<64x32xbf16>
      %c2_87 = arith.constant 2 : index
      %c0_88 = arith.constant 0 : index
      %c0_89 = arith.constant 0 : index
      %167 = vector.load %arg23[%c2_87, %c0_88, %c0_89] : memref<4x64x32xbf16, #tpu.memory_space<vmem>>, vector<1x64x32xbf16>
      %168 = vector.shape_cast %167 : vector<1x64x32xbf16> to vector<64x32xbf16>
      %169 = vector.shape_cast %166 : vector<64x32xbf16> to vector<1x64x32xbf16>
      tpu.vector_store %arg23[%c2_87, %c0_88, %c0_89], %169 {strides = array<i32>} : memref<4x64x32xbf16, #tpu.memory_space<vmem>>, vector<1x64x32xbf16>,
      %170 = vector.extract_strided_slice %144 {offsets = [0, 96], sizes = [64, 32], strides = [1, 1]} : vector<64x128xbf16> to vector<64x32xbf16>
      %c3 = arith.constant 3 : index
      %c0_90 = arith.constant 0 : index
      %c0_91 = arith.constant 0 : index
      %171 = vector.load %arg22[%c3, %c0_90, %c0_91] : memref<4x64x32xbf16, #tpu.memory_space<vmem>>, vector<1x64x32xbf16>
      %172 = vector.shape_cast %171 : vector<1x64x32xbf16> to vector<64x32xbf16>
      %173 = vector.shape_cast %170 : vector<64x32xbf16> to vector<1x64x32xbf16>
      tpu.vector_store %arg22[%c3, %c0_90, %c0_91], %173 {strides = array<i32>} : memref<4x64x32xbf16, #tpu.memory_space<vmem>>, vector<1x64x32xbf16>,
      %174 = vector.extract_strided_slice %145 {offsets = [0, 96], sizes = [64, 32], strides = [1, 1]} : vector<64x128xbf16> to vector<64x32xbf16>
      %c3_92 = arith.constant 3 : index
      %c0_93 = arith.constant 0 : index
      %c0_94 = arith.constant 0 : index
      %175 = vector.load %arg23[%c3_92, %c0_93, %c0_94] : memref<4x64x32xbf16, #tpu.memory_space<vmem>>, vector<1x64x32xbf16>
      %176 = vector.shape_cast %175 : vector<1x64x32xbf16> to vector<64x32xbf16>
      %177 = vector.shape_cast %174 : vector<64x32xbf16> to vector<1x64x32xbf16>
      tpu.vector_store %arg23[%c3_92, %c0_93, %c0_94], %177 {strides = array<i32>} : memref<4x64x32xbf16, #tpu.memory_space<vmem>>, vector<1x64x32xbf16>,
    } else {
    }
    %9 = arith.truncf %1 : vector<32x128xf32> to vector<32x128xbf16>
    %c0_7 = arith.constant 0 : index
    %c0_8 = arith.constant 0 : index
    %10 = vector.load %arg5[%c0_7, %c0_8] : memref<128x128xbf16, #tpu.memory_space<vmem>>, vector<128x128xbf16>
    %cst_9 = arith.constant dense<0.000000e+00> : vector<32x128xf32>
    %11 = tpu.matmul %9, %10, %cst_9 {dimension_numbers = #tpu.dot_dimension_numbers<[1], [0], [0], [1], [0, 0, 1, 1], [], []>} : vector<32x128xbf16>, vector<128x128xbf16>, vector<32x128xf32> -> vector<32x128xf32>
    %c0_10 = arith.constant 0 : index
    %c0_11 = arith.constant 0 : index
    %12 = vector.load %arg6[%c0_10, %c0_11] : memref<1x128xf32, #tpu.memory_space<vmem>>, vector<1x128xf32>
    %13 = vector.broadcast %12 : vector<1x128xf32> to vector<32x128xf32>
    %14 = arith.addf %11, %13 : vector<32x128xf32>
    %15 = vector.broadcast %5 : f32 to vector<32x128xf32>
    %16 = arith.mulf %14, %15 : vector<32x128xf32>
    %17 = arith.truncf %16 : vector<32x128xf32> to vector<32x128xbf16>
    %18 = vector.extract_strided_slice %17 {offsets = [0, 0], sizes = [32, 32], strides = [1, 1]} : vector<32x128xbf16> to vector<32x32xbf16>
    %19 = vector.extract_strided_slice %17 {offsets = [0, 32], sizes = [32, 32], strides = [1, 1]} : vector<32x128xbf16> to vector<32x32xbf16>
    %20 = vector.extract_strided_slice %17 {offsets = [0, 64], sizes = [32, 32], strides = [1, 1]} : vector<32x128xbf16> to vector<32x32xbf16>
    %21 = vector.extract_strided_slice %17 {offsets = [0, 96], sizes = [32, 32], strides = [1, 1]} : vector<32x128xbf16> to vector<32x32xbf16>
    %22 = vector.shape_cast %18 : vector<32x32xbf16> to vector<1x32x32xbf16>
    %23 = vector.shape_cast %19 : vector<32x32xbf16> to vector<1x32x32xbf16>
    %24 = vector.shape_cast %20 : vector<32x32xbf16> to vector<1x32x32xbf16>
    %25 = vector.shape_cast %21 : vector<32x32xbf16> to vector<1x32x32xbf16>
    %26 = tpu.concatenate %22, %23, %24, %25 in 0 : vector<1x32x32xbf16>, vector<1x32x32xbf16>, vector<1x32x32xbf16>, vector<1x32x32xbf16> -> vector<4x32x32xbf16>
    %27 = arith.extf %3 : vector<32x64xbf16> to vector<32x64xf32>
    %cst_12 = arith.constant 1.000000e+00 : f32
    %28 = vector.broadcast %cst_12 : f32 to vector<32x64xf32>
    %29 = arith.subf %27, %28 : vector<32x64xf32>
    %cst_13 = arith.constant 1.000000e+09 : f32
    %30 = vector.broadcast %cst_13 : f32 to vector<32x64xf32>
    %31 = arith.mulf %29, %30 : vector<32x64xf32>
    %c0_14 = arith.constant 0 : index
    %c0_15 = arith.constant 0 : index
    %c0_16 = arith.constant 0 : index
    %32 = vector.load %arg22[%c0_14, %c0_15, %c0_16] : memref<4x64x32xbf16, #tpu.memory_space<vmem>>, vector<4x64x32xbf16>
    "tpu.trace_start"() <{level = 10 : i32, message = "hqd,hkd->hqk"}> : () -> ()
    %cst_17 = arith.constant dense<0.000000e+00> : vector<4x32x64xf32>
    %33 = tpu.matmul %26, %32, %cst_17 {dimension_numbers = #tpu.dot_dimension_numbers<[2], [2], [1], [1], [0, 0, 0, 1, 1, 1], [0], [0]>} : vector<4x32x32xbf16>, vector<4x64x32xbf16>, vector<4x32x64xf32> -> vector<4x32x64xf32>
    "tpu.trace_stop"() : () -> ()
    %34 = vector.shape_cast %31 : vector<32x64xf32> to vector<1x32x64xf32>
    %35 = vector.broadcast %34 : vector<1x32x64xf32> to vector<4x32x64xf32>
    %36 = arith.addf %33, %35 : vector<4x32x64xf32>
    %cst_18 = arith.constant dense<0xFF800000> : vector<4x32xf32>
    %37 = vector.multi_reduction <maximumf>, %36, %cst_18 [2] : vector<4x32x64xf32> to vector<4x32xf32>
    %38 = vector.shape_cast %37 : vector<4x32xf32> to vector<4x32x1xf32>
    %39 = vector.broadcast %38 : vector<4x32x1xf32> to vector<4x32x64xf32>
    %40 = arith.subf %36, %39 : vector<4x32x64xf32>
    %41 = math.exp %40 : vector<4x32x64xf32>
    %cst_19 = arith.constant dense<0.000000e+00> : vector<4x32xf32>
    %42 = vector.multi_reduction <add>, %41, %cst_19 [2] : vector<4x32x64xf32> to vector<4x32xf32>
    %43 = vector.shape_cast %42 : vector<4x32xf32> to vector<4x32x1xf32>
    %44 = arith.truncf %41 : vector<4x32x64xf32> to vector<4x32x64xbf16>
    %c0_20 = arith.constant 0 : index
    %c0_21 = arith.constant 0 : index
    %c0_22 = arith.constant 0 : index
    %45 = vector.load %arg23[%c0_20, %c0_21, %c0_22] : memref<4x64x32xbf16, #tpu.memory_space<vmem>>, vector<4x64x32xbf16>
    "tpu.trace_start"() <{level = 10 : i32, message = "hqk,hkd->hqd"}> : () -> ()
    %cst_23 = arith.constant dense<0.000000e+00> : vector<4x32x32xf32>
    %46 = tpu.matmul %44, %45, %cst_23 {dimension_numbers = #tpu.dot_dimension_numbers<[2], [1], [1], [2], [0, 0, 0, 1, 1, 2], [0], [0]>} : vector<4x32x64xbf16>, vector<4x64x32xbf16>, vector<4x32x32xf32> -> vector<4x32x32xf32>
    "tpu.trace_stop"() : () -> ()
    %47 = tpu.reciprocal %43 {approx = true} : vector<4x32x1xf32> -> vector<4x32x1xf32>
    %48 = vector.broadcast %47 : vector<4x32x1xf32> to vector<4x32x32xf32>
    %49 = arith.mulf %46, %48 : vector<4x32x32xf32>
    %50 = vector.extract_strided_slice %49 {offsets = [0, 0, 0], sizes = [1, 32, 32], strides = [1, 1, 1]} : vector<4x32x32xf32> to vector<1x32x32xf32>
    %51 = vector.shape_cast %50 : vector<1x32x32xf32> to vector<32x32xf32>
    %52 = vector.extract_strided_slice %49 {offsets = [1, 0, 0], sizes = [1, 32, 32], strides = [1, 1, 1]} : vector<4x32x32xf32> to vector<1x32x32xf32>
    %53 = vector.shape_cast %52 : vector<1x32x32xf32> to vector<32x32xf32>
    %54 = vector.extract_strided_slice %49 {offsets = [2, 0, 0], sizes = [1, 32, 32], strides = [1, 1, 1]} : vector<4x32x32xf32> to vector<1x32x32xf32>
    %55 = vector.shape_cast %54 : vector<1x32x32xf32> to vector<32x32xf32>
    %56 = vector.extract_strided_slice %49 {offsets = [3, 0, 0], sizes = [1, 32, 32], strides = [1, 1, 1]} : vector<4x32x32xf32> to vector<1x32x32xf32>
    %57 = vector.shape_cast %56 : vector<1x32x32xf32> to vector<32x32xf32>
    %58 = tpu.concatenate %51, %53, %55, %57 in 1 : vector<32x32xf32>, vector<32x32xf32>, vector<32x32xf32>, vector<32x32xf32> -> vector<32x128xf32>
    %59 = arith.truncf %58 : vector<32x128xf32> to vector<32x128xbf16>
    %c0_24 = arith.constant 0 : index
    %c0_25 = arith.constant 0 : index
    %60 = vector.load %arg11[%c0_24, %c0_25] : memref<128x128xbf16, #tpu.memory_space<vmem>>, vector<128x128xbf16>
    %cst_26 = arith.constant dense<0.000000e+00> : vector<32x128xf32>
    %61 = tpu.matmul %59, %60, %cst_26 {dimension_numbers = #tpu.dot_dimension_numbers<[1], [0], [0], [1], [0, 0, 1, 1], [], []>} : vector<32x128xbf16>, vector<128x128xbf16>, vector<32x128xf32> -> vector<32x128xf32>
    %c0_27 = arith.constant 0 : index
    %c0_28 = arith.constant 0 : index
    %62 = vector.load %arg12[%c0_27, %c0_28] : memref<1x128xf32, #tpu.memory_space<vmem>>, vector<1x128xf32>
    %63 = vector.broadcast %62 : vector<1x128xf32> to vector<32x128xf32>
    %64 = arith.addf %61, %63 : vector<32x128xf32>
    %65 = arith.addf %1, %64 : vector<32x128xf32>
    %cst_29 = arith.constant dense<0.000000e+00> : vector<32xf32>
    %66 = vector.multi_reduction <add>, %65, %cst_29 [1] : vector<32x128xf32> to vector<32xf32>
    %67 = vector.shape_cast %66 : vector<32xf32> to vector<32x1xf32>
    %cst_30 = arith.constant 1.280000e+02 : f32
    %68 = vector.broadcast %cst_30 : f32 to vector<32x1xf32>
    %69 = arith.divf %67, %68 : vector<32x1xf32>
    %70 = arith.mulf %65, %65 : vector<32x128xf32>
    %cst_31 = arith.constant dense<0.000000e+00> : vector<32xf32>
    %71 = vector.multi_reduction <add>, %70, %cst_31 [1] : vector<32x128xf32> to vector<32xf32>
    %72 = vector.shape_cast %71 : vector<32xf32> to vector<32x1xf32>
    %cst_32 = arith.constant 1.280000e+02 : f32
    %73 = vector.broadcast %cst_32 : f32 to vector<32x1xf32>
    %74 = arith.divf %72, %73 : vector<32x1xf32>
    %75 = vector.broadcast %69 : vector<32x1xf32> to vector<32x128xf32>
    %76 = arith.subf %65, %75 : vector<32x128xf32>
    %77 = arith.mulf %69, %69 : vector<32x1xf32>
    %78 = arith.subf %74, %77 : vector<32x1xf32>
    %cst_33 = arith.constant 9.99999997E-7 : f32
    %79 = vector.broadcast %cst_33 : f32 to vector<32x1xf32>
    %80 = arith.addf %78, %79 : vector<32x1xf32>
    %81 = math.rsqrt %80 : vector<32x1xf32>
    %82 = vector.broadcast %81 : vector<32x1xf32> to vector<32x128xf32>
    %83 = arith.mulf %76, %82 : vector<32x128xf32>
    %c0_34 = arith.constant 0 : index
    %c0_35 = arith.constant 0 : index
    %84 = vector.load %arg13[%c0_34, %c0_35] : memref<1x128xf32, #tpu.memory_space<vmem>>, vector<1x128xf32>
    %85 = vector.broadcast %84 : vector<1x128xf32> to vector<32x128xf32>
    %86 = arith.mulf %83, %85 : vector<32x128xf32>
    %c0_36 = arith.constant 0 : index
    %c0_37 = arith.constant 0 : index
    %87 = vector.load %arg14[%c0_36, %c0_37] : memref<1x128xf32, #tpu.memory_space<vmem>>, vector<1x128xf32>
    %88 = vector.broadcast %87 : vector<1x128xf32> to vector<32x128xf32>
    %89 = arith.addf %86, %88 : vector<32x128xf32>
    %90 = arith.truncf %89 : vector<32x128xf32> to vector<32x128xbf16>
    %c0_38 = arith.constant 0 : index
    %c0_39 = arith.constant 0 : index
    %91 = vector.load %arg15[%c0_38, %c0_39] : memref<128x256xbf16, #tpu.memory_space<vmem>>, vector<128x256xbf16>
    %cst_40 = arith.constant dense<0.000000e+00> : vector<32x256xf32>
    %92 = tpu.matmul %90, %91, %cst_40 {dimension_numbers = #tpu.dot_dimension_numbers<[1], [0], [0], [1], [0, 0, 1, 1], [], []>} : vector<32x128xbf16>, vector<128x256xbf16>, vector<32x256xf32> -> vector<32x256xf32>
    %c0_41 = arith.constant 0 : index
    %c0_42 = arith.constant 0 : index
    %93 = vector.load %arg16[%c0_41, %c0_42] : memref<1x256xf32, #tpu.memory_space<vmem>>, vector<1x256xf32>
    %94 = vector.broadcast %93 : vector<1x256xf32> to vector<32x256xf32>
    %95 = arith.addf %92, %94 : vector<32x256xf32>
    %cst_43 = arith.constant 0.000000e+00 : f32
    %96 = vector.broadcast %cst_43 : f32 to vector<32x256xf32>
    %97 = arith.maximumf %95, %96 : vector<32x256xf32>
    %98 = arith.truncf %97 : vector<32x256xf32> to vector<32x256xbf16>
    %c0_44 = arith.constant 0 : index
    %c0_45 = arith.constant 0 : index
    %99 = vector.load %arg17[%c0_44, %c0_45] : memref<256x128xbf16, #tpu.memory_space<vmem>>, vector<256x128xbf16>
    %cst_46 = arith.constant dense<0.000000e+00> : vector<32x128xf32>
    %100 = tpu.matmul %98, %99, %cst_46 {dimension_numbers = #tpu.dot_dimension_numbers<[1], [0], [0], [1], [0, 0, 1, 1], [], []>} : vector<32x256xbf16>, vector<256x128xbf16>, vector<32x128xf32> -> vector<32x128xf32>
    %c0_47 = arith.constant 0 : index
    %c0_48 = arith.constant 0 : index
    %101 = vector.load %arg18[%c0_47, %c0_48] : memref<1x128xf32, #tpu.memory_space<vmem>>, vector<1x128xf32>
    %102 = vector.broadcast %101 : vector<1x128xf32> to vector<32x128xf32>
    %103 = arith.addf %100, %102 : vector<32x128xf32>
    %104 = arith.addf %89, %103 : vector<32x128xf32>
    %cst_49 = arith.constant dense<0.000000e+00> : vector<32xf32>
    %105 = vector.multi_reduction <add>, %104, %cst_49 [1] : vector<32x128xf32> to vector<32xf32>
    %106 = vector.shape_cast %105 : vector<32xf32> to vector<32x1xf32>
    %cst_50 = arith.constant 1.280000e+02 : f32
    %107 = vector.broadcast %cst_50 : f32 to vector<32x1xf32>
    %108 = arith.divf %106, %107 : vector<32x1xf32>
    %109 = arith.mulf %104, %104 : vector<32x128xf32>
    %cst_51 = arith.constant dense<0.000000e+00> : vector<32xf32>
    %110 = vector.multi_reduction <add>, %109, %cst_51 [1] : vector<32x128xf32> to vector<32xf32>
    %111 = vector.shape_cast %110 : vector<32xf32> to vector<32x1xf32>
    %cst_52 = arith.constant 1.280000e+02 : f32
    %112 = vector.broadcast %cst_52 : f32 to vector<32x1xf32>
    %113 = arith.divf %111, %112 : vector<32x1xf32>
    %114 = vector.broadcast %108 : vector<32x1xf32> to vector<32x128xf32>
    %115 = arith.subf %104, %114 : vector<32x128xf32>
    %116 = arith.mulf %108, %108 : vector<32x1xf32>
    %117 = arith.subf %113, %116 : vector<32x1xf32>
    %cst_53 = arith.constant 9.99999997E-7 : f32
    %118 = vector.broadcast %cst_53 : f32 to vector<32x1xf32>
    %119 = arith.addf %117, %118 : vector<32x1xf32>
    %120 = math.rsqrt %119 : vector<32x1xf32>
    %121 = vector.broadcast %120 : vector<32x1xf32> to vector<32x128xf32>
    %122 = arith.mulf %115, %121 : vector<32x128xf32>
    %c0_54 = arith.constant 0 : index
    %c0_55 = arith.constant 0 : index
    %123 = vector.load %arg19[%c0_54, %c0_55] : memref<1x128xf32, #tpu.memory_space<vmem>>, vector<1x128xf32>
    %124 = vector.broadcast %123 : vector<1x128xf32> to vector<32x128xf32>
    %125 = arith.mulf %122, %124 : vector<32x128xf32>
    %c0_56 = arith.constant 0 : index
    %c0_57 = arith.constant 0 : index
    %126 = vector.load %arg20[%c0_56, %c0_57] : memref<1x128xf32, #tpu.memory_space<vmem>>, vector<1x128xf32>
    %127 = vector.broadcast %126 : vector<1x128xf32> to vector<32x128xf32>
    %128 = arith.addf %125, %127 : vector<32x128xf32>
    %c0_58 = arith.constant 0 : index
    %c0_59 = arith.constant 0 : index
    %c0_60 = arith.constant 0 : index
    %129 = vector.load %arg21[%c0_58, %c0_59, %c0_60] : memref<1x32x128xf32, #tpu.memory_space<vmem>>, vector<1x32x128xf32>
    %130 = vector.shape_cast %129 : vector<1x32x128xf32> to vector<32x128xf32>
    %131 = vector.shape_cast %128 : vector<32x128xf32> to vector<1x32x128xf32>
    tpu.vector_store %arg21[%c0_58, %c0_59, %c0_60], %131 {strides = array<i32>} : memref<1x32x128xf32, #tpu.memory_space<vmem>>, vector<1x32x128xf32>,
    return
  }
  func.func @transform_0(%arg0: i32, %arg1: i32) -> (i32, i32, i32) {
    %c0_i32 = arith.constant 0 : i32
    %c0_i32_0 = arith.constant 0 : i32
    return %arg0, %arg1, %c0_i32 : i32, i32, i32
  }
  func.func @transform_1(%arg0: i32, %arg1: i32) -> (i32, i32, i32) {
    %c0_i32 = arith.constant 0 : i32
    %c0_i32_0 = arith.constant 0 : i32
    %c0_i32_1 = arith.constant 0 : i32
    return %arg0, %c0_i32, %c0_i32_0 : i32, i32, i32
  }
  func.func @transform_2(%arg0: i32, %arg1: i32) -> (i32, i32, i32) {
    %c0_i32 = arith.constant 0 : i32
    %c0_i32_0 = arith.constant 0 : i32
    return %arg0, %arg1, %c0_i32 : i32, i32, i32
  }
  func.func @transform_3(%arg0: i32, %arg1: i32) -> (i32, i32) {
    %c0_i32 = arith.constant 0 : i32
    %c0_i32_0 = arith.constant 0 : i32
    %c0_i32_1 = arith.constant 0 : i32
    return %c0_i32, %c0_i32_0 : i32, i32
  }
  func.func @transform_4(%arg0: i32, %arg1: i32) -> (i32, i32) {
    %c0_i32 = arith.constant 0 : i32
    %c0_i32_0 = arith.constant 0 : i32
    %c0_i32_1 = arith.constant 0 : i32
    return %c0_i32, %c0_i32_0 : i32, i32
  }
  func.func @transform_5(%arg0: i32, %arg1: i32) -> (i32, i32) {
    %c0_i32 = arith.constant 0 : i32
    %c0_i32_0 = arith.constant 0 : i32
    %c0_i32_1 = arith.constant 0 : i32
    return %c0_i32, %c0_i32_0 : i32, i32
  }
  func.func @transform_6(%arg0: i32, %arg1: i32) -> (i32, i32) {
    %c0_i32 = arith.constant 0 : i32
    %c0_i32_0 = arith.constant 0 : i32
    %c0_i32_1 = arith.constant 0 : i32
    return %c0_i32, %c0_i32_0 : i32, i32
  }
  func.func @transform_7(%arg0: i32, %arg1: i32) -> (i32, i32) {
    %c0_i32 = arith.constant 0 : i32
    %c0_i32_0 = arith.constant 0 : i32
    %c0_i32_1 = arith.constant 0 : i32
    return %c0_i32, %c0_i32_0 : i32, i32
  }
  func.func @transform_8(%arg0: i32, %arg1: i32) -> (i32, i32) {
    %c0_i32 = arith.constant 0 : i32
    %c0_i32_0 = arith.constant 0 : i32
    %c0_i32_1 = arith.constant 0 : i32
    return %c0_i32, %c0_i32_0 : i32, i32
  }
  func.func @transform_9(%arg0: i32, %arg1: i32) -> (i32, i32) {
    %c0_i32 = arith.constant 0 : i32
    %c0_i32_0 = arith.constant 0 : i32
    %c0_i32_1 = arith.constant 0 : i32
    return %c0_i32, %c0_i32_0 : i32, i32
  }
  func.func @transform_10(%arg0: i32, %arg1: i32) -> (i32, i32) {
    %c0_i32 = arith.constant 0 : i32
    %c0_i32_0 = arith.constant 0 : i32
    %c0_i32_1 = arith.constant 0 : i32
    return %c0_i32, %c0_i32_0 : i32, i32
  }
  func.func @transform_11(%arg0: i32, %arg1: i32) -> (i32, i32) {
    %c0_i32 = arith.constant 0 : i32
    %c0_i32_0 = arith.constant 0 : i32
    %c0_i32_1 = arith.constant 0 : i32
    return %c0_i32, %c0_i32_0 : i32, i32
  }
  func.func @transform_12(%arg0: i32, %arg1: i32) -> (i32, i32) {
    %c0_i32 = arith.constant 0 : i32
    %c0_i32_0 = arith.constant 0 : i32
    %c0_i32_1 = arith.constant 0 : i32
    return %c0_i32, %c0_i32_0 : i32, i32
  }
  func.func @transform_13(%arg0: i32, %arg1: i32) -> (i32, i32) {
    %c0_i32 = arith.constant 0 : i32
    %c0_i32_0 = arith.constant 0 : i32
    %c0_i32_1 = arith.constant 0 : i32
    return %c0_i32, %c0_i32_0 : i32, i32
  }
  func.func @transform_14(%arg0: i32, %arg1: i32) -> (i32, i32) {
    %c0_i32 = arith.constant 0 : i32
    %c0_i32_0 = arith.constant 0 : i32
    %c0_i32_1 = arith.constant 0 : i32
    return %c0_i32, %c0_i32_0 : i32, i32
  }
  func.func @transform_15(%arg0: i32, %arg1: i32) -> (i32, i32) {
    %c0_i32 = arith.constant 0 : i32
    %c0_i32_0 = arith.constant 0 : i32
    %c0_i32_1 = arith.constant 0 : i32
    return %c0_i32, %c0_i32_0 : i32, i32
  }
  func.func @transform_16(%arg0: i32, %arg1: i32) -> (i32, i32) {
    %c0_i32 = arith.constant 0 : i32
    %c0_i32_0 = arith.constant 0 : i32
    %c0_i32_1 = arith.constant 0 : i32
    return %c0_i32, %c0_i32_0 : i32, i32
  }
  func.func @transform_17(%arg0: i32, %arg1: i32) -> (i32, i32) {
    %c0_i32 = arith.constant 0 : i32
    %c0_i32_0 = arith.constant 0 : i32
    %c0_i32_1 = arith.constant 0 : i32
    return %c0_i32, %c0_i32_0 : i32, i32
  }
  func.func @transform_18(%arg0: i32, %arg1: i32) -> (i32, i32) {
    %c0_i32 = arith.constant 0 : i32
    %c0_i32_0 = arith.constant 0 : i32
    %c0_i32_1 = arith.constant 0 : i32
    return %c0_i32, %c0_i32_0 : i32, i32
  }
  func.func @transform_19(%arg0: i32, %arg1: i32) -> (i32, i32, i32) {
    %c0_i32 = arith.constant 0 : i32
    %c0_i32_0 = arith.constant 0 : i32
    return %arg0, %arg1, %c0_i32 : i32, i32, i32
  }
}

module attributes {stable_mosaic.version = 11 : i64} {
  func.func @_encoder_block_kernel(%arg0: i32, %arg1: i32, %arg2: memref<1x32x128xf32, #tpu.memory_space<vmem>>, %arg3: memref<1x64x128xbf16, #tpu.memory_space<vmem>>, %arg4: memref<1x32x64xbf16, #tpu.memory_space<vmem>>, %arg5: memref<128x128xbf16, #tpu.memory_space<vmem>>, %arg6: memref<1x128xf32, #tpu.memory_space<vmem>>, %arg7: memref<128x128xbf16, #tpu.memory_space<vmem>>, %arg8: memref<1x128xf32, #tpu.memory_space<vmem>>, %arg9: memref<128x128xbf16, #tpu.memory_space<vmem>>, %arg10: memref<1x128xf32, #tpu.memory_space<vmem>>, %arg11: memref<128x128xbf16, #tpu.memory_space<vmem>>, %arg12: memref<1x128xf32, #tpu.memory_space<vmem>>, %arg13: memref<1x128xf32, #tpu.memory_space<vmem>>, %arg14: memref<1x128xf32, #tpu.memory_space<vmem>>, %arg15: memref<128x256xbf16, #tpu.memory_space<vmem>>, %arg16: memref<1x256xf32, #tpu.memory_space<vmem>>, %arg17: memref<256x128xbf16, #tpu.memory_space<vmem>>, %arg18: memref<1x128xf32, #tpu.memory_space<vmem>>, %arg19: memref<1x128xf32, #tpu.memory_space<vmem>>, %arg20: memref<1x128xf32, #tpu.memory_space<vmem>>, %arg21: memref<1x32x128xf32, #tpu.memory_space<vmem>>, %arg22: memref<4x64x32xbf16, #tpu.memory_space<vmem>>, %arg23: memref<4x64x32xbf16, #tpu.memory_space<vmem>>) attributes {dimension_semantics = [#tpu.dimension_semantics<parallel>, #tpu.dimension_semantics<arbitrary>], iteration_bounds = array<i64: 2, 2>, scalar_prefetch = 0 : i64, scratch_operands = 2 : i64, tpu.core_type = #tpu.core_type<tc>, window_params = [{transform_indices = @transform_0, window_bounds = array<i64: 1, 32, 128>}, {transform_indices = @transform_1, window_bounds = array<i64: 1, 64, 128>}, {transform_indices = @transform_2, window_bounds = array<i64: 1, 32, 64>}, {pipeline_mode = #tpu.pipeline_mode<synchronous>, transform_indices = @transform_3, window_bounds = array<i64: 128, 128>}, {pipeline_mode = #tpu.pipeline_mode<synchronous>, transform_indices = @transform_4, window_bounds = array<i64: 1, 128>}, {pipeline_mode = #tpu.pipeline_mode<synchronous>, transform_indices = @transform_5, window_bounds = array<i64: 128, 128>}, {pipeline_mode = #tpu.pipeline_mode<synchronous>, transform_indices = @transform_6, window_bounds = array<i64: 1, 128>}, {pipeline_mode = #tpu.pipeline_mode<synchronous>, transform_indices = @transform_7, window_bounds = array<i64: 128, 128>}, {pipeline_mode = #tpu.pipeline_mode<synchronous>, transform_indices = @transform_8, window_bounds = array<i64: 1, 128>}, {pipeline_mode = #tpu.pipeline_mode<synchronous>, transform_indices = @transform_9, window_bounds = array<i64: 128, 128>}, {pipeline_mode = #tpu.pipeline_mode<synchronous>, transform_indices = @transform_10, window_bounds = array<i64: 1, 128>}, {pipeline_mode = #tpu.pipeline_mode<synchronous>, transform_indices = @transform_11, window_bounds = array<i64: 1, 128>}, {pipeline_mode = #tpu.pipeline_mode<synchronous>, transform_indices = @transform_12, window_bounds = array<i64: 1, 128>}, {pipeline_mode = #tpu.pipeline_mode<synchronous>, transform_indices = @transform_13, window_bounds = array<i64: 128, 256>}, {pipeline_mode = #tpu.pipeline_mode<synchronous>, transform_indices = @transform_14, window_bounds = array<i64: 1, 256>}, {pipeline_mode = #tpu.pipeline_mode<synchronous>, transform_indices = @transform_15, window_bounds = array<i64: 256, 128>}, {pipeline_mode = #tpu.pipeline_mode<synchronous>, transform_indices = @transform_16, window_bounds = array<i64: 1, 128>}, {pipeline_mode = #tpu.pipeline_mode<synchronous>, transform_indices = @transform_17, window_bounds = array<i64: 1, 128>}, {pipeline_mode = #tpu.pipeline_mode<synchronous>, transform_indices = @transform_18, window_bounds = array<i64: 1, 128>}, {transform_indices = @transform_19, window_bounds = array<i64: 1, 32, 128>}]} {
    %c0 = arith.constant 0 : index
    %c0_0 = arith.constant 0 : index
    %c0_1 = arith.constant 0 : index
    %0 = vector.load %arg2[%c0, %c0_0, %c0_1] : memref<1x32x128xf32, #tpu.memory_space<vmem>>, vector<1x32x128xf32>
    %1 = vector.shape_cast %0 : vector<1x32x128xf32> to vector<32x128xf32>
    %c0_2 = arith.constant 0 : index
    %c0_3 = arith.constant 0 : index
    %c0_4 = arith.constant 0 : index
    %2 = vector.load %arg4[%c0_2, %c0_3, %c0_4] : memref<1x32x64xbf16, #tpu.memory_space<vmem>>, vector<1x32x64xbf16>
    %3 = vector.shape_cast %2 : vector<1x32x64xbf16> to vector<32x64xbf16>
    %cst = arith.constant 3.200000e+01 : f32
    %4 = math.sqrt %cst : f32
    %cst_5 = arith.constant 1.000000e+00 : f32
    %5 = arith.divf %cst_5, %4 : f32
    %c0_i32 = arith.constant 0 : i32
    %6 = arith.cmpi eq, %arg1, %c0_i32 : i32
    %7 = arith.extui %6 : i1 to i32
    %c0_i32_6 = arith.constant 0 : i32
    %8 = arith.cmpi ne, %7, %c0_i32_6 : i32
    scf.if %8 {
      %c0_61 = arith.constant 0 : index
      %c0_62 = arith.constant 0 : index
      %c0_63 = arith.constant 0 : index
      %132 = vector.load %arg3[%c0_61, %c0_62, %c0_63] : memref<1x64x128xbf16, #tpu.memory_space<vmem>>, vector<1x64x128xbf16>
      %133 = vector.shape_cast %132 : vector<1x64x128xbf16> to vector<64x128xbf16>
      %c0_64 = arith.constant 0 : index
      %c0_65 = arith.constant 0 : index
      %134 = vector.load %arg7[%c0_64, %c0_65] : memref<128x128xbf16, #tpu.memory_space<vmem>>, vector<128x128xbf16>
      %cst_66 = arith.constant dense<0.000000e+00> : vector<64x128xf32>
      %135 = tpu.matmul %133, %134, %cst_66 {dimension_numbers = #tpu.dot_dimension_numbers<[1], [0], [0], [1], [0, 0, 1, 1], [], []>} : vector<64x128xbf16>, vector<128x128xbf16>, vector<64x128xf32> -> vector<64x128xf32>
      %c0_67 = arith.constant 0 : index
      %c0_68 = arith.constant 0 : index
      %136 = vector.load %arg8[%c0_67, %c0_68] : memref<1x128xf32, #tpu.memory_space<vmem>>, vector<1x128xf32>
      %137 = vector.broadcast %136 : vector<1x128xf32> to vector<64x128xf32>
      %138 = arith.addf %135, %137 : vector<64x128xf32>
      %c0_69 = arith.constant 0 : index
      %c0_70 = arith.constant 0 : index
      %139 = vector.load %arg9[%c0_69, %c0_70] : memref<128x128xbf16, #tpu.memory_space<vmem>>, vector<128x128xbf16>
      %cst_71 = arith.constant dense<0.000000e+00> : vector<64x128xf32>
      %140 = tpu.matmul %133, %139, %cst_71 {dimension_numbers = #tpu.dot_dimension_numbers<[1], [0], [0], [1], [0, 0, 1, 1], [], []>} : vector<64x128xbf16>, vector<128x128xbf16>, vector<64x128xf32> -> vector<64x128xf32>
      %c0_72 = arith.constant 0 : index
      %c0_73 = arith.constant 0 : index
      %141 = vector.load %arg10[%c0_72, %c0_73] : memref<1x128xf32, #tpu.memory_space<vmem>>, vector<1x128xf32>
      %142 = vector.broadcast %141 : vector<1x128xf32> to vector<64x128xf32>
      %143 = arith.addf %140, %142 : vector<64x128xf32>
      %144 = arith.truncf %138 : vector<64x128xf32> to vector<64x128xbf16>
      %145 = arith.truncf %143 : vector<64x128xf32> to vector<64x128xbf16>
      %146 = vector.extract_strided_slice %144 {offsets = [0, 0], sizes = [64, 32], strides = [1, 1]} : vector<64x128xbf16> to vector<64x32xbf16>
      %c0_74 = arith.constant 0 : index
      %c0_75 = arith.constant 0 : index
      %c0_76 = arith.constant 0 : index
      %147 = vector.load %arg22[%c0_74, %c0_75, %c0_76] : memref<4x64x32xbf16, #tpu.memory_space<vmem>>, vector<1x64x32xbf16>
      %148 = vector.shape_cast %147 : vector<1x64x32xbf16> to vector<64x32xbf16>
      %149 = vector.shape_cast %146 : vector<64x32xbf16> to vector<1x64x32xbf16>
      tpu.vector_store %arg22[%c0_74, %c0_75, %c0_76], %149 {strides = array<i32>} : memref<4x64x32xbf16, #tpu.memory_space<vmem>>, vector<1x64x32xbf16>,
      %150 = vector.extract_strided_slice %145 {offsets = [0, 0], sizes = [64, 32], strides = [1, 1]} : vector<64x128xbf16> to vector<64x32xbf16>
      %c0_77 = arith.constant 0 : index
      %c0_78 = arith.constant 0 : index
      %c0_79 = arith.constant 0 : index
      %151 = vector.load %arg23[%c0_77, %c0_78, %c0_79] : memref<4x64x32xbf16, #tpu.memory_space<vmem>>, vector<1x64x32xbf16>
      %152 = vector.shape_cast %151 : vector<1x64x32xbf16> to vector<64x32xbf16>
      %153 = vector.shape_cast %150 : vector<64x32xbf16> to vector<1x64x32xbf16>
      tpu.vector_store %arg23[%c0_77, %c0_78, %c0_79], %153 {strides = array<i32>} : memref<4x64x32xbf16, #tpu.memory_space<vmem>>, vector<1x64x32xbf16>,
      %154 = vector.extract_strided_slice %144 {offsets = [0, 32], sizes = [64, 32], strides = [1, 1]} : vector<64x128xbf16> to vector<64x32xbf16>
      %c1 = arith.constant 1 : index
      %c0_80 = arith.constant 0 : index
      %c0_81 = arith.constant 0 : index
      %155 = vector.load %arg22[%c1, %c0_80, %c0_81] : memref<4x64x32xbf16, #tpu.memory_space<vmem>>, vector<1x64x32xbf16>
      %156 = vector.shape_cast %155 : vector<1x64x32xbf16> to vector<64x32xbf16>
      %157 = vector.shape_cast %154 : vector<64x32xbf16> to vector<1x64x32xbf16>
      tpu.vector_store %arg22[%c1, %c0_80, %c0_81], %157 {strides = array<i32>} : memref<4x64x32xbf16, #tpu.memory_space<vmem>>, vector<1x64x32xbf16>,
      %158 = vector.extract_strided_slice %145 {offsets = [0, 32], sizes = [64, 32], strides = [1, 1]} : vector<64x128xbf16> to vector<64x32xbf16>
      %c1_82 = arith.constant 1 : index
      %c0_83 = arith.constant 0 : index
      %c0_84 = arith.constant 0 : index
      %159 = vector.load %arg23[%c1_82, %c0_83, %c0_84] : memref<4x64x32xbf16, #tpu.memory_space<vmem>>, vector<1x64x32xbf16>
      %160 = vector.shape_cast %159 : vector<1x64x32xbf16> to vector<64x32xbf16>
      %161 = vector.shape_cast %158 : vector<64x32xbf16> to vector<1x64x32xbf16>
      tpu.vector_store %arg23[%c1_82, %c0_83, %c0_84], %161 {strides = array<i32>} : memref<4x64x32xbf16, #tpu.memory_space<vmem>>, vector<1x64x32xbf16>,
      %162 = vector.extract_strided_slice %144 {offsets = [0, 64], sizes = [64, 32], strides = [1, 1]} : vector<64x128xbf16> to vector<64x32xbf16>
      %c2 = arith.constant 2 : index
      %c0_85 = arith.constant 0 : index
      %c0_86 = arith.constant 0 : index
      %163 = vector.load %arg22[%c2, %c0_85, %c0_86] : memref<4x64x32xbf16, #tpu.memory_space<vmem>>, vector<1x64x32xbf16>
      %164 = vector.shape_cast %163 : vector<1x64x32xbf16> to vector<64x32xbf16>
      %165 = vector.shape_cast %162 : vector<64x32xbf16> to vector<1x64x32xbf16>
      tpu.vector_store %arg22[%c2, %c0_85, %c0_86], %165 {strides = array<i32>} : memref<4x64x32xbf16, #tpu.memory_space<vmem>>, vector<1x64x32xbf16>,
      %166 = vector.extract_strided_slice %145 {offsets = [0, 64], sizes = [64, 32], strides = [1, 1]} : vector<64x128xbf16> to vector<64x32xbf16>
      %c2_87 = arith.constant 2 : index
      %c0_88 = arith.constant 0 : index
      %c0_89 = arith.constant 0 : index
      %167 = vector.load %arg23[%c2_87, %c0_88, %c0_89] : memref<4x64x32xbf16, #tpu.memory_space<vmem>>, vector<1x64x32xbf16>
      %168 = vector.shape_cast %167 : vector<1x64x32xbf16> to vector<64x32xbf16>
      %169 = vector.shape_cast %166 : vector<64x32xbf16> to vector<1x64x32xbf16>
      tpu.vector_store %arg23[%c2_87, %c0_88, %c0_89], %169 {strides = array<i32>} : memref<4x64x32xbf16, #tpu.memory_space<vmem>>, vector<1x64x32xbf16>,
      %170 = vector.extract_strided_slice %144 {offsets = [0, 96], sizes = [64, 32], strides = [1, 1]} : vector<64x128xbf16> to vector<64x32xbf16>
      %c3 = arith.constant 3 : index
      %c0_90 = arith.constant 0 : index
      %c0_91 = arith.constant 0 : index
      %171 = vector.load %arg22[%c3, %c0_90, %c0_91] : memref<4x64x32xbf16, #tpu.memory_space<vmem>>, vector<1x64x32xbf16>
      %172 = vector.shape_cast %171 : vector<1x64x32xbf16> to vector<64x32xbf16>
      %173 = vector.shape_cast %170 : vector<64x32xbf16> to vector<1x64x32xbf16>
      tpu.vector_store %arg22[%c3, %c0_90, %c0_91], %173 {strides = array<i32>} : memref<4x64x32xbf16, #tpu.memory_space<vmem>>, vector<1x64x32xbf16>,
      %174 = vector.extract_strided_slice %145 {offsets = [0, 96], sizes = [64, 32], strides = [1, 1]} : vector<64x128xbf16> to vector<64x32xbf16>
      %c3_92 = arith.constant 3 : index
      %c0_93 = arith.constant 0 : index
      %c0_94 = arith.constant 0 : index
      %175 = vector.load %arg23[%c3_92, %c0_93, %c0_94] : memref<4x64x32xbf16, #tpu.memory_space<vmem>>, vector<1x64x32xbf16>
      %176 = vector.shape_cast %175 : vector<1x64x32xbf16> to vector<64x32xbf16>
      %177 = vector.shape_cast %174 : vector<64x32xbf16> to vector<1x64x32xbf16>
      tpu.vector_store %arg23[%c3_92, %c0_93, %c0_94], %177 {strides = array<i32>} : memref<4x64x32xbf16, #tpu.memory_space<vmem>>, vector<1x64x32xbf16>,
    } else {
    }
    %9 = arith.truncf %1 : vector<32x128xf32> to vector<32x128xbf16>
    %c0_7 = arith.constant 0 : index
    %c0_8 = arith.constant 0 : index
    %10 = vector.load %arg5[%c0_7, %c0_8] : memref<128x128xbf16, #tpu.memory_space<vmem>>, vector<128x128xbf16>
    %cst_9 = arith.constant dense<0.000000e+00> : vector<32x128xf32>
    %11 = tpu.matmul %9, %10, %cst_9 {dimension_numbers = #tpu.dot_dimension_numbers<[1], [0], [0], [1], [0, 0, 1, 1], [], []>} : vector<32x128xbf16>, vector<128x128xbf16>, vector<32x128xf32> -> vector<32x128xf32>
    %c0_10 = arith.constant 0 : index
    %c0_11 = arith.constant 0 : index
    %12 = vector.load %arg6[%c0_10, %c0_11] : memref<1x128xf32, #tpu.memory_space<vmem>>, vector<1x128xf32>
    %13 = vector.broadcast %12 : vector<1x128xf32> to vector<32x128xf32>
    %14 = arith.addf %11, %13 : vector<32x128xf32>
    %15 = vector.broadcast %5 : f32 to vector<32x128xf32>
    %16 = arith.mulf %14, %15 : vector<32x128xf32>
    %17 = arith.truncf %16 : vector<32x128xf32> to vector<32x128xbf16>
    %18 = vector.extract_strided_slice %17 {offsets = [0, 0], sizes = [32, 32], strides = [1, 1]} : vector<32x128xbf16> to vector<32x32xbf16>
    %19 = vector.extract_strided_slice %17 {offsets = [0, 32], sizes = [32, 32], strides = [1, 1]} : vector<32x128xbf16> to vector<32x32xbf16>
    %20 = vector.extract_strided_slice %17 {offsets = [0, 64], sizes = [32, 32], strides = [1, 1]} : vector<32x128xbf16> to vector<32x32xbf16>
    %21 = vector.extract_strided_slice %17 {offsets = [0, 96], sizes = [32, 32], strides = [1, 1]} : vector<32x128xbf16> to vector<32x32xbf16>
    %22 = vector.shape_cast %18 : vector<32x32xbf16> to vector<1x32x32xbf16>
    %23 = vector.shape_cast %19 : vector<32x32xbf16> to vector<1x32x32xbf16>
    %24 = vector.shape_cast %20 : vector<32x32xbf16> to vector<1x32x32xbf16>
    %25 = vector.shape_cast %21 : vector<32x32xbf16> to vector<1x32x32xbf16>
    %26 = tpu.concatenate %22, %23, %24, %25 in 0 : vector<1x32x32xbf16>, vector<1x32x32xbf16>, vector<1x32x32xbf16>, vector<1x32x32xbf16> -> vector<4x32x32xbf16>
    %27 = arith.extf %3 : vector<32x64xbf16> to vector<32x64xf32>
    %cst_12 = arith.constant 1.000000e+00 : f32
    %28 = vector.broadcast %cst_12 : f32 to vector<32x64xf32>
    %29 = arith.subf %27, %28 : vector<32x64xf32>
    %cst_13 = arith.constant 1.000000e+09 : f32
    %30 = vector.broadcast %cst_13 : f32 to vector<32x64xf32>
    %31 = arith.mulf %29, %30 : vector<32x64xf32>
    %c0_14 = arith.constant 0 : index
    %c0_15 = arith.constant 0 : index
    %c0_16 = arith.constant 0 : index
    %32 = vector.load %arg22[%c0_14, %c0_15, %c0_16] : memref<4x64x32xbf16, #tpu.memory_space<vmem>>, vector<4x64x32xbf16>
    "tpu.trace_start"() <{level = 10 : i32, message = "hqd,hkd->hqk"}> : () -> ()
    %cst_17 = arith.constant dense<0.000000e+00> : vector<4x32x64xf32>
    %33 = tpu.matmul %26, %32, %cst_17 {dimension_numbers = #tpu.dot_dimension_numbers<[2], [2], [1], [1], [0, 0, 0, 1, 1, 1], [0], [0]>} : vector<4x32x32xbf16>, vector<4x64x32xbf16>, vector<4x32x64xf32> -> vector<4x32x64xf32>
    "tpu.trace_stop"() : () -> ()
    %34 = vector.shape_cast %31 : vector<32x64xf32> to vector<1x32x64xf32>
    %35 = vector.broadcast %34 : vector<1x32x64xf32> to vector<4x32x64xf32>
    %36 = arith.addf %33, %35 : vector<4x32x64xf32>
    %cst_18 = arith.constant dense<0xFF800000> : vector<4x32xf32>
    %37 = vector.multi_reduction <maximumf>, %36, %cst_18 [2] : vector<4x32x64xf32> to vector<4x32xf32>
    %38 = vector.shape_cast %37 : vector<4x32xf32> to vector<4x32x1xf32>
    %39 = vector.broadcast %38 : vector<4x32x1xf32> to vector<4x32x64xf32>
    %40 = arith.subf %36, %39 : vector<4x32x64xf32>
    %41 = math.exp %40 : vector<4x32x64xf32>
    %cst_19 = arith.constant dense<0.000000e+00> : vector<4x32xf32>
    %42 = vector.multi_reduction <add>, %41, %cst_19 [2] : vector<4x32x64xf32> to vector<4x32xf32>
    %43 = vector.shape_cast %42 : vector<4x32xf32> to vector<4x32x1xf32>
    %44 = arith.truncf %41 : vector<4x32x64xf32> to vector<4x32x64xbf16>
    %c0_20 = arith.constant 0 : index
    %c0_21 = arith.constant 0 : index
    %c0_22 = arith.constant 0 : index
    %45 = vector.load %arg23[%c0_20, %c0_21, %c0_22] : memref<4x64x32xbf16, #tpu.memory_space<vmem>>, vector<4x64x32xbf16>
    "tpu.trace_start"() <{level = 10 : i32, message = "hqk,hkd->hqd"}> : () -> ()
    %cst_23 = arith.constant dense<0.000000e+00> : vector<4x32x32xf32>
    %46 = tpu.matmul %44, %45, %cst_23 {dimension_numbers = #tpu.dot_dimension_numbers<[2], [1], [1], [2], [0, 0, 0, 1, 1, 2], [0], [0]>} : vector<4x32x64xbf16>, vector<4x64x32xbf16>, vector<4x32x32xf32> -> vector<4x32x32xf32>
    "tpu.trace_stop"() : () -> ()
    %47 = tpu.reciprocal %43 {approx = true} : vector<4x32x1xf32> -> vector<4x32x1xf32>
    %48 = vector.broadcast %47 : vector<4x32x1xf32> to vector<4x32x32xf32>
    %49 = arith.mulf %46, %48 : vector<4x32x32xf32>
    %50 = vector.extract_strided_slice %49 {offsets = [0, 0, 0], sizes = [1, 32, 32], strides = [1, 1, 1]} : vector<4x32x32xf32> to vector<1x32x32xf32>
    %51 = vector.shape_cast %50 : vector<1x32x32xf32> to vector<32x32xf32>
    %52 = vector.extract_strided_slice %49 {offsets = [1, 0, 0], sizes = [1, 32, 32], strides = [1, 1, 1]} : vector<4x32x32xf32> to vector<1x32x32xf32>
    %53 = vector.shape_cast %52 : vector<1x32x32xf32> to vector<32x32xf32>
    %54 = vector.extract_strided_slice %49 {offsets = [2, 0, 0], sizes = [1, 32, 32], strides = [1, 1, 1]} : vector<4x32x32xf32> to vector<1x32x32xf32>
    %55 = vector.shape_cast %54 : vector<1x32x32xf32> to vector<32x32xf32>
    %56 = vector.extract_strided_slice %49 {offsets = [3, 0, 0], sizes = [1, 32, 32], strides = [1, 1, 1]} : vector<4x32x32xf32> to vector<1x32x32xf32>
    %57 = vector.shape_cast %56 : vector<1x32x32xf32> to vector<32x32xf32>
    %58 = tpu.concatenate %51, %53, %55, %57 in 1 : vector<32x32xf32>, vector<32x32xf32>, vector<32x32xf32>, vector<32x32xf32> -> vector<32x128xf32>
    %59 = arith.truncf %58 : vector<32x128xf32> to vector<32x128xbf16>
    %c0_24 = arith.constant 0 : index
    %c0_25 = arith.constant 0 : index
    %60 = vector.load %arg11[%c0_24, %c0_25] : memref<128x128xbf16, #tpu.memory_space<vmem>>, vector<128x128xbf16>
    %cst_26 = arith.constant dense<0.000000e+00> : vector<32x128xf32>
    %61 = tpu.matmul %59, %60, %cst_26 {dimension_numbers = #tpu.dot_dimension_numbers<[1], [0], [0], [1], [0, 0, 1, 1], [], []>} : vector<32x128xbf16>, vector<128x128xbf16>, vector<32x128xf32> -> vector<32x128xf32>
    %c0_27 = arith.constant 0 : index
    %c0_28 = arith.constant 0 : index
    %62 = vector.load %arg12[%c0_27, %c0_28] : memref<1x128xf32, #tpu.memory_space<vmem>>, vector<1x128xf32>
    %63 = vector.broadcast %62 : vector<1x128xf32> to vector<32x128xf32>
    %64 = arith.addf %61, %63 : vector<32x128xf32>
    %65 = arith.addf %1, %64 : vector<32x128xf32>
    %cst_29 = arith.constant dense<0.000000e+00> : vector<32xf32>
    %66 = vector.multi_reduction <add>, %65, %cst_29 [1] : vector<32x128xf32> to vector<32xf32>
    %67 = vector.shape_cast %66 : vector<32xf32> to vector<32x1xf32>
    %cst_30 = arith.constant 1.280000e+02 : f32
    %68 = vector.broadcast %cst_30 : f32 to vector<32x1xf32>
    %69 = arith.divf %67, %68 : vector<32x1xf32>
    %70 = arith.mulf %65, %65 : vector<32x128xf32>
    %cst_31 = arith.constant dense<0.000000e+00> : vector<32xf32>
    %71 = vector.multi_reduction <add>, %70, %cst_31 [1] : vector<32x128xf32> to vector<32xf32>
    %72 = vector.shape_cast %71 : vector<32xf32> to vector<32x1xf32>
    %cst_32 = arith.constant 1.280000e+02 : f32
    %73 = vector.broadcast %cst_32 : f32 to vector<32x1xf32>
    %74 = arith.divf %72, %73 : vector<32x1xf32>
    %75 = vector.broadcast %69 : vector<32x1xf32> to vector<32x128xf32>
    %76 = arith.subf %65, %75 : vector<32x128xf32>
    %77 = arith.mulf %69, %69 : vector<32x1xf32>
    %78 = arith.subf %74, %77 : vector<32x1xf32>
    %cst_33 = arith.constant 9.99999997E-7 : f32
    %79 = vector.broadcast %cst_33 : f32 to vector<32x1xf32>
    %80 = arith.addf %78, %79 : vector<32x1xf32>
    %81 = math.rsqrt %80 : vector<32x1xf32>
    %82 = vector.broadcast %81 : vector<32x1xf32> to vector<32x128xf32>
    %83 = arith.mulf %76, %82 : vector<32x128xf32>
    %c0_34 = arith.constant 0 : index
    %c0_35 = arith.constant 0 : index
    %84 = vector.load %arg13[%c0_34, %c0_35] : memref<1x128xf32, #tpu.memory_space<vmem>>, vector<1x128xf32>
    %85 = vector.broadcast %84 : vector<1x128xf32> to vector<32x128xf32>
    %86 = arith.mulf %83, %85 : vector<32x128xf32>
    %c0_36 = arith.constant 0 : index
    %c0_37 = arith.constant 0 : index
    %87 = vector.load %arg14[%c0_36, %c0_37] : memref<1x128xf32, #tpu.memory_space<vmem>>, vector<1x128xf32>
    %88 = vector.broadcast %87 : vector<1x128xf32> to vector<32x128xf32>
    %89 = arith.addf %86, %88 : vector<32x128xf32>
    %90 = arith.truncf %89 : vector<32x128xf32> to vector<32x128xbf16>
    %c0_38 = arith.constant 0 : index
    %c0_39 = arith.constant 0 : index
    %91 = vector.load %arg15[%c0_38, %c0_39] : memref<128x256xbf16, #tpu.memory_space<vmem>>, vector<128x256xbf16>
    %cst_40 = arith.constant dense<0.000000e+00> : vector<32x256xf32>
    %92 = tpu.matmul %90, %91, %cst_40 {dimension_numbers = #tpu.dot_dimension_numbers<[1], [0], [0], [1], [0, 0, 1, 1], [], []>} : vector<32x128xbf16>, vector<128x256xbf16>, vector<32x256xf32> -> vector<32x256xf32>
    %c0_41 = arith.constant 0 : index
    %c0_42 = arith.constant 0 : index
    %93 = vector.load %arg16[%c0_41, %c0_42] : memref<1x256xf32, #tpu.memory_space<vmem>>, vector<1x256xf32>
    %94 = vector.broadcast %93 : vector<1x256xf32> to vector<32x256xf32>
    %95 = arith.addf %92, %94 : vector<32x256xf32>
    %cst_43 = arith.constant 0.000000e+00 : f32
    %96 = vector.broadcast %cst_43 : f32 to vector<32x256xf32>
    %97 = arith.maximumf %95, %96 : vector<32x256xf32>
    %98 = arith.truncf %97 : vector<32x256xf32> to vector<32x256xbf16>
    %c0_44 = arith.constant 0 : index
    %c0_45 = arith.constant 0 : index
    %99 = vector.load %arg17[%c0_44, %c0_45] : memref<256x128xbf16, #tpu.memory_space<vmem>>, vector<256x128xbf16>
    %cst_46 = arith.constant dense<0.000000e+00> : vector<32x128xf32>
    %100 = tpu.matmul %98, %99, %cst_46 {dimension_numbers = #tpu.dot_dimension_numbers<[1], [0], [0], [1], [0, 0, 1, 1], [], []>} : vector<32x256xbf16>, vector<256x128xbf16>, vector<32x128xf32> -> vector<32x128xf32>
    %c0_47 = arith.constant 0 : index
    %c0_48 = arith.constant 0 : index
    %101 = vector.load %arg18[%c0_47, %c0_48] : memref<1x128xf32, #tpu.memory_space<vmem>>, vector<1x128xf32>
    %102 = vector.broadcast %101 : vector<1x128xf32> to vector<32x128xf32>
    %103 = arith.addf %100, %102 : vector<32x128xf32>
    %104 = arith.addf %89, %103 : vector<32x128xf32>
    %cst_49 = arith.constant dense<0.000000e+00> : vector<32xf32>
    %105 = vector.multi_reduction <add>, %104, %cst_49 [1] : vector<32x128xf32> to vector<32xf32>
    %106 = vector.shape_cast %105 : vector<32xf32> to vector<32x1xf32>
    %cst_50 = arith.constant 1.280000e+02 : f32
    %107 = vector.broadcast %cst_50 : f32 to vector<32x1xf32>
    %108 = arith.divf %106, %107 : vector<32x1xf32>
    %109 = arith.mulf %104, %104 : vector<32x128xf32>
    %cst_51 = arith.constant dense<0.000000e+00> : vector<32xf32>
    %110 = vector.multi_reduction <add>, %109, %cst_51 [1] : vector<32x128xf32> to vector<32xf32>
    %111 = vector.shape_cast %110 : vector<32xf32> to vector<32x1xf32>
    %cst_52 = arith.constant 1.280000e+02 : f32
    %112 = vector.broadcast %cst_52 : f32 to vector<32x1xf32>
    %113 = arith.divf %111, %112 : vector<32x1xf32>
    %114 = vector.broadcast %108 : vector<32x1xf32> to vector<32x128xf32>
    %115 = arith.subf %104, %114 : vector<32x128xf32>
    %116 = arith.mulf %108, %108 : vector<32x1xf32>
    %117 = arith.subf %113, %116 : vector<32x1xf32>
    %cst_53 = arith.constant 9.99999997E-7 : f32
    %118 = vector.broadcast %cst_53 : f32 to vector<32x1xf32>
    %119 = arith.addf %117, %118 : vector<32x1xf32>
    %120 = math.rsqrt %119 : vector<32x1xf32>
    %121 = vector.broadcast %120 : vector<32x1xf32> to vector<32x128xf32>
    %122 = arith.mulf %115, %121 : vector<32x128xf32>
    %c0_54 = arith.constant 0 : index
    %c0_55 = arith.constant 0 : index
    %123 = vector.load %arg19[%c0_54, %c0_55] : memref<1x128xf32, #tpu.memory_space<vmem>>, vector<1x128xf32>
    %124 = vector.broadcast %123 : vector<1x128xf32> to vector<32x128xf32>
    %125 = arith.mulf %122, %124 : vector<32x128xf32>
    %c0_56 = arith.constant 0 : index
    %c0_57 = arith.constant 0 : index
    %126 = vector.load %arg20[%c0_56, %c0_57] : memref<1x128xf32, #tpu.memory_space<vmem>>, vector<1x128xf32>
    %127 = vector.broadcast %126 : vector<1x128xf32> to vector<32x128xf32>
    %128 = arith.addf %125, %127 : vector<32x128xf32>
    %c0_58 = arith.constant 0 : index
    %c0_59 = arith.constant 0 : index
    %c0_60 = arith.constant 0 : index
    %129 = vector.load %arg21[%c0_58, %c0_59, %c0_60] : memref<1x32x128xf32, #tpu.memory_space<vmem>>, vector<1x32x128xf32>
    %130 = vector.shape_cast %129 : vector<1x32x128xf32> to vector<32x128xf32>
    %131 = vector.shape_cast %128 : vector<32x128xf32> to vector<1x32x128xf32>
    tpu.vector_store %arg21[%c0_58, %c0_59, %c0_60], %131 {strides = array<i32>} : memref<1x32x128xf32, #tpu.memory_space<vmem>>, vector<1x32x128xf32>,
    return
  }
  func.func @transform_0(%arg0: i32, %arg1: i32) -> (i32, i32, i32) {
    %c0_i32 = arith.constant 0 : i32
    %c0_i32_0 = arith.constant 0 : i32
    return %arg0, %arg1, %c0_i32 : i32, i32, i32
  }
  func.func @transform_1(%arg0: i32, %arg1: i32) -> (i32, i32, i32) {
    %c0_i32 = arith.constant 0 : i32
    %c0_i32_0 = arith.constant 0 : i32
    %c0_i32_1 = arith.constant 0 : i32
    return %arg0, %c0_i32, %c0_i32_0 : i32, i32, i32
  }
  func.func @transform_2(%arg0: i32, %arg1: i32) -> (i32, i32, i32) {
    %c0_i32 = arith.constant 0 : i32
    %c0_i32_0 = arith.constant 0 : i32
    return %arg0, %arg1, %c0_i32 : i32, i32, i32
  }
  func.func @transform_3(%arg0: i32, %arg1: i32) -> (i32, i32) {
    %c0_i32 = arith.constant 0 : i32
    %c0_i32_0 = arith.constant 0 : i32
    %c0_i32_1 = arith.constant 0 : i32
    return %c0_i32, %c0_i32_0 : i32, i32
  }
  func.func @transform_4(%arg0: i32, %arg1: i32) -> (i32, i32) {
    %c0_i32 = arith.constant 0 : i32
    %c0_i32_0 = arith.constant 0 : i32
    %c0_i32_1 = arith.constant 0 : i32
    return %c0_i32, %c0_i32_0 : i32, i32
  }
  func.func @transform_5(%arg0: i32, %arg1: i32) -> (i32, i32) {
    %c0_i32 = arith.constant 0 : i32
    %c0_i32_0 = arith.constant 0 : i32
    %c0_i32_1 = arith.constant 0 : i32
    return %c0_i32, %c0_i32_0 : i32, i32
  }
  func.func @transform_6(%arg0: i32, %arg1: i32) -> (i32, i32) {
    %c0_i32 = arith.constant 0 : i32
    %c0_i32_0 = arith.constant 0 : i32
    %c0_i32_1 = arith.constant 0 : i32
    return %c0_i32, %c0_i32_0 : i32, i32
  }
  func.func @transform_7(%arg0: i32, %arg1: i32) -> (i32, i32) {
    %c0_i32 = arith.constant 0 : i32
    %c0_i32_0 = arith.constant 0 : i32
    %c0_i32_1 = arith.constant 0 : i32
    return %c0_i32, %c0_i32_0 : i32, i32
  }
  func.func @transform_8(%arg0: i32, %arg1: i32) -> (i32, i32) {
    %c0_i32 = arith.constant 0 : i32
    %c0_i32_0 = arith.constant 0 : i32
    %c0_i32_1 = arith.constant 0 : i32
    return %c0_i32, %c0_i32_0 : i32, i32
  }
  func.func @transform_9(%arg0: i32, %arg1: i32) -> (i32, i32) {
    %c0_i32 = arith.constant 0 : i32
    %c0_i32_0 = arith.constant 0 : i32
    %c0_i32_1 = arith.constant 0 : i32
    return %c0_i32, %c0_i32_0 : i32, i32
  }
  func.func @transform_10(%arg0: i32, %arg1: i32) -> (i32, i32) {
    %c0_i32 = arith.constant 0 : i32
    %c0_i32_0 = arith.constant 0 : i32
    %c0_i32_1 = arith.constant 0 : i32
    return %c0_i32, %c0_i32_0 : i32, i32
  }
  func.func @transform_11(%arg0: i32, %arg1: i32) -> (i32, i32) {
    %c0_i32 = arith.constant 0 : i32
    %c0_i32_0 = arith.constant 0 : i32
    %c0_i32_1 = arith.constant 0 : i32
    return %c0_i32, %c0_i32_0 : i32, i32
  }
  func.func @transform_12(%arg0: i32, %arg1: i32) -> (i32, i32) {
    %c0_i32 = arith.constant 0 : i32
    %c0_i32_0 = arith.constant 0 : i32
    %c0_i32_1 = arith.constant 0 : i32
    return %c0_i32, %c0_i32_0 : i32, i32
  }
  func.func @transform_13(%arg0: i32, %arg1: i32) -> (i32, i32) {
    %c0_i32 = arith.constant 0 : i32
    %c0_i32_0 = arith.constant 0 : i32
    %c0_i32_1 = arith.constant 0 : i32
    return %c0_i32, %c0_i32_0 : i32, i32
  }
  func.func @transform_14(%arg0: i32, %arg1: i32) -> (i32, i32) {
    %c0_i32 = arith.constant 0 : i32
    %c0_i32_0 = arith.constant 0 : i32
    %c0_i32_1 = arith.constant 0 : i32
    return %c0_i32, %c0_i32_0 : i32, i32
  }
  func.func @transform_15(%arg0: i32, %arg1: i32) -> (i32, i32) {
    %c0_i32 = arith.constant 0 : i32
    %c0_i32_0 = arith.constant 0 : i32
    %c0_i32_1 = arith.constant 0 : i32
    return %c0_i32, %c0_i32_0 : i32, i32
  }
  func.func @transform_16(%arg0: i32, %arg1: i32) -> (i32, i32) {
    %c0_i32 = arith.constant 0 : i32
    %c0_i32_0 = arith.constant 0 : i32
    %c0_i32_1 = arith.constant 0 : i32
    return %c0_i32, %c0_i32_0 : i32, i32
  }
  func.func @transform_17(%arg0: i32, %arg1: i32) -> (i32, i32) {
    %c0_i32 = arith.constant 0 : i32
    %c0_i32_0 = arith.constant 0 : i32
    %c0_i32_1 = arith.constant 0 : i32
    return %c0_i32, %c0_i32_0 : i32, i32
  }
  func.func @transform_18(%arg0: i32, %arg1: i32) -> (i32, i32) {
    %c0_i32 = arith.constant 0 : i32
    %c0_i32_0 = arith.constant 0 : i32
    %c0_i32_1 = arith.constant 0 : i32
    return %c0_i32, %c0_i32_0 : i32, i32
  }
  func.func @transform_19(%arg0: i32, %arg1: i32) -> (i32, i32, i32) {
    %c0_i32 = arith.constant 0 : i32
    %c0_i32_0 = arith.constant 0 : i32
    return %arg0, %arg1, %c0_i32 : i32, i32, i32
  }
}

</mosaic_0001>

<llo_original>
// kernel: tpu_custom_call.1
$region0: #{tpu_custom_call.1}
  #allocation0 [shape = 'u32[]', space=smem, size = 0x4, offset = 0x4, fixed_abs, tag = 'smem constant byte address 0x4 - core index']
  #allocation1 [shape = 'u32[144,128]{1,0:T(1,128)}', space=vmem, size = 0x12000, scoped, tag = 'internal scratch']
  #allocation2 [shape = 'bf16[4,64,32]{2,1,0:T(8,128)(2,1)}', space=vmem, size = 0x10000, scoped, tag = 'scratch operand']
  #allocation3 [shape = 'bf16[4,64,32]{2,1,0:T(8,128)(2,1)}', space=vmem, size = 0x10000, scoped, tag = 'scratch operand']
  %s0 = inlined_call_operand.hbm [shape: f32[2,64,128], index: 0, kind: input, shape index: {}]
  %s1 = inlined_call_operand.hbm [shape: bf16[2,64,128], index: 1, kind: input, shape index: {}]
  %s2 = inlined_call_operand.hbm [shape: bf16[2,64,64], index: 2, kind: input, shape index: {}]
  %s3 = inlined_call_operand.hbm [shape: bf16[128,128], index: 3, kind: input, shape index: {}]
  %s4 = inlined_call_operand.vmem [shape: f32[1,128], index: 4, kind: input, shape index: {}]
  %s5 = inlined_call_operand.hbm [shape: bf16[128,128], index: 5, kind: input, shape index: {}]
  %s6 = inlined_call_operand.vmem [shape: f32[1,128], index: 6, kind: input, shape index: {}]
  %s7 = inlined_call_operand.hbm [shape: bf16[128,128], index: 7, kind: input, shape index: {}]
  %s8 = inlined_call_operand.vmem [shape: f32[1,128], index: 8, kind: input, shape index: {}]
  %s9 = inlined_call_operand.hbm [shape: bf16[128,128], index: 9, kind: input, shape index: {}]
  %s10 = inlined_call_operand.vmem [shape: f32[1,128], index: 10, kind: input, shape index: {}]
  %s11 = inlined_call_operand.vmem [shape: f32[1,128], index: 11, kind: input, shape index: {}]
  %s12 = inlined_call_operand.vmem [shape: f32[1,128], index: 12, kind: input, shape index: {}]
  %s13 = inlined_call_operand.hbm [shape: bf16[128,256], index: 13, kind: input, shape index: {}]
  %s14 = inlined_call_operand.vmem [shape: f32[1,256], index: 14, kind: input, shape index: {}]
  %s15 = inlined_call_operand.hbm [shape: bf16[256,128], index: 15, kind: input, shape index: {}]
  %s16 = inlined_call_operand.vmem [shape: f32[1,128], index: 16, kind: input, shape index: {}]
  %s17 = inlined_call_operand.vmem [shape: f32[1,128], index: 17, kind: input, shape index: {}]
  %s18 = inlined_call_operand.vmem [shape: f32[1,128], index: 18, kind: input, shape index: {}]
  %s19 = inlined_call_operand.hbm [shape: f32[2,64,128], index: 19, kind: output, shape index: {}]
  %s20 = sld [smem:[#allocation0]]
  $region149: #{tpu_custom_call.1} parent=0
    _
  %s22 = ssub.s32 1, %s20
  %s23 = scalar_select 0, %s22, %s20
  $region1: #{tpu_custom_call.1} parent=0
    #allocation4 [shape = 'u8[32768]{0}', space=vmem, size = 0x8000, scoped, tag = 'input window, operand 0']
    #allocation5 [shape = 's32[2]{0}', space=sflag, size = 0x8, scoped, tag = 'scoped memory for tpu_custom_call.1']
    #allocation6 [shape = 's32[2]{0}', space=sflag, size = 0x8, scoped, tag = 'scoped memory for tpu_custom_call.1']
    #allocation7 [shape = 'u8[32768]{0}', space=vmem, size = 0x8000, scoped, tag = 'input window, operand 1']
    #allocation8 [shape = 's32[2]{0}', space=sflag, size = 0x8, scoped, tag = 'scoped memory for tpu_custom_call.1']
    #allocation9 [shape = 'u8[16384]{0}', space=vmem, size = 0x4000, scoped, tag = 'input window, operand 2']
    #allocation10 [shape = 'u8[32768]{0}', space=vmem, size = 0x8000, scoped, tag = 'input window, operand 3, single buffered']
    #allocation11 [shape = 's32[1]{0}', space=sflag, size = 0x4, scoped, tag = 'scoped memory for tpu_custom_call.1']
    #allocation12 [shape = 'u8[32768]{0}', space=vmem, size = 0x8000, scoped, tag = 'input window, operand 5, single buffered']
    #allocation13 [shape = 'u8[32768]{0}', space=vmem, size = 0x8000, scoped, tag = 'input window, operand 7, single buffered']
    #allocation14 [shape = 's32[1]{0}', space=sflag, size = 0x4, scoped, tag = 'scoped memory for tpu_custom_call.1']
    #allocation15 [shape = 'u8[32768]{0}', space=vmem, size = 0x8000, scoped, tag = 'input window, operand 9, single buffered']
    #allocation16 [shape = 'u8[65536]{0}', space=vmem, size = 0x10000, scoped, tag = 'input window, operand 13, single buffered']
    #allocation17 [shape = 's32[1]{0}', space=sflag, size = 0x4, scoped, tag = 'scoped memory for tpu_custom_call.1']
    #allocation18 [shape = 'u8[65536]{0}', space=vmem, size = 0x10000, scoped, tag = 'input window, operand 15, single buffered']
    #allocation19 [shape = 'u8[32768]{0}', space=vmem, size = 0x8000, scoped, tag = 'output window, operand 0']
    %24 = vsyncpa [#allocation5], 0
    %s25 = scalar_lea.sflag [#allocation5], 1
    %26 = vsyncpa %s25, 0
    %27 = vsyncpa [#allocation8], 0
    %s28 = scalar_lea.sflag [#allocation8], 1
    %29 = vsyncpa %s28, 0
    %30 = vsyncpa [#allocation11], 0
    %31 = vsyncpa [#allocation14], 0
    %32 = vsyncpa [#allocation17], 0
    %33 = vsyncpa [#allocation6], 0
    %s34 = scalar_lea.sflag [#allocation6], 1
    %35 = vsyncpa %s34, 0
    loop: start=0, step=1, limit=6
    $region2: #{tpu_custom_call.1} parent=1 // loop_pre_header
      _
    $region3: #{tpu_custom_call.1} parent=1 // loop_header
      %s37 = sphi 0, %s41
      %p38 = scmp.ge.s32.totalorder %s37, 6
      %s44 = sphi 0, %s56
      %s45 = sphi 0, %s52
      %s46 = sphi 0, %s44
      %s47 = sphi 0, %s45
      %s48 = sphi 0, %s46
      %s49 = sphi 0, %s47
      %s61 = sphi 0, %s63
      %s64 = sphi 0, %s61
      %s65 = sphi 0, %s64
      %s81 = sphi 0, %s65
      %s87 = sphi 0, %s89
      %s90 = sphi 0, %s87
      %s91 = sphi 0, %s90
      %s107 = sphi 0, %s91
      %s115 = sphi 0, %s117
      %s118 = sphi 0, %s115
      %s119 = sphi 0, %s118
      %s135 = sphi 0, %s119
      %s139 = sphi 0, %s139
      %s141 = sphi 0, %s139
      %s142 = sphi 0, %s141
      %s156 = sphi 0, %s142
      %s160 = sphi 0, %s160
      %s162 = sphi 0, %s160
      %s163 = sphi 0, %s162
      %s177 = sphi 0, %s163
      %s181 = sphi 0, %s181
      %s183 = sphi 0, %s181
      %s184 = sphi 0, %s183
      %s198 = sphi 0, %s184
      %s202 = sphi 0, %s202
      %s204 = sphi 0, %s202
      %s205 = sphi 0, %s204
      %s219 = sphi 0, %s205
      %s223 = sphi 0, %s223
      %s225 = sphi 0, %s223
      %s226 = sphi 0, %s225
      %s240 = sphi 0, %s226
      %s244 = sphi 0, %s244
      %s246 = sphi 0, %s244
      %s247 = sphi 0, %s246
      %s261 = sphi 0, %s247
      %s265 = sphi 0, %s265
      %s267 = sphi 0, %s265
      %s268 = sphi 0, %s267
      %s282 = sphi 0, %s268
      %s286 = sphi 0, %s286
      %s288 = sphi 0, %s286
      %s289 = sphi 0, %s288
      %s303 = sphi 0, %s289
      %s307 = sphi 0, %s307
      %s309 = sphi 0, %s307
      %s310 = sphi 0, %s309
      %s324 = sphi 0, %s310
      %s328 = sphi 0, %s328
      %s330 = sphi 0, %s328
      %s331 = sphi 0, %s330
      %s345 = sphi 0, %s331
      %s349 = sphi 0, %s349
      %s351 = sphi 0, %s349
      %s352 = sphi 0, %s351
      %s366 = sphi 0, %s352
      %s370 = sphi 0, %s370
      %s372 = sphi 0, %s370
      %s373 = sphi 0, %s372
      %s387 = sphi 0, %s373
      %s391 = sphi 0, %s391
      %s393 = sphi 0, %s391
      %s394 = sphi 0, %s393
      %s408 = sphi 0, %s394
      %s412 = sphi 0, %s412
      %s414 = sphi 0, %s412
      %s415 = sphi 0, %s414
      %s429 = sphi 0, %s415
      %s433 = sphi 0, %s433
      %s435 = sphi 0, %s433
      %s436 = sphi 0, %s435
      %s450 = sphi 0, %s436
      %s454 = sphi 0, %s454
      %s456 = sphi 0, %s454
      %s457 = sphi 0, %s456
      %s471 = sphi 0, %s457
      %s479 = sphi 0, %s481
      %s482 = sphi 0, %s479
      %s483 = sphi 0, %s482
      %s499 = sphi 0, %s483
    $region4: #{tpu_custom_call.1} parent=1 // loop_header_branch
      %40 = sbr.rel (%p38) target = $region8
    $region5: #{tpu_custom_call.1} parent=1 // loop_body
      %s42 = ssub.s32 %s37, 1
      %s43 = ssub.s32 %s37, 2
      %s50 = sadd.s32 1, %s45
      %p51 = scmp.ge.s32.totalorder %s50, 2
      %s52 = scalar_select %p51, 0, %s50
      %s53 = sadd.s32 1, %s44
      %s54 = scalar_select %p51, %s53, %s44
      %p55 = scmp.ge.s32.totalorder %s54, 2
      %s56 = scalar_select %p55, 0, %s54
      %s57 = ssub.s32 %s44, %s56
      %s58 = ssub.s32 %s45, %s52
      %s59 = sor.u32 %s57, %s58
      %p60 = scmp.eq.s32.totalorder %s59, 0
      %s62 = sadd.s32 %s61, 1
      %s63 = scalar_select %p60, %s61, %s62
      %p66 = pneg %p60
      %p67 = scmp.eq.s32.totalorder %s37, 3
      %p68 = por %p66, %p67
      %p69 = scmp.ne.s32.totalorder %s61, %s64
      %p70 = scmp.eq.s32.totalorder %s37, 0
      %p71 = por %p69, %p70
      %p72 = scmp.ne.s32.totalorder %s61, %s64
      %p73 = scmp.eq.s32.totalorder %s42, 3
      %p74 = por %p72, %p73
      %p75 = scmp.ne.s32.totalorder %s64, %s65
      %p76 = scmp.eq.s32.totalorder %s42, 0
      %p77 = por %p75, %p76
      %p78 = scmp.ne.s32.totalorder %s64, %s65
      %p79 = scmp.eq.s32.totalorder %s43, 3
      %p80 = por %p78, %p79
      %p82 = scmp.ne.s32.totalorder %s65, %s81
      %p83 = scmp.eq.s32.totalorder %s43, 0
      %p84 = por %p82, %p83
      %s85 = ssub.s32 %s44, %s56
      %p86 = scmp.eq.s32.totalorder %s85, 0
      %s88 = sadd.s32 %s87, 1
      %s89 = scalar_select %p86, %s87, %s88
      %p92 = pneg %p86
      %p93 = scmp.eq.s32.totalorder %s37, 3
      %p94 = por %p92, %p93
      %p95 = scmp.ne.s32.totalorder %s87, %s90
      %p96 = scmp.eq.s32.totalorder %s37, 0
      %p97 = por %p95, %p96
      %p98 = scmp.ne.s32.totalorder %s87, %s90
      %p99 = scmp.eq.s32.totalorder %s42, 3
      %p100 = por %p98, %p99
      %p101 = scmp.ne.s32.totalorder %s90, %s91
      %p102 = scmp.eq.s32.totalorder %s42, 0
      %p103 = por %p101, %p102
      %p104 = scmp.ne.s32.totalorder %s90, %s91
      %p105 = scmp.eq.s32.totalorder %s43, 3
      %p106 = por %p104, %p105
      %p108 = scmp.ne.s32.totalorder %s91, %s107
      %p109 = scmp.eq.s32.totalorder %s43, 0
      %p110 = por %p108, %p109
      %s111 = ssub.s32 %s44, %s56
      %s112 = ssub.s32 %s45, %s52
      %s113 = sor.u32 %s111, %s112
      %p114 = scmp.eq.s32.totalorder %s113, 0
      %s116 = sadd.s32 %s115, 1
      %s117 = scalar_select %p114, %s115, %s116
      %p120 = pneg %p114
      %p121 = scmp.eq.s32.totalorder %s37, 3
      %p122 = por %p120, %p121
      %p123 = scmp.ne.s32.totalorder %s115, %s118
      %p124 = scmp.eq.s32.totalorder %s37, 0
      %p125 = por %p123, %p124
      %p126 = scmp.ne.s32.totalorder %s115, %s118
      %p127 = scmp.eq.s32.totalorder %s42, 3
      %p128 = por %p126, %p127
      %p129 = scmp.ne.s32.totalorder %s118, %s119
      %p130 = scmp.eq.s32.totalorder %s42, 0
      %p131 = por %p129, %p130
      %p132 = scmp.ne.s32.totalorder %s118, %s119
      %p133 = scmp.eq.s32.totalorder %s43, 3
      %p134 = por %p132, %p133
      %p136 = scmp.ne.s32.totalorder %s119, %s135
      %p137 = scmp.eq.s32.totalorder %s43, 0
      %p138 = por %p136, %p137
      %s140 = sadd.s32 %s139, 1
      %p143 = scmp.eq.s32.totalorder %s37, 3
      %p144 = scmp.ne.s32.totalorder %s139, %s141
      %p145 = scmp.eq.s32.totalorder %s37, 0
      %p146 = por %p144, %p145
      %p147 = scmp.ne.s32.totalorder %s139, %s141
      %p148 = scmp.eq.s32.totalorder %s42, 3
      %p149 = por %p147, %p148
      %p150 = scmp.ne.s32.totalorder %s141, %s142
      %p151 = scmp.eq.s32.totalorder %s42, 0
      %p152 = por %p150, %p151
      %p153 = scmp.ne.s32.totalorder %s141, %s142
      %p154 = scmp.eq.s32.totalorder %s43, 3
      %p155 = por %p153, %p154
      %p157 = scmp.ne.s32.totalorder %s142, %s156
      %p158 = scmp.eq.s32.totalorder %s43, 0
      %p159 = por %p157, %p158
      %s161 = sadd.s32 %s160, 1
      %p164 = scmp.eq.s32.totalorder %s37, 3
      %p165 = scmp.ne.s32.totalorder %s160, %s162
      %p166 = scmp.eq.s32.totalorder %s37, 0
      %p167 = por %p165, %p166
      %p168 = scmp.ne.s32.totalorder %s160, %s162
      %p169 = scmp.eq.s32.totalorder %s42, 3
      %p170 = por %p168, %p169
      %p171 = scmp.ne.s32.totalorder %s162, %s163
      %p172 = scmp.eq.s32.totalorder %s42, 0
      %p173 = por %p171, %p172
      %p174 = scmp.ne.s32.totalorder %s162, %s163
      %p175 = scmp.eq.s32.totalorder %s43, 3
      %p176 = por %p174, %p175
      %p178 = scmp.ne.s32.totalorder %s163, %s177
      %p179 = scmp.eq.s32.totalorder %s43, 0
      %p180 = por %p178, %p179
      %s182 = sadd.s32 %s181, 1
      %p185 = scmp.eq.s32.totalorder %s37, 3
      %p186 = scmp.ne.s32.totalorder %s181, %s183
      %p187 = scmp.eq.s32.totalorder %s37, 0
      %p188 = por %p186, %p187
      %p189 = scmp.ne.s32.totalorder %s181, %s183
      %p190 = scmp.eq.s32.totalorder %s42, 3
      %p191 = por %p189, %p190
      %p192 = scmp.ne.s32.totalorder %s183, %s184
      %p193 = scmp.eq.s32.totalorder %s42, 0
      %p194 = por %p192, %p193
      %p195 = scmp.ne.s32.totalorder %s183, %s184
      %p196 = scmp.eq.s32.totalorder %s43, 3
      %p197 = por %p195, %p196
      %p199 = scmp.ne.s32.totalorder %s184, %s198
      %p200 = scmp.eq.s32.totalorder %s43, 0
      %p201 = por %p199, %p200
      %s203 = sadd.s32 %s202, 1
      %p206 = scmp.eq.s32.totalorder %s37, 3
      %p207 = scmp.ne.s32.totalorder %s202, %s204
      %p208 = scmp.eq.s32.totalorder %s37, 0
      %p209 = por %p207, %p208
      %p210 = scmp.ne.s32.totalorder %s202, %s204
      %p211 = scmp.eq.s32.totalorder %s42, 3
      %p212 = por %p210, %p211
      %p213 = scmp.ne.s32.totalorder %s204, %s205
      %p214 = scmp.eq.s32.totalorder %s42, 0
      %p215 = por %p213, %p214
      %p216 = scmp.ne.s32.totalorder %s204, %s205
      %p217 = scmp.eq.s32.totalorder %s43, 3
      %p218 = por %p216, %p217
      %p220 = scmp.ne.s32.totalorder %s205, %s219
      %p221 = scmp.eq.s32.totalorder %s43, 0
      %p222 = por %p220, %p221
      %s224 = sadd.s32 %s223, 1
      %p227 = scmp.eq.s32.totalorder %s37, 3
      %p228 = scmp.ne.s32.totalorder %s223, %s225
      %p229 = scmp.eq.s32.totalorder %s37, 0
      %p230 = por %p228, %p229
      %p231 = scmp.ne.s32.totalorder %s223, %s225
      %p232 = scmp.eq.s32.totalorder %s42, 3
      %p233 = por %p231, %p232
      %p234 = scmp.ne.s32.totalorder %s225, %s226
      %p235 = scmp.eq.s32.totalorder %s42, 0
      %p236 = por %p234, %p235
      %p237 = scmp.ne.s32.totalorder %s225, %s226
      %p238 = scmp.eq.s32.totalorder %s43, 3
      %p239 = por %p237, %p238
      %p241 = scmp.ne.s32.totalorder %s226, %s240
      %p242 = scmp.eq.s32.totalorder %s43, 0
      %p243 = por %p241, %p242
      %s245 = sadd.s32 %s244, 1
      %p248 = scmp.eq.s32.totalorder %s37, 3
      %p249 = scmp.ne.s32.totalorder %s244, %s246
      %p250 = scmp.eq.s32.totalorder %s37, 0
      %p251 = por %p249, %p250
      %p252 = scmp.ne.s32.totalorder %s244, %s246
      %p253 = scmp.eq.s32.totalorder %s42, 3
      %p254 = por %p252, %p253
      %p255 = scmp.ne.s32.totalorder %s246, %s247
      %p256 = scmp.eq.s32.totalorder %s42, 0
      %p257 = por %p255, %p256
      %p258 = scmp.ne.s32.totalorder %s246, %s247
      %p259 = scmp.eq.s32.totalorder %s43, 3
      %p260 = por %p258, %p259
      %p262 = scmp.ne.s32.totalorder %s247, %s261
      %p263 = scmp.eq.s32.totalorder %s43, 0
      %p264 = por %p262, %p263
      %s266 = sadd.s32 %s265, 1
      %p269 = scmp.eq.s32.totalorder %s37, 3
      %p270 = scmp.ne.s32.totalorder %s265, %s267
      %p271 = scmp.eq.s32.totalorder %s37, 0
      %p272 = por %p270, %p271
      %p273 = scmp.ne.s32.totalorder %s265, %s267
      %p274 = scmp.eq.s32.totalorder %s42, 3
      %p275 = por %p273, %p274
      %p276 = scmp.ne.s32.totalorder %s267, %s268
      %p277 = scmp.eq.s32.totalorder %s42, 0
      %p278 = por %p276, %p277
      %p279 = scmp.ne.s32.totalorder %s267, %s268
      %p280 = scmp.eq.s32.totalorder %s43, 3
      %p281 = por %p279, %p280
      %p283 = scmp.ne.s32.totalorder %s268, %s282
      %p284 = scmp.eq.s32.totalorder %s43, 0
      %p285 = por %p283, %p284
      %s287 = sadd.s32 %s286, 1
      %p290 = scmp.eq.s32.totalorder %s37, 3
      %p291 = scmp.ne.s32.totalorder %s286, %s288
      %p292 = scmp.eq.s32.totalorder %s37, 0
      %p293 = por %p291, %p292
      %p294 = scmp.ne.s32.totalorder %s286, %s288
      %p295 = scmp.eq.s32.totalorder %s42, 3
      %p296 = por %p294, %p295
      %p297 = scmp.ne.s32.totalorder %s288, %s289
      %p298 = scmp.eq.s32.totalorder %s42, 0
      %p299 = por %p297, %p298
      %p300 = scmp.ne.s32.totalorder %s288, %s289
      %p301 = scmp.eq.s32.totalorder %s43, 3
      %p302 = por %p300, %p301
      %p304 = scmp.ne.s32.totalorder %s289, %s303
      %p305 = scmp.eq.s32.totalorder %s43, 0
      %p306 = por %p304, %p305
      %s308 = sadd.s32 %s307, 1
      %p311 = scmp.eq.s32.totalorder %s37, 3
      %p312 = scmp.ne.s32.totalorder %s307, %s309
      %p313 = scmp.eq.s32.totalorder %s37, 0
      %p314 = por %p312, %p313
      %p315 = scmp.ne.s32.totalorder %s307, %s309
      %p316 = scmp.eq.s32.totalorder %s42, 3
      %p317 = por %p315, %p316
      %p318 = scmp.ne.s32.totalorder %s309, %s310
      %p319 = scmp.eq.s32.totalorder %s42, 0
      %p320 = por %p318, %p319
      %p321 = scmp.ne.s32.totalorder %s309, %s310
      %p322 = scmp.eq.s32.totalorder %s43, 3
      %p323 = por %p321, %p322
      %p325 = scmp.ne.s32.totalorder %s310, %s324
      %p326 = scmp.eq.s32.totalorder %s43, 0
      %p327 = por %p325, %p326
      %s329 = sadd.s32 %s328, 1
      %p332 = scmp.eq.s32.totalorder %s37, 3
      %p333 = scmp.ne.s32.totalorder %s328, %s330
      %p334 = scmp.eq.s32.totalorder %s37, 0
      %p335 = por %p333, %p334
      %p336 = scmp.ne.s32.totalorder %s328, %s330
      %p337 = scmp.eq.s32.totalorder %s42, 3
      %p338 = por %p336, %p337
      %p339 = scmp.ne.s32.totalorder %s330, %s331
      %p340 = scmp.eq.s32.totalorder %s42, 0
      %p341 = por %p339, %p340
      %p342 = scmp.ne.s32.totalorder %s330, %s331
      %p343 = scmp.eq.s32.totalorder %s43, 3
      %p344 = por %p342, %p343
      %p346 = scmp.ne.s32.totalorder %s331, %s345
      %p347 = scmp.eq.s32.totalorder %s43, 0
      %p348 = por %p346, %p347
      %s350 = sadd.s32 %s349, 1
      %p353 = scmp.eq.s32.totalorder %s37, 3
      %p354 = scmp.ne.s32.totalorder %s349, %s351
      %p355 = scmp.eq.s32.totalorder %s37, 0
      %p356 = por %p354, %p355
      %p357 = scmp.ne.s32.totalorder %s349, %s351
      %p358 = scmp.eq.s32.totalorder %s42, 3
      %p359 = por %p357, %p358
      %p360 = scmp.ne.s32.totalorder %s351, %s352
      %p361 = scmp.eq.s32.totalorder %s42, 0
      %p362 = por %p360, %p361
      %p363 = scmp.ne.s32.totalorder %s351, %s352
      %p364 = scmp.eq.s32.totalorder %s43, 3
      %p365 = por %p363, %p364
      %p367 = scmp.ne.s32.totalorder %s352, %s366
      %p368 = scmp.eq.s32.totalorder %s43, 0
      %p369 = por %p367, %p368
      %s371 = sadd.s32 %s370, 1
      %p374 = scmp.eq.s32.totalorder %s37, 3
      %p375 = scmp.ne.s32.totalorder %s370, %s372
      %p376 = scmp.eq.s32.totalorder %s37, 0
      %p377 = por %p375, %p376
      %p378 = scmp.ne.s32.totalorder %s370, %s372
      %p379 = scmp.eq.s32.totalorder %s42, 3
      %p380 = por %p378, %p379
      %p381 = scmp.ne.s32.totalorder %s372, %s373
      %p382 = scmp.eq.s32.totalorder %s42, 0
      %p383 = por %p381, %p382
      %p384 = scmp.ne.s32.totalorder %s372, %s373
      %p385 = scmp.eq.s32.totalorder %s43, 3
      %p386 = por %p384, %p385
      %p388 = scmp.ne.s32.totalorder %s373, %s387
      %p389 = scmp.eq.s32.totalorder %s43, 0
      %p390 = por %p388, %p389
      %s392 = sadd.s32 %s391, 1
      %p395 = scmp.eq.s32.totalorder %s37, 3
      %p396 = scmp.ne.s32.totalorder %s391, %s393
      %p397 = scmp.eq.s32.totalorder %s37, 0
      %p398 = por %p396, %p397
      %p399 = scmp.ne.s32.totalorder %s391, %s393
      %p400 = scmp.eq.s32.totalorder %s42, 3
      %p401 = por %p399, %p400
      %p402 = scmp.ne.s32.totalorder %s393, %s394
      %p403 = scmp.eq.s32.totalorder %s42, 0
      %p404 = por %p402, %p403
      %p405 = scmp.ne.s32.totalorder %s393, %s394
      %p406 = scmp.eq.s32.totalorder %s43, 3
      %p407 = por %p405, %p406
      %p409 = scmp.ne.s32.totalorder %s394, %s408
      %p410 = scmp.eq.s32.totalorder %s43, 0
      %p411 = por %p409, %p410
      %s413 = sadd.s32 %s412, 1
      %p416 = scmp.eq.s32.totalorder %s37, 3
      %p417 = scmp.ne.s32.totalorder %s412, %s414
      %p418 = scmp.eq.s32.totalorder %s37, 0
      %p419 = por %p417, %p418
      %p420 = scmp.ne.s32.totalorder %s412, %s414
      %p421 = scmp.eq.s32.totalorder %s42, 3
      %p422 = por %p420, %p421
      %p423 = scmp.ne.s32.totalorder %s414, %s415
      %p424 = scmp.eq.s32.totalorder %s42, 0
      %p425 = por %p423, %p424
      %p426 = scmp.ne.s32.totalorder %s414, %s415
      %p427 = scmp.eq.s32.totalorder %s43, 3
      %p428 = por %p426, %p427
      %p430 = scmp.ne.s32.totalorder %s415, %s429
      %p431 = scmp.eq.s32.totalorder %s43, 0
      %p432 = por %p430, %p431
      %s434 = sadd.s32 %s433, 1
      %p437 = scmp.eq.s32.totalorder %s37, 3
      %p438 = scmp.ne.s32.totalorder %s433, %s435
      %p439 = scmp.eq.s32.totalorder %s37, 0
      %p440 = por %p438, %p439
      %p441 = scmp.ne.s32.totalorder %s433, %s435
      %p442 = scmp.eq.s32.totalorder %s42, 3
      %p443 = por %p441, %p442
      %p444 = scmp.ne.s32.totalorder %s435, %s436
      %p445 = scmp.eq.s32.totalorder %s42, 0
      %p446 = por %p444, %p445
      %p447 = scmp.ne.s32.totalorder %s435, %s436
      %p448 = scmp.eq.s32.totalorder %s43, 3
      %p449 = por %p447, %p448
      %p451 = scmp.ne.s32.totalorder %s436, %s450
      %p452 = scmp.eq.s32.totalorder %s43, 0
      %p453 = por %p451, %p452
      %s455 = sadd.s32 %s454, 1
      %p458 = scmp.eq.s32.totalorder %s37, 3
      %p459 = scmp.ne.s32.totalorder %s454, %s456
      %p460 = scmp.eq.s32.totalorder %s37, 0
      %p461 = por %p459, %p460
      %p462 = scmp.ne.s32.totalorder %s454, %s456
      %p463 = scmp.eq.s32.totalorder %s42, 3
      %p464 = por %p462, %p463
      %p465 = scmp.ne.s32.totalorder %s456, %s457
      %p466 = scmp.eq.s32.totalorder %s42, 0
      %p467 = por %p465, %p466
      %p468 = scmp.ne.s32.totalorder %s456, %s457
      %p469 = scmp.eq.s32.totalorder %s43, 3
      %p470 = por %p468, %p469
      %p472 = scmp.ne.s32.totalorder %s457, %s471
      %p473 = scmp.eq.s32.totalorder %s43, 0
      %p474 = por %p472, %p473
      %s475 = ssub.s32 %s44, %s56
      %s476 = ssub.s32 %s45, %s52
      %s477 = sor.u32 %s475, %s476
      %p478 = scmp.eq.s32.totalorder %s477, 0
      %s480 = sadd.s32 %s479, 1
      %s481 = scalar_select %p478, %s479, %s480
      %p484 = pneg %p478
      %p485 = scmp.eq.s32.totalorder %s37, 3
      %p486 = por %p484, %p485
      %p487 = scmp.ne.s32.totalorder %s479, %s482
      %p488 = scmp.eq.s32.totalorder %s37, 0
      %p489 = por %p487, %p488
      %p490 = scmp.ne.s32.totalorder %s479, %s482
      %p491 = scmp.eq.s32.totalorder %s42, 3
      %p492 = por %p490, %p491
      %p493 = scmp.ne.s32.totalorder %s482, %s483
      %p494 = scmp.eq.s32.totalorder %s42, 0
      %p495 = por %p493, %p494
      %p496 = scmp.ne.s32.totalorder %s482, %s483
      %p497 = scmp.eq.s32.totalorder %s43, 3
      %p498 = por %p496, %p497
      %p500 = scmp.ne.s32.totalorder %s483, %s499
      %p501 = scmp.eq.s32.totalorder %s43, 0
      %p502 = por %p500, %p501
      %p503 = scmp.le.s32.totalorder 1, %s37
      %p504 = scmp.lt.s32.totalorder %s37, 5
      %p505 = pnand %p503, %p504
      %p506 = pneg %p505
      // Predicated region
      $region9: #{tpu_custom_call.1} parent=5 // pred_check
        _
      $region10: #{tpu_custom_call.1} parent=5 // pred_check_branch
        %508 = sbr.rel (%p505) target = $region12
      $region11: #{tpu_custom_call.1} parent=5 // pred_region
        %s509 = ssub.s32 %s37, 1
        // Predicated region
        $region13: #{tpu_custom_call.1} parent=11 // pred_check
          %p510 = pneg %p152
        $region14: #{tpu_custom_call.1} parent=11 // pred_check_branch
          %512 = sbr.rel (%p510) target = $region16
        $region15: #{tpu_custom_call.1} parent=11 // pred_region
          %s514 = ssub.s32 1024, 1024
          %515 = vsyncadd [#allocation11], %s514
          %s516 = sshll.u32 [#allocation10], 4
          %s517 = int_to_ptr.vmem [resolvable:$true] %s516
          %522 = dma.hbm_to_vmem [thread:$0]  %s3, 1024, %s517, [#allocation11], 64, 64, 4
        $region16: #{tpu_custom_call.1} parent=11 // pred_fallthru
          _
        // Predicated region
        $region17: #{tpu_custom_call.1} parent=11 // pred_check
          %p523 = pneg %p173
        $region18: #{tpu_custom_call.1} parent=11 // pred_check_branch
          %525 = sbr.rel (%p523) target = $region20
        $region19: #{tpu_custom_call.1} parent=11 // pred_region
          _
        $region20: #{tpu_custom_call.1} parent=11 // pred_fallthru
          _
        // Predicated region
        $region21: #{tpu_custom_call.1} parent=11 // pred_check
          %p526 = pneg %p194
        $region22: #{tpu_custom_call.1} parent=11 // pred_check_branch
          %528 = sbr.rel (%p526) target = $region24
        $region23: #{tpu_custom_call.1} parent=11 // pred_region
          %s530 = ssub.s32 1024, 1024
          %531 = vsyncadd [#allocation11], %s530
          %s532 = sshll.u32 [#allocation12], 4
          %s533 = int_to_ptr.vmem [resolvable:$true] %s532
          %538 = dma.hbm_to_vmem [thread:$0]  %s5, 1024, %s533, [#allocation11], 64, 64, 4
        $region24: #{tpu_custom_call.1} parent=11 // pred_fallthru
          _
        // Predicated region
        $region25: #{tpu_custom_call.1} parent=11 // pred_check
          %p539 = pneg %p215
        $region26: #{tpu_custom_call.1} parent=11 // pred_check_branch
          %541 = sbr.rel (%p539) target = $region28
        $region27: #{tpu_custom_call.1} parent=11 // pred_region
          _
        $region28: #{tpu_custom_call.1} parent=11 // pred_fallthru
          _
        // Predicated region
        $region29: #{tpu_custom_call.1} parent=11 // pred_check
          %p542 = pneg %p236
        $region30: #{tpu_custom_call.1} parent=11 // pred_check_branch
          %544 = sbr.rel (%p542) target = $region32
        $region31: #{tpu_custom_call.1} parent=11 // pred_region
          %s546 = ssub.s32 1024, 1024
          %547 = vsyncadd [#allocation14], %s546
          %s548 = sshll.u32 [#allocation13], 4
          %s549 = int_to_ptr.vmem [resolvable:$true] %s548
          %554 = dma.hbm_to_vmem [thread:$0]  %s7, 1024, %s549, [#allocation14], 64, 64, 4
        $region32: #{tpu_custom_call.1} parent=11 // pred_fallthru
          _
        // Predicated region
        $region33: #{tpu_custom_call.1} parent=11 // pred_check
          %p555 = pneg %p257
        $region34: #{tpu_custom_call.1} parent=11 // pred_check_branch
          %557 = sbr.rel (%p555) target = $region36
        $region35: #{tpu_custom_call.1} parent=11 // pred_region
          _
        $region36: #{tpu_custom_call.1} parent=11 // pred_fallthru
          _
        // Predicated region
        $region37: #{tpu_custom_call.1} parent=11 // pred_check
          %p558 = pneg %p278
        $region38: #{tpu_custom_call.1} parent=11 // pred_check_branch
          %560 = sbr.rel (%p558) target = $region40
        $region39: #{tpu_custom_call.1} parent=11 // pred_region
          %s562 = ssub.s32 1024, 1024
          %563 = vsyncadd [#allocation14], %s562
          %s564 = sshll.u32 [#allocation15], 4
          %s565 = int_to_ptr.vmem [resolvable:$true] %s564
          %570 = dma.hbm_to_vmem [thread:$0]  %s9, 1024, %s565, [#allocation14], 64, 64, 4
        $region40: #{tpu_custom_call.1} parent=11 // pred_fallthru
          _
        // Predicated region
        $region41: #{tpu_custom_call.1} parent=11 // pred_check
          %p571 = pneg %p299
        $region42: #{tpu_custom_call.1} parent=11 // pred_check_branch
          %573 = sbr.rel (%p571) target = $region44
        $region43: #{tpu_custom_call.1} parent=11 // pred_region
          _
        $region44: #{tpu_custom_call.1} parent=11 // pred_fallthru
          _
        // Predicated region
        $region45: #{tpu_custom_call.1} parent=11 // pred_check
          %p574 = pneg %p320
        $region46: #{tpu_custom_call.1} parent=11 // pred_check_branch
          %576 = sbr.rel (%p574) target = $region48
        $region47: #{tpu_custom_call.1} parent=11 // pred_region
          _
        $region48: #{tpu_custom_call.1} parent=11 // pred_fallthru
          _
        // Predicated region
        $region49: #{tpu_custom_call.1} parent=11 // pred_check
          %p577 = pneg %p341
        $region50: #{tpu_custom_call.1} parent=11 // pred_check_branch
          %579 = sbr.rel (%p577) target = $region52
        $region51: #{tpu_custom_call.1} parent=11 // pred_region
          _
        $region52: #{tpu_custom_call.1} parent=11 // pred_fallthru
          _
        // Predicated region
        $region53: #{tpu_custom_call.1} parent=11 // pred_check
          %p580 = pneg %p362
        $region54: #{tpu_custom_call.1} parent=11 // pred_check_branch
          %582 = sbr.rel (%p580) target = $region56
        $region55: #{tpu_custom_call.1} parent=11 // pred_region
          %s584 = ssub.s32 2048, 2048
          %585 = vsyncadd [#allocation17], %s584
          %s586 = sshll.u32 [#allocation16], 4
          %s587 = int_to_ptr.vmem [resolvable:$true] %s586
          %592 = dma.hbm_to_vmem [thread:$0]  %s13, 2048, %s587, [#allocation17], 128, 128, 8
        $region56: #{tpu_custom_call.1} parent=11 // pred_fallthru
          _
        // Predicated region
        $region57: #{tpu_custom_call.1} parent=11 // pred_check
          %p593 = pneg %p383
        $region58: #{tpu_custom_call.1} parent=11 // pred_check_branch
          %595 = sbr.rel (%p593) target = $region60
        $region59: #{tpu_custom_call.1} parent=11 // pred_region
          _
        $region60: #{tpu_custom_call.1} parent=11 // pred_fallthru
          _
        // Predicated region
        $region61: #{tpu_custom_call.1} parent=11 // pred_check
          %p596 = pneg %p404
        $region62: #{tpu_custom_call.1} parent=11 // pred_check_branch
          %598 = sbr.rel (%p596) target = $region64
        $region63: #{tpu_custom_call.1} parent=11 // pred_region
          %s600 = ssub.s32 2048, 2048
          %601 = vsyncadd [#allocation17], %s600
          %s602 = sshll.u32 [#allocation18], 4
          %s603 = int_to_ptr.vmem [resolvable:$true] %s602
          %608 = dma.hbm_to_vmem [thread:$0]  %s15, 2048, %s603, [#allocation17], 64, 64, 4
        $region64: #{tpu_custom_call.1} parent=11 // pred_fallthru
          _
        // Predicated region
        $region65: #{tpu_custom_call.1} parent=11 // pred_check
          %p609 = pneg %p425
        $region66: #{tpu_custom_call.1} parent=11 // pred_check_branch
          %611 = sbr.rel (%p609) target = $region68
        $region67: #{tpu_custom_call.1} parent=11 // pred_region
          _
        $region68: #{tpu_custom_call.1} parent=11 // pred_fallthru
          _
        // Predicated region
        $region69: #{tpu_custom_call.1} parent=11 // pred_check
          %p612 = pneg %p446
        $region70: #{tpu_custom_call.1} parent=11 // pred_check_branch
          %614 = sbr.rel (%p612) target = $region72
        $region71: #{tpu_custom_call.1} parent=11 // pred_region
          _
        $region72: #{tpu_custom_call.1} parent=11 // pred_fallthru
          _
        // Predicated region
        $region73: #{tpu_custom_call.1} parent=11 // pred_check
          %p615 = pneg %p467
        $region74: #{tpu_custom_call.1} parent=11 // pred_check_branch
          %617 = sbr.rel (%p615) target = $region76
        $region75: #{tpu_custom_call.1} parent=11 // pred_region
          _
        $region76: #{tpu_custom_call.1} parent=11 // pred_fallthru
          _
      $region12: #{tpu_custom_call.1} parent=5 // pred_fallthru
        _
      %p618 = scmp.lt.s32.totalorder %s37, 4
      // Predicated region
      $region77: #{tpu_custom_call.1} parent=5 // pred_check
        %p619 = pneg %p618
      $region78: #{tpu_custom_call.1} parent=5 // pred_check_branch
        %621 = sbr.rel (%p619) target = $region80
      $region79: #{tpu_custom_call.1} parent=5 // pred_region
        // Predicated region
        $region81: #{tpu_custom_call.1} parent=79 // pred_check
          %p622 = pneg %p71
        $region82: #{tpu_custom_call.1} parent=79 // pred_check_branch
          %624 = sbr.rel (%p622) target = $region84
        $region83: #{tpu_custom_call.1} parent=79 // pred_region
          %s625 = sand.u32 %s61, 1
          %s626 = scalar_lea.sflag [#allocation5], %s625
          %s627 = sand.u32 %s61, 1
          %s628 = smul.addr %s627, 32
          %s629 = scalar_lea.vmem [#allocation4], %s628
          %s630 = smul.u32 4, %s45
          %s632 = ssub.s32 512, 512
          %633 = vsyncadd %s626, %s632
          %s634 = smul.addr %s44, 8
          %s635 = sadd.s32 %s630, %s634
          %s636 = smul.addr %s635, 128
          %s637 = scalar_lea.hbm %s0, %s636
          %s638 = sshll.u32 %s629, 4
          %s639 = int_to_ptr.vmem [resolvable:$true] %s638
          %644 = dma.hbm_to_vmem [thread:$0]  %s637, 512, %s639, %s626, 128, 128, 8
        $region84: #{tpu_custom_call.1} parent=79 // pred_fallthru
          _
        // Predicated region
        $region85: #{tpu_custom_call.1} parent=79 // pred_check
          %p645 = pneg %p97
        $region86: #{tpu_custom_call.1} parent=79 // pred_check_branch
          %647 = sbr.rel (%p645) target = $region88
        $region87: #{tpu_custom_call.1} parent=79 // pred_region
          %s648 = sand.u32 %s37, 1
          %s649 = scalar_lea.sflag [#allocation8], %s648
          %s650 = sand.u32 %s87, 1
          %s651 = smul.addr %s650, 32
          %s652 = scalar_lea.vmem [#allocation7], %s651
          %s654 = ssub.s32 512, 512
          %655 = vsyncadd %s649, %s654
          %s656 = smul.addr %s44, 8
          %s657 = smul.addr %s656, 64
          %s658 = scalar_lea.hbm %s1, %s657
          %s659 = sshll.u32 %s652, 4
          %s660 = int_to_ptr.vmem [resolvable:$true] %s659
          %665 = dma.hbm_to_vmem [thread:$0]  %s658, 512, %s660, %s649, 64, 64, 4
        $region88: #{tpu_custom_call.1} parent=79 // pred_fallthru
          _
        // Predicated region
        $region89: #{tpu_custom_call.1} parent=79 // pred_check
          %p666 = pneg %p125
        $region90: #{tpu_custom_call.1} parent=79 // pred_check_branch
          %668 = sbr.rel (%p666) target = $region92
        $region91: #{tpu_custom_call.1} parent=79 // pred_region
          %s669 = sand.u32 %s37, 1
          %s670 = scalar_lea.sflag [#allocation8], %s669
          %s671 = sand.u32 %s115, 1
          %s672 = smul.addr %s671, 16
          %s673 = scalar_lea.vmem [#allocation9], %s672
          %s674 = smul.u32 4, %s45
          %s676 = ssub.s32 256, 256
          %677 = vsyncadd %s670, %s676
          %s678 = smul.addr %s44, 8
          %s679 = sadd.s32 %s674, %s678
          %s680 = smul.addr %s679, 64
          %s681 = scalar_lea.hbm %s2, %s680
          %s682 = sshll.u32 %s673, 4
          %s683 = int_to_ptr.vmem [resolvable:$true] %s682
          %688 = dma.hbm_to_vmem [thread:$0]  %s681, 256, %s683, %s670, 64, 64, 4
        $region92: #{tpu_custom_call.1} parent=79 // pred_fallthru
          _
      $region80: #{tpu_custom_call.1} parent=5 // pred_fallthru
        _
      %p689 = scmp.le.s32.totalorder 1, %s37
      %p690 = scmp.lt.s32.totalorder %s37, 5
      %p691 = pnand %p689, %p690
      %p692 = pneg %p691
      // Predicated region
      $region93: #{tpu_custom_call.1} parent=5 // pred_check
        _
      $region94: #{tpu_custom_call.1} parent=5 // pred_check_branch
        %694 = sbr.rel (%p691) target = $region96
      $region95: #{tpu_custom_call.1} parent=5 // pred_region
        %s695 = ssub.s32 %s37, 1
        %s696 = sand.u32 %s64, 1
        %s697 = scalar_lea.sflag [#allocation5], %s696
        %s698 = sand.u32 %s64, 1
        %s699 = smul.addr %s698, 32
        %s700 = scalar_lea.vmem [#allocation4], %s699
        // Predicated region
        $region97: #{tpu_custom_call.1} parent=95 // pred_check
          %p701 = pneg %p77
        $region98: #{tpu_custom_call.1} parent=95 // pred_check_branch
          %703 = sbr.rel (%p701) target = $region100
        $region99: #{tpu_custom_call.1} parent=95 // pred_region
          %704 = dma.done %s697, 512
        $region100: #{tpu_custom_call.1} parent=95 // pred_fallthru
          _
        %s705 = sand.u32 %s42, 1
        %s706 = scalar_lea.sflag [#allocation8], %s705
        %s707 = sand.u32 %s90, 1
        %s708 = smul.addr %s707, 32
        %s709 = scalar_lea.vmem [#allocation7], %s708
        // Predicated region
        $region101: #{tpu_custom_call.1} parent=95 // pred_check
          %p710 = pneg %p103
        $region102: #{tpu_custom_call.1} parent=95 // pred_check_branch
          %712 = sbr.rel (%p710) target = $region104
        $region103: #{tpu_custom_call.1} parent=95 // pred_region
          %713 = dma.done %s706, 512
        $region104: #{tpu_custom_call.1} parent=95 // pred_fallthru
          _
        %s714 = sand.u32 %s42, 1
        %s715 = scalar_lea.sflag [#allocation8], %s714
        %s716 = sand.u32 %s118, 1
        %s717 = smul.addr %s716, 16
        %s718 = scalar_lea.vmem [#allocation9], %s717
        // Predicated region
        $region105: #{tpu_custom_call.1} parent=95 // pred_check
          %p719 = pneg %p131
        $region106: #{tpu_custom_call.1} parent=95 // pred_check_branch
          %721 = sbr.rel (%p719) target = $region108
        $region107: #{tpu_custom_call.1} parent=95 // pred_region
          %722 = dma.done %s715, 256
        $region108: #{tpu_custom_call.1} parent=95 // pred_fallthru
          _
        // Predicated region
        $region109: #{tpu_custom_call.1} parent=95 // pred_check
          %p723 = pneg %p152
        $region110: #{tpu_custom_call.1} parent=95 // pred_check_branch
          %725 = sbr.rel (%p723) target = $region112
        $region111: #{tpu_custom_call.1} parent=95 // pred_region
          %726 = dma.done [#allocation11], 1024
        $region112: #{tpu_custom_call.1} parent=95 // pred_fallthru
          _
        // Predicated region
        $region113: #{tpu_custom_call.1} parent=95 // pred_check
          %p727 = pneg %p194
        $region114: #{tpu_custom_call.1} parent=95 // pred_check_branch
          %729 = sbr.rel (%p727) target = $region116
        $region115: #{tpu_custom_call.1} parent=95 // pred_region
          %730 = dma.done [#allocation11], 1024
        $region116: #{tpu_custom_call.1} parent=95 // pred_fallthru
          _
        // Predicated region
        $region117: #{tpu_custom_call.1} parent=95 // pred_check
          %p731 = pneg %p236
        $region118: #{tpu_custom_call.1} parent=95 // pred_check_branch
          %733 = sbr.rel (%p731) target = $region120
        $region119: #{tpu_custom_call.1} parent=95 // pred_region
          %734 = dma.done [#allocation14], 1024
        $region120: #{tpu_custom_call.1} parent=95 // pred_fallthru
          _
        // Predicated region
        $region121: #{tpu_custom_call.1} parent=95 // pred_check
          %p735 = pneg %p278
        $region122: #{tpu_custom_call.1} parent=95 // pred_check_branch
          %737 = sbr.rel (%p735) target = $region124
        $region123: #{tpu_custom_call.1} parent=95 // pred_region
          %738 = dma.done [#allocation14], 1024
        $region124: #{tpu_custom_call.1} parent=95 // pred_fallthru
          _
        // Predicated region
        $region125: #{tpu_custom_call.1} parent=95 // pred_check
          %p739 = pneg %p362
        $region126: #{tpu_custom_call.1} parent=95 // pred_check_branch
          %741 = sbr.rel (%p739) target = $region128
        $region127: #{tpu_custom_call.1} parent=95 // pred_region
          %742 = dma.done [#allocation17], 2048
        $region128: #{tpu_custom_call.1} parent=95 // pred_fallthru
          _
        // Predicated region
        $region129: #{tpu_custom_call.1} parent=95 // pred_check
          %p743 = pneg %p404
        $region130: #{tpu_custom_call.1} parent=95 // pred_check_branch
          %745 = sbr.rel (%p743) target = $region132
        $region131: #{tpu_custom_call.1} parent=95 // pred_region
          %746 = dma.done [#allocation17], 2048
        $region132: #{tpu_custom_call.1} parent=95 // pred_fallthru
          _
        %s747 = sand.u32 %s64, 1
        %s748 = scalar_lea.sflag [#allocation5], %s747
        %s749 = sand.u32 %s64, 1
        %s750 = smul.addr %s749, 32
        %s751 = scalar_lea.vmem [#allocation4], %s750
        %p752 = pneg %p77
        %p753 = pneg %p74
        %s754 = sand.u32 %s42, 1
        %s755 = scalar_lea.sflag [#allocation8], %s754
        %s756 = sand.u32 %s90, 1
        %s757 = smul.addr %s756, 32
        %s758 = scalar_lea.vmem [#allocation7], %s757
        %p759 = pneg %p103
        %p760 = pneg %p100
        %s761 = sand.u32 %s42, 1
        %s762 = scalar_lea.sflag [#allocation8], %s761
        %s763 = sand.u32 %s118, 1
        %s764 = smul.addr %s763, 16
        %s765 = scalar_lea.vmem [#allocation9], %s764
        %p766 = pneg %p131
        %p767 = pneg %p128
        %p768 = pneg %p152
        %p769 = pneg %p149
        %p770 = pneg %p173
        %p771 = pneg %p170
        %p772 = pneg %p194
        %p773 = pneg %p191
        %p774 = pneg %p215
        %p775 = pneg %p212
        %p776 = pneg %p236
        %p777 = pneg %p233
        %p778 = pneg %p257
        %p779 = pneg %p254
        %p780 = pneg %p278
        %p781 = pneg %p275
        %p782 = pneg %p299
        %p783 = pneg %p296
        %p784 = pneg %p320
        %p785 = pneg %p317
        %p786 = pneg %p341
        %p787 = pneg %p338
        %p788 = pneg %p362
        %p789 = pneg %p359
        %p790 = pneg %p383
        %p791 = pneg %p380
        %p792 = pneg %p404
        %p793 = pneg %p401
        %p794 = pneg %p425
        %p795 = pneg %p422
        %p796 = pneg %p446
        %p797 = pneg %p443
        %p798 = pneg %p467
        %p799 = pneg %p464
        %p800 = pneg %p495
        %p801 = pneg %p492
        %s802 = sand.u32 %s482, 1
        %s803 = scalar_lea.sflag [#allocation6], %s802
        %s804 = sand.u32 %s482, 1
        %s805 = smul.addr %s804, 32
        %s806 = scalar_lea.vmem [#allocation19], %s805
        %s807 = smul.u32 4, %s47
        %s808 = smul.u32 4, %s47
        %s809 = smul.u32 4, %s47
        %v811 = vld [vmem:[%s700] sm:$0xff]
        %v812 = vld [vmem:[%s700 + $0x8] sm:$0xff]
        %v813 = vld [vmem:[%s700 + $0x10] sm:$0xff]
        %v814 = vld [vmem:[%s700 + $0x18] sm:$0xff]
        %v815 = vld [vmem:[%s718] sm:$0xf]
        %v816 = vld [vmem:[%s718 + $0x4] sm:$0xf]
        %v817 = vld [vmem:[%s718 + $0x8] sm:$0xf]
        %v818 = vld [vmem:[%s718 + $0xc] sm:$0xf]
        %p819 = scmp.eq.s32.totalorder %s47, 0
        // Predicated region
        $region133: #{tpu_custom_call.1} parent=95 // pred_check
          %p820 = pneg %p819
        $region134: #{tpu_custom_call.1} parent=95 // pred_check_branch
          %822 = sbr.rel (%p820) target = $region136
        $region135: #{tpu_custom_call.1} parent=95 // pred_region
          %v823 = vld [vmem:[%s709] sm:$0xf]
          %v824 = vld [vmem:[%s709 + $0x4] sm:$0xf]
          %v825 = vld [vmem:[%s709 + $0x8] sm:$0xf]
          %v826 = vld [vmem:[%s709 + $0xc] sm:$0xf]
          %v827 = vld [vmem:[%s709 + $0x10] sm:$0xf]
          %v828 = vld [vmem:[%s709 + $0x14] sm:$0xf]
          %v829 = vld [vmem:[%s709 + $0x18] sm:$0xf]
          %v830 = vld [vmem:[%s709 + $0x1c] sm:$0xf]
          %v831 = vld [vmem:[#allocation12] sm:$0xf]
          %v832 = vld [vmem:[#allocation12 + $0x4] sm:$0xf]
          %v833 = vld [vmem:[#allocation12 + $0x8] sm:$0xf]
          %v834 = vld [vmem:[#allocation12 + $0xc] sm:$0xf]
          %v835 = vld [vmem:[#allocation12 + $0x10] sm:$0xf]
          %v836 = vld [vmem:[#allocation12 + $0x14] sm:$0xf]
          %v837 = vld [vmem:[#allocation12 + $0x18] sm:$0xf]
          %v838 = vld [vmem:[#allocation12 + $0x1c] sm:$0xf]
          %v839 = vld [vmem:[#allocation12 + $0x20] sm:$0xf]
          %v840 = vld [vmem:[#allocation12 + $0x24] sm:$0xf]
          %v841 = vld [vmem:[#allocation12 + $0x28] sm:$0xf]
          %v842 = vld [vmem:[#allocation12 + $0x2c] sm:$0xf]
          %v843 = vld [vmem:[#allocation12 + $0x30] sm:$0xf]
          %v844 = vld [vmem:[#allocation12 + $0x34] sm:$0xf]
          %v845 = vld [vmem:[#allocation12 + $0x38] sm:$0xf]
          %v846 = vld [vmem:[#allocation12 + $0x3c] sm:$0xf]
          %v847 = vld [vmem:[%s6] sm:$0x1]
          %v849 = vlaneseq
          %v850 = vshrl.u32 %v849, 7
          %v851 = vsub.s32 0, %v850
          %v852 = vrot.slane %v847, %v851
          %v862 = vunpack.c.l.b16 %v823
          %v863 = vunpack.c.l.b16 %v824
          %v864 = vunpack.c.l.b16 %v825
          %v865 = vunpack.c.l.b16 %v826
          %v866 = vunpack.c.l.b16 %v827
          %v867 = vunpack.c.l.b16 %v828
          %v868 = vunpack.c.l.b16 %v829
          %v869 = vunpack.c.l.b16 %v830
          %v870 = vpack.c.b16 %v863, %v862
          %v871 = vpack.c.b16 %v865, %v864
          %v872 = vpack.c.b16 %v867, %v866
          %v873 = vpack.c.b16 %v869, %v868
          %v894 = vunpack.c.l.b16 %v831
          %v895 = vunpack.c.l.b16 %v832
          %v896 = vunpack.c.l.b16 %v833
          %v897 = vunpack.c.l.b16 %v834
          %v898 = vunpack.c.l.b16 %v835
          %v899 = vunpack.c.l.b16 %v836
          %v900 = vunpack.c.l.b16 %v837
          %v901 = vunpack.c.l.b16 %v838
          %v902 = vunpack.c.l.b16 %v839
          %v903 = vunpack.c.l.b16 %v840
          %v904 = vunpack.c.l.b16 %v841
          %v905 = vunpack.c.l.b16 %v842
          %v906 = vunpack.c.l.b16 %v843
          %v907 = vunpack.c.l.b16 %v844
          %v908 = vunpack.c.l.b16 %v845
          %v909 = vunpack.c.l.b16 %v846
          %v910 = vpack.c.b16 %v895, %v894
          %v911 = vpack.c.b16 %v897, %v896
          %v912 = vpack.c.b16 %v899, %v898
          %v913 = vpack.c.b16 %v901, %v900
          %v914 = vpack.c.b16 %v903, %v902
          %v915 = vpack.c.b16 %v905, %v904
          %v916 = vpack.c.b16 %v907, %v906
          %v917 = vpack.c.b16 %v909, %v908
          %926 = vmatprep.subr.bf16.mxu0 0
          %927 = vmatpush1.bf16.msra.mxu0 %v917
          %928 = vmatprep.subr.bf16.mxu0 0
          %929 = vmatpush1.bf16.msra.mxu0 %v916
          %930 = vmatprep.subr.bf16.mxu0 0
          %931 = vmatpush1.bf16.msra.mxu0 %v915
          %932 = vmatprep.subr.bf16.mxu0 0
          %933 = vmatpush1.bf16.msra.mxu0 %v914
          %934 = vmatprep.subr.bf16.mxu0 0
          %935 = vmatpush1.bf16.msra.mxu0 %v913
          %936 = vmatprep.subr.bf16.mxu0 0
          %937 = vmatpush1.bf16.msra.mxu0 %v912
          %938 = vmatprep.subr.bf16.mxu0 0
          %939 = vmatpush1.bf16.msra.mxu0 %v911
          %940 = vmatprep.subr.bf16.mxu0 0
          %941 = vmatpush1.bf16.msra.mxu0 %v910
          %942 = vmatprep.subr.bf16.mxu0 0
          %943 = vmatpush2.bf16.msra.mxu0 0
          %944 = vmatprep.subr.bf16.mxu0 0
          %945 = vmatpush2.bf16.msra.mxu0 0
          %946 = vmatprep.subr.bf16.mxu0 0
          %947 = vmatpush2.bf16.msra.mxu0 0
          %948 = vmatprep.subr.bf16.mxu0 0
          %949 = vmatpush2.bf16.msra.mxu0 0
          %950 = vmatprep.subr.bf16.mxu0 0
          %951 = vmatpush2.bf16.msra.mxu0 0
          %952 = vmatprep.subr.bf16.mxu0 0
          %953 = vmatpush2.bf16.msra.mxu0 0
          %954 = vmatprep.subr.bf16.mxu0 0
          %955 = vmatpush2.bf16.msra.mxu0 0
          %956 = vmatprep.subr.bf16.mxu0 0
          %957 = vmatpush2.bf16.msra.mxu0 0
          %958 = vmatprep.mubr.bf16.mxu0 0
          %959 = vmatmul.mubr.bf16.gmra.mxu0 %v870
          %v960 = vpop.f32.mrf.mxu0
          %v961 = vadd.f32 %v852, %v960
          %v962 = vpop.f32.mrf.mxu0
          %v963 = vpop.f32.mrf.mxu0
          %v964 = vadd.f32 %v852, %v963
          %v965 = vpop.f32.mrf.mxu0
          %966 = vmatprep.mubr.bf16.mxu0 0
          %967 = vmatmul.mubr.bf16.gmra.mxu0 %v871
          %v968 = vpop.f32.mrf.mxu0
          %v969 = vadd.f32 %v852, %v968
          %v970 = vpop.f32.mrf.mxu0
          %v971 = vpop.f32.mrf.mxu0
          %v972 = vadd.f32 %v852, %v971
          %v973 = vpop.f32.mrf.mxu0
          %974 = vmatprep.mubr.bf16.mxu0 0
          %975 = vmatmul.mubr.bf16.gmra.mxu0 %v872
          %v976 = vpop.f32.mrf.mxu0
          %v977 = vadd.f32 %v852, %v976
          %v978 = vpop.f32.mrf.mxu0
          %v979 = vpop.f32.mrf.mxu0
          %v980 = vadd.f32 %v852, %v979
          %v981 = vpop.f32.mrf.mxu0
          %982 = vmatprep.mubr.bf16.mxu0 0
          %983 = vmatmul.mubr.bf16.gmra.mxu0 %v873
          %v984 = vpop.f32.mrf.mxu0
          %v985 = vadd.f32 %v852, %v984
          %v986 = vpop.f32.mrf.mxu0
          %v987 = vpop.f32.mrf.mxu0
          %v988 = vadd.f32 %v852, %v987
          %v989 = vpop.f32.mrf.mxu0
          %990 = vdwg.mxu0
          %v991 = vld [vmem:[#allocation13] sm:$0xf]
          %v992 = vld [vmem:[#allocation13 + $0x4] sm:$0xf]
          %v993 = vld [vmem:[#allocation13 + $0x8] sm:$0xf]
          %v994 = vld [vmem:[#allocation13 + $0xc] sm:$0xf]
          %v995 = vld [vmem:[#allocation13 + $0x10] sm:$0xf]
          %v996 = vld [vmem:[#allocation13 + $0x14] sm:$0xf]
          %v997 = vld [vmem:[#allocation13 + $0x18] sm:$0xf]
          %v998 = vld [vmem:[#allocation13 + $0x1c] sm:$0xf]
          %v999 = vld [vmem:[#allocation13 + $0x20] sm:$0xf]
          %v1000 = vld [vmem:[#allocation13 + $0x24] sm:$0xf]
          %v1001 = vld [vmem:[#allocation13 + $0x28] sm:$0xf]
          %v1002 = vld [vmem:[#allocation13 + $0x2c] sm:$0xf]
          %v1003 = vld [vmem:[#allocation13 + $0x30] sm:$0xf]
          %v1004 = vld [vmem:[#allocation13 + $0x34] sm:$0xf]
          %v1005 = vld [vmem:[#allocation13 + $0x38] sm:$0xf]
          %v1006 = vld [vmem:[#allocation13 + $0x3c] sm:$0xf]
          %v1007 = vld [vmem:[%s8] sm:$0x1]
          %v1009 = vlaneseq
          %v1010 = vshrl.u32 %v1009, 7
          %v1011 = vsub.s32 0, %v1010
          %v1012 = vrot.slane %v1007, %v1011
          %v1030 = vunpack.c.l.b16 %v991
          %v1031 = vunpack.c.l.b16 %v992
          %v1032 = vunpack.c.l.b16 %v993
          %v1033 = vunpack.c.l.b16 %v994
          %v1034 = vunpack.c.l.b16 %v995
          %v1035 = vunpack.c.l.b16 %v996
          %v1036 = vunpack.c.l.b16 %v997
          %v1037 = vunpack.c.l.b16 %v998
          %v1038 = vunpack.c.l.b16 %v999
          %v1039 = vunpack.c.l.b16 %v1000
          %v1040 = vunpack.c.l.b16 %v1001
          %v1041 = vunpack.c.l.b16 %v1002
          %v1042 = vunpack.c.l.b16 %v1003
          %v1043 = vunpack.c.l.b16 %v1004
          %v1044 = vunpack.c.l.b16 %v1005
          %v1045 = vunpack.c.l.b16 %v1006
          %v1046 = vpack.c.b16 %v1031, %v1030
          %v1047 = vpack.c.b16 %v1033, %v1032
          %v1048 = vpack.c.b16 %v1035, %v1034
          %v1049 = vpack.c.b16 %v1037, %v1036
          %v1050 = vpack.c.b16 %v1039, %v1038
          %v1051 = vpack.c.b16 %v1041, %v1040
          %v1052 = vpack.c.b16 %v1043, %v1042
          %v1053 = vpack.c.b16 %v1045, %v1044
          %1062 = vmatprep.subr.bf16.mxu0 0
          %1063 = vmatpush1.bf16.msra.mxu0 %v1053
          %1064 = vmatprep.subr.bf16.mxu0 0
          %1065 = vmatpush1.bf16.msra.mxu0 %v1052
          %1066 = vmatprep.subr.bf16.mxu0 0
          %1067 = vmatpush1.bf16.msra.mxu0 %v1051
          %1068 = vmatprep.subr.bf16.mxu0 0
          %1069 = vmatpush1.bf16.msra.mxu0 %v1050
          %1070 = vmatprep.subr.bf16.mxu0 0
          %1071 = vmatpush1.bf16.msra.mxu0 %v1049
          %1072 = vmatprep.subr.bf16.mxu0 0
          %1073 = vmatpush1.bf16.msra.mxu0 %v1048
          %1074 = vmatprep.subr.bf16.mxu0 0
          %1075 = vmatpush1.bf16.msra.mxu0 %v1047
          %1076 = vmatprep.subr.bf16.mxu0 0
          %1077 = vmatpush1.bf16.msra.mxu0 %v1046
          %1078 = vmatprep.subr.bf16.mxu0 0
          %1079 = vmatpush2.bf16.msra.mxu0 0
          %1080 = vmatprep.subr.bf16.mxu0 0
          %1081 = vmatpush2.bf16.msra.mxu0 0
          %1082 = vmatprep.subr.bf16.mxu0 0
          %1083 = vmatpush2.bf16.msra.mxu0 0
          %1084 = vmatprep.subr.bf16.mxu0 0
          %1085 = vmatpush2.bf16.msra.mxu0 0
          %1086 = vmatprep.subr.bf16.mxu0 0
          %1087 = vmatpush2.bf16.msra.mxu0 0
          %1088 = vmatprep.subr.bf16.mxu0 0
          %1089 = vmatpush2.bf16.msra.mxu0 0
          %1090 = vmatprep.subr.bf16.mxu0 0
          %1091 = vmatpush2.bf16.msra.mxu0 0
          %1092 = vmatprep.subr.bf16.mxu0 0
          %1093 = vmatpush2.bf16.msra.mxu0 0
          %1094 = vmatprep.mubr.bf16.mxu0 0
          %1095 = vmatmul.mubr.bf16.gmra.mxu0 %v870
          %v1096 = vpop.f32.mrf.mxu0
          %v1097 = vadd.f32 %v1012, %v1096
          %v1098 = vpop.f32.mrf.mxu0
          %v1099 = vpop.f32.mrf.mxu0
          %v1100 = vadd.f32 %v1012, %v1099
          %v1101 = vpop.f32.mrf.mxu0
          %1102 = vmatprep.mubr.bf16.mxu0 0
          %1103 = vmatmul.mubr.bf16.gmra.mxu0 %v871
          %v1104 = vpop.f32.mrf.mxu0
          %v1105 = vadd.f32 %v1012, %v1104
          %v1106 = vpop.f32.mrf.mxu0
          %v1107 = vpop.f32.mrf.mxu0
          %v1108 = vadd.f32 %v1012, %v1107
          %v1109 = vpop.f32.mrf.mxu0
          %1110 = vmatprep.mubr.bf16.mxu0 0
          %1111 = vmatmul.mubr.bf16.gmra.mxu0 %v872
          %v1112 = vpop.f32.mrf.mxu0
          %v1113 = vadd.f32 %v1012, %v1112
          %v1114 = vpop.f32.mrf.mxu0
          %v1115 = vpop.f32.mrf.mxu0
          %v1116 = vadd.f32 %v1012, %v1115
          %v1117 = vpop.f32.mrf.mxu0
          %1118 = vmatprep.mubr.bf16.mxu0 0
          %1119 = vmatmul.mubr.bf16.gmra.mxu0 %v873
          %v1120 = vpop.f32.mrf.mxu0
          %v1121 = vadd.f32 %v1012, %v1120
          %v1122 = vpop.f32.mrf.mxu0
          %v1123 = vpop.f32.mrf.mxu0
          %v1124 = vadd.f32 %v1012, %v1123
          %v1125 = vpop.f32.mrf.mxu0
          %1126 = vdwg.mxu0
          %v1127 = vpack.c.bf16 %v964, %v961
          %v1128 = vpack.c.bf16 %v972, %v969
          %v1129 = vpack.c.bf16 %v980, %v977
          %v1130 = vpack.c.bf16 %v988, %v985
          %v1131 = vpack.c.bf16 %v1100, %v1097
          %v1132 = vpack.c.bf16 %v1108, %v1105
          %v1133 = vpack.c.bf16 %v1116, %v1113
          %v1134 = vpack.c.bf16 %v1124, %v1121
          %v1139 = vunpack.c.l.b16 %v1127
          %v1140 = vunpack.c.h.b16 %v1127
          %v1141 = vunpack.c.l.b16 %v1128
          %v1142 = vunpack.c.h.b16 %v1128
          %v1143 = vunpack.c.l.b16 %v1129
          %v1144 = vunpack.c.h.b16 %v1129
          %v1145 = vunpack.c.l.b16 %v1130
          %v1146 = vunpack.c.h.b16 %v1130
          %v1147 = vpack.c.b16 %v1139, %v1139
          %v1148 = vpack.c.b16 %v1140, %v1140
          %v1149 = vpack.c.b16 %v1141, %v1141
          %v1150 = vpack.c.b16 %v1142, %v1142
          %v1151 = vpack.c.b16 %v1143, %v1143
          %v1152 = vpack.c.b16 %v1144, %v1144
          %v1153 = vpack.c.b16 %v1145, %v1145
          %v1154 = vpack.c.b16 %v1146, %v1146
          %vm1163 = vcmask 257024
          %1164 = vst.msk [vmem:[#allocation2] sm:$0xf] %vm1163, %v1147
          %1165 = vst.msk [vmem:[#allocation2 + $0x4] sm:$0xf] %vm1163, %v1148
          %1166 = vst.msk [vmem:[#allocation2 + $0x8] sm:$0xf] %vm1163, %v1149
          %1167 = vst.msk [vmem:[#allocation2 + $0xc] sm:$0xf] %vm1163, %v1150
          %1168 = vst.msk [vmem:[#allocation2 + $0x10] sm:$0xf] %vm1163, %v1151
          %1169 = vst.msk [vmem:[#allocation2 + $0x14] sm:$0xf] %vm1163, %v1152
          %1170 = vst.msk [vmem:[#allocation2 + $0x18] sm:$0xf] %vm1163, %v1153
          %1171 = vst.msk [vmem:[#allocation2 + $0x1c] sm:$0xf] %vm1163, %v1154
          %v1176 = vunpack.c.l.b16 %v1131
          %v1177 = vunpack.c.h.b16 %v1131
          %v1178 = vunpack.c.l.b16 %v1132
          %v1179 = vunpack.c.h.b16 %v1132
          %v1180 = vunpack.c.l.b16 %v1133
          %v1181 = vunpack.c.h.b16 %v1133
          %v1182 = vunpack.c.l.b16 %v1134
          %v1183 = vunpack.c.h.b16 %v1134
          %v1184 = vpack.c.b16 %v1176, %v1176
          %v1185 = vpack.c.b16 %v1177, %v1177
          %v1186 = vpack.c.b16 %v1178, %v1178
          %v1187 = vpack.c.b16 %v1179, %v1179
          %v1188 = vpack.c.b16 %v1180, %v1180
          %v1189 = vpack.c.b16 %v1181, %v1181
          %v1190 = vpack.c.b16 %v1182, %v1182
          %v1191 = vpack.c.b16 %v1183, %v1183
          %1200 = vst.msk [vmem:[#allocation3] sm:$0xf] %vm1163, %v1184
          %1201 = vst.msk [vmem:[#allocation3 + $0x4] sm:$0xf] %vm1163, %v1185
          %1202 = vst.msk [vmem:[#allocation3 + $0x8] sm:$0xf] %vm1163, %v1186
          %1203 = vst.msk [vmem:[#allocation3 + $0xc] sm:$0xf] %vm1163, %v1187
          %1204 = vst.msk [vmem:[#allocation3 + $0x10] sm:$0xf] %vm1163, %v1188
          %1205 = vst.msk [vmem:[#allocation3 + $0x14] sm:$0xf] %vm1163, %v1189
          %1206 = vst.msk [vmem:[#allocation3 + $0x18] sm:$0xf] %vm1163, %v1190
          %1207 = vst.msk [vmem:[#allocation3 + $0x1c] sm:$0xf] %vm1163, %v1191
          %1208 = vrot.lane.b32.xlu0 %v1147, 96
          %v1209 = vpop.permute.xlu0 %1208
          %1210 = vrot.lane.b32.xlu0 %v1148, 96
          %v1211 = vpop.permute.xlu0 %1210
          %1212 = vrot.lane.b32.xlu0 %v1149, 96
          %v1213 = vpop.permute.xlu0 %1212
          %1214 = vrot.lane.b32.xlu0 %v1150, 96
          %v1215 = vpop.permute.xlu0 %1214
          %1216 = vrot.lane.b32.xlu0 %v1151, 96
          %v1217 = vpop.permute.xlu0 %1216
          %1218 = vrot.lane.b32.xlu0 %v1152, 96
          %v1219 = vpop.permute.xlu0 %1218
          %1220 = vrot.lane.b32.xlu0 %v1153, 96
          %v1221 = vpop.permute.xlu0 %1220
          %1222 = vrot.lane.b32.xlu0 %v1154, 96
          %v1223 = vpop.permute.xlu0 %1222
          %s1232 = scalar_lea.vmem [#allocation2], 32
          %1233 = vst.msk [vmem:[%s1232] sm:$0xf] %vm1163, %v1209
          %1234 = vst.msk [vmem:[%s1232 + $0x4] sm:$0xf] %vm1163, %v1211
          %1235 = vst.msk [vmem:[%s1232 + $0x8] sm:$0xf] %vm1163, %v1213
          %1236 = vst.msk [vmem:[%s1232 + $0xc] sm:$0xf] %vm1163, %v1215
          %1237 = vst.msk [vmem:[%s1232 + $0x10] sm:$0xf] %vm1163, %v1217
          %1238 = vst.msk [vmem:[%s1232 + $0x14] sm:$0xf] %vm1163, %v1219
          %1239 = vst.msk [vmem:[%s1232 + $0x18] sm:$0xf] %vm1163, %v1221
          %1240 = vst.msk [vmem:[%s1232 + $0x1c] sm:$0xf] %vm1163, %v1223
          %1241 = vrot.lane.b32.xlu0 %v1184, 96
          %v1242 = vpop.permute.xlu0 %1241
          %1243 = vrot.lane.b32.xlu0 %v1185, 96
          %v1244 = vpop.permute.xlu0 %1243
          %1245 = vrot.lane.b32.xlu0 %v1186, 96
          %v1246 = vpop.permute.xlu0 %1245
          %1247 = vrot.lane.b32.xlu0 %v1187, 96
          %v1248 = vpop.permute.xlu0 %1247
          %1249 = vrot.lane.b32.xlu0 %v1188, 96
          %v1250 = vpop.permute.xlu0 %1249
          %1251 = vrot.lane.b32.xlu0 %v1189, 96
          %v1252 = vpop.permute.xlu0 %1251
          %1253 = vrot.lane.b32.xlu0 %v1190, 96
          %v1254 = vpop.permute.xlu0 %1253
          %1255 = vrot.lane.b32.xlu0 %v1191, 96
          %v1256 = vpop.permute.xlu0 %1255
          %s1265 = scalar_lea.vmem [#allocation3], 32
          %1266 = vst.msk [vmem:[%s1265] sm:$0xf] %vm1163, %v1242
          %1267 = vst.msk [vmem:[%s1265 + $0x4] sm:$0xf] %vm1163, %v1244
          %1268 = vst.msk [vmem:[%s1265 + $0x8] sm:$0xf] %vm1163, %v1246
          %1269 = vst.msk [vmem:[%s1265 + $0xc] sm:$0xf] %vm1163, %v1248
          %1270 = vst.msk [vmem:[%s1265 + $0x10] sm:$0xf] %vm1163, %v1250
          %1271 = vst.msk [vmem:[%s1265 + $0x14] sm:$0xf] %vm1163, %v1252
          %1272 = vst.msk [vmem:[%s1265 + $0x18] sm:$0xf] %vm1163, %v1254
          %1273 = vst.msk [vmem:[%s1265 + $0x1c] sm:$0xf] %vm1163, %v1256
          %1274 = vrot.lane.b32.xlu0 %v1147, 64
          %v1275 = vpop.permute.xlu0 %1274
          %1276 = vrot.lane.b32.xlu0 %v1148, 64
          %v1277 = vpop.permute.xlu0 %1276
          %1278 = vrot.lane.b32.xlu0 %v1149, 64
          %v1279 = vpop.permute.xlu0 %1278
          %1280 = vrot.lane.b32.xlu0 %v1150, 64
          %v1281 = vpop.permute.xlu0 %1280
          %1282 = vrot.lane.b32.xlu0 %v1151, 64
          %v1283 = vpop.permute.xlu0 %1282
          %1284 = vrot.lane.b32.xlu0 %v1152, 64
          %v1285 = vpop.permute.xlu0 %1284
          %1286 = vrot.lane.b32.xlu0 %v1153, 64
          %v1287 = vpop.permute.xlu0 %1286
          %1288 = vrot.lane.b32.xlu0 %v1154, 64
          %v1289 = vpop.permute.xlu0 %1288
          %s1298 = scalar_lea.vmem [#allocation2], 64
          %1299 = vst.msk [vmem:[%s1298] sm:$0xf] %vm1163, %v1275
          %1300 = vst.msk [vmem:[%s1298 + $0x4] sm:$0xf] %vm1163, %v1277
          %1301 = vst.msk [vmem:[%s1298 + $0x8] sm:$0xf] %vm1163, %v1279
          %1302 = vst.msk [vmem:[%s1298 + $0xc] sm:$0xf] %vm1163, %v1281
          %1303 = vst.msk [vmem:[%s1298 + $0x10] sm:$0xf] %vm1163, %v1283
          %1304 = vst.msk [vmem:[%s1298 + $0x14] sm:$0xf] %vm1163, %v1285
          %1305 = vst.msk [vmem:[%s1298 + $0x18] sm:$0xf] %vm1163, %v1287
          %1306 = vst.msk [vmem:[%s1298 + $0x1c] sm:$0xf] %vm1163, %v1289
          %1307 = vrot.lane.b32.xlu0 %v1184, 64
          %v1308 = vpop.permute.xlu0 %1307
          %1309 = vrot.lane.b32.xlu0 %v1185, 64
          %v1310 = vpop.permute.xlu0 %1309
          %1311 = vrot.lane.b32.xlu0 %v1186, 64
          %v1312 = vpop.permute.xlu0 %1311
          %1313 = vrot.lane.b32.xlu0 %v1187, 64
          %v1314 = vpop.permute.xlu0 %1313
          %1315 = vrot.lane.b32.xlu0 %v1188, 64
          %v1316 = vpop.permute.xlu0 %1315
          %1317 = vrot.lane.b32.xlu0 %v1189, 64
          %v1318 = vpop.permute.xlu0 %1317
          %1319 = vrot.lane.b32.xlu0 %v1190, 64
          %v1320 = vpop.permute.xlu0 %1319
          %1321 = vrot.lane.b32.xlu0 %v1191, 64
          %v1322 = vpop.permute.xlu0 %1321
          %s1331 = scalar_lea.vmem [#allocation3], 64
          %1332 = vst.msk [vmem:[%s1331] sm:$0xf] %vm1163, %v1308
          %1333 = vst.msk [vmem:[%s1331 + $0x4] sm:$0xf] %vm1163, %v1310
          %1334 = vst.msk [vmem:[%s1331 + $0x8] sm:$0xf] %vm1163, %v1312
          %1335 = vst.msk [vmem:[%s1331 + $0xc] sm:$0xf] %vm1163, %v1314
          %1336 = vst.msk [vmem:[%s1331 + $0x10] sm:$0xf] %vm1163, %v1316
          %1337 = vst.msk [vmem:[%s1331 + $0x14] sm:$0xf] %vm1163, %v1318
          %1338 = vst.msk [vmem:[%s1331 + $0x18] sm:$0xf] %vm1163, %v1320
          %1339 = vst.msk [vmem:[%s1331 + $0x1c] sm:$0xf] %vm1163, %v1322
          %1340 = vrot.lane.b32.xlu0 %v1147, 32
          %v1341 = vpop.permute.xlu0 %1340
          %1342 = vrot.lane.b32.xlu0 %v1148, 32
          %v1343 = vpop.permute.xlu0 %1342
          %1344 = vrot.lane.b32.xlu0 %v1149, 32
          %v1345 = vpop.permute.xlu0 %1344
          %1346 = vrot.lane.b32.xlu0 %v1150, 32
          %v1347 = vpop.permute.xlu0 %1346
          %1348 = vrot.lane.b32.xlu0 %v1151, 32
          %v1349 = vpop.permute.xlu0 %1348
          %1350 = vrot.lane.b32.xlu0 %v1152, 32
          %v1351 = vpop.permute.xlu0 %1350
          %1352 = vrot.lane.b32.xlu0 %v1153, 32
          %v1353 = vpop.permute.xlu0 %1352
          %1354 = vrot.lane.b32.xlu0 %v1154, 32
          %v1355 = vpop.permute.xlu0 %1354
          %s1364 = scalar_lea.vmem [#allocation2], 96
          %1365 = vst.msk [vmem:[%s1364] sm:$0xf] %vm1163, %v1341
          %1366 = vst.msk [vmem:[%s1364 + $0x4] sm:$0xf] %vm1163, %v1343
          %1367 = vst.msk [vmem:[%s1364 + $0x8] sm:$0xf] %vm1163, %v1345
          %1368 = vst.msk [vmem:[%s1364 + $0xc] sm:$0xf] %vm1163, %v1347
          %1369 = vst.msk [vmem:[%s1364 + $0x10] sm:$0xf] %vm1163, %v1349
          %1370 = vst.msk [vmem:[%s1364 + $0x14] sm:$0xf] %vm1163, %v1351
          %1371 = vst.msk [vmem:[%s1364 + $0x18] sm:$0xf] %vm1163, %v1353
          %1372 = vst.msk [vmem:[%s1364 + $0x1c] sm:$0xf] %vm1163, %v1355
          %1373 = vrot.lane.b32.xlu0 %v1184, 32
          %v1374 = vpop.permute.xlu0 %1373
          %1375 = vrot.lane.b32.xlu0 %v1185, 32
          %v1376 = vpop.permute.xlu0 %1375
          %1377 = vrot.lane.b32.xlu0 %v1186, 32
          %v1378 = vpop.permute.xlu0 %1377
          %1379 = vrot.lane.b32.xlu0 %v1187, 32
          %v1380 = vpop.permute.xlu0 %1379
          %1381 = vrot.lane.b32.xlu0 %v1188, 32
          %v1382 = vpop.permute.xlu0 %1381
          %1383 = vrot.lane.b32.xlu0 %v1189, 32
          %v1384 = vpop.permute.xlu0 %1383
          %1385 = vrot.lane.b32.xlu0 %v1190, 32
          %v1386 = vpop.permute.xlu0 %1385
          %1387 = vrot.lane.b32.xlu0 %v1191, 32
          %v1388 = vpop.permute.xlu0 %1387
          %s1397 = scalar_lea.vmem [#allocation3], 96
          %1398 = vst.msk [vmem:[%s1397] sm:$0xf] %vm1163, %v1374
          %1399 = vst.msk [vmem:[%s1397 + $0x4] sm:$0xf] %vm1163, %v1376
          %1400 = vst.msk [vmem:[%s1397 + $0x8] sm:$0xf] %vm1163, %v1378
          %1401 = vst.msk [vmem:[%s1397 + $0xc] sm:$0xf] %vm1163, %v1380
          %1402 = vst.msk [vmem:[%s1397 + $0x10] sm:$0xf] %vm1163, %v1382
          %1403 = vst.msk [vmem:[%s1397 + $0x14] sm:$0xf] %vm1163, %v1384
          %1404 = vst.msk [vmem:[%s1397 + $0x18] sm:$0xf] %vm1163, %v1386
          %1405 = vst.msk [vmem:[%s1397 + $0x1c] sm:$0xf] %vm1163, %v1388
        $region136: #{tpu_custom_call.1} parent=95 // pred_fallthru
          _
        %v1406 = vpack.c.bf16 %v812, %v811
        %v1407 = vpack.c.bf16 %v814, %v813
        %v1408 = vld [vmem:[#allocation10] sm:$0xf]
        %v1409 = vld [vmem:[#allocation10 + $0x4] sm:$0xf]
        %v1410 = vld [vmem:[#allocation10 + $0x8] sm:$0xf]
        %v1411 = vld [vmem:[#allocation10 + $0xc] sm:$0xf]
        %v1412 = vld [vmem:[#allocation10 + $0x10] sm:$0xf]
        %v1413 = vld [vmem:[#allocation10 + $0x14] sm:$0xf]
        %v1414 = vld [vmem:[#allocation10 + $0x18] sm:$0xf]
        %v1415 = vld [vmem:[#allocation10 + $0x1c] sm:$0xf]
        %v1416 = vld [vmem:[#allocation10 + $0x20] sm:$0xf]
        %v1417 = vld [vmem:[#allocation10 + $0x24] sm:$0xf]
        %v1418 = vld [vmem:[#allocation10 + $0x28] sm:$0xf]
        %v1419 = vld [vmem:[#allocation10 + $0x2c] sm:$0xf]
        %v1420 = vld [vmem:[#allocation10 + $0x30] sm:$0xf]
        %v1421 = vld [vmem:[#allocation10 + $0x34] sm:$0xf]
        %v1422 = vld [vmem:[#allocation10 + $0x38] sm:$0xf]
        %v1423 = vld [vmem:[#allocation10 + $0x3c] sm:$0xf]
        %v1424 = vld [vmem:[%s4] sm:$0x1]
        %v1426 = vlaneseq
        %v1427 = vshrl.u32 %v1426, 7
        %v1428 = vsub.s32 0, %v1427
        %v1429 = vrot.slane %v1424, %v1428
        %v1447 = vunpack.c.l.b16 %v1408
        %v1448 = vunpack.c.l.b16 %v1409
        %v1449 = vunpack.c.l.b16 %v1410
        %v1450 = vunpack.c.l.b16 %v1411
        %v1451 = vunpack.c.l.b16 %v1412
        %v1452 = vunpack.c.l.b16 %v1413
        %v1453 = vunpack.c.l.b16 %v1414
        %v1454 = vunpack.c.l.b16 %v1415
        %v1455 = vunpack.c.l.b16 %v1416
        %v1456 = vunpack.c.l.b16 %v1417
        %v1457 = vunpack.c.l.b16 %v1418
        %v1458 = vunpack.c.l.b16 %v1419
        %v1459 = vunpack.c.l.b16 %v1420
        %v1460 = vunpack.c.l.b16 %v1421
        %v1461 = vunpack.c.l.b16 %v1422
        %v1462 = vunpack.c.l.b16 %v1423
        %v1463 = vpack.c.b16 %v1448, %v1447
        %v1464 = vpack.c.b16 %v1450, %v1449
        %v1465 = vpack.c.b16 %v1452, %v1451
        %v1466 = vpack.c.b16 %v1454, %v1453
        %v1467 = vpack.c.b16 %v1456, %v1455
        %v1468 = vpack.c.b16 %v1458, %v1457
        %v1469 = vpack.c.b16 %v1460, %v1459
        %v1470 = vpack.c.b16 %v1462, %v1461
        %1479 = vmatprep.subr.bf16.mxu0 0
        %1480 = vmatpush1.bf16.msra.mxu0 %v1470
        %1481 = vmatprep.subr.bf16.mxu0 0
        %1482 = vmatpush1.bf16.msra.mxu0 %v1469
        %1483 = vmatprep.subr.bf16.mxu0 0
        %1484 = vmatpush1.bf16.msra.mxu0 %v1468
        %1485 = vmatprep.subr.bf16.mxu0 0
        %1486 = vmatpush1.bf16.msra.mxu0 %v1467
        %1487 = vmatprep.subr.bf16.mxu0 0
        %1488 = vmatpush1.bf16.msra.mxu0 %v1466
        %1489 = vmatprep.subr.bf16.mxu0 0
        %1490 = vmatpush1.bf16.msra.mxu0 %v1465
        %1491 = vmatprep.subr.bf16.mxu0 0
        %1492 = vmatpush1.bf16.msra.mxu0 %v1464
        %1493 = vmatprep.subr.bf16.mxu0 0
        %1494 = vmatpush1.bf16.msra.mxu0 %v1463
        %1495 = vmatprep.subr.bf16.mxu0 0
        %1496 = vmatpush2.bf16.msra.mxu0 0
        %1497 = vmatprep.subr.bf16.mxu0 0
        %1498 = vmatpush2.bf16.msra.mxu0 0
        %1499 = vmatprep.subr.bf16.mxu0 0
        %1500 = vmatpush2.bf16.msra.mxu0 0
        %1501 = vmatprep.subr.bf16.mxu0 0
        %1502 = vmatpush2.bf16.msra.mxu0 0
        %1503 = vmatprep.subr.bf16.mxu0 0
        %1504 = vmatpush2.bf16.msra.mxu0 0
        %1505 = vmatprep.subr.bf16.mxu0 0
        %1506 = vmatpush2.bf16.msra.mxu0 0
        %1507 = vmatprep.subr.bf16.mxu0 0
        %1508 = vmatpush2.bf16.msra.mxu0 0
        %1509 = vmatprep.subr.bf16.mxu0 0
        %1510 = vmatpush2.bf16.msra.mxu0 0
        %1511 = vmatprep.mubr.bf16.mxu0 0
        %1512 = vmatmul.mubr.bf16.gmra.mxu0 %v1406
        %v1513 = vpop.f32.mrf.mxu0
        %v1514 = vadd.f32 %v1429, %v1513
        %v1515 = vpop.f32.mrf.mxu0
        %v1516 = vpop.f32.mrf.mxu0
        %v1517 = vadd.f32 %v1429, %v1516
        %v1518 = vpop.f32.mrf.mxu0
        %1519 = vmatprep.mubr.bf16.mxu0 0
        %1520 = vmatmul.mubr.bf16.gmra.mxu0 %v1407
        %v1521 = vpop.f32.mrf.mxu0
        %v1522 = vadd.f32 %v1429, %v1521
        %v1523 = vpop.f32.mrf.mxu0
        %v1524 = vpop.f32.mrf.mxu0
        %v1525 = vadd.f32 %v1429, %v1524
        %v1526 = vpop.f32.mrf.mxu0
        %1527 = vdwg.mxu0
        %v1528 = vmul.f32 %v1514, 0.17677669
        %v1529 = vmul.f32 %v1517, 0.17677669
        %v1530 = vmul.f32 %v1522, 0.17677669
        %v1531 = vmul.f32 %v1525, 0.17677669
        %v1532 = vpack.c.bf16 %v1529, %v1528
        %v1533 = vpack.c.bf16 %v1531, %v1530
        %1536 = vrot.lane.b32.xlu0 %v1532, 96
        %v1537 = vpop.permute.xlu0 %1536
        %1538 = vrot.lane.b32.xlu0 %v1533, 96
        %v1539 = vpop.permute.xlu0 %1538
        %1540 = vrot.lane.b32.xlu0 %v1532, 64
        %v1541 = vpop.permute.xlu0 %1540
        %1542 = vrot.lane.b32.xlu0 %v1533, 64
        %v1543 = vpop.permute.xlu0 %1542
        %1544 = vrot.lane.b32.xlu0 %v1532, 32
        %v1545 = vpop.permute.xlu0 %1544
        %1546 = vrot.lane.b32.xlu0 %v1533, 32
        %v1547 = vpop.permute.xlu0 %1546
        %v1548 = vunpack.c.l.bf16 %v815
        %v1549 = vunpack.c.l.bf16 %v816
        %v1550 = vunpack.c.l.bf16 %v817
        %v1551 = vunpack.c.l.bf16 %v818
        %v1552 = vsub.f32 %v1548, 1.0
        %v1553 = vsub.f32 %v1549, 1.0
        %v1554 = vsub.f32 %v1550, 1.0
        %v1555 = vsub.f32 %v1551, 1.0
        %v1556 = vmul.f32 %v1552, 1e+09
        %v1557 = vmul.f32 %v1553, 1e+09
        %v1558 = vmul.f32 %v1554, 1e+09
        %v1559 = vmul.f32 %v1555, 1e+09
        %v1560 = vld [vmem:[#allocation2] sm:$0xf]
        %v1561 = vld [vmem:[#allocation2 + $0x4] sm:$0xf]
        %v1562 = vld [vmem:[#allocation2 + $0x8] sm:$0xf]
        %v1563 = vld [vmem:[#allocation2 + $0xc] sm:$0xf]
        %v1564 = vld [vmem:[#allocation2 + $0x10] sm:$0xf]
        %v1565 = vld [vmem:[#allocation2 + $0x14] sm:$0xf]
        %v1566 = vld [vmem:[#allocation2 + $0x18] sm:$0xf]
        %v1567 = vld [vmem:[#allocation2 + $0x1c] sm:$0xf]
        %v1568 = vld [vmem:[#allocation2 + $0x20] sm:$0xf]
        %v1569 = vld [vmem:[#allocation2 + $0x24] sm:$0xf]
        %v1570 = vld [vmem:[#allocation2 + $0x28] sm:$0xf]
        %v1571 = vld [vmem:[#allocation2 + $0x2c] sm:$0xf]
        %v1572 = vld [vmem:[#allocation2 + $0x30] sm:$0xf]
        %v1573 = vld [vmem:[#allocation2 + $0x34] sm:$0xf]
        %v1574 = vld [vmem:[#allocation2 + $0x38] sm:$0xf]
        %v1575 = vld [vmem:[#allocation2 + $0x3c] sm:$0xf]
        %v1576 = vld [vmem:[#allocation2 + $0x40] sm:$0xf]
        %v1577 = vld [vmem:[#allocation2 + $0x44] sm:$0xf]
        %v1578 = vld [vmem:[#allocation2 + $0x48] sm:$0xf]
        %v1579 = vld [vmem:[#allocation2 + $0x4c] sm:$0xf]
        %v1580 = vld [vmem:[#allocation2 + $0x50] sm:$0xf]
        %v1581 = vld [vmem:[#allocation2 + $0x54] sm:$0xf]
        %v1582 = vld [vmem:[#allocation2 + $0x58] sm:$0xf]
        %v1583 = vld [vmem:[#allocation2 + $0x5c] sm:$0xf]
        %v1584 = vld [vmem:[#allocation2 + $0x60] sm:$0xf]
        %v1585 = vld [vmem:[#allocation2 + $0x64] sm:$0xf]
        %v1586 = vld [vmem:[#allocation2 + $0x68] sm:$0xf]
        %v1587 = vld [vmem:[#allocation2 + $0x6c] sm:$0xf]
        %v1588 = vld [vmem:[#allocation2 + $0x70] sm:$0xf]
        %v1589 = vld [vmem:[#allocation2 + $0x74] sm:$0xf]
        %v1590 = vld [vmem:[#allocation2 + $0x78] sm:$0xf]
        %v1591 = vld [vmem:[#allocation2 + $0x7c] sm:$0xf]
        %v1600 = vunpack.c.l.b16 %v1560
        %v1601 = vunpack.c.l.b16 %v1561
        %v1602 = vunpack.c.l.b16 %v1562
        %v1603 = vunpack.c.l.b16 %v1563
        %v1604 = vunpack.c.l.b16 %v1564
        %v1605 = vunpack.c.l.b16 %v1565
        %v1606 = vunpack.c.l.b16 %v1566
        %v1607 = vunpack.c.l.b16 %v1567
        %v1608 = vpack.c.b16 %v1601, %v1600
        %v1609 = vpack.c.b16 %v1603, %v1602
        %v1610 = vpack.c.b16 %v1605, %v1604
        %v1611 = vpack.c.b16 %v1607, %v1606
        %vm1612 = vcmask 261120
        %v1614 = vsel %vm1612, %v1532, 0
        %v1617 = vsel %vm1612, %v1533, 0
        %v1620 = vsel %vm1612, %v1608, 0
        %v1623 = vsel %vm1612, %v1609, 0
        %v1626 = vsel %vm1612, %v1610, 0
        %v1629 = vsel %vm1612, %v1611, 0
        %1631 = vmatprep.subr.bf16.mxu0 0
        %1632 = vmatpush1.bf16.xpose.msra.mxu0 0
        %1633 = vmatprep.subr.bf16.mxu0 0
        %1634 = vmatpush1.bf16.xpose.msra.mxu0 0
        %1635 = vmatprep.subr.bf16.mxu0 0
        %1636 = vmatpush1.bf16.xpose.msra.mxu0 0
        %1637 = vmatprep.subr.bf16.mxu0 0
        %1638 = vmatpush1.bf16.xpose.msra.mxu0 0
        %1639 = vmatprep.subr.bf16.mxu0 0
        %1640 = vmatpush1.bf16.xpose.msra.mxu0 %v1629
        %1641 = vmatprep.subr.bf16.mxu0 0
        %1642 = vmatpush1.bf16.xpose.msra.mxu0 %v1626
        %1643 = vmatprep.subr.bf16.mxu0 0
        %1644 = vmatpush1.bf16.xpose.msra.mxu0 %v1623
        %1645 = vmatprep.subr.bf16.mxu0 0
        %1646 = vmatpush1.bf16.xpose.msra.mxu0 %v1620
        %1647 = vmatprep.subr.bf16.mxu0 0
        %1648 = vmatpush2.bf16.xpose.msra.mxu0 0
        %1649 = vmatprep.subr.bf16.mxu0 0
        %1650 = vmatpush2.bf16.xpose.msra.mxu0 0
        %1651 = vmatprep.subr.bf16.mxu0 0
        %1652 = vmatpush2.bf16.xpose.msra.mxu0 0
        %1653 = vmatprep.subr.bf16.mxu0 0
        %1654 = vmatpush2.bf16.xpose.msra.mxu0 0
        %1655 = vmatprep.subr.bf16.mxu0 0
        %1656 = vmatpush2.bf16.xpose.msra.mxu0 0
        %1657 = vmatprep.subr.bf16.mxu0 0
        %1658 = vmatpush2.bf16.xpose.msra.mxu0 0
        %1659 = vmatprep.subr.bf16.mxu0 0
        %1660 = vmatpush2.bf16.xpose.msra.mxu0 0
        %1661 = vmatprep.subr.bf16.mxu0 0
        %1662 = vmatpush2.bf16.xpose.msra.mxu0 0
        %1663 = vmatprep.mubr.bf16.mxu0 0
        %1664 = vmatmul.mubr.bf16.gmra.mxu0 %v1614
        %v1665 = vpop.f32.mrf.mxu0
        %v1666 = vadd.f32 %v1556, %v1665
        %v1667 = vpop.f32.mrf.mxu0
        %v1668 = vpop.f32.mrf.mxu0
        %v1669 = vadd.f32 %v1557, %v1668
        %v1670 = vpop.f32.mrf.mxu0
        %1671 = vmatprep.mubr.bf16.mxu0 0
        %1672 = vmatmul.mubr.bf16.gmra.mxu0 %v1617
        %v1673 = vpop.f32.mrf.mxu0
        %v1674 = vadd.f32 %v1558, %v1673
        %v1675 = vpop.f32.mrf.mxu0
        %v1676 = vpop.f32.mrf.mxu0
        %v1677 = vadd.f32 %v1559, %v1676
        %v1678 = vpop.f32.mrf.mxu0
        %1679 = vdwg.mxu0
        %v1688 = vunpack.c.l.b16 %v1568
        %v1689 = vunpack.c.l.b16 %v1569
        %v1690 = vunpack.c.l.b16 %v1570
        %v1691 = vunpack.c.l.b16 %v1571
        %v1692 = vunpack.c.l.b16 %v1572
        %v1693 = vunpack.c.l.b16 %v1573
        %v1694 = vunpack.c.l.b16 %v1574
        %v1695 = vunpack.c.l.b16 %v1575
        %v1696 = vpack.c.b16 %v1689, %v1688
        %v1697 = vpack.c.b16 %v1691, %v1690
        %v1698 = vpack.c.b16 %v1693, %v1692
        %v1699 = vpack.c.b16 %v1695, %v1694
        %v1701 = vsel %vm1612, %v1537, 0
        %v1704 = vsel %vm1612, %v1539, 0
        %v1707 = vsel %vm1612, %v1696, 0
        %v1710 = vsel %vm1612, %v1697, 0
        %v1713 = vsel %vm1612, %v1698, 0
        %v1716 = vsel %vm1612, %v1699, 0
        %1718 = vmatprep.subr.bf16.mxu0 0
        %1719 = vmatpush1.bf16.xpose.msra.mxu0 0
        %1720 = vmatprep.subr.bf16.mxu0 0
        %1721 = vmatpush1.bf16.xpose.msra.mxu0 0
        %1722 = vmatprep.subr.bf16.mxu0 0
        %1723 = vmatpush1.bf16.xpose.msra.mxu0 0
        %1724 = vmatprep.subr.bf16.mxu0 0
        %1725 = vmatpush1.bf16.xpose.msra.mxu0 0
        %1726 = vmatprep.subr.bf16.mxu0 0
        %1727 = vmatpush1.bf16.xpose.msra.mxu0 %v1716
        %1728 = vmatprep.subr.bf16.mxu0 0
        %1729 = vmatpush1.bf16.xpose.msra.mxu0 %v1713
        %1730 = vmatprep.subr.bf16.mxu0 0
        %1731 = vmatpush1.bf16.xpose.msra.mxu0 %v1710
        %1732 = vmatprep.subr.bf16.mxu0 0
        %1733 = vmatpush1.bf16.xpose.msra.mxu0 %v1707
        %1734 = vmatprep.subr.bf16.mxu0 0
        %1735 = vmatpush2.bf16.xpose.msra.mxu0 0
        %1736 = vmatprep.subr.bf16.mxu0 0
        %1737 = vmatpush2.bf16.xpose.msra.mxu0 0
        %1738 = vmatprep.subr.bf16.mxu0 0
        %1739 = vmatpush2.bf16.xpose.msra.mxu0 0
        %1740 = vmatprep.subr.bf16.mxu0 0
        %1741 = vmatpush2.bf16.xpose.msra.mxu0 0
        %1742 = vmatprep.subr.bf16.mxu0 0
        %1743 = vmatpush2.bf16.xpose.msra.mxu0 0
        %1744 = vmatprep.subr.bf16.mxu0 0
        %1745 = vmatpush2.bf16.xpose.msra.mxu0 0
        %1746 = vmatprep.subr.bf16.mxu0 0
        %1747 = vmatpush2.bf16.xpose.msra.mxu0 0
        %1748 = vmatprep.subr.bf16.mxu0 0
        %1749 = vmatpush2.bf16.xpose.msra.mxu0 0
        %1750 = vmatprep.mubr.bf16.mxu0 0
        %1751 = vmatmul.mubr.bf16.gmra.mxu0 %v1701
        %v1752 = vpop.f32.mrf.mxu0
        %v1753 = vadd.f32 %v1556, %v1752
        %v1754 = vpop.f32.mrf.mxu0
        %v1755 = vpop.f32.mrf.mxu0
        %v1756 = vadd.f32 %v1557, %v1755
        %v1757 = vpop.f32.mrf.mxu0
        %1758 = vmatprep.mubr.bf16.mxu0 0
        %1759 = vmatmul.mubr.bf16.gmra.mxu0 %v1704
        %v1760 = vpop.f32.mrf.mxu0
        %v1761 = vadd.f32 %v1558, %v1760
        %v1762 = vpop.f32.mrf.mxu0
        %v1763 = vpop.f32.mrf.mxu0
        %v1764 = vadd.f32 %v1559, %v1763
        %v1765 = vpop.f32.mrf.mxu0
        %1766 = vdwg.mxu0
        %v1775 = vunpack.c.l.b16 %v1576
        %v1776 = vunpack.c.l.b16 %v1577
        %v1777 = vunpack.c.l.b16 %v1578
        %v1778 = vunpack.c.l.b16 %v1579
        %v1779 = vunpack.c.l.b16 %v1580
        %v1780 = vunpack.c.l.b16 %v1581
        %v1781 = vunpack.c.l.b16 %v1582
        %v1782 = vunpack.c.l.b16 %v1583
        %v1783 = vpack.c.b16 %v1776, %v1775
        %v1784 = vpack.c.b16 %v1778, %v1777
        %v1785 = vpack.c.b16 %v1780, %v1779
        %v1786 = vpack.c.b16 %v1782, %v1781
        %v1788 = vsel %vm1612, %v1541, 0
        %v1791 = vsel %vm1612, %v1543, 0
        %v1794 = vsel %vm1612, %v1783, 0
        %v1797 = vsel %vm1612, %v1784, 0
        %v1800 = vsel %vm1612, %v1785, 0
        %v1803 = vsel %vm1612, %v1786, 0
        %1805 = vmatprep.subr.bf16.mxu0 0
        %1806 = vmatpush1.bf16.xpose.msra.mxu0 0
        %1807 = vmatprep.subr.bf16.mxu0 0
        %1808 = vmatpush1.bf16.xpose.msra.mxu0 0
        %1809 = vmatprep.subr.bf16.mxu0 0
        %1810 = vmatpush1.bf16.xpose.msra.mxu0 0
        %1811 = vmatprep.subr.bf16.mxu0 0
        %1812 = vmatpush1.bf16.xpose.msra.mxu0 0
        %1813 = vmatprep.subr.bf16.mxu0 0
        %1814 = vmatpush1.bf16.xpose.msra.mxu0 %v1803
        %1815 = vmatprep.subr.bf16.mxu0 0
        %1816 = vmatpush1.bf16.xpose.msra.mxu0 %v1800
        %1817 = vmatprep.subr.bf16.mxu0 0
        %1818 = vmatpush1.bf16.xpose.msra.mxu0 %v1797
        %1819 = vmatprep.subr.bf16.mxu0 0
        %1820 = vmatpush1.bf16.xpose.msra.mxu0 %v1794
        %1821 = vmatprep.subr.bf16.mxu0 0
        %1822 = vmatpush2.bf16.xpose.msra.mxu0 0
        %1823 = vmatprep.subr.bf16.mxu0 0
        %1824 = vmatpush2.bf16.xpose.msra.mxu0 0
        %1825 = vmatprep.subr.bf16.mxu0 0
        %1826 = vmatpush2.bf16.xpose.msra.mxu0 0
        %1827 = vmatprep.subr.bf16.mxu0 0
        %1828 = vmatpush2.bf16.xpose.msra.mxu0 0
        %1829 = vmatprep.subr.bf16.mxu0 0
        %1830 = vmatpush2.bf16.xpose.msra.mxu0 0
        %1831 = vmatprep.subr.bf16.mxu0 0
        %1832 = vmatpush2.bf16.xpose.msra.mxu0 0
        %1833 = vmatprep.subr.bf16.mxu0 0
        %1834 = vmatpush2.bf16.xpose.msra.mxu0 0
        %1835 = vmatprep.subr.bf16.mxu0 0
        %1836 = vmatpush2.bf16.xpose.msra.mxu0 0
        %1837 = vmatprep.mubr.bf16.mxu0 0
        %1838 = vmatmul.mubr.bf16.gmra.mxu0 %v1788
        %v1839 = vpop.f32.mrf.mxu0
        %v1840 = vadd.f32 %v1556, %v1839
        %v1841 = vpop.f32.mrf.mxu0
        %v1842 = vpop.f32.mrf.mxu0
        %v1843 = vadd.f32 %v1557, %v1842
        %v1844 = vpop.f32.mrf.mxu0
        %1845 = vmatprep.mubr.bf16.mxu0 0
        %1846 = vmatmul.mubr.bf16.gmra.mxu0 %v1791
        %v1847 = vpop.f32.mrf.mxu0
        %v1848 = vadd.f32 %v1558, %v1847
        %v1849 = vpop.f32.mrf.mxu0
        %v1850 = vpop.f32.mrf.mxu0
        %v1851 = vadd.f32 %v1559, %v1850
        %v1852 = vpop.f32.mrf.mxu0
        %1853 = vdwg.mxu0
        %v1862 = vunpack.c.l.b16 %v1584
        %v1863 = vunpack.c.l.b16 %v1585
        %v1864 = vunpack.c.l.b16 %v1586
        %v1865 = vunpack.c.l.b16 %v1587
        %v1866 = vunpack.c.l.b16 %v1588
        %v1867 = vunpack.c.l.b16 %v1589
        %v1868 = vunpack.c.l.b16 %v1590
        %v1869 = vunpack.c.l.b16 %v1591
        %v1870 = vpack.c.b16 %v1863, %v1862
        %v1871 = vpack.c.b16 %v1865, %v1864
        %v1872 = vpack.c.b16 %v1867, %v1866
        %v1873 = vpack.c.b16 %v1869, %v1868
        %v1875 = vsel %vm1612, %v1545, 0
        %v1878 = vsel %vm1612, %v1547, 0
        %v1881 = vsel %vm1612, %v1870, 0
        %v1884 = vsel %vm1612, %v1871, 0
        %v1887 = vsel %vm1612, %v1872, 0
        %v1890 = vsel %vm1612, %v1873, 0
        %1892 = vmatprep.subr.bf16.mxu0 0
        %1893 = vmatpush1.bf16.xpose.msra.mxu0 0
        %1894 = vmatprep.subr.bf16.mxu0 0
        %1895 = vmatpush1.bf16.xpose.msra.mxu0 0
        %1896 = vmatprep.subr.bf16.mxu0 0
        %1897 = vmatpush1.bf16.xpose.msra.mxu0 0
        %1898 = vmatprep.subr.bf16.mxu0 0
        %1899 = vmatpush1.bf16.xpose.msra.mxu0 0
        %1900 = vmatprep.subr.bf16.mxu0 0
        %1901 = vmatpush1.bf16.xpose.msra.mxu0 %v1890
        %1902 = vmatprep.subr.bf16.mxu0 0
        %1903 = vmatpush1.bf16.xpose.msra.mxu0 %v1887
        %1904 = vmatprep.subr.bf16.mxu0 0
        %1905 = vmatpush1.bf16.xpose.msra.mxu0 %v1884
        %1906 = vmatprep.subr.bf16.mxu0 0
        %1907 = vmatpush1.bf16.xpose.msra.mxu0 %v1881
        %1908 = vmatprep.subr.bf16.mxu0 0
        %1909 = vmatpush2.bf16.xpose.msra.mxu0 0
        %1910 = vmatprep.subr.bf16.mxu0 0
        %1911 = vmatpush2.bf16.xpose.msra.mxu0 0
        %1912 = vmatprep.subr.bf16.mxu0 0
        %1913 = vmatpush2.bf16.xpose.msra.mxu0 0
        %1914 = vmatprep.subr.bf16.mxu0 0
        %1915 = vmatpush2.bf16.xpose.msra.mxu0 0
        %1916 = vmatprep.subr.bf16.mxu0 0
        %1917 = vmatpush2.bf16.xpose.msra.mxu0 0
        %1918 = vmatprep.subr.bf16.mxu0 0
        %1919 = vmatpush2.bf16.xpose.msra.mxu0 0
        %1920 = vmatprep.subr.bf16.mxu0 0
        %1921 = vmatpush2.bf16.xpose.msra.mxu0 0
        %1922 = vmatprep.subr.bf16.mxu0 0
        %1923 = vmatpush2.bf16.xpose.msra.mxu0 0
        %1924 = vmatprep.mubr.bf16.mxu0 0
        %1925 = vmatmul.mubr.bf16.gmra.mxu0 %v1875
        %v1926 = vpop.f32.mrf.mxu0
        %v1927 = vadd.f32 %v1556, %v1926
        %v1928 = vpop.f32.mrf.mxu0
        %v1929 = vpop.f32.mrf.mxu0
        %v1930 = vadd.f32 %v1557, %v1929
        %v1931 = vpop.f32.mrf.mxu0
        %1932 = vmatprep.mubr.bf16.mxu0 0
        %1933 = vmatmul.mubr.bf16.gmra.mxu0 %v1878
        %v1934 = vpop.f32.mrf.mxu0
        %v1935 = vadd.f32 %v1558, %v1934
        %v1936 = vpop.f32.mrf.mxu0
        %v1937 = vpop.f32.mrf.mxu0
        %v1938 = vadd.f32 %v1559, %v1937
        %v1939 = vpop.f32.mrf.mxu0
        %1940 = vdwg.mxu0
        %vm1941 = vcmask 523264
        %v1942 = vsel %vm1941, %v1666, -inf
        %1943 = vmax.xlane.f32.xlu0 %v1942
        %v1944 = vpop.xlane.xlu0 %1943
        %v1945 = vsel %vm1941, %v1669, -inf
        %1946 = vmax.xlane.f32.xlu0 %v1945
        %v1947 = vpop.xlane.xlu0 %1946
        %v1948 = vsel %vm1941, %v1674, -inf
        %1949 = vmax.xlane.f32.xlu0 %v1948
        %v1950 = vpop.xlane.xlu0 %1949
        %v1951 = vsel %vm1941, %v1677, -inf
        %1952 = vmax.xlane.f32.xlu0 %v1951
        %v1953 = vpop.xlane.xlu0 %1952
        %v1954 = vsel %vm1941, %v1753, -inf
        %1955 = vmax.xlane.f32.xlu0 %v1954
        %v1956 = vpop.xlane.xlu0 %1955
        %v1957 = vsel %vm1941, %v1756, -inf
        %1958 = vmax.xlane.f32.xlu0 %v1957
        %v1959 = vpop.xlane.xlu0 %1958
        %v1960 = vsel %vm1941, %v1761, -inf
        %1961 = vmax.xlane.f32.xlu0 %v1960
        %v1962 = vpop.xlane.xlu0 %1961
        %v1963 = vsel %vm1941, %v1764, -inf
        %1964 = vmax.xlane.f32.xlu0 %v1963
        %v1965 = vpop.xlane.xlu0 %1964
        %v1966 = vsel %vm1941, %v1840, -inf
        %1967 = vmax.xlane.f32.xlu0 %v1966
        %v1968 = vpop.xlane.xlu0 %1967
        %v1969 = vsel %vm1941, %v1843, -inf
        %1970 = vmax.xlane.f32.xlu0 %v1969
        %v1971 = vpop.xlane.xlu0 %1970
        %v1972 = vsel %vm1941, %v1848, -inf
        %1973 = vmax.xlane.f32.xlu0 %v1972
        %v1974 = vpop.xlane.xlu0 %1973
        %v1975 = vsel %vm1941, %v1851, -inf
        %1976 = vmax.xlane.f32.xlu0 %v1975
        %v1977 = vpop.xlane.xlu0 %1976
        %v1978 = vsel %vm1941, %v1927, -inf
        %1979 = vmax.xlane.f32.xlu0 %v1978
        %v1980 = vpop.xlane.xlu0 %1979
        %v1981 = vsel %vm1941, %v1930, -inf
        %1982 = vmax.xlane.f32.xlu0 %v1981
        %v1983 = vpop.xlane.xlu0 %1982
        %v1984 = vsel %vm1941, %v1935, -inf
        %1985 = vmax.xlane.f32.xlu0 %v1984
        %v1986 = vpop.xlane.xlu0 %1985
        %v1987 = vsel %vm1941, %v1938, -inf
        %1988 = vmax.xlane.f32.xlu0 %v1987
        %v1989 = vpop.xlane.xlu0 %1988
        %v1990 = vsub.f32 %v1666, %v1944
        %v1991 = vsub.f32 %v1669, %v1947
        %v1992 = vsub.f32 %v1674, %v1950
        %v1993 = vsub.f32 %v1677, %v1953
        %v1994 = vsub.f32 %v1753, %v1956
        %v1995 = vsub.f32 %v1756, %v1959
        %v1996 = vsub.f32 %v1761, %v1962
        %v1997 = vsub.f32 %v1764, %v1965
        %v1998 = vsub.f32 %v1840, %v1968
        %v1999 = vsub.f32 %v1843, %v1971
        %v2000 = vsub.f32 %v1848, %v1974
        %v2001 = vsub.f32 %v1851, %v1977
        %v2002 = vsub.f32 %v1927, %v1980
        %v2003 = vsub.f32 %v1930, %v1983
        %v2004 = vsub.f32 %v1935, %v1986
        %v2005 = vsub.f32 %v1938, %v1989
        %v2006 = vmul.f32 %v1990, 1.442695
        %v2007 = vpow.pop %v2006
        %v2008 = vmul.f32 %v1991, 1.442695
        %v2009 = vpow.pop %v2008
        %v2010 = vmul.f32 %v1992, 1.442695
        %v2011 = vpow.pop %v2010
        %v2012 = vmul.f32 %v1993, 1.442695
        %v2013 = vpow.pop %v2012
        %v2014 = vmul.f32 %v1994, 1.442695
        %v2015 = vpow.pop %v2014
        %v2016 = vmul.f32 %v1995, 1.442695
        %v2017 = vpow.pop %v2016
        %v2018 = vmul.f32 %v1996, 1.442695
        %v2019 = vpow.pop %v2018
        %v2020 = vmul.f32 %v1997, 1.442695
        %v2021 = vpow.pop %v2020
        %v2022 = vmul.f32 %v1998, 1.442695
        %v2023 = vpow.pop %v2022
        %v2024 = vmul.f32 %v1999, 1.442695
        %v2025 = vpow.pop %v2024
        %v2026 = vmul.f32 %v2000, 1.442695
        %v2027 = vpow.pop %v2026
        %v2028 = vmul.f32 %v2001, 1.442695
        %v2029 = vpow.pop %v2028
        %v2030 = vmul.f32 %v2002, 1.442695
        %v2031 = vpow.pop %v2030
        %v2032 = vmul.f32 %v2003, 1.442695
        %v2033 = vpow.pop %v2032
        %v2034 = vmul.f32 %v2004, 1.442695
        %v2035 = vpow.pop %v2034
        %v2036 = vmul.f32 %v2005, 1.442695
        %v2037 = vpow.pop %v2036
        %v2038 = vsel %vm1941, %v2007, 0.0
        %2039 = vadd.xlane.f32.xlu0 %v2038
        %v2040 = vpop.xlane.xlu0 %2039
        %v2041 = vsel %vm1941, %v2009, 0.0
        %2042 = vadd.xlane.f32.xlu0 %v2041
        %v2043 = vpop.xlane.xlu0 %2042
        %v2044 = vsel %vm1941, %v2011, 0.0
        %2045 = vadd.xlane.f32.xlu0 %v2044
        %v2046 = vpop.xlane.xlu0 %2045
        %v2047 = vsel %vm1941, %v2013, 0.0
        %2048 = vadd.xlane.f32.xlu0 %v2047
        %v2049 = vpop.xlane.xlu0 %2048
        %v2050 = vsel %vm1941, %v2015, 0.0
        %2051 = vadd.xlane.f32.xlu0 %v2050
        %v2052 = vpop.xlane.xlu0 %2051
        %v2053 = vsel %vm1941, %v2017, 0.0
        %2054 = vadd.xlane.f32.xlu0 %v2053
        %v2055 = vpop.xlane.xlu0 %2054
        %v2056 = vsel %vm1941, %v2019, 0.0
        %2057 = vadd.xlane.f32.xlu0 %v2056
        %v2058 = vpop.xlane.xlu0 %2057
        %v2059 = vsel %vm1941, %v2021, 0.0
        %2060 = vadd.xlane.f32.xlu0 %v2059
        %v2061 = vpop.xlane.xlu0 %2060
        %v2062 = vsel %vm1941, %v2023, 0.0
        %2063 = vadd.xlane.f32.xlu0 %v2062
        %v2064 = vpop.xlane.xlu0 %2063
        %v2065 = vsel %vm1941, %v2025, 0.0
        %2066 = vadd.xlane.f32.xlu0 %v2065
        %v2067 = vpop.xlane.xlu0 %2066
        %v2068 = vsel %vm1941, %v2027, 0.0
        %2069 = vadd.xlane.f32.xlu0 %v2068
        %v2070 = vpop.xlane.xlu0 %2069
        %v2071 = vsel %vm1941, %v2029, 0.0
        %2072 = vadd.xlane.f32.xlu0 %v2071
        %v2073 = vpop.xlane.xlu0 %2072
        %v2074 = vsel %vm1941, %v2031, 0.0
        %2075 = vadd.xlane.f32.xlu0 %v2074
        %v2076 = vpop.xlane.xlu0 %2075
        %v2077 = vsel %vm1941, %v2033, 0.0
        %2078 = vadd.xlane.f32.xlu0 %v2077
        %v2079 = vpop.xlane.xlu0 %2078
        %v2080 = vsel %vm1941, %v2035, 0.0
        %2081 = vadd.xlane.f32.xlu0 %v2080
        %v2082 = vpop.xlane.xlu0 %2081
        %v2083 = vsel %vm1941, %v2037, 0.0
        %2084 = vadd.xlane.f32.xlu0 %v2083
        %v2085 = vpop.xlane.xlu0 %2084
        %v2086 = vpack.c.bf16 %v2009, %v2007
        %v2087 = vpack.c.bf16 %v2013, %v2011
        %v2088 = vpack.c.bf16 %v2017, %v2015
        %v2089 = vpack.c.bf16 %v2021, %v2019
        %v2090 = vpack.c.bf16 %v2025, %v2023
        %v2091 = vpack.c.bf16 %v2029, %v2027
        %v2092 = vpack.c.bf16 %v2033, %v2031
        %v2093 = vpack.c.bf16 %v2037, %v2035
        %v2094 = vld [vmem:[#allocation3] sm:$0xf]
        %v2095 = vld [vmem:[#allocation3 + $0x4] sm:$0xf]
        %v2096 = vld [vmem:[#allocation3 + $0x8] sm:$0xf]
        %v2097 = vld [vmem:[#allocation3 + $0xc] sm:$0xf]
        %v2098 = vld [vmem:[#allocation3 + $0x10] sm:$0xf]
        %v2099 = vld [vmem:[#allocation3 + $0x14] sm:$0xf]
        %v2100 = vld [vmem:[#allocation3 + $0x18] sm:$0xf]
        %v2101 = vld [vmem:[#allocation3 + $0x1c] sm:$0xf]
        %v2102 = vld [vmem:[#allocation3 + $0x20] sm:$0xf]
        %v2103 = vld [vmem:[#allocation3 + $0x24] sm:$0xf]
        %v2104 = vld [vmem:[#allocation3 + $0x28] sm:$0xf]
        %v2105 = vld [vmem:[#allocation3 + $0x2c] sm:$0xf]
        %v2106 = vld [vmem:[#allocation3 + $0x30] sm:$0xf]
        %v2107 = vld [vmem:[#allocation3 + $0x34] sm:$0xf]
        %v2108 = vld [vmem:[#allocation3 + $0x38] sm:$0xf]
        %v2109 = vld [vmem:[#allocation3 + $0x3c] sm:$0xf]
        %v2110 = vld [vmem:[#allocation3 + $0x40] sm:$0xf]
        %v2111 = vld [vmem:[#allocation3 + $0x44] sm:$0xf]
        %v2112 = vld [vmem:[#allocation3 + $0x48] sm:$0xf]
        %v2113 = vld [vmem:[#allocation3 + $0x4c] sm:$0xf]
        %v2114 = vld [vmem:[#allocation3 + $0x50] sm:$0xf]
        %v2115 = vld [vmem:[#allocation3 + $0x54] sm:$0xf]
        %v2116 = vld [vmem:[#allocation3 + $0x58] sm:$0xf]
        %v2117 = vld [vmem:[#allocation3 + $0x5c] sm:$0xf]
        %v2118 = vld [vmem:[#allocation3 + $0x60] sm:$0xf]
        %v2119 = vld [vmem:[#allocation3 + $0x64] sm:$0xf]
        %v2120 = vld [vmem:[#allocation3 + $0x68] sm:$0xf]
        %v2121 = vld [vmem:[#allocation3 + $0x6c] sm:$0xf]
        %v2122 = vld [vmem:[#allocation3 + $0x70] sm:$0xf]
        %v2123 = vld [vmem:[#allocation3 + $0x74] sm:$0xf]
        %v2124 = vld [vmem:[#allocation3 + $0x78] sm:$0xf]
        %v2125 = vld [vmem:[#allocation3 + $0x7c] sm:$0xf]
        %v2134 = vunpack.c.l.b16 %v2094
        %v2135 = vunpack.c.l.b16 %v2095
        %v2136 = vunpack.c.l.b16 %v2096
        %v2137 = vunpack.c.l.b16 %v2097
        %v2138 = vunpack.c.l.b16 %v2098
        %v2139 = vunpack.c.l.b16 %v2099
        %v2140 = vunpack.c.l.b16 %v2100
        %v2141 = vunpack.c.l.b16 %v2101
        %v2142 = vpack.c.b16 %v2135, %v2134
        %v2143 = vpack.c.b16 %v2137, %v2136
        %v2144 = vpack.c.b16 %v2139, %v2138
        %v2145 = vpack.c.b16 %v2141, %v2140
        %v2151 = vsel %vm1941, %v2086, 0
        %v2154 = vsel %vm1941, %v2087, 0
        %2156 = vmatprep.subr.bf16.mxu0 0
        %2157 = vmatpush1.bf16.msra.mxu0 0
        %2158 = vmatprep.subr.bf16.mxu0 0
        %2159 = vmatpush1.bf16.msra.mxu0 0
        %2160 = vmatprep.subr.bf16.mxu0 0
        %2161 = vmatpush1.bf16.msra.mxu0 0
        %2162 = vmatprep.subr.bf16.mxu0 0
        %2163 = vmatpush1.bf16.msra.mxu0 0
        %2164 = vmatprep.subr.bf16.mxu0 0
        %2165 = vmatpush1.bf16.msra.mxu0 %v2145
        %2166 = vmatprep.subr.bf16.mxu0 0
        %2167 = vmatpush1.bf16.msra.mxu0 %v2144
        %2168 = vmatprep.subr.bf16.mxu0 0
        %2169 = vmatpush1.bf16.msra.mxu0 %v2143
        %2170 = vmatprep.subr.bf16.mxu0 0
        %2171 = vmatpush1.bf16.msra.mxu0 %v2142
        %2172 = vmatprep.subr.bf16.mxu0 0
        %2173 = vmatpush2.bf16.msra.mxu0 0
        %2174 = vmatprep.subr.bf16.mxu0 0
        %2175 = vmatpush2.bf16.msra.mxu0 0
        %2176 = vmatprep.subr.bf16.mxu0 0
        %2177 = vmatpush2.bf16.msra.mxu0 0
        %2178 = vmatprep.subr.bf16.mxu0 0
        %2179 = vmatpush2.bf16.msra.mxu0 0
        %2180 = vmatprep.subr.bf16.mxu0 0
        %2181 = vmatpush2.bf16.msra.mxu0 0
        %2182 = vmatprep.subr.bf16.mxu0 0
        %2183 = vmatpush2.bf16.msra.mxu0 0
        %2184 = vmatprep.subr.bf16.mxu0 0
        %2185 = vmatpush2.bf16.msra.mxu0 0
        %2186 = vmatprep.subr.bf16.mxu0 0
        %2187 = vmatpush2.bf16.msra.mxu0 0
        %2188 = vmatprep.mubr.bf16.mxu0 0
        %2189 = vmatmul.mubr.bf16.gmra.mxu0 %v2151
        %v2190 = vpop.f32.mrf.mxu0
        %v2191 = vadd.f32 0.0, %v2190
        %v2192 = vpop.f32.mrf.mxu0
        %v2193 = vpop.f32.mrf.mxu0
        %v2194 = vadd.f32 0.0, %v2193
        %v2195 = vpop.f32.mrf.mxu0
        %2196 = vmatprep.mubr.bf16.mxu0 0
        %2197 = vmatmul.mubr.bf16.gmra.mxu0 %v2154
        %v2198 = vpop.f32.mrf.mxu0
        %v2199 = vadd.f32 0.0, %v2198
        %v2200 = vpop.f32.mrf.mxu0
        %v2201 = vpop.f32.mrf.mxu0
        %v2202 = vadd.f32 0.0, %v2201
        %v2203 = vpop.f32.mrf.mxu0
        %2204 = vdwg.mxu0
        %v2213 = vunpack.c.l.b16 %v2102
        %v2214 = vunpack.c.l.b16 %v2103
        %v2215 = vunpack.c.l.b16 %v2104
        %v2216 = vunpack.c.l.b16 %v2105
        %v2217 = vunpack.c.l.b16 %v2106
        %v2218 = vunpack.c.l.b16 %v2107
        %v2219 = vunpack.c.l.b16 %v2108
        %v2220 = vunpack.c.l.b16 %v2109
        %v2221 = vpack.c.b16 %v2214, %v2213
        %v2222 = vpack.c.b16 %v2216, %v2215
        %v2223 = vpack.c.b16 %v2218, %v2217
        %v2224 = vpack.c.b16 %v2220, %v2219
        %v2230 = vsel %vm1941, %v2088, 0
        %v2233 = vsel %vm1941, %v2089, 0
        %2235 = vmatprep.subr.bf16.mxu0 0
        %2236 = vmatpush1.bf16.msra.mxu0 0
        %2237 = vmatprep.subr.bf16.mxu0 0
        %2238 = vmatpush1.bf16.msra.mxu0 0
        %2239 = vmatprep.subr.bf16.mxu0 0
        %2240 = vmatpush1.bf16.msra.mxu0 0
        %2241 = vmatprep.subr.bf16.mxu0 0
        %2242 = vmatpush1.bf16.msra.mxu0 0
        %2243 = vmatprep.subr.bf16.mxu0 0
        %2244 = vmatpush1.bf16.msra.mxu0 %v2224
        %2245 = vmatprep.subr.bf16.mxu0 0
        %2246 = vmatpush1.bf16.msra.mxu0 %v2223
        %2247 = vmatprep.subr.bf16.mxu0 0
        %2248 = vmatpush1.bf16.msra.mxu0 %v2222
        %2249 = vmatprep.subr.bf16.mxu0 0
        %2250 = vmatpush1.bf16.msra.mxu0 %v2221
        %2251 = vmatprep.subr.bf16.mxu0 0
        %2252 = vmatpush2.bf16.msra.mxu0 0
        %2253 = vmatprep.subr.bf16.mxu0 0
        %2254 = vmatpush2.bf16.msra.mxu0 0
        %2255 = vmatprep.subr.bf16.mxu0 0
        %2256 = vmatpush2.bf16.msra.mxu0 0
        %2257 = vmatprep.subr.bf16.mxu0 0
        %2258 = vmatpush2.bf16.msra.mxu0 0
        %2259 = vmatprep.subr.bf16.mxu0 0
        %2260 = vmatpush2.bf16.msra.mxu0 0
        %2261 = vmatprep.subr.bf16.mxu0 0
        %2262 = vmatpush2.bf16.msra.mxu0 0
        %2263 = vmatprep.subr.bf16.mxu0 0
        %2264 = vmatpush2.bf16.msra.mxu0 0
        %2265 = vmatprep.subr.bf16.mxu0 0
        %2266 = vmatpush2.bf16.msra.mxu0 0
        %2267 = vmatprep.mubr.bf16.mxu0 0
        %2268 = vmatmul.mubr.bf16.gmra.mxu0 %v2230
        %v2269 = vpop.f32.mrf.mxu0
        %v2270 = vadd.f32 0.0, %v2269
        %v2271 = vpop.f32.mrf.mxu0
        %v2272 = vpop.f32.mrf.mxu0
        %v2273 = vadd.f32 0.0, %v2272
        %v2274 = vpop.f32.mrf.mxu0
        %2275 = vmatprep.mubr.bf16.mxu0 0
        %2276 = vmatmul.mubr.bf16.gmra.mxu0 %v2233
        %v2277 = vpop.f32.mrf.mxu0
        %v2278 = vadd.f32 0.0, %v2277
        %v2279 = vpop.f32.mrf.mxu0
        %v2280 = vpop.f32.mrf.mxu0
        %v2281 = vadd.f32 0.0, %v2280
        %v2282 = vpop.f32.mrf.mxu0
        %2283 = vdwg.mxu0
        %v2292 = vunpack.c.l.b16 %v2110
        %v2293 = vunpack.c.l.b16 %v2111
        %v2294 = vunpack.c.l.b16 %v2112
        %v2295 = vunpack.c.l.b16 %v2113
        %v2296 = vunpack.c.l.b16 %v2114
        %v2297 = vunpack.c.l.b16 %v2115
        %v2298 = vunpack.c.l.b16 %v2116
        %v2299 = vunpack.c.l.b16 %v2117
        %v2300 = vpack.c.b16 %v2293, %v2292
        %v2301 = vpack.c.b16 %v2295, %v2294
        %v2302 = vpack.c.b16 %v2297, %v2296
        %v2303 = vpack.c.b16 %v2299, %v2298
        %v2309 = vsel %vm1941, %v2090, 0
        %v2312 = vsel %vm1941, %v2091, 0
        %2314 = vmatprep.subr.bf16.mxu0 0
        %2315 = vmatpush1.bf16.msra.mxu0 0
        %2316 = vmatprep.subr.bf16.mxu0 0
        %2317 = vmatpush1.bf16.msra.mxu0 0
        %2318 = vmatprep.subr.bf16.mxu0 0
        %2319 = vmatpush1.bf16.msra.mxu0 0
        %2320 = vmatprep.subr.bf16.mxu0 0
        %2321 = vmatpush1.bf16.msra.mxu0 0
        %2322 = vmatprep.subr.bf16.mxu0 0
        %2323 = vmatpush1.bf16.msra.mxu0 %v2303
        %2324 = vmatprep.subr.bf16.mxu0 0
        %2325 = vmatpush1.bf16.msra.mxu0 %v2302
        %2326 = vmatprep.subr.bf16.mxu0 0
        %2327 = vmatpush1.bf16.msra.mxu0 %v2301
        %2328 = vmatprep.subr.bf16.mxu0 0
        %2329 = vmatpush1.bf16.msra.mxu0 %v2300
        %2330 = vmatprep.subr.bf16.mxu0 0
        %2331 = vmatpush2.bf16.msra.mxu0 0
        %2332 = vmatprep.subr.bf16.mxu0 0
        %2333 = vmatpush2.bf16.msra.mxu0 0
        %2334 = vmatprep.subr.bf16.mxu0 0
        %2335 = vmatpush2.bf16.msra.mxu0 0
        %2336 = vmatprep.subr.bf16.mxu0 0
        %2337 = vmatpush2.bf16.msra.mxu0 0
        %2338 = vmatprep.subr.bf16.mxu0 0
        %2339 = vmatpush2.bf16.msra.mxu0 0
        %2340 = vmatprep.subr.bf16.mxu0 0
        %2341 = vmatpush2.bf16.msra.mxu0 0
        %2342 = vmatprep.subr.bf16.mxu0 0
        %2343 = vmatpush2.bf16.msra.mxu0 0
        %2344 = vmatprep.subr.bf16.mxu0 0
        %2345 = vmatpush2.bf16.msra.mxu0 0
        %2346 = vmatprep.mubr.bf16.mxu0 0
        %2347 = vmatmul.mubr.bf16.gmra.mxu0 %v2309
        %v2348 = vpop.f32.mrf.mxu0
        %v2349 = vadd.f32 0.0, %v2348
        %v2350 = vpop.f32.mrf.mxu0
        %v2351 = vpop.f32.mrf.mxu0
        %v2352 = vadd.f32 0.0, %v2351
        %v2353 = vpop.f32.mrf.mxu0
        %2354 = vmatprep.mubr.bf16.mxu0 0
        %2355 = vmatmul.mubr.bf16.gmra.mxu0 %v2312
        %v2356 = vpop.f32.mrf.mxu0
        %v2357 = vadd.f32 0.0, %v2356
        %v2358 = vpop.f32.mrf.mxu0
        %v2359 = vpop.f32.mrf.mxu0
        %v2360 = vadd.f32 0.0, %v2359
        %v2361 = vpop.f32.mrf.mxu0
        %2362 = vdwg.mxu0
        %v2371 = vunpack.c.l.b16 %v2118
        %v2372 = vunpack.c.l.b16 %v2119
        %v2373 = vunpack.c.l.b16 %v2120
        %v2374 = vunpack.c.l.b16 %v2121
        %v2375 = vunpack.c.l.b16 %v2122
        %v2376 = vunpack.c.l.b16 %v2123
        %v2377 = vunpack.c.l.b16 %v2124
        %v2378 = vunpack.c.l.b16 %v2125
        %v2379 = vpack.c.b16 %v2372, %v2371
        %v2380 = vpack.c.b16 %v2374, %v2373
        %v2381 = vpack.c.b16 %v2376, %v2375
        %v2382 = vpack.c.b16 %v2378, %v2377
        %v2388 = vsel %vm1941, %v2092, 0
        %v2391 = vsel %vm1941, %v2093, 0
        %2393 = vmatprep.subr.bf16.mxu0 0
        %2394 = vmatpush1.bf16.msra.mxu0 0
        %2395 = vmatprep.subr.bf16.mxu0 0
        %2396 = vmatpush1.bf16.msra.mxu0 0
        %2397 = vmatprep.subr.bf16.mxu0 0
        %2398 = vmatpush1.bf16.msra.mxu0 0
        %2399 = vmatprep.subr.bf16.mxu0 0
        %2400 = vmatpush1.bf16.msra.mxu0 0
        %2401 = vmatprep.subr.bf16.mxu0 0
        %2402 = vmatpush1.bf16.msra.mxu0 %v2382
        %2403 = vmatprep.subr.bf16.mxu0 0
        %2404 = vmatpush1.bf16.msra.mxu0 %v2381
        %2405 = vmatprep.subr.bf16.mxu0 0
        %2406 = vmatpush1.bf16.msra.mxu0 %v2380
        %2407 = vmatprep.subr.bf16.mxu0 0
        %2408 = vmatpush1.bf16.msra.mxu0 %v2379
        %2409 = vmatprep.subr.bf16.mxu0 0
        %2410 = vmatpush2.bf16.msra.mxu0 0
        %2411 = vmatprep.subr.bf16.mxu0 0
        %2412 = vmatpush2.bf16.msra.mxu0 0
        %2413 = vmatprep.subr.bf16.mxu0 0
        %2414 = vmatpush2.bf16.msra.mxu0 0
        %2415 = vmatprep.subr.bf16.mxu0 0
        %2416 = vmatpush2.bf16.msra.mxu0 0
        %2417 = vmatprep.subr.bf16.mxu0 0
        %2418 = vmatpush2.bf16.msra.mxu0 0
        %2419 = vmatprep.subr.bf16.mxu0 0
        %2420 = vmatpush2.bf16.msra.mxu0 0
        %2421 = vmatprep.subr.bf16.mxu0 0
        %2422 = vmatpush2.bf16.msra.mxu0 0
        %2423 = vmatprep.subr.bf16.mxu0 0
        %2424 = vmatpush2.bf16.msra.mxu0 0
        %2425 = vmatprep.mubr.bf16.mxu0 0
        %2426 = vmatmul.mubr.bf16.gmra.mxu0 %v2388
        %v2427 = vpop.f32.mrf.mxu0
        %v2428 = vadd.f32 0.0, %v2427
        %v2429 = vpop.f32.mrf.mxu0
        %v2430 = vpop.f32.mrf.mxu0
        %v2431 = vadd.f32 0.0, %v2430
        %v2432 = vpop.f32.mrf.mxu0
        %2433 = vmatprep.mubr.bf16.mxu0 0
        %2434 = vmatmul.mubr.bf16.gmra.mxu0 %v2391
        %v2435 = vpop.f32.mrf.mxu0
        %v2436 = vadd.f32 0.0, %v2435
        %v2437 = vpop.f32.mrf.mxu0
        %v2438 = vpop.f32.mrf.mxu0
        %v2439 = vadd.f32 0.0, %v2438
        %v2440 = vpop.f32.mrf.mxu0
        %2441 = vdwg.mxu0
        %v2442 = vrcp.pop %v2040
        %v2443 = vrcp.pop %v2043
        %v2444 = vrcp.pop %v2046
        %v2445 = vrcp.pop %v2049
        %v2446 = vrcp.pop %v2052
        %v2447 = vrcp.pop %v2055
        %v2448 = vrcp.pop %v2058
        %v2449 = vrcp.pop %v2061
        %v2450 = vrcp.pop %v2064
        %v2451 = vrcp.pop %v2067
        %v2452 = vrcp.pop %v2070
        %v2453 = vrcp.pop %v2073
        %v2454 = vrcp.pop %v2076
        %v2455 = vrcp.pop %v2079
        %v2456 = vrcp.pop %v2082
        %v2457 = vrcp.pop %v2085
        %v2458 = vmul.f32 %v2191, %v2442
        %v2459 = vmul.f32 %v2194, %v2443
        %v2460 = vmul.f32 %v2199, %v2444
        %v2461 = vmul.f32 %v2202, %v2445
        %v2462 = vmul.f32 %v2270, %v2446
        %v2463 = vmul.f32 %v2273, %v2447
        %v2464 = vmul.f32 %v2278, %v2448
        %v2465 = vmul.f32 %v2281, %v2449
        %v2466 = vmul.f32 %v2349, %v2450
        %v2467 = vmul.f32 %v2352, %v2451
        %v2468 = vmul.f32 %v2357, %v2452
        %v2469 = vmul.f32 %v2360, %v2453
        %v2470 = vmul.f32 %v2428, %v2454
        %v2471 = vmul.f32 %v2431, %v2455
        %v2472 = vmul.f32 %v2436, %v2456
        %v2473 = vmul.f32 %v2439, %v2457
        %2478 = vrot.lane.b32.xlu0 %v2462, 32
        %v2479 = vpop.permute.xlu0 %2478
        %2480 = vrot.lane.b32.xlu0 %v2463, 32
        %v2481 = vpop.permute.xlu0 %2480
        %2482 = vrot.lane.b32.xlu0 %v2464, 32
        %v2483 = vpop.permute.xlu0 %2482
        %2484 = vrot.lane.b32.xlu0 %v2465, 32
        %v2485 = vpop.permute.xlu0 %2484
        %2494 = vrot.lane.b32.xlu0 %v2466, 64
        %v2495 = vpop.permute.xlu0 %2494
        %2496 = vrot.lane.b32.xlu0 %v2467, 64
        %v2497 = vpop.permute.xlu0 %2496
        %2498 = vrot.lane.b32.xlu0 %v2468, 64
        %v2499 = vpop.permute.xlu0 %2498
        %2500 = vrot.lane.b32.xlu0 %v2469, 64
        %v2501 = vpop.permute.xlu0 %2500
        %2510 = vrot.lane.b32.xlu0 %v2470, 96
        %v2511 = vpop.permute.xlu0 %2510
        %2512 = vrot.lane.b32.xlu0 %v2471, 96
        %v2513 = vpop.permute.xlu0 %2512
        %2514 = vrot.lane.b32.xlu0 %v2472, 96
        %v2515 = vpop.permute.xlu0 %2514
        %2516 = vrot.lane.b32.xlu0 %v2473, 96
        %v2517 = vpop.permute.xlu0 %2516
        %v2522 = vsel %vm1612, %v2458, %v2479
        %v2523 = vsel %vm1612, %v2459, %v2481
        %v2524 = vsel %vm1612, %v2460, %v2483
        %v2525 = vsel %vm1612, %v2461, %v2485
        %v2526 = vsel %vm1941, %v2522, %v2495
        %v2527 = vsel %vm1941, %v2523, %v2497
        %v2528 = vsel %vm1941, %v2524, %v2499
        %v2529 = vsel %vm1941, %v2525, %v2501
        %vm2530 = vcmask 785408
        %v2531 = vsel %vm2530, %v2526, %v2511
        %v2532 = vsel %vm2530, %v2527, %v2513
        %v2533 = vsel %vm2530, %v2528, %v2515
        %v2534 = vsel %vm2530, %v2529, %v2517
        %v2535 = vpack.c.bf16 %v2532, %v2531
        %v2536 = vpack.c.bf16 %v2534, %v2533
        %v2537 = vld [vmem:[#allocation15] sm:$0xf]
        %v2538 = vld [vmem:[#allocation15 + $0x4] sm:$0xf]
        %v2539 = vld [vmem:[#allocation15 + $0x8] sm:$0xf]
        %v2540 = vld [vmem:[#allocation15 + $0xc] sm:$0xf]
        %v2541 = vld [vmem:[#allocation15 + $0x10] sm:$0xf]
        %v2542 = vld [vmem:[#allocation15 + $0x14] sm:$0xf]
        %v2543 = vld [vmem:[#allocation15 + $0x18] sm:$0xf]
        %v2544 = vld [vmem:[#allocation15 + $0x1c] sm:$0xf]
        %v2545 = vld [vmem:[#allocation15 + $0x20] sm:$0xf]
        %v2546 = vld [vmem:[#allocation15 + $0x24] sm:$0xf]
        %v2547 = vld [vmem:[#allocation15 + $0x28] sm:$0xf]
        %v2548 = vld [vmem:[#allocation15 + $0x2c] sm:$0xf]
        %v2549 = vld [vmem:[#allocation15 + $0x30] sm:$0xf]
        %v2550 = vld [vmem:[#allocation15 + $0x34] sm:$0xf]
        %v2551 = vld [vmem:[#allocation15 + $0x38] sm:$0xf]
        %v2552 = vld [vmem:[#allocation15 + $0x3c] sm:$0xf]
        %v2553 = vld [vmem:[%s10] sm:$0x1]
        %v2555 = vlaneseq
        %v2556 = vshrl.u32 %v2555, 7
        %v2557 = vsub.s32 0, %v2556
        %v2558 = vrot.slane %v2553, %v2557
        %v2576 = vunpack.c.l.b16 %v2537
        %v2577 = vunpack.c.l.b16 %v2538
        %v2578 = vunpack.c.l.b16 %v2539
        %v2579 = vunpack.c.l.b16 %v2540
        %v2580 = vunpack.c.l.b16 %v2541
        %v2581 = vunpack.c.l.b16 %v2542
        %v2582 = vunpack.c.l.b16 %v2543
        %v2583 = vunpack.c.l.b16 %v2544
        %v2584 = vunpack.c.l.b16 %v2545
        %v2585 = vunpack.c.l.b16 %v2546
        %v2586 = vunpack.c.l.b16 %v2547
        %v2587 = vunpack.c.l.b16 %v2548
        %v2588 = vunpack.c.l.b16 %v2549
        %v2589 = vunpack.c.l.b16 %v2550
        %v2590 = vunpack.c.l.b16 %v2551
        %v2591 = vunpack.c.l.b16 %v2552
        %v2592 = vpack.c.b16 %v2577, %v2576
        %v2593 = vpack.c.b16 %v2579, %v2578
        %v2594 = vpack.c.b16 %v2581, %v2580
        %v2595 = vpack.c.b16 %v2583, %v2582
        %v2596 = vpack.c.b16 %v2585, %v2584
        %v2597 = vpack.c.b16 %v2587, %v2586
        %v2598 = vpack.c.b16 %v2589, %v2588
        %v2599 = vpack.c.b16 %v2591, %v2590
        %2608 = vmatprep.subr.bf16.mxu0 0
        %2609 = vmatpush1.bf16.msra.mxu0 %v2599
        %2610 = vmatprep.subr.bf16.mxu0 0
        %2611 = vmatpush1.bf16.msra.mxu0 %v2598
        %2612 = vmatprep.subr.bf16.mxu0 0
        %2613 = vmatpush1.bf16.msra.mxu0 %v2597
        %2614 = vmatprep.subr.bf16.mxu0 0
        %2615 = vmatpush1.bf16.msra.mxu0 %v2596
        %2616 = vmatprep.subr.bf16.mxu0 0
        %2617 = vmatpush1.bf16.msra.mxu0 %v2595
        %2618 = vmatprep.subr.bf16.mxu0 0
        %2619 = vmatpush1.bf16.msra.mxu0 %v2594
        %2620 = vmatprep.subr.bf16.mxu0 0
        %2621 = vmatpush1.bf16.msra.mxu0 %v2593
        %2622 = vmatprep.subr.bf16.mxu0 0
        %2623 = vmatpush1.bf16.msra.mxu0 %v2592
        %2624 = vmatprep.subr.bf16.mxu0 0
        %2625 = vmatpush2.bf16.msra.mxu0 0
        %2626 = vmatprep.subr.bf16.mxu0 0
        %2627 = vmatpush2.bf16.msra.mxu0 0
        %2628 = vmatprep.subr.bf16.mxu0 0
        %2629 = vmatpush2.bf16.msra.mxu0 0
        %2630 = vmatprep.subr.bf16.mxu0 0
        %2631 = vmatpush2.bf16.msra.mxu0 0
        %2632 = vmatprep.subr.bf16.mxu0 0
        %2633 = vmatpush2.bf16.msra.mxu0 0
        %2634 = vmatprep.subr.bf16.mxu0 0
        %2635 = vmatpush2.bf16.msra.mxu0 0
        %2636 = vmatprep.subr.bf16.mxu0 0
        %2637 = vmatpush2.bf16.msra.mxu0 0
        %2638 = vmatprep.subr.bf16.mxu0 0
        %2639 = vmatpush2.bf16.msra.mxu0 0
        %2640 = vmatprep.mubr.bf16.mxu0 0
        %2641 = vmatmul.mubr.bf16.gmra.mxu0 %v2535
        %v2642 = vpop.f32.mrf.mxu0
        %v2643 = vadd.f32 %v2558, %v2642
        %v2644 = vpop.f32.mrf.mxu0
        %v2645 = vpop.f32.mrf.mxu0
        %v2646 = vadd.f32 %v2558, %v2645
        %v2647 = vpop.f32.mrf.mxu0
        %2648 = vmatprep.mubr.bf16.mxu0 0
        %2649 = vmatmul.mubr.bf16.gmra.mxu0 %v2536
        %v2650 = vpop.f32.mrf.mxu0
        %v2651 = vadd.f32 %v2558, %v2650
        %v2652 = vpop.f32.mrf.mxu0
        %v2653 = vpop.f32.mrf.mxu0
        %v2654 = vadd.f32 %v2558, %v2653
        %v2655 = vpop.f32.mrf.mxu0
        %2656 = vdwg.mxu0
        %v2657 = vadd.f32 %v811, %v2643
        %v2658 = vadd.f32 %v812, %v2646
        %v2659 = vadd.f32 %v813, %v2651
        %v2660 = vadd.f32 %v814, %v2654
        %2661 = vadd.xlane.f32.xlu0 %v2657
        %v2662 = vpop.xlane.xlu0 %2661
        %2663 = vadd.xlane.f32.xlu0 %v2658
        %v2664 = vpop.xlane.xlu0 %2663
        %2665 = vadd.xlane.f32.xlu0 %v2659
        %v2666 = vpop.xlane.xlu0 %2665
        %2667 = vadd.xlane.f32.xlu0 %v2660
        %v2668 = vpop.xlane.xlu0 %2667
        %v2669 = vrcp.pop 128.0
        %v2670 = vmul.f32 %v2662, %v2669
        %v2671 = vmul.f32 %v2664, %v2669
        %v2672 = vmul.f32 %v2666, %v2669
        %v2673 = vmul.f32 %v2668, %v2669
        %v2674 = vmul.f32 %v2657, %v2657
        %v2675 = vmul.f32 %v2658, %v2658
        %v2676 = vmul.f32 %v2659, %v2659
        %v2677 = vmul.f32 %v2660, %v2660
        %2678 = vadd.xlane.f32.xlu0 %v2674
        %v2679 = vpop.xlane.xlu0 %2678
        %2680 = vadd.xlane.f32.xlu0 %v2675
        %v2681 = vpop.xlane.xlu0 %2680
        %2682 = vadd.xlane.f32.xlu0 %v2676
        %v2683 = vpop.xlane.xlu0 %2682
        %2684 = vadd.xlane.f32.xlu0 %v2677
        %v2685 = vpop.xlane.xlu0 %2684
        %v2686 = vmul.f32 %v2679, %v2669
        %v2687 = vmul.f32 %v2681, %v2669
        %v2688 = vmul.f32 %v2683, %v2669
        %v2689 = vmul.f32 %v2685, %v2669
        %v2690 = vsub.f32 %v2657, %v2670
        %v2691 = vsub.f32 %v2658, %v2671
        %v2692 = vsub.f32 %v2659, %v2672
        %v2693 = vsub.f32 %v2660, %v2673
        %v2694 = vmul.f32 %v2670, %v2670
        %v2695 = vmul.f32 %v2671, %v2671
        %v2696 = vmul.f32 %v2672, %v2672
        %v2697 = vmul.f32 %v2673, %v2673
        %v2698 = vsub.f32 %v2686, %v2694
        %v2699 = vsub.f32 %v2687, %v2695
        %v2700 = vsub.f32 %v2688, %v2696
        %v2701 = vsub.f32 %v2689, %v2697
        %v2702 = vadd.f32 %v2698, 1e-06
        %v2703 = vadd.f32 %v2699, 1e-06
        %v2704 = vadd.f32 %v2700, 1e-06
        %v2705 = vadd.f32 %v2701, 1e-06
        %v2706 = vrsqrt.pop %v2702
        %v2707 = vrsqrt.pop %v2703
        %v2708 = vrsqrt.pop %v2704
        %v2709 = vrsqrt.pop %v2705
        %v2710 = vmul.f32 %v2690, %v2706
        %v2711 = vmul.f32 %v2691, %v2707
        %v2712 = vmul.f32 %v2692, %v2708
        %v2713 = vmul.f32 %v2693, %v2709
        %v2714 = vld [vmem:[%s11] sm:$0x1]
        %v2716 = vlaneseq
        %v2717 = vshrl.u32 %v2716, 7
        %v2718 = vsub.s32 0, %v2717
        %v2719 = vrot.slane %v2714, %v2718
        %v2721 = vmul.f32 %v2710, %v2719
        %v2722 = vmul.f32 %v2711, %v2719
        %v2723 = vmul.f32 %v2712, %v2719
        %v2724 = vmul.f32 %v2713, %v2719
        %v2725 = vld [vmem:[%s12] sm:$0x1]
        %v2727 = vlaneseq
        %v2728 = vshrl.u32 %v2727, 7
        %v2729 = vsub.s32 0, %v2728
        %v2730 = vrot.slane %v2725, %v2729
        %v2732 = vadd.f32 %v2721, %v2730
        %v2733 = vadd.f32 %v2722, %v2730
        %v2734 = vadd.f32 %v2723, %v2730
        %v2735 = vadd.f32 %v2724, %v2730
        %v2736 = vpack.c.bf16 %v2733, %v2732
        %v2737 = vpack.c.bf16 %v2735, %v2734
        %v2738 = vld [vmem:[#allocation16] sm:$0xff]
        %v2739 = vld [vmem:[#allocation16 + $0x8] sm:$0xff]
        %v2740 = vld [vmem:[#allocation16 + $0x10] sm:$0xff]
        %v2741 = vld [vmem:[#allocation16 + $0x18] sm:$0xff]
        %v2742 = vld [vmem:[#allocation16 + $0x20] sm:$0xff]
        %v2743 = vld [vmem:[#allocation16 + $0x28] sm:$0xff]
        %v2744 = vld [vmem:[#allocation16 + $0x30] sm:$0xff]
        %v2745 = vld [vmem:[#allocation16 + $0x38] sm:$0xff]
        %v2746 = vld [vmem:[#allocation16 + $0x40] sm:$0xff]
        %v2747 = vld [vmem:[#allocation16 + $0x48] sm:$0xff]
        %v2748 = vld [vmem:[#allocation16 + $0x50] sm:$0xff]
        %v2749 = vld [vmem:[#allocation16 + $0x58] sm:$0xff]
        %v2750 = vld [vmem:[#allocation16 + $0x60] sm:$0xff]
        %v2751 = vld [vmem:[#allocation16 + $0x68] sm:$0xff]
        %v2752 = vld [vmem:[#allocation16 + $0x70] sm:$0xff]
        %v2753 = vld [vmem:[#allocation16 + $0x78] sm:$0xff]
        %v2754 = vld [vmem:[%s14] sm:$0x3]
        %v2756 = vlaneseq
        %v2757 = vshrl.u32 %v2756, 7
        %v2758 = vsub.s32 0, %v2757
        %v2759 = vrot.slane %v2754, %v2758
        %v2760 = vlaneseq
        %v2761 = vshrl.u32 %v2760, 7
        %v2762 = vsub.s32 1, %v2761
        %v2763 = vrot.slane %v2754, %v2762
        %v2782 = vunpack.c.l.b16 %v2738
        %v2783 = vunpack.c.h.b16 %v2738
        %v2784 = vunpack.c.l.b16 %v2739
        %v2785 = vunpack.c.h.b16 %v2739
        %v2786 = vunpack.c.l.b16 %v2740
        %v2787 = vunpack.c.h.b16 %v2740
        %v2788 = vunpack.c.l.b16 %v2741
        %v2789 = vunpack.c.h.b16 %v2741
        %v2790 = vunpack.c.l.b16 %v2742
        %v2791 = vunpack.c.h.b16 %v2742
        %v2792 = vunpack.c.l.b16 %v2743
        %v2793 = vunpack.c.h.b16 %v2743
        %v2794 = vunpack.c.l.b16 %v2744
        %v2795 = vunpack.c.h.b16 %v2744
        %v2796 = vunpack.c.l.b16 %v2745
        %v2797 = vunpack.c.h.b16 %v2745
        %v2798 = vunpack.c.l.b16 %v2746
        %v2799 = vunpack.c.h.b16 %v2746
        %v2800 = vunpack.c.l.b16 %v2747
        %v2801 = vunpack.c.h.b16 %v2747
        %v2802 = vunpack.c.l.b16 %v2748
        %v2803 = vunpack.c.h.b16 %v2748
        %v2804 = vunpack.c.l.b16 %v2749
        %v2805 = vunpack.c.h.b16 %v2749
        %v2806 = vunpack.c.l.b16 %v2750
        %v2807 = vunpack.c.h.b16 %v2750
        %v2808 = vunpack.c.l.b16 %v2751
        %v2809 = vunpack.c.h.b16 %v2751
        %v2810 = vunpack.c.l.b16 %v2752
        %v2811 = vunpack.c.h.b16 %v2752
        %v2812 = vunpack.c.l.b16 %v2753
        %v2813 = vunpack.c.h.b16 %v2753
        %v2814 = vpack.c.b16 %v2784, %v2782
        %v2815 = vpack.c.b16 %v2785, %v2783
        %v2816 = vpack.c.b16 %v2788, %v2786
        %v2817 = vpack.c.b16 %v2789, %v2787
        %v2818 = vpack.c.b16 %v2792, %v2790
        %v2819 = vpack.c.b16 %v2793, %v2791
        %v2820 = vpack.c.b16 %v2796, %v2794
        %v2821 = vpack.c.b16 %v2797, %v2795
        %v2822 = vpack.c.b16 %v2800, %v2798
        %v2823 = vpack.c.b16 %v2801, %v2799
        %v2824 = vpack.c.b16 %v2804, %v2802
        %v2825 = vpack.c.b16 %v2805, %v2803
        %v2826 = vpack.c.b16 %v2808, %v2806
        %v2827 = vpack.c.b16 %v2809, %v2807
        %v2828 = vpack.c.b16 %v2812, %v2810
        %v2829 = vpack.c.b16 %v2813, %v2811
        %2846 = vmatprep.subr.bf16.mxu0 %v2829
        %2847 = vmatpush1.bf16.msra.mxu0 %v2828
        %2848 = vmatprep.subr.bf16.mxu0 %v2827
        %2849 = vmatpush1.bf16.msra.mxu0 %v2826
        %2850 = vmatprep.subr.bf16.mxu0 %v2825
        %2851 = vmatpush1.bf16.msra.mxu0 %v2824
        %2852 = vmatprep.subr.bf16.mxu0 %v2823
        %2853 = vmatpush1.bf16.msra.mxu0 %v2822
        %2854 = vmatprep.subr.bf16.mxu0 %v2821
        %2855 = vmatpush1.bf16.msra.mxu0 %v2820
        %2856 = vmatprep.subr.bf16.mxu0 %v2819
        %2857 = vmatpush1.bf16.msra.mxu0 %v2818
        %2858 = vmatprep.subr.bf16.mxu0 %v2817
        %2859 = vmatpush1.bf16.msra.mxu0 %v2816
        %2860 = vmatprep.subr.bf16.mxu0 %v2815
        %2861 = vmatpush1.bf16.msra.mxu0 %v2814
        %2862 = vmatprep.subr.bf16.mxu0 0
        %2863 = vmatpush2.bf16.msra.mxu0 0
        %2864 = vmatprep.subr.bf16.mxu0 0
        %2865 = vmatpush2.bf16.msra.mxu0 0
        %2866 = vmatprep.subr.bf16.mxu0 0
        %2867 = vmatpush2.bf16.msra.mxu0 0
        %2868 = vmatprep.subr.bf16.mxu0 0
        %2869 = vmatpush2.bf16.msra.mxu0 0
        %2870 = vmatprep.subr.bf16.mxu0 0
        %2871 = vmatpush2.bf16.msra.mxu0 0
        %2872 = vmatprep.subr.bf16.mxu0 0
        %2873 = vmatpush2.bf16.msra.mxu0 0
        %2874 = vmatprep.subr.bf16.mxu0 0
        %2875 = vmatpush2.bf16.msra.mxu0 0
        %2876 = vmatprep.subr.bf16.mxu0 0
        %2877 = vmatpush2.bf16.msra.mxu0 0
        %2878 = vmatprep.mubr.bf16.mxu0 0
        %2879 = vmatmul.mubr.bf16.gmra.mxu0 %v2736
        %v2880 = vpop.f32.mrf.mxu0
        %v2881 = vadd.f32 %v2759, %v2880
        %v2882 = vpop.f32.mrf.mxu0
        %v2883 = vadd.f32 %v2763, %v2882
        %v2884 = vpop.f32.mrf.mxu0
        %v2885 = vadd.f32 %v2759, %v2884
        %v2886 = vpop.f32.mrf.mxu0
        %v2887 = vadd.f32 %v2763, %v2886
        %2888 = vmatprep.mubr.bf16.mxu0 0
        %2889 = vmatmul.mubr.bf16.gmra.mxu0 %v2737
        %v2890 = vpop.f32.mrf.mxu0
        %v2891 = vadd.f32 %v2759, %v2890
        %v2892 = vpop.f32.mrf.mxu0
        %v2893 = vadd.f32 %v2763, %v2892
        %v2894 = vpop.f32.mrf.mxu0
        %v2895 = vadd.f32 %v2759, %v2894
        %v2896 = vpop.f32.mrf.mxu0
        %v2897 = vadd.f32 %v2763, %v2896
        %2898 = vdwg.mxu0
        %v2899 = vmax.f32 %v2881, 0.0
        %v2900 = vmax.f32 %v2883, 0.0
        %v2901 = vmax.f32 %v2885, 0.0
        %v2902 = vmax.f32 %v2887, 0.0
        %v2903 = vmax.f32 %v2891, 0.0
        %v2904 = vmax.f32 %v2893, 0.0
        %v2905 = vmax.f32 %v2895, 0.0
        %v2906 = vmax.f32 %v2897, 0.0
        %v2907 = vpack.c.bf16 %v2901, %v2899
        %v2908 = vpack.c.bf16 %v2902, %v2900
        %v2909 = vpack.c.bf16 %v2905, %v2903
        %v2910 = vpack.c.bf16 %v2906, %v2904
        %v2911 = vld [vmem:[#allocation18] sm:$0xf]
        %v2912 = vld [vmem:[#allocation18 + $0x4] sm:$0xf]
        %v2913 = vld [vmem:[#allocation18 + $0x8] sm:$0xf]
        %v2914 = vld [vmem:[#allocation18 + $0xc] sm:$0xf]
        %v2915 = vld [vmem:[#allocation18 + $0x10] sm:$0xf]
        %v2916 = vld [vmem:[#allocation18 + $0x14] sm:$0xf]
        %v2917 = vld [vmem:[#allocation18 + $0x18] sm:$0xf]
        %v2918 = vld [vmem:[#allocation18 + $0x1c] sm:$0xf]
        %v2919 = vld [vmem:[#allocation18 + $0x20] sm:$0xf]
        %v2920 = vld [vmem:[#allocation18 + $0x24] sm:$0xf]
        %v2921 = vld [vmem:[#allocation18 + $0x28] sm:$0xf]
        %v2922 = vld [vmem:[#allocation18 + $0x2c] sm:$0xf]
        %v2923 = vld [vmem:[#allocation18 + $0x30] sm:$0xf]
        %v2924 = vld [vmem:[#allocation18 + $0x34] sm:$0xf]
        %v2925 = vld [vmem:[#allocation18 + $0x38] sm:$0xf]
        %v2926 = vld [vmem:[#allocation18 + $0x3c] sm:$0xf]
        %v2927 = vld [vmem:[#allocation18 + $0x40] sm:$0xf]
        %v2928 = vld [vmem:[#allocation18 + $0x44] sm:$0xf]
        %v2929 = vld [vmem:[#allocation18 + $0x48] sm:$0xf]
        %v2930 = vld [vmem:[#allocation18 + $0x4c] sm:$0xf]
        %v2931 = vld [vmem:[#allocation18 + $0x50] sm:$0xf]
        %v2932 = vld [vmem:[#allocation18 + $0x54] sm:$0xf]
        %v2933 = vld [vmem:[#allocation18 + $0x58] sm:$0xf]
        %v2934 = vld [vmem:[#allocation18 + $0x5c] sm:$0xf]
        %v2935 = vld [vmem:[#allocation18 + $0x60] sm:$0xf]
        %v2936 = vld [vmem:[#allocation18 + $0x64] sm:$0xf]
        %v2937 = vld [vmem:[#allocation18 + $0x68] sm:$0xf]
        %v2938 = vld [vmem:[#allocation18 + $0x6c] sm:$0xf]
        %v2939 = vld [vmem:[#allocation18 + $0x70] sm:$0xf]
        %v2940 = vld [vmem:[#allocation18 + $0x74] sm:$0xf]
        %v2941 = vld [vmem:[#allocation18 + $0x78] sm:$0xf]
        %v2942 = vld [vmem:[#allocation18 + $0x7c] sm:$0xf]
        %v2943 = vld [vmem:[%s16] sm:$0x1]
        %v2945 = vlaneseq
        %v2946 = vshrl.u32 %v2945, 7
        %v2947 = vsub.s32 0, %v2946
        %v2948 = vrot.slane %v2943, %v2947
        %v2982 = vunpack.c.l.b16 %v2911
        %v2983 = vunpack.c.l.b16 %v2912
        %v2984 = vunpack.c.l.b16 %v2913
        %v2985 = vunpack.c.l.b16 %v2914
        %v2986 = vunpack.c.l.b16 %v2915
        %v2987 = vunpack.c.l.b16 %v2916
        %v2988 = vunpack.c.l.b16 %v2917
        %v2989 = vunpack.c.l.b16 %v2918
        %v2990 = vunpack.c.l.b16 %v2919
        %v2991 = vunpack.c.l.b16 %v2920
        %v2992 = vunpack.c.l.b16 %v2921
        %v2993 = vunpack.c.l.b16 %v2922
        %v2994 = vunpack.c.l.b16 %v2923
        %v2995 = vunpack.c.l.b16 %v2924
        %v2996 = vunpack.c.l.b16 %v2925
        %v2997 = vunpack.c.l.b16 %v2926
        %v2998 = vunpack.c.l.b16 %v2927
        %v2999 = vunpack.c.l.b16 %v2928
        %v3000 = vunpack.c.l.b16 %v2929
        %v3001 = vunpack.c.l.b16 %v2930
        %v3002 = vunpack.c.l.b16 %v2931
        %v3003 = vunpack.c.l.b16 %v2932
        %v3004 = vunpack.c.l.b16 %v2933
        %v3005 = vunpack.c.l.b16 %v2934
        %v3006 = vunpack.c.l.b16 %v2935
        %v3007 = vunpack.c.l.b16 %v2936
        %v3008 = vunpack.c.l.b16 %v2937
        %v3009 = vunpack.c.l.b16 %v2938
        %v3010 = vunpack.c.l.b16 %v2939
        %v3011 = vunpack.c.l.b16 %v2940
        %v3012 = vunpack.c.l.b16 %v2941
        %v3013 = vunpack.c.l.b16 %v2942
        %v3014 = vpack.c.b16 %v2983, %v2982
        %v3015 = vpack.c.b16 %v2985, %v2984
        %v3016 = vpack.c.b16 %v2987, %v2986
        %v3017 = vpack.c.b16 %v2989, %v2988
        %v3018 = vpack.c.b16 %v2991, %v2990
        %v3019 = vpack.c.b16 %v2993, %v2992
        %v3020 = vpack.c.b16 %v2995, %v2994
        %v3021 = vpack.c.b16 %v2997, %v2996
        %v3022 = vpack.c.b16 %v2999, %v2998
        %v3023 = vpack.c.b16 %v3001, %v3000
        %v3024 = vpack.c.b16 %v3003, %v3002
        %v3025 = vpack.c.b16 %v3005, %v3004
        %v3026 = vpack.c.b16 %v3007, %v3006
        %v3027 = vpack.c.b16 %v3009, %v3008
        %v3028 = vpack.c.b16 %v3011, %v3010
        %v3029 = vpack.c.b16 %v3013, %v3012
        %3046 = vmatprep.subr.bf16.mxu0 0
        %3047 = vmatpush1.bf16.msra.mxu0 %v3021
        %3048 = vmatprep.subr.bf16.mxu0 0
        %3049 = vmatpush1.bf16.msra.mxu0 %v3020
        %3050 = vmatprep.subr.bf16.mxu0 0
        %3051 = vmatpush1.bf16.msra.mxu0 %v3019
        %3052 = vmatprep.subr.bf16.mxu0 0
        %3053 = vmatpush1.bf16.msra.mxu0 %v3018
        %3054 = vmatprep.subr.bf16.mxu0 0
        %3055 = vmatpush1.bf16.msra.mxu0 %v3017
        %3056 = vmatprep.subr.bf16.mxu0 0
        %3057 = vmatpush1.bf16.msra.mxu0 %v3016
        %3058 = vmatprep.subr.bf16.mxu0 0
        %3059 = vmatpush1.bf16.msra.mxu0 %v3015
        %3060 = vmatprep.subr.bf16.mxu0 0
        %3061 = vmatpush1.bf16.msra.mxu0 %v3014
        %3062 = vmatprep.subr.bf16.mxu0 0
        %3063 = vmatpush2.bf16.msra.mxu0 %v3029
        %3064 = vmatprep.subr.bf16.mxu0 0
        %3065 = vmatpush2.bf16.msra.mxu0 %v3028
        %3066 = vmatprep.subr.bf16.mxu0 0
        %3067 = vmatpush2.bf16.msra.mxu0 %v3027
        %3068 = vmatprep.subr.bf16.mxu0 0
        %3069 = vmatpush2.bf16.msra.mxu0 %v3026
        %3070 = vmatprep.subr.bf16.mxu0 0
        %3071 = vmatpush2.bf16.msra.mxu0 %v3025
        %3072 = vmatprep.subr.bf16.mxu0 0
        %3073 = vmatpush2.bf16.msra.mxu0 %v3024
        %3074 = vmatprep.subr.bf16.mxu0 0
        %3075 = vmatpush2.bf16.msra.mxu0 %v3023
        %3076 = vmatprep.subr.bf16.mxu0 0
        %3077 = vmatpush2.bf16.msra.mxu0 %v3022
        %3078 = vmatprep.mubr.bf16.mxu0 %v2908
        %3079 = vmatmul.mubr.bf16.gmra.mxu0 %v2907
        %v3080 = vpop.f32.mrf.mxu0
        %v3081 = vadd.f32 %v2948, %v3080
        %v3082 = vpop.f32.mrf.mxu0
        %v3083 = vpop.f32.mrf.mxu0
        %v3084 = vadd.f32 %v2948, %v3083
        %v3085 = vpop.f32.mrf.mxu0
        %3086 = vmatprep.mubr.bf16.mxu0 %v2910
        %3087 = vmatmul.mubr.bf16.gmra.mxu0 %v2909
        %v3088 = vpop.f32.mrf.mxu0
        %v3089 = vadd.f32 %v2948, %v3088
        %v3090 = vpop.f32.mrf.mxu0
        %v3091 = vpop.f32.mrf.mxu0
        %v3092 = vadd.f32 %v2948, %v3091
        %v3093 = vpop.f32.mrf.mxu0
        %3094 = vdwg.mxu0
        %v3095 = vadd.f32 %v2732, %v3081
        %v3096 = vadd.f32 %v2733, %v3084
        %v3097 = vadd.f32 %v2734, %v3089
        %v3098 = vadd.f32 %v2735, %v3092
        %3099 = vadd.xlane.f32.xlu0 %v3095
        %v3100 = vpop.xlane.xlu0 %3099
        %3101 = vadd.xlane.f32.xlu0 %v3096
        %v3102 = vpop.xlane.xlu0 %3101
        %3103 = vadd.xlane.f32.xlu0 %v3097
        %v3104 = vpop.xlane.xlu0 %3103
        %3105 = vadd.xlane.f32.xlu0 %v3098
        %v3106 = vpop.xlane.xlu0 %3105
        %v3107 = vmul.f32 %v3100, %v2669
        %v3108 = vmul.f32 %v3102, %v2669
        %v3109 = vmul.f32 %v3104, %v2669
        %v3110 = vmul.f32 %v3106, %v2669
        %v3111 = vmul.f32 %v3095, %v3095
        %v3112 = vmul.f32 %v3096, %v3096
        %v3113 = vmul.f32 %v3097, %v3097
        %v3114 = vmul.f32 %v3098, %v3098
        %3115 = vadd.xlane.f32.xlu0 %v3111
        %v3116 = vpop.xlane.xlu0 %3115
        %3117 = vadd.xlane.f32.xlu0 %v3112
        %v3118 = vpop.xlane.xlu0 %3117
        %3119 = vadd.xlane.f32.xlu0 %v3113
        %v3120 = vpop.xlane.xlu0 %3119
        %3121 = vadd.xlane.f32.xlu0 %v3114
        %v3122 = vpop.xlane.xlu0 %3121
        %v3123 = vmul.f32 %v3116, %v2669
        %v3124 = vmul.f32 %v3118, %v2669
        %v3125 = vmul.f32 %v3120, %v2669
        %v3126 = vmul.f32 %v3122, %v2669
        %v3127 = vsub.f32 %v3095, %v3107
        %v3128 = vsub.f32 %v3096, %v3108
        %v3129 = vsub.f32 %v3097, %v3109
        %v3130 = vsub.f32 %v3098, %v3110
        %v3131 = vmul.f32 %v3107, %v3107
        %v3132 = vmul.f32 %v3108, %v3108
        %v3133 = vmul.f32 %v3109, %v3109
        %v3134 = vmul.f32 %v3110, %v3110
        %v3135 = vsub.f32 %v3123, %v3131
        %v3136 = vsub.f32 %v3124, %v3132
        %v3137 = vsub.f32 %v3125, %v3133
        %v3138 = vsub.f32 %v3126, %v3134
        %v3139 = vadd.f32 %v3135, 1e-06
        %v3140 = vadd.f32 %v3136, 1e-06
        %v3141 = vadd.f32 %v3137, 1e-06
        %v3142 = vadd.f32 %v3138, 1e-06
        %v3143 = vrsqrt.pop %v3139
        %v3144 = vrsqrt.pop %v3140
        %v3145 = vrsqrt.pop %v3141
        %v3146 = vrsqrt.pop %v3142
        %v3147 = vmul.f32 %v3127, %v3143
        %v3148 = vmul.f32 %v3128, %v3144
        %v3149 = vmul.f32 %v3129, %v3145
        %v3150 = vmul.f32 %v3130, %v3146
        %v3151 = vld [vmem:[%s17] sm:$0x1]
        %v3153 = vlaneseq
        %v3154 = vshrl.u32 %v3153, 7
        %v3155 = vsub.s32 0, %v3154
        %v3156 = vrot.slane %v3151, %v3155
        %v3158 = vmul.f32 %v3147, %v3156
        %v3159 = vmul.f32 %v3148, %v3156
        %v3160 = vmul.f32 %v3149, %v3156
        %v3161 = vmul.f32 %v3150, %v3156
        %v3162 = vld [vmem:[%s18] sm:$0x1]
        %v3164 = vlaneseq
        %v3165 = vshrl.u32 %v3164, 7
        %v3166 = vsub.s32 0, %v3165
        %v3167 = vrot.slane %v3162, %v3166
        %v3169 = vadd.f32 %v3158, %v3167
        %v3170 = vadd.f32 %v3159, %v3167
        %v3171 = vadd.f32 %v3160, %v3167
        %v3172 = vadd.f32 %v3161, %v3167
        %3173 = vst [vmem:[%s806] sm:$0xff] %v3169
        %3174 = vst [vmem:[%s806 + $0x8] sm:$0xff] %v3170
        %3175 = vst [vmem:[%s806 + $0x10] sm:$0xff] %v3171
        %3176 = vst [vmem:[%s806 + $0x18] sm:$0xff] %v3172
        %s3177 = sand.u32 %s482, 1
        %s3178 = scalar_lea.sflag [#allocation6], %s3177
        %s3179 = sand.u32 %s482, 1
        %s3180 = smul.addr %s3179, 32
        %s3181 = scalar_lea.vmem [#allocation19], %s3180
        // Predicated region
        $region137: #{tpu_custom_call.1} parent=95 // pred_check
          %p3182 = pneg %p492
        $region138: #{tpu_custom_call.1} parent=95 // pred_check_branch
          %3184 = sbr.rel (%p3182) target = $region140
        $region139: #{tpu_custom_call.1} parent=95 // pred_region
          %s3185 = smul.u32 4, %s47
          %s3187 = ssub.s32 512, 512
          %3188 = vsyncadd %s3178, %s3187
          %s3189 = smul.addr %s46, 8
          %s3190 = sadd.s32 %s3185, %s3189
          %s3191 = smul.addr %s3190, 128
          %s3192 = scalar_lea.hbm %s19, %s3191
          %s3193 = sshll.u32 %s3181, 4
          %s3194 = int_to_ptr.vmem [resolvable:$true] %s3193
          %3199 = dma.vmem_to_hbm [thread:$0]  %s3194, 512, %s3192, %s3178, 128, 128, 8
        $region140: #{tpu_custom_call.1} parent=95 // pred_fallthru
          _
      $region96: #{tpu_custom_call.1} parent=5 // pred_fallthru
        _
      %p3200 = scmp.le.s32.totalorder 2, %s37
      // Predicated region
      $region141: #{tpu_custom_call.1} parent=5 // pred_check
        %p3201 = pneg %p3200
      $region142: #{tpu_custom_call.1} parent=5 // pred_check_branch
        %3203 = sbr.rel (%p3201) target = $region144
      $region143: #{tpu_custom_call.1} parent=5 // pred_region
        %s3204 = ssub.s32 %s37, 2
        // Predicated region
        $region145: #{tpu_custom_call.1} parent=143 // pred_check
          %p3205 = pneg %p498
        $region146: #{tpu_custom_call.1} parent=143 // pred_check_branch
          %3207 = sbr.rel (%p3205) target = $region148
        $region147: #{tpu_custom_call.1} parent=143 // pred_region
          %s3208 = sand.u32 %s483, 1
          %s3209 = scalar_lea.sflag [#allocation6], %s3208
          %s3210 = sand.u32 %s483, 1
          %s3211 = smul.addr %s3210, 32
          %s3212 = scalar_lea.vmem [#allocation19], %s3211
          %3213 = dma.done %s3209, 512
        $region148: #{tpu_custom_call.1} parent=143 // pred_fallthru
          _
      $region144: #{tpu_custom_call.1} parent=5 // pred_fallthru
        _
    $region6: #{tpu_custom_call.1} parent=1 // loop_footer
      %s41 = sadd.s32 1, %s37
    $region7: #{tpu_custom_call.1} parent=1 // loop_footer_branch
      %36 = sbr.rel target = $region3
    $region8: #{tpu_custom_call.1} parent=1 // loop_exit
      _
    %3214 = vsyncpa [#allocation5], 1
    %s3215 = scalar_lea.sflag [#allocation5], 1
    %3216 = vsyncpa %s3215, 1
    %3217 = vsyncpa [#allocation8], 1
    %s3218 = scalar_lea.sflag [#allocation8], 1
    %3219 = vsyncpa %s3218, 1
    %3220 = vsyncpa [#allocation11], 1
    %3221 = vsyncpa [#allocation14], 1
    %3222 = vsyncpa [#allocation17], 1
    %3223 = vsyncpa [#allocation6], 1
    %s3224 = scalar_lea.sflag [#allocation6], 1
    %3225 = vsyncpa %s3224, 1

// kernel: tpu_custom_call.1
$region0: #{tpu_custom_call.1}
  #allocation0 [shape = 'u32[]', space=smem, size = 0x4, offset = 0x4, fixed_abs, tag = 'smem constant byte address 0x4 - core index']
  #allocation1 [shape = 'u32[144,128]{1,0:T(1,128)}', space=vmem, size = 0x12000, scoped, tag = 'internal scratch']
  #allocation2 [shape = 'bf16[4,64,32]{2,1,0:T(8,128)(2,1)}', space=vmem, size = 0x10000, scoped, tag = 'scratch operand']
  #allocation3 [shape = 'bf16[4,64,32]{2,1,0:T(8,128)(2,1)}', space=vmem, size = 0x10000, scoped, tag = 'scratch operand']
  %s0 = inlined_call_operand.hbm [shape: f32[2,64,128], index: 0, kind: input, shape index: {}]
  %s1 = inlined_call_operand.hbm [shape: bf16[2,64,128], index: 1, kind: input, shape index: {}]
  %s2 = inlined_call_operand.hbm [shape: bf16[2,64,64], index: 2, kind: input, shape index: {}]
  %s3 = inlined_call_operand.hbm [shape: bf16[128,128], index: 3, kind: input, shape index: {}]
  %s4 = inlined_call_operand.vmem [shape: f32[1,128], index: 4, kind: input, shape index: {}]
  %s5 = inlined_call_operand.hbm [shape: bf16[128,128], index: 5, kind: input, shape index: {}]
  %s6 = inlined_call_operand.vmem [shape: f32[1,128], index: 6, kind: input, shape index: {}]
  %s7 = inlined_call_operand.hbm [shape: bf16[128,128], index: 7, kind: input, shape index: {}]
  %s8 = inlined_call_operand.vmem [shape: f32[1,128], index: 8, kind: input, shape index: {}]
  %s9 = inlined_call_operand.hbm [shape: bf16[128,128], index: 9, kind: input, shape index: {}]
  %s10 = inlined_call_operand.vmem [shape: f32[1,128], index: 10, kind: input, shape index: {}]
  %s11 = inlined_call_operand.vmem [shape: f32[1,128], index: 11, kind: input, shape index: {}]
  %s12 = inlined_call_operand.vmem [shape: f32[1,128], index: 12, kind: input, shape index: {}]
  %s13 = inlined_call_operand.hbm [shape: bf16[128,256], index: 13, kind: input, shape index: {}]
  %s14 = inlined_call_operand.vmem [shape: f32[1,256], index: 14, kind: input, shape index: {}]
  %s15 = inlined_call_operand.hbm [shape: bf16[256,128], index: 15, kind: input, shape index: {}]
  %s16 = inlined_call_operand.vmem [shape: f32[1,128], index: 16, kind: input, shape index: {}]
  %s17 = inlined_call_operand.vmem [shape: f32[1,128], index: 17, kind: input, shape index: {}]
  %s18 = inlined_call_operand.vmem [shape: f32[1,128], index: 18, kind: input, shape index: {}]
  %s19 = inlined_call_operand.hbm [shape: f32[2,64,128], index: 19, kind: output, shape index: {}]
  %s20 = sld [smem:[#allocation0]]
  $region149: #{tpu_custom_call.1} parent=0
    _
  %s22 = ssub.s32 1, %s20
  %s23 = scalar_select 0, %s22, %s20
  $region1: #{tpu_custom_call.1} parent=0
    #allocation4 [shape = 'u8[32768]{0}', space=vmem, size = 0x8000, scoped, tag = 'input window, operand 0']
    #allocation5 [shape = 's32[2]{0}', space=sflag, size = 0x8, scoped, tag = 'scoped memory for tpu_custom_call.1']
    #allocation6 [shape = 's32[2]{0}', space=sflag, size = 0x8, scoped, tag = 'scoped memory for tpu_custom_call.1']
    #allocation7 [shape = 'u8[32768]{0}', space=vmem, size = 0x8000, scoped, tag = 'input window, operand 1']
    #allocation8 [shape = 's32[2]{0}', space=sflag, size = 0x8, scoped, tag = 'scoped memory for tpu_custom_call.1']
    #allocation9 [shape = 'u8[16384]{0}', space=vmem, size = 0x4000, scoped, tag = 'input window, operand 2']
    #allocation10 [shape = 'u8[32768]{0}', space=vmem, size = 0x8000, scoped, tag = 'input window, operand 3, single buffered']
    #allocation11 [shape = 's32[1]{0}', space=sflag, size = 0x4, scoped, tag = 'scoped memory for tpu_custom_call.1']
    #allocation12 [shape = 'u8[32768]{0}', space=vmem, size = 0x8000, scoped, tag = 'input window, operand 5, single buffered']
    #allocation13 [shape = 'u8[32768]{0}', space=vmem, size = 0x8000, scoped, tag = 'input window, operand 7, single buffered']
    #allocation14 [shape = 's32[1]{0}', space=sflag, size = 0x4, scoped, tag = 'scoped memory for tpu_custom_call.1']
    #allocation15 [shape = 'u8[32768]{0}', space=vmem, size = 0x8000, scoped, tag = 'input window, operand 9, single buffered']
    #allocation16 [shape = 'u8[65536]{0}', space=vmem, size = 0x10000, scoped, tag = 'input window, operand 13, single buffered']
    #allocation17 [shape = 's32[1]{0}', space=sflag, size = 0x4, scoped, tag = 'scoped memory for tpu_custom_call.1']
    #allocation18 [shape = 'u8[65536]{0}', space=vmem, size = 0x10000, scoped, tag = 'input window, operand 15, single buffered']
    #allocation19 [shape = 'u8[32768]{0}', space=vmem, size = 0x8000, scoped, tag = 'output window, operand 0']
    %24 = vsyncpa [#allocation5], 0
    %s25 = scalar_lea.sflag [#allocation5], 1
    %26 = vsyncpa %s25, 0
    %27 = vsyncpa [#allocation8], 0
    %s28 = scalar_lea.sflag [#allocation8], 1
    %29 = vsyncpa %s28, 0
    %30 = vsyncpa [#allocation11], 0
    %31 = vsyncpa [#allocation14], 0
    %32 = vsyncpa [#allocation17], 0
    %33 = vsyncpa [#allocation6], 0
    %s34 = scalar_lea.sflag [#allocation6], 1
    %35 = vsyncpa %s34, 0
    loop: start=0, step=1, limit=6
    $region2: #{tpu_custom_call.1} parent=1 // loop_pre_header
      _
    $region3: #{tpu_custom_call.1} parent=1 // loop_header
      %s37 = sphi 0, %s41
      %p38 = scmp.ge.s32.totalorder %s37, 6
      %s44 = sphi 0, %s56
      %s45 = sphi 0, %s52
      %s46 = sphi 0, %s44
      %s47 = sphi 0, %s45
      %s48 = sphi 0, %s46
      %s49 = sphi 0, %s47
      %s61 = sphi 0, %s63
      %s64 = sphi 0, %s61
      %s65 = sphi 0, %s64
      %s81 = sphi 0, %s65
      %s87 = sphi 0, %s89
      %s90 = sphi 0, %s87
      %s91 = sphi 0, %s90
      %s107 = sphi 0, %s91
      %s115 = sphi 0, %s117
      %s118 = sphi 0, %s115
      %s119 = sphi 0, %s118
      %s135 = sphi 0, %s119
      %s139 = sphi 0, %s139
      %s141 = sphi 0, %s139
      %s142 = sphi 0, %s141
      %s156 = sphi 0, %s142
      %s160 = sphi 0, %s160
      %s162 = sphi 0, %s160
      %s163 = sphi 0, %s162
      %s177 = sphi 0, %s163
      %s181 = sphi 0, %s181
      %s183 = sphi 0, %s181
      %s184 = sphi 0, %s183
      %s198 = sphi 0, %s184
      %s202 = sphi 0, %s202
      %s204 = sphi 0, %s202
      %s205 = sphi 0, %s204
      %s219 = sphi 0, %s205
      %s223 = sphi 0, %s223
      %s225 = sphi 0, %s223
      %s226 = sphi 0, %s225
      %s240 = sphi 0, %s226
      %s244 = sphi 0, %s244
      %s246 = sphi 0, %s244
      %s247 = sphi 0, %s246
      %s261 = sphi 0, %s247
      %s265 = sphi 0, %s265
      %s267 = sphi 0, %s265
      %s268 = sphi 0, %s267
      %s282 = sphi 0, %s268
      %s286 = sphi 0, %s286
      %s288 = sphi 0, %s286
      %s289 = sphi 0, %s288
      %s303 = sphi 0, %s289
      %s307 = sphi 0, %s307
      %s309 = sphi 0, %s307
      %s310 = sphi 0, %s309
      %s324 = sphi 0, %s310
      %s328 = sphi 0, %s328
      %s330 = sphi 0, %s328
      %s331 = sphi 0, %s330
      %s345 = sphi 0, %s331
      %s349 = sphi 0, %s349
      %s351 = sphi 0, %s349
      %s352 = sphi 0, %s351
      %s366 = sphi 0, %s352
      %s370 = sphi 0, %s370
      %s372 = sphi 0, %s370
      %s373 = sphi 0, %s372
      %s387 = sphi 0, %s373
      %s391 = sphi 0, %s391
      %s393 = sphi 0, %s391
      %s394 = sphi 0, %s393
      %s408 = sphi 0, %s394
      %s412 = sphi 0, %s412
      %s414 = sphi 0, %s412
      %s415 = sphi 0, %s414
      %s429 = sphi 0, %s415
      %s433 = sphi 0, %s433
      %s435 = sphi 0, %s433
      %s436 = sphi 0, %s435
      %s450 = sphi 0, %s436
      %s454 = sphi 0, %s454
      %s456 = sphi 0, %s454
      %s457 = sphi 0, %s456
      %s471 = sphi 0, %s457
      %s479 = sphi 0, %s481
      %s482 = sphi 0, %s479
      %s483 = sphi 0, %s482
      %s499 = sphi 0, %s483
    $region4: #{tpu_custom_call.1} parent=1 // loop_header_branch
      %40 = sbr.rel (%p38) target = $region8
    $region5: #{tpu_custom_call.1} parent=1 // loop_body
      %s42 = ssub.s32 %s37, 1
      %s43 = ssub.s32 %s37, 2
      %s50 = sadd.s32 1, %s45
      %p51 = scmp.ge.s32.totalorder %s50, 2
      %s52 = scalar_select %p51, 0, %s50
      %s53 = sadd.s32 1, %s44
      %s54 = scalar_select %p51, %s53, %s44
      %p55 = scmp.ge.s32.totalorder %s54, 2
      %s56 = scalar_select %p55, 0, %s54
      %s57 = ssub.s32 %s44, %s56
      %s58 = ssub.s32 %s45, %s52
      %s59 = sor.u32 %s57, %s58
      %p60 = scmp.eq.s32.totalorder %s59, 0
      %s62 = sadd.s32 %s61, 1
      %s63 = scalar_select %p60, %s61, %s62
      %p66 = pneg %p60
      %p67 = scmp.eq.s32.totalorder %s37, 3
      %p68 = por %p66, %p67
      %p69 = scmp.ne.s32.totalorder %s61, %s64
      %p70 = scmp.eq.s32.totalorder %s37, 0
      %p71 = por %p69, %p70
      %p72 = scmp.ne.s32.totalorder %s61, %s64
      %p73 = scmp.eq.s32.totalorder %s42, 3
      %p74 = por %p72, %p73
      %p75 = scmp.ne.s32.totalorder %s64, %s65
      %p76 = scmp.eq.s32.totalorder %s42, 0
      %p77 = por %p75, %p76
      %p78 = scmp.ne.s32.totalorder %s64, %s65
      %p79 = scmp.eq.s32.totalorder %s43, 3
      %p80 = por %p78, %p79
      %p82 = scmp.ne.s32.totalorder %s65, %s81
      %p83 = scmp.eq.s32.totalorder %s43, 0
      %p84 = por %p82, %p83
      %s85 = ssub.s32 %s44, %s56
      %p86 = scmp.eq.s32.totalorder %s85, 0
      %s88 = sadd.s32 %s87, 1
      %s89 = scalar_select %p86, %s87, %s88
      %p92 = pneg %p86
      %p93 = scmp.eq.s32.totalorder %s37, 3
      %p94 = por %p92, %p93
      %p95 = scmp.ne.s32.totalorder %s87, %s90
      %p96 = scmp.eq.s32.totalorder %s37, 0
      %p97 = por %p95, %p96
      %p98 = scmp.ne.s32.totalorder %s87, %s90
      %p99 = scmp.eq.s32.totalorder %s42, 3
      %p100 = por %p98, %p99
      %p101 = scmp.ne.s32.totalorder %s90, %s91
      %p102 = scmp.eq.s32.totalorder %s42, 0
      %p103 = por %p101, %p102
      %p104 = scmp.ne.s32.totalorder %s90, %s91
      %p105 = scmp.eq.s32.totalorder %s43, 3
      %p106 = por %p104, %p105
      %p108 = scmp.ne.s32.totalorder %s91, %s107
      %p109 = scmp.eq.s32.totalorder %s43, 0
      %p110 = por %p108, %p109
      %s111 = ssub.s32 %s44, %s56
      %s112 = ssub.s32 %s45, %s52
      %s113 = sor.u32 %s111, %s112
      %p114 = scmp.eq.s32.totalorder %s113, 0
      %s116 = sadd.s32 %s115, 1
      %s117 = scalar_select %p114, %s115, %s116
      %p120 = pneg %p114
      %p121 = scmp.eq.s32.totalorder %s37, 3
      %p122 = por %p120, %p121
      %p123 = scmp.ne.s32.totalorder %s115, %s118
      %p124 = scmp.eq.s32.totalorder %s37, 0
      %p125 = por %p123, %p124
      %p126 = scmp.ne.s32.totalorder %s115, %s118
      %p127 = scmp.eq.s32.totalorder %s42, 3
      %p128 = por %p126, %p127
      %p129 = scmp.ne.s32.totalorder %s118, %s119
      %p130 = scmp.eq.s32.totalorder %s42, 0
      %p131 = por %p129, %p130
      %p132 = scmp.ne.s32.totalorder %s118, %s119
      %p133 = scmp.eq.s32.totalorder %s43, 3
      %p134 = por %p132, %p133
      %p136 = scmp.ne.s32.totalorder %s119, %s135
      %p137 = scmp.eq.s32.totalorder %s43, 0
      %p138 = por %p136, %p137
      %s140 = sadd.s32 %s139, 1
      %p143 = scmp.eq.s32.totalorder %s37, 3
      %p144 = scmp.ne.s32.totalorder %s139, %s141
      %p145 = scmp.eq.s32.totalorder %s37, 0
      %p146 = por %p144, %p145
      %p147 = scmp.ne.s32.totalorder %s139, %s141
      %p148 = scmp.eq.s32.totalorder %s42, 3
      %p149 = por %p147, %p148
      %p150 = scmp.ne.s32.totalorder %s141, %s142
      %p151 = scmp.eq.s32.totalorder %s42, 0
      %p152 = por %p150, %p151
      %p153 = scmp.ne.s32.totalorder %s141, %s142
      %p154 = scmp.eq.s32.totalorder %s43, 3
      %p155 = por %p153, %p154
      %p157 = scmp.ne.s32.totalorder %s142, %s156
      %p158 = scmp.eq.s32.totalorder %s43, 0
      %p159 = por %p157, %p158
      %s161 = sadd.s32 %s160, 1
      %p164 = scmp.eq.s32.totalorder %s37, 3
      %p165 = scmp.ne.s32.totalorder %s160, %s162
      %p166 = scmp.eq.s32.totalorder %s37, 0
      %p167 = por %p165, %p166
      %p168 = scmp.ne.s32.totalorder %s160, %s162
      %p169 = scmp.eq.s32.totalorder %s42, 3
      %p170 = por %p168, %p169
      %p171 = scmp.ne.s32.totalorder %s162, %s163
      %p172 = scmp.eq.s32.totalorder %s42, 0
      %p173 = por %p171, %p172
      %p174 = scmp.ne.s32.totalorder %s162, %s163
      %p175 = scmp.eq.s32.totalorder %s43, 3
      %p176 = por %p174, %p175
      %p178 = scmp.ne.s32.totalorder %s163, %s177
      %p179 = scmp.eq.s32.totalorder %s43, 0
      %p180 = por %p178, %p179
      %s182 = sadd.s32 %s181, 1
      %p185 = scmp.eq.s32.totalorder %s37, 3
      %p186 = scmp.ne.s32.totalorder %s181, %s183
      %p187 = scmp.eq.s32.totalorder %s37, 0
      %p188 = por %p186, %p187
      %p189 = scmp.ne.s32.totalorder %s181, %s183
      %p190 = scmp.eq.s32.totalorder %s42, 3
      %p191 = por %p189, %p190
      %p192 = scmp.ne.s32.totalorder %s183, %s184
      %p193 = scmp.eq.s32.totalorder %s42, 0
      %p194 = por %p192, %p193
      %p195 = scmp.ne.s32.totalorder %s183, %s184
      %p196 = scmp.eq.s32.totalorder %s43, 3
      %p197 = por %p195, %p196
      %p199 = scmp.ne.s32.totalorder %s184, %s198
      %p200 = scmp.eq.s32.totalorder %s43, 0
      %p201 = por %p199, %p200
      %s203 = sadd.s32 %s202, 1
      %p206 = scmp.eq.s32.totalorder %s37, 3
      %p207 = scmp.ne.s32.totalorder %s202, %s204
      %p208 = scmp.eq.s32.totalorder %s37, 0
      %p209 = por %p207, %p208
      %p210 = scmp.ne.s32.totalorder %s202, %s204
      %p211 = scmp.eq.s32.totalorder %s42, 3
      %p212 = por %p210, %p211
      %p213 = scmp.ne.s32.totalorder %s204, %s205
      %p214 = scmp.eq.s32.totalorder %s42, 0
      %p215 = por %p213, %p214
      %p216 = scmp.ne.s32.totalorder %s204, %s205
      %p217 = scmp.eq.s32.totalorder %s43, 3
      %p218 = por %p216, %p217
      %p220 = scmp.ne.s32.totalorder %s205, %s219
      %p221 = scmp.eq.s32.totalorder %s43, 0
      %p222 = por %p220, %p221
      %s224 = sadd.s32 %s223, 1
      %p227 = scmp.eq.s32.totalorder %s37, 3
      %p228 = scmp.ne.s32.totalorder %s223, %s225
      %p229 = scmp.eq.s32.totalorder %s37, 0
      %p230 = por %p228, %p229
      %p231 = scmp.ne.s32.totalorder %s223, %s225
      %p232 = scmp.eq.s32.totalorder %s42, 3
      %p233 = por %p231, %p232
      %p234 = scmp.ne.s32.totalorder %s225, %s226
      %p235 = scmp.eq.s32.totalorder %s42, 0
      %p236 = por %p234, %p235
      %p237 = scmp.ne.s32.totalorder %s225, %s226
      %p238 = scmp.eq.s32.totalorder %s43, 3
      %p239 = por %p237, %p238
      %p241 = scmp.ne.s32.totalorder %s226, %s240
      %p242 = scmp.eq.s32.totalorder %s43, 0
      %p243 = por %p241, %p242
      %s245 = sadd.s32 %s244, 1
      %p248 = scmp.eq.s32.totalorder %s37, 3
      %p249 = scmp.ne.s32.totalorder %s244, %s246
      %p250 = scmp.eq.s32.totalorder %s37, 0
      %p251 = por %p249, %p250
      %p252 = scmp.ne.s32.totalorder %s244, %s246
      %p253 = scmp.eq.s32.totalorder %s42, 3
      %p254 = por %p252, %p253
      %p255 = scmp.ne.s32.totalorder %s246, %s247
      %p256 = scmp.eq.s32.totalorder %s42, 0
      %p257 = por %p255, %p256
      %p258 = scmp.ne.s32.totalorder %s246, %s247
      %p259 = scmp.eq.s32.totalorder %s43, 3
      %p260 = por %p258, %p259
      %p262 = scmp.ne.s32.totalorder %s247, %s261
      %p263 = scmp.eq.s32.totalorder %s43, 0
      %p264 = por %p262, %p263
      %s266 = sadd.s32 %s265, 1
      %p269 = scmp.eq.s32.totalorder %s37, 3
      %p270 = scmp.ne.s32.totalorder %s265, %s267
      %p271 = scmp.eq.s32.totalorder %s37, 0
      %p272 = por %p270, %p271
      %p273 = scmp.ne.s32.totalorder %s265, %s267
      %p274 = scmp.eq.s32.totalorder %s42, 3
      %p275 = por %p273, %p274
      %p276 = scmp.ne.s32.totalorder %s267, %s268
      %p277 = scmp.eq.s32.totalorder %s42, 0
      %p278 = por %p276, %p277
      %p279 = scmp.ne.s32.totalorder %s267, %s268
      %p280 = scmp.eq.s32.totalorder %s43, 3
      %p281 = por %p279, %p280
      %p283 = scmp.ne.s32.totalorder %s268, %s282
      %p284 = scmp.eq.s32.totalorder %s43, 0
      %p285 = por %p283, %p284
      %s287 = sadd.s32 %s286, 1
      %p290 = scmp.eq.s32.totalorder %s37, 3
      %p291 = scmp.ne.s32.totalorder %s286, %s288
      %p292 = scmp.eq.s32.totalorder %s37, 0
      %p293 = por %p291, %p292
      %p294 = scmp.ne.s32.totalorder %s286, %s288
      %p295 = scmp.eq.s32.totalorder %s42, 3
      %p296 = por %p294, %p295
      %p297 = scmp.ne.s32.totalorder %s288, %s289
      %p298 = scmp.eq.s32.totalorder %s42, 0
      %p299 = por %p297, %p298
      %p300 = scmp.ne.s32.totalorder %s288, %s289
      %p301 = scmp.eq.s32.totalorder %s43, 3
      %p302 = por %p300, %p301
      %p304 = scmp.ne.s32.totalorder %s289, %s303
      %p305 = scmp.eq.s32.totalorder %s43, 0
      %p306 = por %p304, %p305
      %s308 = sadd.s32 %s307, 1
      %p311 = scmp.eq.s32.totalorder %s37, 3
      %p312 = scmp.ne.s32.totalorder %s307, %s309
      %p313 = scmp.eq.s32.totalorder %s37, 0
      %p314 = por %p312, %p313
      %p315 = scmp.ne.s32.totalorder %s307, %s309
      %p316 = scmp.eq.s32.totalorder %s42, 3
      %p317 = por %p315, %p316
      %p318 = scmp.ne.s32.totalorder %s309, %s310
      %p319 = scmp.eq.s32.totalorder %s42, 0
      %p320 = por %p318, %p319
      %p321 = scmp.ne.s32.totalorder %s309, %s310
      %p322 = scmp.eq.s32.totalorder %s43, 3
      %p323 = por %p321, %p322
      %p325 = scmp.ne.s32.totalorder %s310, %s324
      %p326 = scmp.eq.s32.totalorder %s43, 0
      %p327 = por %p325, %p326
      %s329 = sadd.s32 %s328, 1
      %p332 = scmp.eq.s32.totalorder %s37, 3
      %p333 = scmp.ne.s32.totalorder %s328, %s330
      %p334 = scmp.eq.s32.totalorder %s37, 0
      %p335 = por %p333, %p334
      %p336 = scmp.ne.s32.totalorder %s328, %s330
      %p337 = scmp.eq.s32.totalorder %s42, 3
      %p338 = por %p336, %p337
      %p339 = scmp.ne.s32.totalorder %s330, %s331
      %p340 = scmp.eq.s32.totalorder %s42, 0
      %p341 = por %p339, %p340
      %p342 = scmp.ne.s32.totalorder %s330, %s331
      %p343 = scmp.eq.s32.totalorder %s43, 3
      %p344 = por %p342, %p343
      %p346 = scmp.ne.s32.totalorder %s331, %s345
      %p347 = scmp.eq.s32.totalorder %s43, 0
      %p348 = por %p346, %p347
      %s350 = sadd.s32 %s349, 1
      %p353 = scmp.eq.s32.totalorder %s37, 3
      %p354 = scmp.ne.s32.totalorder %s349, %s351
      %p355 = scmp.eq.s32.totalorder %s37, 0
      %p356 = por %p354, %p355
      %p357 = scmp.ne.s32.totalorder %s349, %s351
      %p358 = scmp.eq.s32.totalorder %s42, 3
      %p359 = por %p357, %p358
      %p360 = scmp.ne.s32.totalorder %s351, %s352
      %p361 = scmp.eq.s32.totalorder %s42, 0
      %p362 = por %p360, %p361
      %p363 = scmp.ne.s32.totalorder %s351, %s352
      %p364 = scmp.eq.s32.totalorder %s43, 3
      %p365 = por %p363, %p364
      %p367 = scmp.ne.s32.totalorder %s352, %s366
      %p368 = scmp.eq.s32.totalorder %s43, 0
      %p369 = por %p367, %p368
      %s371 = sadd.s32 %s370, 1
      %p374 = scmp.eq.s32.totalorder %s37, 3
      %p375 = scmp.ne.s32.totalorder %s370, %s372
      %p376 = scmp.eq.s32.totalorder %s37, 0
      %p377 = por %p375, %p376
      %p378 = scmp.ne.s32.totalorder %s370, %s372
      %p379 = scmp.eq.s32.totalorder %s42, 3
      %p380 = por %p378, %p379
      %p381 = scmp.ne.s32.totalorder %s372, %s373
      %p382 = scmp.eq.s32.totalorder %s42, 0
      %p383 = por %p381, %p382
      %p384 = scmp.ne.s32.totalorder %s372, %s373
      %p385 = scmp.eq.s32.totalorder %s43, 3
      %p386 = por %p384, %p385
      %p388 = scmp.ne.s32.totalorder %s373, %s387
      %p389 = scmp.eq.s32.totalorder %s43, 0
      %p390 = por %p388, %p389
      %s392 = sadd.s32 %s391, 1
      %p395 = scmp.eq.s32.totalorder %s37, 3
      %p396 = scmp.ne.s32.totalorder %s391, %s393
      %p397 = scmp.eq.s32.totalorder %s37, 0
      %p398 = por %p396, %p397
      %p399 = scmp.ne.s32.totalorder %s391, %s393
      %p400 = scmp.eq.s32.totalorder %s42, 3
      %p401 = por %p399, %p400
      %p402 = scmp.ne.s32.totalorder %s393, %s394
      %p403 = scmp.eq.s32.totalorder %s42, 0
      %p404 = por %p402, %p403
      %p405 = scmp.ne.s32.totalorder %s393, %s394
      %p406 = scmp.eq.s32.totalorder %s43, 3
      %p407 = por %p405, %p406
      %p409 = scmp.ne.s32.totalorder %s394, %s408
      %p410 = scmp.eq.s32.totalorder %s43, 0
      %p411 = por %p409, %p410
      %s413 = sadd.s32 %s412, 1
      %p416 = scmp.eq.s32.totalorder %s37, 3
      %p417 = scmp.ne.s32.totalorder %s412, %s414
      %p418 = scmp.eq.s32.totalorder %s37, 0
      %p419 = por %p417, %p418
      %p420 = scmp.ne.s32.totalorder %s412, %s414
      %p421 = scmp.eq.s32.totalorder %s42, 3
      %p422 = por %p420, %p421
      %p423 = scmp.ne.s32.totalorder %s414, %s415
      %p424 = scmp.eq.s32.totalorder %s42, 0
      %p425 = por %p423, %p424
      %p426 = scmp.ne.s32.totalorder %s414, %s415
      %p427 = scmp.eq.s32.totalorder %s43, 3
      %p428 = por %p426, %p427
      %p430 = scmp.ne.s32.totalorder %s415, %s429
      %p431 = scmp.eq.s32.totalorder %s43, 0
      %p432 = por %p430, %p431
      %s434 = sadd.s32 %s433, 1
      %p437 = scmp.eq.s32.totalorder %s37, 3
      %p438 = scmp.ne.s32.totalorder %s433, %s435
      %p439 = scmp.eq.s32.totalorder %s37, 0
      %p440 = por %p438, %p439
      %p441 = scmp.ne.s32.totalorder %s433, %s435
      %p442 = scmp.eq.s32.totalorder %s42, 3
      %p443 = por %p441, %p442
      %p444 = scmp.ne.s32.totalorder %s435, %s436
      %p445 = scmp.eq.s32.totalorder %s42, 0
      %p446 = por %p444, %p445
      %p447 = scmp.ne.s32.totalorder %s435, %s436
      %p448 = scmp.eq.s32.totalorder %s43, 3
      %p449 = por %p447, %p448
      %p451 = scmp.ne.s32.totalorder %s436, %s450
      %p452 = scmp.eq.s32.totalorder %s43, 0
      %p453 = por %p451, %p452
      %s455 = sadd.s32 %s454, 1
      %p458 = scmp.eq.s32.totalorder %s37, 3
      %p459 = scmp.ne.s32.totalorder %s454, %s456
      %p460 = scmp.eq.s32.totalorder %s37, 0
      %p461 = por %p459, %p460
      %p462 = scmp.ne.s32.totalorder %s454, %s456
      %p463 = scmp.eq.s32.totalorder %s42, 3
      %p464 = por %p462, %p463
      %p465 = scmp.ne.s32.totalorder %s456, %s457
      %p466 = scmp.eq.s32.totalorder %s42, 0
      %p467 = por %p465, %p466
      %p468 = scmp.ne.s32.totalorder %s456, %s457
      %p469 = scmp.eq.s32.totalorder %s43, 3
      %p470 = por %p468, %p469
      %p472 = scmp.ne.s32.totalorder %s457, %s471
      %p473 = scmp.eq.s32.totalorder %s43, 0
      %p474 = por %p472, %p473
      %s475 = ssub.s32 %s44, %s56
      %s476 = ssub.s32 %s45, %s52
      %s477 = sor.u32 %s475, %s476
      %p478 = scmp.eq.s32.totalorder %s477, 0
      %s480 = sadd.s32 %s479, 1
      %s481 = scalar_select %p478, %s479, %s480
      %p484 = pneg %p478
      %p485 = scmp.eq.s32.totalorder %s37, 3
      %p486 = por %p484, %p485
      %p487 = scmp.ne.s32.totalorder %s479, %s482
      %p488 = scmp.eq.s32.totalorder %s37, 0
      %p489 = por %p487, %p488
      %p490 = scmp.ne.s32.totalorder %s479, %s482
      %p491 = scmp.eq.s32.totalorder %s42, 3
      %p492 = por %p490, %p491
      %p493 = scmp.ne.s32.totalorder %s482, %s483
      %p494 = scmp.eq.s32.totalorder %s42, 0
      %p495 = por %p493, %p494
      %p496 = scmp.ne.s32.totalorder %s482, %s483
      %p497 = scmp.eq.s32.totalorder %s43, 3
      %p498 = por %p496, %p497
      %p500 = scmp.ne.s32.totalorder %s483, %s499
      %p501 = scmp.eq.s32.totalorder %s43, 0
      %p502 = por %p500, %p501
      %p503 = scmp.le.s32.totalorder 1, %s37
      %p504 = scmp.lt.s32.totalorder %s37, 5
      %p505 = pnand %p503, %p504
      %p506 = pneg %p505
      // Predicated region
      $region9: #{tpu_custom_call.1} parent=5 // pred_check
        _
      $region10: #{tpu_custom_call.1} parent=5 // pred_check_branch
        %508 = sbr.rel (%p505) target = $region12
      $region11: #{tpu_custom_call.1} parent=5 // pred_region
        %s509 = ssub.s32 %s37, 1
        // Predicated region
        $region13: #{tpu_custom_call.1} parent=11 // pred_check
          %p510 = pneg %p152
        $region14: #{tpu_custom_call.1} parent=11 // pred_check_branch
          %512 = sbr.rel (%p510) target = $region16
        $region15: #{tpu_custom_call.1} parent=11 // pred_region
          %s514 = ssub.s32 1024, 1024
          %515 = vsyncadd [#allocation11], %s514
          %s516 = sshll.u32 [#allocation10], 4
          %s517 = int_to_ptr.vmem [resolvable:$true] %s516
          %522 = dma.hbm_to_vmem [thread:$0]  %s3, 1024, %s517, [#allocation11], 64, 64, 4
        $region16: #{tpu_custom_call.1} parent=11 // pred_fallthru
          _
        // Predicated region
        $region17: #{tpu_custom_call.1} parent=11 // pred_check
          %p523 = pneg %p173
        $region18: #{tpu_custom_call.1} parent=11 // pred_check_branch
          %525 = sbr.rel (%p523) target = $region20
        $region19: #{tpu_custom_call.1} parent=11 // pred_region
          _
        $region20: #{tpu_custom_call.1} parent=11 // pred_fallthru
          _
        // Predicated region
        $region21: #{tpu_custom_call.1} parent=11 // pred_check
          %p526 = pneg %p194
        $region22: #{tpu_custom_call.1} parent=11 // pred_check_branch
          %528 = sbr.rel (%p526) target = $region24
        $region23: #{tpu_custom_call.1} parent=11 // pred_region
          %s530 = ssub.s32 1024, 1024
          %531 = vsyncadd [#allocation11], %s530
          %s532 = sshll.u32 [#allocation12], 4
          %s533 = int_to_ptr.vmem [resolvable:$true] %s532
          %538 = dma.hbm_to_vmem [thread:$0]  %s5, 1024, %s533, [#allocation11], 64, 64, 4
        $region24: #{tpu_custom_call.1} parent=11 // pred_fallthru
          _
        // Predicated region
        $region25: #{tpu_custom_call.1} parent=11 // pred_check
          %p539 = pneg %p215
        $region26: #{tpu_custom_call.1} parent=11 // pred_check_branch
          %541 = sbr.rel (%p539) target = $region28
        $region27: #{tpu_custom_call.1} parent=11 // pred_region
          _
        $region28: #{tpu_custom_call.1} parent=11 // pred_fallthru
          _
        // Predicated region
        $region29: #{tpu_custom_call.1} parent=11 // pred_check
          %p542 = pneg %p236
        $region30: #{tpu_custom_call.1} parent=11 // pred_check_branch
          %544 = sbr.rel (%p542) target = $region32
        $region31: #{tpu_custom_call.1} parent=11 // pred_region
          %s546 = ssub.s32 1024, 1024
          %547 = vsyncadd [#allocation14], %s546
          %s548 = sshll.u32 [#allocation13], 4
          %s549 = int_to_ptr.vmem [resolvable:$true] %s548
          %554 = dma.hbm_to_vmem [thread:$0]  %s7, 1024, %s549, [#allocation14], 64, 64, 4
        $region32: #{tpu_custom_call.1} parent=11 // pred_fallthru
          _
        // Predicated region
        $region33: #{tpu_custom_call.1} parent=11 // pred_check
          %p555 = pneg %p257
        $region34: #{tpu_custom_call.1} parent=11 // pred_check_branch
          %557 = sbr.rel (%p555) target = $region36
        $region35: #{tpu_custom_call.1} parent=11 // pred_region
          _
        $region36: #{tpu_custom_call.1} parent=11 // pred_fallthru
          _
        // Predicated region
        $region37: #{tpu_custom_call.1} parent=11 // pred_check
          %p558 = pneg %p278
        $region38: #{tpu_custom_call.1} parent=11 // pred_check_branch
          %560 = sbr.rel (%p558) target = $region40
        $region39: #{tpu_custom_call.1} parent=11 // pred_region
          %s562 = ssub.s32 1024, 1024
          %563 = vsyncadd [#allocation14], %s562
          %s564 = sshll.u32 [#allocation15], 4
          %s565 = int_to_ptr.vmem [resolvable:$true] %s564
          %570 = dma.hbm_to_vmem [thread:$0]  %s9, 1024, %s565, [#allocation14], 64, 64, 4
        $region40: #{tpu_custom_call.1} parent=11 // pred_fallthru
          _
        // Predicated region
        $region41: #{tpu_custom_call.1} parent=11 // pred_check
          %p571 = pneg %p299
        $region42: #{tpu_custom_call.1} parent=11 // pred_check_branch
          %573 = sbr.rel (%p571) target = $region44
        $region43: #{tpu_custom_call.1} parent=11 // pred_region
          _
        $region44: #{tpu_custom_call.1} parent=11 // pred_fallthru
          _
        // Predicated region
        $region45: #{tpu_custom_call.1} parent=11 // pred_check
          %p574 = pneg %p320
        $region46: #{tpu_custom_call.1} parent=11 // pred_check_branch
          %576 = sbr.rel (%p574) target = $region48
        $region47: #{tpu_custom_call.1} parent=11 // pred_region
          _
        $region48: #{tpu_custom_call.1} parent=11 // pred_fallthru
          _
        // Predicated region
        $region49: #{tpu_custom_call.1} parent=11 // pred_check
          %p577 = pneg %p341
        $region50: #{tpu_custom_call.1} parent=11 // pred_check_branch
          %579 = sbr.rel (%p577) target = $region52
        $region51: #{tpu_custom_call.1} parent=11 // pred_region
          _
        $region52: #{tpu_custom_call.1} parent=11 // pred_fallthru
          _
        // Predicated region
        $region53: #{tpu_custom_call.1} parent=11 // pred_check
          %p580 = pneg %p362
        $region54: #{tpu_custom_call.1} parent=11 // pred_check_branch
          %582 = sbr.rel (%p580) target = $region56
        $region55: #{tpu_custom_call.1} parent=11 // pred_region
          %s584 = ssub.s32 2048, 2048
          %585 = vsyncadd [#allocation17], %s584
          %s586 = sshll.u32 [#allocation16], 4
          %s587 = int_to_ptr.vmem [resolvable:$true] %s586
          %592 = dma.hbm_to_vmem [thread:$0]  %s13, 2048, %s587, [#allocation17], 128, 128, 8
        $region56: #{tpu_custom_call.1} parent=11 // pred_fallthru
          _
        // Predicated region
        $region57: #{tpu_custom_call.1} parent=11 // pred_check
          %p593 = pneg %p383
        $region58: #{tpu_custom_call.1} parent=11 // pred_check_branch
          %595 = sbr.rel (%p593) target = $region60
        $region59: #{tpu_custom_call.1} parent=11 // pred_region
          _
        $region60: #{tpu_custom_call.1} parent=11 // pred_fallthru
          _
        // Predicated region
        $region61: #{tpu_custom_call.1} parent=11 // pred_check
          %p596 = pneg %p404
        $region62: #{tpu_custom_call.1} parent=11 // pred_check_branch
          %598 = sbr.rel (%p596) target = $region64
        $region63: #{tpu_custom_call.1} parent=11 // pred_region
          %s600 = ssub.s32 2048, 2048
          %601 = vsyncadd [#allocation17], %s600
          %s602 = sshll.u32 [#allocation18], 4
          %s603 = int_to_ptr.vmem [resolvable:$true] %s602
          %608 = dma.hbm_to_vmem [thread:$0]  %s15, 2048, %s603, [#allocation17], 64, 64, 4
        $region64: #{tpu_custom_call.1} parent=11 // pred_fallthru
          _
        // Predicated region
        $region65: #{tpu_custom_call.1} parent=11 // pred_check
          %p609 = pneg %p425
        $region66: #{tpu_custom_call.1} parent=11 // pred_check_branch
          %611 = sbr.rel (%p609) target = $region68
        $region67: #{tpu_custom_call.1} parent=11 // pred_region
          _
        $region68: #{tpu_custom_call.1} parent=11 // pred_fallthru
          _
        // Predicated region
        $region69: #{tpu_custom_call.1} parent=11 // pred_check
          %p612 = pneg %p446
        $region70: #{tpu_custom_call.1} parent=11 // pred_check_branch
          %614 = sbr.rel (%p612) target = $region72
        $region71: #{tpu_custom_call.1} parent=11 // pred_region
          _
        $region72: #{tpu_custom_call.1} parent=11 // pred_fallthru
          _
        // Predicated region
        $region73: #{tpu_custom_call.1} parent=11 // pred_check
          %p615 = pneg %p467
        $region74: #{tpu_custom_call.1} parent=11 // pred_check_branch
          %617 = sbr.rel (%p615) target = $region76
        $region75: #{tpu_custom_call.1} parent=11 // pred_region
          _
        $region76: #{tpu_custom_call.1} parent=11 // pred_fallthru
          _
      $region12: #{tpu_custom_call.1} parent=5 // pred_fallthru
        _
      %p618 = scmp.lt.s32.totalorder %s37, 4
      // Predicated region
      $region77: #{tpu_custom_call.1} parent=5 // pred_check
        %p619 = pneg %p618
      $region78: #{tpu_custom_call.1} parent=5 // pred_check_branch
        %621 = sbr.rel (%p619) target = $region80
      $region79: #{tpu_custom_call.1} parent=5 // pred_region
        // Predicated region
        $region81: #{tpu_custom_call.1} parent=79 // pred_check
          %p622 = pneg %p71
        $region82: #{tpu_custom_call.1} parent=79 // pred_check_branch
          %624 = sbr.rel (%p622) target = $region84
        $region83: #{tpu_custom_call.1} parent=79 // pred_region
          %s625 = sand.u32 %s61, 1
          %s626 = scalar_lea.sflag [#allocation5], %s625
          %s627 = sand.u32 %s61, 1
          %s628 = smul.addr %s627, 32
          %s629 = scalar_lea.vmem [#allocation4], %s628
          %s630 = smul.u32 4, %s45
          %s632 = ssub.s32 512, 512
          %633 = vsyncadd %s626, %s632
          %s634 = smul.addr %s44, 8
          %s635 = sadd.s32 %s630, %s634
          %s636 = smul.addr %s635, 128
          %s637 = scalar_lea.hbm %s0, %s636
          %s638 = sshll.u32 %s629, 4
          %s639 = int_to_ptr.vmem [resolvable:$true] %s638
          %644 = dma.hbm_to_vmem [thread:$0]  %s637, 512, %s639, %s626, 128, 128, 8
        $region84: #{tpu_custom_call.1} parent=79 // pred_fallthru
          _
        // Predicated region
        $region85: #{tpu_custom_call.1} parent=79 // pred_check
          %p645 = pneg %p97
        $region86: #{tpu_custom_call.1} parent=79 // pred_check_branch
          %647 = sbr.rel (%p645) target = $region88
        $region87: #{tpu_custom_call.1} parent=79 // pred_region
          %s648 = sand.u32 %s37, 1
          %s649 = scalar_lea.sflag [#allocation8], %s648
          %s650 = sand.u32 %s87, 1
          %s651 = smul.addr %s650, 32
          %s652 = scalar_lea.vmem [#allocation7], %s651
          %s654 = ssub.s32 512, 512
          %655 = vsyncadd %s649, %s654
          %s656 = smul.addr %s44, 8
          %s657 = smul.addr %s656, 64
          %s658 = scalar_lea.hbm %s1, %s657
          %s659 = sshll.u32 %s652, 4
          %s660 = int_to_ptr.vmem [resolvable:$true] %s659
          %665 = dma.hbm_to_vmem [thread:$0]  %s658, 512, %s660, %s649, 64, 64, 4
        $region88: #{tpu_custom_call.1} parent=79 // pred_fallthru
          _
        // Predicated region
        $region89: #{tpu_custom_call.1} parent=79 // pred_check
          %p666 = pneg %p125
        $region90: #{tpu_custom_call.1} parent=79 // pred_check_branch
          %668 = sbr.rel (%p666) target = $region92
        $region91: #{tpu_custom_call.1} parent=79 // pred_region
          %s669 = sand.u32 %s37, 1
          %s670 = scalar_lea.sflag [#allocation8], %s669
          %s671 = sand.u32 %s115, 1
          %s672 = smul.addr %s671, 16
          %s673 = scalar_lea.vmem [#allocation9], %s672
          %s674 = smul.u32 4, %s45
          %s676 = ssub.s32 256, 256
          %677 = vsyncadd %s670, %s676
          %s678 = smul.addr %s44, 8
          %s679 = sadd.s32 %s674, %s678
          %s680 = smul.addr %s679, 64
          %s681 = scalar_lea.hbm %s2, %s680
          %s682 = sshll.u32 %s673, 4
          %s683 = int_to_ptr.vmem [resolvable:$true] %s682
          %688 = dma.hbm_to_vmem [thread:$0]  %s681, 256, %s683, %s670, 64, 64, 4
        $region92: #{tpu_custom_call.1} parent=79 // pred_fallthru
          _
      $region80: #{tpu_custom_call.1} parent=5 // pred_fallthru
        _
      %p689 = scmp.le.s32.totalorder 1, %s37
      %p690 = scmp.lt.s32.totalorder %s37, 5
      %p691 = pnand %p689, %p690
      %p692 = pneg %p691
      // Predicated region
      $region93: #{tpu_custom_call.1} parent=5 // pred_check
        _
      $region94: #{tpu_custom_call.1} parent=5 // pred_check_branch
        %694 = sbr.rel (%p691) target = $region96
      $region95: #{tpu_custom_call.1} parent=5 // pred_region
        %s695 = ssub.s32 %s37, 1
        %s696 = sand.u32 %s64, 1
        %s697 = scalar_lea.sflag [#allocation5], %s696
        %s698 = sand.u32 %s64, 1
        %s699 = smul.addr %s698, 32
        %s700 = scalar_lea.vmem [#allocation4], %s699
        // Predicated region
        $region97: #{tpu_custom_call.1} parent=95 // pred_check
          %p701 = pneg %p77
        $region98: #{tpu_custom_call.1} parent=95 // pred_check_branch
          %703 = sbr.rel (%p701) target = $region100
        $region99: #{tpu_custom_call.1} parent=95 // pred_region
          %704 = dma.done %s697, 512
        $region100: #{tpu_custom_call.1} parent=95 // pred_fallthru
          _
        %s705 = sand.u32 %s42, 1
        %s706 = scalar_lea.sflag [#allocation8], %s705
        %s707 = sand.u32 %s90, 1
        %s708 = smul.addr %s707, 32
        %s709 = scalar_lea.vmem [#allocation7], %s708
        // Predicated region
        $region101: #{tpu_custom_call.1} parent=95 // pred_check
          %p710 = pneg %p103
        $region102: #{tpu_custom_call.1} parent=95 // pred_check_branch
          %712 = sbr.rel (%p710) target = $region104
        $region103: #{tpu_custom_call.1} parent=95 // pred_region
          %713 = dma.done %s706, 512
        $region104: #{tpu_custom_call.1} parent=95 // pred_fallthru
          _
        %s714 = sand.u32 %s42, 1
        %s715 = scalar_lea.sflag [#allocation8], %s714
        %s716 = sand.u32 %s118, 1
        %s717 = smul.addr %s716, 16
        %s718 = scalar_lea.vmem [#allocation9], %s717
        // Predicated region
        $region105: #{tpu_custom_call.1} parent=95 // pred_check
          %p719 = pneg %p131
        $region106: #{tpu_custom_call.1} parent=95 // pred_check_branch
          %721 = sbr.rel (%p719) target = $region108
        $region107: #{tpu_custom_call.1} parent=95 // pred_region
          %722 = dma.done %s715, 256
        $region108: #{tpu_custom_call.1} parent=95 // pred_fallthru
          _
        // Predicated region
        $region109: #{tpu_custom_call.1} parent=95 // pred_check
          %p723 = pneg %p152
        $region110: #{tpu_custom_call.1} parent=95 // pred_check_branch
          %725 = sbr.rel (%p723) target = $region112
        $region111: #{tpu_custom_call.1} parent=95 // pred_region
          %726 = dma.done [#allocation11], 1024
        $region112: #{tpu_custom_call.1} parent=95 // pred_fallthru
          _
        // Predicated region
        $region113: #{tpu_custom_call.1} parent=95 // pred_check
          %p727 = pneg %p194
        $region114: #{tpu_custom_call.1} parent=95 // pred_check_branch
          %729 = sbr.rel (%p727) target = $region116
        $region115: #{tpu_custom_call.1} parent=95 // pred_region
          %730 = dma.done [#allocation11], 1024
        $region116: #{tpu_custom_call.1} parent=95 // pred_fallthru
          _
        // Predicated region
        $region117: #{tpu_custom_call.1} parent=95 // pred_check
          %p731 = pneg %p236
        $region118: #{tpu_custom_call.1} parent=95 // pred_check_branch
          %733 = sbr.rel (%p731) target = $region120
        $region119: #{tpu_custom_call.1} parent=95 // pred_region
          %734 = dma.done [#allocation14], 1024
        $region120: #{tpu_custom_call.1} parent=95 // pred_fallthru
          _
        // Predicated region
        $region121: #{tpu_custom_call.1} parent=95 // pred_check
          %p735 = pneg %p278
        $region122: #{tpu_custom_call.1} parent=95 // pred_check_branch
          %737 = sbr.rel (%p735) target = $region124
        $region123: #{tpu_custom_call.1} parent=95 // pred_region
          %738 = dma.done [#allocation14], 1024
        $region124: #{tpu_custom_call.1} parent=95 // pred_fallthru
          _
        // Predicated region
        $region125: #{tpu_custom_call.1} parent=95 // pred_check
          %p739 = pneg %p362
        $region126: #{tpu_custom_call.1} parent=95 // pred_check_branch
          %741 = sbr.rel (%p739) target = $region128
        $region127: #{tpu_custom_call.1} parent=95 // pred_region
          %742 = dma.done [#allocation17], 2048
        $region128: #{tpu_custom_call.1} parent=95 // pred_fallthru
          _
        // Predicated region
        $region129: #{tpu_custom_call.1} parent=95 // pred_check
          %p743 = pneg %p404
        $region130: #{tpu_custom_call.1} parent=95 // pred_check_branch
          %745 = sbr.rel (%p743) target = $region132
        $region131: #{tpu_custom_call.1} parent=95 // pred_region
          %746 = dma.done [#allocation17], 2048
        $region132: #{tpu_custom_call.1} parent=95 // pred_fallthru
          _
        %s747 = sand.u32 %s64, 1
        %s748 = scalar_lea.sflag [#allocation5], %s747
        %s749 = sand.u32 %s64, 1
        %s750 = smul.addr %s749, 32
        %s751 = scalar_lea.vmem [#allocation4], %s750
        %p752 = pneg %p77
        %p753 = pneg %p74
        %s754 = sand.u32 %s42, 1
        %s755 = scalar_lea.sflag [#allocation8], %s754
        %s756 = sand.u32 %s90, 1
        %s757 = smul.addr %s756, 32
        %s758 = scalar_lea.vmem [#allocation7], %s757
        %p759 = pneg %p103
        %p760 = pneg %p100
        %s761 = sand.u32 %s42, 1
        %s762 = scalar_lea.sflag [#allocation8], %s761
        %s763 = sand.u32 %s118, 1
        %s764 = smul.addr %s763, 16
        %s765 = scalar_lea.vmem [#allocation9], %s764
        %p766 = pneg %p131
        %p767 = pneg %p128
        %p768 = pneg %p152
        %p769 = pneg %p149
        %p770 = pneg %p173
        %p771 = pneg %p170
        %p772 = pneg %p194
        %p773 = pneg %p191
        %p774 = pneg %p215
        %p775 = pneg %p212
        %p776 = pneg %p236
        %p777 = pneg %p233
        %p778 = pneg %p257
        %p779 = pneg %p254
        %p780 = pneg %p278
        %p781 = pneg %p275
        %p782 = pneg %p299
        %p783 = pneg %p296
        %p784 = pneg %p320
        %p785 = pneg %p317
        %p786 = pneg %p341
        %p787 = pneg %p338
        %p788 = pneg %p362
        %p789 = pneg %p359
        %p790 = pneg %p383
        %p791 = pneg %p380
        %p792 = pneg %p404
        %p793 = pneg %p401
        %p794 = pneg %p425
        %p795 = pneg %p422
        %p796 = pneg %p446
        %p797 = pneg %p443
        %p798 = pneg %p467
        %p799 = pneg %p464
        %p800 = pneg %p495
        %p801 = pneg %p492
        %s802 = sand.u32 %s482, 1
        %s803 = scalar_lea.sflag [#allocation6], %s802
        %s804 = sand.u32 %s482, 1
        %s805 = smul.addr %s804, 32
        %s806 = scalar_lea.vmem [#allocation19], %s805
        %s807 = smul.u32 4, %s47
        %s808 = smul.u32 4, %s47
        %s809 = smul.u32 4, %s47
        %v811 = vld [vmem:[%s700] sm:$0xff]
        %v812 = vld [vmem:[%s700 + $0x8] sm:$0xff]
        %v813 = vld [vmem:[%s700 + $0x10] sm:$0xff]
        %v814 = vld [vmem:[%s700 + $0x18] sm:$0xff]
        %v815 = vld [vmem:[%s718] sm:$0xf]
        %v816 = vld [vmem:[%s718 + $0x4] sm:$0xf]
        %v817 = vld [vmem:[%s718 + $0x8] sm:$0xf]
        %v818 = vld [vmem:[%s718 + $0xc] sm:$0xf]
        %p819 = scmp.eq.s32.totalorder %s47, 0
        // Predicated region
        $region133: #{tpu_custom_call.1} parent=95 // pred_check
          %p820 = pneg %p819
        $region134: #{tpu_custom_call.1} parent=95 // pred_check_branch
          %822 = sbr.rel (%p820) target = $region136
        $region135: #{tpu_custom_call.1} parent=95 // pred_region
          %v823 = vld [vmem:[%s709] sm:$0xf]
          %v824 = vld [vmem:[%s709 + $0x4] sm:$0xf]
          %v825 = vld [vmem:[%s709 + $0x8] sm:$0xf]
          %v826 = vld [vmem:[%s709 + $0xc] sm:$0xf]
          %v827 = vld [vmem:[%s709 + $0x10] sm:$0xf]
          %v828 = vld [vmem:[%s709 + $0x14] sm:$0xf]
          %v829 = vld [vmem:[%s709 + $0x18] sm:$0xf]
          %v830 = vld [vmem:[%s709 + $0x1c] sm:$0xf]
          %v831 = vld [vmem:[#allocation12] sm:$0xf]
          %v832 = vld [vmem:[#allocation12 + $0x4] sm:$0xf]
          %v833 = vld [vmem:[#allocation12 + $0x8] sm:$0xf]
          %v834 = vld [vmem:[#allocation12 + $0xc] sm:$0xf]
          %v835 = vld [vmem:[#allocation12 + $0x10] sm:$0xf]
          %v836 = vld [vmem:[#allocation12 + $0x14] sm:$0xf]
          %v837 = vld [vmem:[#allocation12 + $0x18] sm:$0xf]
          %v838 = vld [vmem:[#allocation12 + $0x1c] sm:$0xf]
          %v839 = vld [vmem:[#allocation12 + $0x20] sm:$0xf]
          %v840 = vld [vmem:[#allocation12 + $0x24] sm:$0xf]
          %v841 = vld [vmem:[#allocation12 + $0x28] sm:$0xf]
          %v842 = vld [vmem:[#allocation12 + $0x2c] sm:$0xf]
          %v843 = vld [vmem:[#allocation12 + $0x30] sm:$0xf]
          %v844 = vld [vmem:[#allocation12 + $0x34] sm:$0xf]
          %v845 = vld [vmem:[#allocation12 + $0x38] sm:$0xf]
          %v846 = vld [vmem:[#allocation12 + $0x3c] sm:$0xf]
          %v847 = vld [vmem:[%s6] sm:$0x1]
          %v849 = vlaneseq
          %v850 = vshrl.u32 %v849, 7
          %v851 = vsub.s32 0, %v850
          %v852 = vrot.slane %v847, %v851
          %v862 = vunpack.c.l.b16 %v823
          %v863 = vunpack.c.l.b16 %v824
          %v864 = vunpack.c.l.b16 %v825
          %v865 = vunpack.c.l.b16 %v826
          %v866 = vunpack.c.l.b16 %v827
          %v867 = vunpack.c.l.b16 %v828
          %v868 = vunpack.c.l.b16 %v829
          %v869 = vunpack.c.l.b16 %v830
          %v870 = vpack.c.b16 %v863, %v862
          %v871 = vpack.c.b16 %v865, %v864
          %v872 = vpack.c.b16 %v867, %v866
          %v873 = vpack.c.b16 %v869, %v868
          %v894 = vunpack.c.l.b16 %v831
          %v895 = vunpack.c.l.b16 %v832
          %v896 = vunpack.c.l.b16 %v833
          %v897 = vunpack.c.l.b16 %v834
          %v898 = vunpack.c.l.b16 %v835
          %v899 = vunpack.c.l.b16 %v836
          %v900 = vunpack.c.l.b16 %v837
          %v901 = vunpack.c.l.b16 %v838
          %v902 = vunpack.c.l.b16 %v839
          %v903 = vunpack.c.l.b16 %v840
          %v904 = vunpack.c.l.b16 %v841
          %v905 = vunpack.c.l.b16 %v842
          %v906 = vunpack.c.l.b16 %v843
          %v907 = vunpack.c.l.b16 %v844
          %v908 = vunpack.c.l.b16 %v845
          %v909 = vunpack.c.l.b16 %v846
          %v910 = vpack.c.b16 %v895, %v894
          %v911 = vpack.c.b16 %v897, %v896
          %v912 = vpack.c.b16 %v899, %v898
          %v913 = vpack.c.b16 %v901, %v900
          %v914 = vpack.c.b16 %v903, %v902
          %v915 = vpack.c.b16 %v905, %v904
          %v916 = vpack.c.b16 %v907, %v906
          %v917 = vpack.c.b16 %v909, %v908
          %926 = vmatprep.subr.bf16.mxu0 0
          %927 = vmatpush1.bf16.msra.mxu0 %v917
          %928 = vmatprep.subr.bf16.mxu0 0
          %929 = vmatpush1.bf16.msra.mxu0 %v916
          %930 = vmatprep.subr.bf16.mxu0 0
          %931 = vmatpush1.bf16.msra.mxu0 %v915
          %932 = vmatprep.subr.bf16.mxu0 0
          %933 = vmatpush1.bf16.msra.mxu0 %v914
          %934 = vmatprep.subr.bf16.mxu0 0
          %935 = vmatpush1.bf16.msra.mxu0 %v913
          %936 = vmatprep.subr.bf16.mxu0 0
          %937 = vmatpush1.bf16.msra.mxu0 %v912
          %938 = vmatprep.subr.bf16.mxu0 0
          %939 = vmatpush1.bf16.msra.mxu0 %v911
          %940 = vmatprep.subr.bf16.mxu0 0
          %941 = vmatpush1.bf16.msra.mxu0 %v910
          %942 = vmatprep.subr.bf16.mxu0 0
          %943 = vmatpush2.bf16.msra.mxu0 0
          %944 = vmatprep.subr.bf16.mxu0 0
          %945 = vmatpush2.bf16.msra.mxu0 0
          %946 = vmatprep.subr.bf16.mxu0 0
          %947 = vmatpush2.bf16.msra.mxu0 0
          %948 = vmatprep.subr.bf16.mxu0 0
          %949 = vmatpush2.bf16.msra.mxu0 0
          %950 = vmatprep.subr.bf16.mxu0 0
          %951 = vmatpush2.bf16.msra.mxu0 0
          %952 = vmatprep.subr.bf16.mxu0 0
          %953 = vmatpush2.bf16.msra.mxu0 0
          %954 = vmatprep.subr.bf16.mxu0 0
          %955 = vmatpush2.bf16.msra.mxu0 0
          %956 = vmatprep.subr.bf16.mxu0 0
          %957 = vmatpush2.bf16.msra.mxu0 0
          %958 = vmatprep.mubr.bf16.mxu0 0
          %959 = vmatmul.mubr.bf16.gmra.mxu0 %v870
          %v960 = vpop.f32.mrf.mxu0
          %v961 = vadd.f32 %v852, %v960
          %v962 = vpop.f32.mrf.mxu0
          %v963 = vpop.f32.mrf.mxu0
          %v964 = vadd.f32 %v852, %v963
          %v965 = vpop.f32.mrf.mxu0
          %966 = vmatprep.mubr.bf16.mxu0 0
          %967 = vmatmul.mubr.bf16.gmra.mxu0 %v871
          %v968 = vpop.f32.mrf.mxu0
          %v969 = vadd.f32 %v852, %v968
          %v970 = vpop.f32.mrf.mxu0
          %v971 = vpop.f32.mrf.mxu0
          %v972 = vadd.f32 %v852, %v971
          %v973 = vpop.f32.mrf.mxu0
          %974 = vmatprep.mubr.bf16.mxu0 0
          %975 = vmatmul.mubr.bf16.gmra.mxu0 %v872
          %v976 = vpop.f32.mrf.mxu0
          %v977 = vadd.f32 %v852, %v976
          %v978 = vpop.f32.mrf.mxu0
          %v979 = vpop.f32.mrf.mxu0
          %v980 = vadd.f32 %v852, %v979
          %v981 = vpop.f32.mrf.mxu0
          %982 = vmatprep.mubr.bf16.mxu0 0
          %983 = vmatmul.mubr.bf16.gmra.mxu0 %v873
          %v984 = vpop.f32.mrf.mxu0
          %v985 = vadd.f32 %v852, %v984
          %v986 = vpop.f32.mrf.mxu0
          %v987 = vpop.f32.mrf.mxu0
          %v988 = vadd.f32 %v852, %v987
          %v989 = vpop.f32.mrf.mxu0
          %990 = vdwg.mxu0
          %v991 = vld [vmem:[#allocation13] sm:$0xf]
          %v992 = vld [vmem:[#allocation13 + $0x4] sm:$0xf]
          %v993 = vld [vmem:[#allocation13 + $0x8] sm:$0xf]
          %v994 = vld [vmem:[#allocation13 + $0xc] sm:$0xf]
          %v995 = vld [vmem:[#allocation13 + $0x10] sm:$0xf]
          %v996 = vld [vmem:[#allocation13 + $0x14] sm:$0xf]
          %v997 = vld [vmem:[#allocation13 + $0x18] sm:$0xf]
          %v998 = vld [vmem:[#allocation13 + $0x1c] sm:$0xf]
          %v999 = vld [vmem:[#allocation13 + $0x20] sm:$0xf]
          %v1000 = vld [vmem:[#allocation13 + $0x24] sm:$0xf]
          %v1001 = vld [vmem:[#allocation13 + $0x28] sm:$0xf]
          %v1002 = vld [vmem:[#allocation13 + $0x2c] sm:$0xf]
          %v1003 = vld [vmem:[#allocation13 + $0x30] sm:$0xf]
          %v1004 = vld [vmem:[#allocation13 + $0x34] sm:$0xf]
          %v1005 = vld [vmem:[#allocation13 + $0x38] sm:$0xf]
          %v1006 = vld [vmem:[#allocation13 + $0x3c] sm:$0xf]
          %v1007 = vld [vmem:[%s8] sm:$0x1]
          %v1009 = vlaneseq
          %v1010 = vshrl.u32 %v1009, 7
          %v1011 = vsub.s32 0, %v1010
          %v1012 = vrot.slane %v1007, %v1011
          %v1030 = vunpack.c.l.b16 %v991
          %v1031 = vunpack.c.l.b16 %v992
          %v1032 = vunpack.c.l.b16 %v993
          %v1033 = vunpack.c.l.b16 %v994
          %v1034 = vunpack.c.l.b16 %v995
          %v1035 = vunpack.c.l.b16 %v996
          %v1036 = vunpack.c.l.b16 %v997
          %v1037 = vunpack.c.l.b16 %v998
          %v1038 = vunpack.c.l.b16 %v999
          %v1039 = vunpack.c.l.b16 %v1000
          %v1040 = vunpack.c.l.b16 %v1001
          %v1041 = vunpack.c.l.b16 %v1002
          %v1042 = vunpack.c.l.b16 %v1003
          %v1043 = vunpack.c.l.b16 %v1004
          %v1044 = vunpack.c.l.b16 %v1005
          %v1045 = vunpack.c.l.b16 %v1006
          %v1046 = vpack.c.b16 %v1031, %v1030
          %v1047 = vpack.c.b16 %v1033, %v1032
          %v1048 = vpack.c.b16 %v1035, %v1034
          %v1049 = vpack.c.b16 %v1037, %v1036
          %v1050 = vpack.c.b16 %v1039, %v1038
          %v1051 = vpack.c.b16 %v1041, %v1040
          %v1052 = vpack.c.b16 %v1043, %v1042
          %v1053 = vpack.c.b16 %v1045, %v1044
          %1062 = vmatprep.subr.bf16.mxu0 0
          %1063 = vmatpush1.bf16.msra.mxu0 %v1053
          %1064 = vmatprep.subr.bf16.mxu0 0
          %1065 = vmatpush1.bf16.msra.mxu0 %v1052
          %1066 = vmatprep.subr.bf16.mxu0 0
          %1067 = vmatpush1.bf16.msra.mxu0 %v1051
          %1068 = vmatprep.subr.bf16.mxu0 0
          %1069 = vmatpush1.bf16.msra.mxu0 %v1050
          %1070 = vmatprep.subr.bf16.mxu0 0
          %1071 = vmatpush1.bf16.msra.mxu0 %v1049
          %1072 = vmatprep.subr.bf16.mxu0 0
          %1073 = vmatpush1.bf16.msra.mxu0 %v1048
          %1074 = vmatprep.subr.bf16.mxu0 0
          %1075 = vmatpush1.bf16.msra.mxu0 %v1047
          %1076 = vmatprep.subr.bf16.mxu0 0
          %1077 = vmatpush1.bf16.msra.mxu0 %v1046
          %1078 = vmatprep.subr.bf16.mxu0 0
          %1079 = vmatpush2.bf16.msra.mxu0 0
          %1080 = vmatprep.subr.bf16.mxu0 0
          %1081 = vmatpush2.bf16.msra.mxu0 0
          %1082 = vmatprep.subr.bf16.mxu0 0
          %1083 = vmatpush2.bf16.msra.mxu0 0
          %1084 = vmatprep.subr.bf16.mxu0 0
          %1085 = vmatpush2.bf16.msra.mxu0 0
          %1086 = vmatprep.subr.bf16.mxu0 0
          %1087 = vmatpush2.bf16.msra.mxu0 0
          %1088 = vmatprep.subr.bf16.mxu0 0
          %1089 = vmatpush2.bf16.msra.mxu0 0
          %1090 = vmatprep.subr.bf16.mxu0 0
          %1091 = vmatpush2.bf16.msra.mxu0 0
          %1092 = vmatprep.subr.bf16.mxu0 0
          %1093 = vmatpush2.bf16.msra.mxu0 0
          %1094 = vmatprep.mubr.bf16.mxu0 0
          %1095 = vmatmul.mubr.bf16.gmra.mxu0 %v870
          %v1096 = vpop.f32.mrf.mxu0
          %v1097 = vadd.f32 %v1012, %v1096
          %v1098 = vpop.f32.mrf.mxu0
          %v1099 = vpop.f32.mrf.mxu0
          %v1100 = vadd.f32 %v1012, %v1099
          %v1101 = vpop.f32.mrf.mxu0
          %1102 = vmatprep.mubr.bf16.mxu0 0
          %1103 = vmatmul.mubr.bf16.gmra.mxu0 %v871
          %v1104 = vpop.f32.mrf.mxu0
          %v1105 = vadd.f32 %v1012, %v1104
          %v1106 = vpop.f32.mrf.mxu0
          %v1107 = vpop.f32.mrf.mxu0
          %v1108 = vadd.f32 %v1012, %v1107
          %v1109 = vpop.f32.mrf.mxu0
          %1110 = vmatprep.mubr.bf16.mxu0 0
          %1111 = vmatmul.mubr.bf16.gmra.mxu0 %v872
          %v1112 = vpop.f32.mrf.mxu0
          %v1113 = vadd.f32 %v1012, %v1112
          %v1114 = vpop.f32.mrf.mxu0
          %v1115 = vpop.f32.mrf.mxu0
          %v1116 = vadd.f32 %v1012, %v1115
          %v1117 = vpop.f32.mrf.mxu0
          %1118 = vmatprep.mubr.bf16.mxu0 0
          %1119 = vmatmul.mubr.bf16.gmra.mxu0 %v873
          %v1120 = vpop.f32.mrf.mxu0
          %v1121 = vadd.f32 %v1012, %v1120
          %v1122 = vpop.f32.mrf.mxu0
          %v1123 = vpop.f32.mrf.mxu0
          %v1124 = vadd.f32 %v1012, %v1123
          %v1125 = vpop.f32.mrf.mxu0
          %1126 = vdwg.mxu0
          %v1127 = vpack.c.bf16 %v964, %v961
          %v1128 = vpack.c.bf16 %v972, %v969
          %v1129 = vpack.c.bf16 %v980, %v977
          %v1130 = vpack.c.bf16 %v988, %v985
          %v1131 = vpack.c.bf16 %v1100, %v1097
          %v1132 = vpack.c.bf16 %v1108, %v1105
          %v1133 = vpack.c.bf16 %v1116, %v1113
          %v1134 = vpack.c.bf16 %v1124, %v1121
          %v1139 = vunpack.c.l.b16 %v1127
          %v1140 = vunpack.c.h.b16 %v1127
          %v1141 = vunpack.c.l.b16 %v1128
          %v1142 = vunpack.c.h.b16 %v1128
          %v1143 = vunpack.c.l.b16 %v1129
          %v1144 = vunpack.c.h.b16 %v1129
          %v1145 = vunpack.c.l.b16 %v1130
          %v1146 = vunpack.c.h.b16 %v1130
          %v1147 = vpack.c.b16 %v1139, %v1139
          %v1148 = vpack.c.b16 %v1140, %v1140
          %v1149 = vpack.c.b16 %v1141, %v1141
          %v1150 = vpack.c.b16 %v1142, %v1142
          %v1151 = vpack.c.b16 %v1143, %v1143
          %v1152 = vpack.c.b16 %v1144, %v1144
          %v1153 = vpack.c.b16 %v1145, %v1145
          %v1154 = vpack.c.b16 %v1146, %v1146
          %vm1163 = vcmask 257024
          %1164 = vst.msk [vmem:[#allocation2] sm:$0xf] %vm1163, %v1147
          %1165 = vst.msk [vmem:[#allocation2 + $0x4] sm:$0xf] %vm1163, %v1148
          %1166 = vst.msk [vmem:[#allocation2 + $0x8] sm:$0xf] %vm1163, %v1149
          %1167 = vst.msk [vmem:[#allocation2 + $0xc] sm:$0xf] %vm1163, %v1150
          %1168 = vst.msk [vmem:[#allocation2 + $0x10] sm:$0xf] %vm1163, %v1151
          %1169 = vst.msk [vmem:[#allocation2 + $0x14] sm:$0xf] %vm1163, %v1152
          %1170 = vst.msk [vmem:[#allocation2 + $0x18] sm:$0xf] %vm1163, %v1153
          %1171 = vst.msk [vmem:[#allocation2 + $0x1c] sm:$0xf] %vm1163, %v1154
          %v1176 = vunpack.c.l.b16 %v1131
          %v1177 = vunpack.c.h.b16 %v1131
          %v1178 = vunpack.c.l.b16 %v1132
          %v1179 = vunpack.c.h.b16 %v1132
          %v1180 = vunpack.c.l.b16 %v1133
          %v1181 = vunpack.c.h.b16 %v1133
          %v1182 = vunpack.c.l.b16 %v1134
          %v1183 = vunpack.c.h.b16 %v1134
          %v1184 = vpack.c.b16 %v1176, %v1176
          %v1185 = vpack.c.b16 %v1177, %v1177
          %v1186 = vpack.c.b16 %v1178, %v1178
          %v1187 = vpack.c.b16 %v1179, %v1179
          %v1188 = vpack.c.b16 %v1180, %v1180
          %v1189 = vpack.c.b16 %v1181, %v1181
          %v1190 = vpack.c.b16 %v1182, %v1182
          %v1191 = vpack.c.b16 %v1183, %v1183
          %1200 = vst.msk [vmem:[#allocation3] sm:$0xf] %vm1163, %v1184
          %1201 = vst.msk [vmem:[#allocation3 + $0x4] sm:$0xf] %vm1163, %v1185
          %1202 = vst.msk [vmem:[#allocation3 + $0x8] sm:$0xf] %vm1163, %v1186
          %1203 = vst.msk [vmem:[#allocation3 + $0xc] sm:$0xf] %vm1163, %v1187
          %1204 = vst.msk [vmem:[#allocation3 + $0x10] sm:$0xf] %vm1163, %v1188
          %1205 = vst.msk [vmem:[#allocation3 + $0x14] sm:$0xf] %vm1163, %v1189
          %1206 = vst.msk [vmem:[#allocation3 + $0x18] sm:$0xf] %vm1163, %v1190
          %1207 = vst.msk [vmem:[#allocation3 + $0x1c] sm:$0xf] %vm1163, %v1191
          %1208 = vrot.lane.b32.xlu0 %v1147, 96
          %v1209 = vpop.permute.xlu0 %1208
          %1210 = vrot.lane.b32.xlu0 %v1148, 96
          %v1211 = vpop.permute.xlu0 %1210
          %1212 = vrot.lane.b32.xlu0 %v1149, 96
          %v1213 = vpop.permute.xlu0 %1212
          %1214 = vrot.lane.b32.xlu0 %v1150, 96
          %v1215 = vpop.permute.xlu0 %1214
          %1216 = vrot.lane.b32.xlu0 %v1151, 96
          %v1217 = vpop.permute.xlu0 %1216
          %1218 = vrot.lane.b32.xlu0 %v1152, 96
          %v1219 = vpop.permute.xlu0 %1218
          %1220 = vrot.lane.b32.xlu0 %v1153, 96
          %v1221 = vpop.permute.xlu0 %1220
          %1222 = vrot.lane.b32.xlu0 %v1154, 96
          %v1223 = vpop.permute.xlu0 %1222
          %s1232 = scalar_lea.vmem [#allocation2], 32
          %1233 = vst.msk [vmem:[%s1232] sm:$0xf] %vm1163, %v1209
          %1234 = vst.msk [vmem:[%s1232 + $0x4] sm:$0xf] %vm1163, %v1211
          %1235 = vst.msk [vmem:[%s1232 + $0x8] sm:$0xf] %vm1163, %v1213
          %1236 = vst.msk [vmem:[%s1232 + $0xc] sm:$0xf] %vm1163, %v1215
          %1237 = vst.msk [vmem:[%s1232 + $0x10] sm:$0xf] %vm1163, %v1217
          %1238 = vst.msk [vmem:[%s1232 + $0x14] sm:$0xf] %vm1163, %v1219
          %1239 = vst.msk [vmem:[%s1232 + $0x18] sm:$0xf] %vm1163, %v1221
          %1240 = vst.msk [vmem:[%s1232 + $0x1c] sm:$0xf] %vm1163, %v1223
          %1241 = vrot.lane.b32.xlu0 %v1184, 96
          %v1242 = vpop.permute.xlu0 %1241
          %1243 = vrot.lane.b32.xlu0 %v1185, 96
          %v1244 = vpop.permute.xlu0 %1243
          %1245 = vrot.lane.b32.xlu0 %v1186, 96
          %v1246 = vpop.permute.xlu0 %1245
          %1247 = vrot.lane.b32.xlu0 %v1187, 96
          %v1248 = vpop.permute.xlu0 %1247
          %1249 = vrot.lane.b32.xlu0 %v1188, 96
          %v1250 = vpop.permute.xlu0 %1249
          %1251 = vrot.lane.b32.xlu0 %v1189, 96
          %v1252 = vpop.permute.xlu0 %1251
          %1253 = vrot.lane.b32.xlu0 %v1190, 96
          %v1254 = vpop.permute.xlu0 %1253
          %1255 = vrot.lane.b32.xlu0 %v1191, 96
          %v1256 = vpop.permute.xlu0 %1255
          %s1265 = scalar_lea.vmem [#allocation3], 32
          %1266 = vst.msk [vmem:[%s1265] sm:$0xf] %vm1163, %v1242
          %1267 = vst.msk [vmem:[%s1265 + $0x4] sm:$0xf] %vm1163, %v1244
          %1268 = vst.msk [vmem:[%s1265 + $0x8] sm:$0xf] %vm1163, %v1246
          %1269 = vst.msk [vmem:[%s1265 + $0xc] sm:$0xf] %vm1163, %v1248
          %1270 = vst.msk [vmem:[%s1265 + $0x10] sm:$0xf] %vm1163, %v1250
          %1271 = vst.msk [vmem:[%s1265 + $0x14] sm:$0xf] %vm1163, %v1252
          %1272 = vst.msk [vmem:[%s1265 + $0x18] sm:$0xf] %vm1163, %v1254
          %1273 = vst.msk [vmem:[%s1265 + $0x1c] sm:$0xf] %vm1163, %v1256
          %1274 = vrot.lane.b32.xlu0 %v1147, 64
          %v1275 = vpop.permute.xlu0 %1274
          %1276 = vrot.lane.b32.xlu0 %v1148, 64
          %v1277 = vpop.permute.xlu0 %1276
          %1278 = vrot.lane.b32.xlu0 %v1149, 64
          %v1279 = vpop.permute.xlu0 %1278
          %1280 = vrot.lane.b32.xlu0 %v1150, 64
          %v1281 = vpop.permute.xlu0 %1280
          %1282 = vrot.lane.b32.xlu0 %v1151, 64
          %v1283 = vpop.permute.xlu0 %1282
          %1284 = vrot.lane.b32.xlu0 %v1152, 64
          %v1285 = vpop.permute.xlu0 %1284
          %1286 = vrot.lane.b32.xlu0 %v1153, 64
          %v1287 = vpop.permute.xlu0 %1286
          %1288 = vrot.lane.b32.xlu0 %v1154, 64
          %v1289 = vpop.permute.xlu0 %1288
          %s1298 = scalar_lea.vmem [#allocation2], 64
          %1299 = vst.msk [vmem:[%s1298] sm:$0xf] %vm1163, %v1275
          %1300 = vst.msk [vmem:[%s1298 + $0x4] sm:$0xf] %vm1163, %v1277
          %1301 = vst.msk [vmem:[%s1298 + $0x8] sm:$0xf] %vm1163, %v1279
          %1302 = vst.msk [vmem:[%s1298 + $0xc] sm:$0xf] %vm1163, %v1281
          %1303 = vst.msk [vmem:[%s1298 + $0x10] sm:$0xf] %vm1163, %v1283
          %1304 = vst.msk [vmem:[%s1298 + $0x14] sm:$0xf] %vm1163, %v1285
          %1305 = vst.msk [vmem:[%s1298 + $0x18] sm:$0xf] %vm1163, %v1287
          %1306 = vst.msk [vmem:[%s1298 + $0x1c] sm:$0xf] %vm1163, %v1289
          %1307 = vrot.lane.b32.xlu0 %v1184, 64
          %v1308 = vpop.permute.xlu0 %1307
          %1309 = vrot.lane.b32.xlu0 %v1185, 64
          %v1310 = vpop.permute.xlu0 %1309
          %1311 = vrot.lane.b32.xlu0 %v1186, 64
          %v1312 = vpop.permute.xlu0 %1311
          %1313 = vrot.lane.b32.xlu0 %v1187, 64
          %v1314 = vpop.permute.xlu0 %1313
          %1315 = vrot.lane.b32.xlu0 %v1188, 64
          %v1316 = vpop.permute.xlu0 %1315
          %1317 = vrot.lane.b32.xlu0 %v1189, 64
          %v1318 = vpop.permute.xlu0 %1317
          %1319 = vrot.lane.b32.xlu0 %v1190, 64
          %v1320 = vpop.permute.xlu0 %1319
          %1321 = vrot.lane.b32.xlu0 %v1191, 64
          %v1322 = vpop.permute.xlu0 %1321
          %s1331 = scalar_lea.vmem [#allocation3], 64
          %1332 = vst.msk [vmem:[%s1331] sm:$0xf] %vm1163, %v1308
          %1333 = vst.msk [vmem:[%s1331 + $0x4] sm:$0xf] %vm1163, %v1310
          %1334 = vst.msk [vmem:[%s1331 + $0x8] sm:$0xf] %vm1163, %v1312
          %1335 = vst.msk [vmem:[%s1331 + $0xc] sm:$0xf] %vm1163, %v1314
          %1336 = vst.msk [vmem:[%s1331 + $0x10] sm:$0xf] %vm1163, %v1316
          %1337 = vst.msk [vmem:[%s1331 + $0x14] sm:$0xf] %vm1163, %v1318
          %1338 = vst.msk [vmem:[%s1331 + $0x18] sm:$0xf] %vm1163, %v1320
          %1339 = vst.msk [vmem:[%s1331 + $0x1c] sm:$0xf] %vm1163, %v1322
          %1340 = vrot.lane.b32.xlu0 %v1147, 32
          %v1341 = vpop.permute.xlu0 %1340
          %1342 = vrot.lane.b32.xlu0 %v1148, 32
          %v1343 = vpop.permute.xlu0 %1342
          %1344 = vrot.lane.b32.xlu0 %v1149, 32
          %v1345 = vpop.permute.xlu0 %1344
          %1346 = vrot.lane.b32.xlu0 %v1150, 32
          %v1347 = vpop.permute.xlu0 %1346
          %1348 = vrot.lane.b32.xlu0 %v1151, 32
          %v1349 = vpop.permute.xlu0 %1348
          %1350 = vrot.lane.b32.xlu0 %v1152, 32
          %v1351 = vpop.permute.xlu0 %1350
          %1352 = vrot.lane.b32.xlu0 %v1153, 32
          %v1353 = vpop.permute.xlu0 %1352
          %1354 = vrot.lane.b32.xlu0 %v1154, 32
          %v1355 = vpop.permute.xlu0 %1354
          %s1364 = scalar_lea.vmem [#allocation2], 96
          %1365 = vst.msk [vmem:[%s1364] sm:$0xf] %vm1163, %v1341
          %1366 = vst.msk [vmem:[%s1364 + $0x4] sm:$0xf] %vm1163, %v1343
          %1367 = vst.msk [vmem:[%s1364 + $0x8] sm:$0xf] %vm1163, %v1345
          %1368 = vst.msk [vmem:[%s1364 + $0xc] sm:$0xf] %vm1163, %v1347
          %1369 = vst.msk [vmem:[%s1364 + $0x10] sm:$0xf] %vm1163, %v1349
          %1370 = vst.msk [vmem:[%s1364 + $0x14] sm:$0xf] %vm1163, %v1351
          %1371 = vst.msk [vmem:[%s1364 + $0x18] sm:$0xf] %vm1163, %v1353
          %1372 = vst.msk [vmem:[%s1364 + $0x1c] sm:$0xf] %vm1163, %v1355
          %1373 = vrot.lane.b32.xlu0 %v1184, 32
          %v1374 = vpop.permute.xlu0 %1373
          %1375 = vrot.lane.b32.xlu0 %v1185, 32
          %v1376 = vpop.permute.xlu0 %1375
          %1377 = vrot.lane.b32.xlu0 %v1186, 32
          %v1378 = vpop.permute.xlu0 %1377
          %1379 = vrot.lane.b32.xlu0 %v1187, 32
          %v1380 = vpop.permute.xlu0 %1379
          %1381 = vrot.lane.b32.xlu0 %v1188, 32
          %v1382 = vpop.permute.xlu0 %1381
          %1383 = vrot.lane.b32.xlu0 %v1189, 32
          %v1384 = vpop.permute.xlu0 %1383
          %1385 = vrot.lane.b32.xlu0 %v1190, 32
          %v1386 = vpop.permute.xlu0 %1385
          %1387 = vrot.lane.b32.xlu0 %v1191, 32
          %v1388 = vpop.permute.xlu0 %1387
          %s1397 = scalar_lea.vmem [#allocation3], 96
          %1398 = vst.msk [vmem:[%s1397] sm:$0xf] %vm1163, %v1374
          %1399 = vst.msk [vmem:[%s1397 + $0x4] sm:$0xf] %vm1163, %v1376
          %1400 = vst.msk [vmem:[%s1397 + $0x8] sm:$0xf] %vm1163, %v1378
          %1401 = vst.msk [vmem:[%s1397 + $0xc] sm:$0xf] %vm1163, %v1380
          %1402 = vst.msk [vmem:[%s1397 + $0x10] sm:$0xf] %vm1163, %v1382
          %1403 = vst.msk [vmem:[%s1397 + $0x14] sm:$0xf] %vm1163, %v1384
          %1404 = vst.msk [vmem:[%s1397 + $0x18] sm:$0xf] %vm1163, %v1386
          %1405 = vst.msk [vmem:[%s1397 + $0x1c] sm:$0xf] %vm1163, %v1388
        $region136: #{tpu_custom_call.1} parent=95 // pred_fallthru
          _
        %v1406 = vpack.c.bf16 %v812, %v811
        %v1407 = vpack.c.bf16 %v814, %v813
        %v1408 = vld [vmem:[#allocation10] sm:$0xf]
        %v1409 = vld [vmem:[#allocation10 + $0x4] sm:$0xf]
        %v1410 = vld [vmem:[#allocation10 + $0x8] sm:$0xf]
        %v1411 = vld [vmem:[#allocation10 + $0xc] sm:$0xf]
        %v1412 = vld [vmem:[#allocation10 + $0x10] sm:$0xf]
        %v1413 = vld [vmem:[#allocation10 + $0x14] sm:$0xf]
        %v1414 = vld [vmem:[#allocation10 + $0x18] sm:$0xf]
        %v1415 = vld [vmem:[#allocation10 + $0x1c] sm:$0xf]
        %v1416 = vld [vmem:[#allocation10 + $0x20] sm:$0xf]
        %v1417 = vld [vmem:[#allocation10 + $0x24] sm:$0xf]
        %v1418 = vld [vmem:[#allocation10 + $0x28] sm:$0xf]
        %v1419 = vld [vmem:[#allocation10 + $0x2c] sm:$0xf]
        %v1420 = vld [vmem:[#allocation10 + $0x30] sm:$0xf]
        %v1421 = vld [vmem:[#allocation10 + $0x34] sm:$0xf]
        %v1422 = vld [vmem:[#allocation10 + $0x38] sm:$0xf]
        %v1423 = vld [vmem:[#allocation10 + $0x3c] sm:$0xf]
        %v1424 = vld [vmem:[%s4] sm:$0x1]
        %v1426 = vlaneseq
        %v1427 = vshrl.u32 %v1426, 7
        %v1428 = vsub.s32 0, %v1427
        %v1429 = vrot.slane %v1424, %v1428
        %v1447 = vunpack.c.l.b16 %v1408
        %v1448 = vunpack.c.l.b16 %v1409
        %v1449 = vunpack.c.l.b16 %v1410
        %v1450 = vunpack.c.l.b16 %v1411
        %v1451 = vunpack.c.l.b16 %v1412
        %v1452 = vunpack.c.l.b16 %v1413
        %v1453 = vunpack.c.l.b16 %v1414
        %v1454 = vunpack.c.l.b16 %v1415
        %v1455 = vunpack.c.l.b16 %v1416
        %v1456 = vunpack.c.l.b16 %v1417
        %v1457 = vunpack.c.l.b16 %v1418
        %v1458 = vunpack.c.l.b16 %v1419
        %v1459 = vunpack.c.l.b16 %v1420
        %v1460 = vunpack.c.l.b16 %v1421
        %v1461 = vunpack.c.l.b16 %v1422
        %v1462 = vunpack.c.l.b16 %v1423
        %v1463 = vpack.c.b16 %v1448, %v1447
        %v1464 = vpack.c.b16 %v1450, %v1449
        %v1465 = vpack.c.b16 %v1452, %v1451
        %v1466 = vpack.c.b16 %v1454, %v1453
        %v1467 = vpack.c.b16 %v1456, %v1455
        %v1468 = vpack.c.b16 %v1458, %v1457
        %v1469 = vpack.c.b16 %v1460, %v1459
        %v1470 = vpack.c.b16 %v1462, %v1461
        %1479 = vmatprep.subr.bf16.mxu0 0
        %1480 = vmatpush1.bf16.msra.mxu0 %v1470
        %1481 = vmatprep.subr.bf16.mxu0 0
        %1482 = vmatpush1.bf16.msra.mxu0 %v1469
        %1483 = vmatprep.subr.bf16.mxu0 0
        %1484 = vmatpush1.bf16.msra.mxu0 %v1468
        %1485 = vmatprep.subr.bf16.mxu0 0
        %1486 = vmatpush1.bf16.msra.mxu0 %v1467
        %1487 = vmatprep.subr.bf16.mxu0 0
        %1488 = vmatpush1.bf16.msra.mxu0 %v1466
        %1489 = vmatprep.subr.bf16.mxu0 0
        %1490 = vmatpush1.bf16.msra.mxu0 %v1465
        %1491 = vmatprep.subr.bf16.mxu0 0
        %1492 = vmatpush1.bf16.msra.mxu0 %v1464
        %1493 = vmatprep.subr.bf16.mxu0 0
        %1494 = vmatpush1.bf16.msra.mxu0 %v1463
        %1495 = vmatprep.subr.bf16.mxu0 0
        %1496 = vmatpush2.bf16.msra.mxu0 0
        %1497 = vmatprep.subr.bf16.mxu0 0
        %1498 = vmatpush2.bf16.msra.mxu0 0
        %1499 = vmatprep.subr.bf16.mxu0 0
        %1500 = vmatpush2.bf16.msra.mxu0 0
        %1501 = vmatprep.subr.bf16.mxu0 0
        %1502 = vmatpush2.bf16.msra.mxu0 0
        %1503 = vmatprep.subr.bf16.mxu0 0
        %1504 = vmatpush2.bf16.msra.mxu0 0
        %1505 = vmatprep.subr.bf16.mxu0 0
        %1506 = vmatpush2.bf16.msra.mxu0 0
        %1507 = vmatprep.subr.bf16.mxu0 0
        %1508 = vmatpush2.bf16.msra.mxu0 0
        %1509 = vmatprep.subr.bf16.mxu0 0
        %1510 = vmatpush2.bf16.msra.mxu0 0
        %1511 = vmatprep.mubr.bf16.mxu0 0
        %1512 = vmatmul.mubr.bf16.gmra.mxu0 %v1406
        %v1513 = vpop.f32.mrf.mxu0
        %v1514 = vadd.f32 %v1429, %v1513
        %v1515 = vpop.f32.mrf.mxu0
        %v1516 = vpop.f32.mrf.mxu0
        %v1517 = vadd.f32 %v1429, %v1516
        %v1518 = vpop.f32.mrf.mxu0
        %1519 = vmatprep.mubr.bf16.mxu0 0
        %1520 = vmatmul.mubr.bf16.gmra.mxu0 %v1407
        %v1521 = vpop.f32.mrf.mxu0
        %v1522 = vadd.f32 %v1429, %v1521
        %v1523 = vpop.f32.mrf.mxu0
        %v1524 = vpop.f32.mrf.mxu0
        %v1525 = vadd.f32 %v1429, %v1524
        %v1526 = vpop.f32.mrf.mxu0
        %1527 = vdwg.mxu0
        %v1528 = vmul.f32 %v1514, 0.17677669
        %v1529 = vmul.f32 %v1517, 0.17677669
        %v1530 = vmul.f32 %v1522, 0.17677669
        %v1531 = vmul.f32 %v1525, 0.17677669
        %v1532 = vpack.c.bf16 %v1529, %v1528
        %v1533 = vpack.c.bf16 %v1531, %v1530
        %1536 = vrot.lane.b32.xlu0 %v1532, 96
        %v1537 = vpop.permute.xlu0 %1536
        %1538 = vrot.lane.b32.xlu0 %v1533, 96
        %v1539 = vpop.permute.xlu0 %1538
        %1540 = vrot.lane.b32.xlu0 %v1532, 64
        %v1541 = vpop.permute.xlu0 %1540
        %1542 = vrot.lane.b32.xlu0 %v1533, 64
        %v1543 = vpop.permute.xlu0 %1542
        %1544 = vrot.lane.b32.xlu0 %v1532, 32
        %v1545 = vpop.permute.xlu0 %1544
        %1546 = vrot.lane.b32.xlu0 %v1533, 32
        %v1547 = vpop.permute.xlu0 %1546
        %v1548 = vunpack.c.l.bf16 %v815
        %v1549 = vunpack.c.l.bf16 %v816
        %v1550 = vunpack.c.l.bf16 %v817
        %v1551 = vunpack.c.l.bf16 %v818
        %v1552 = vsub.f32 %v1548, 1.0
        %v1553 = vsub.f32 %v1549, 1.0
        %v1554 = vsub.f32 %v1550, 1.0
        %v1555 = vsub.f32 %v1551, 1.0
        %v1556 = vmul.f32 %v1552, 1e+09
        %v1557 = vmul.f32 %v1553, 1e+09
        %v1558 = vmul.f32 %v1554, 1e+09
        %v1559 = vmul.f32 %v1555, 1e+09
        %v1560 = vld [vmem:[#allocation2] sm:$0xf]
        %v1561 = vld [vmem:[#allocation2 + $0x4] sm:$0xf]
        %v1562 = vld [vmem:[#allocation2 + $0x8] sm:$0xf]
        %v1563 = vld [vmem:[#allocation2 + $0xc] sm:$0xf]
        %v1564 = vld [vmem:[#allocation2 + $0x10] sm:$0xf]
        %v1565 = vld [vmem:[#allocation2 + $0x14] sm:$0xf]
        %v1566 = vld [vmem:[#allocation2 + $0x18] sm:$0xf]
        %v1567 = vld [vmem:[#allocation2 + $0x1c] sm:$0xf]
        %v1568 = vld [vmem:[#allocation2 + $0x20] sm:$0xf]
        %v1569 = vld [vmem:[#allocation2 + $0x24] sm:$0xf]
        %v1570 = vld [vmem:[#allocation2 + $0x28] sm:$0xf]
        %v1571 = vld [vmem:[#allocation2 + $0x2c] sm:$0xf]
        %v1572 = vld [vmem:[#allocation2 + $0x30] sm:$0xf]
        %v1573 = vld [vmem:[#allocation2 + $0x34] sm:$0xf]
        %v1574 = vld [vmem:[#allocation2 + $0x38] sm:$0xf]
        %v1575 = vld [vmem:[#allocation2 + $0x3c] sm:$0xf]
        %v1576 = vld [vmem:[#allocation2 + $0x40] sm:$0xf]
        %v1577 = vld [vmem:[#allocation2 + $0x44] sm:$0xf]
        %v1578 = vld [vmem:[#allocation2 + $0x48] sm:$0xf]
        %v1579 = vld [vmem:[#allocation2 + $0x4c] sm:$0xf]
        %v1580 = vld [vmem:[#allocation2 + $0x50] sm:$0xf]
        %v1581 = vld [vmem:[#allocation2 + $0x54] sm:$0xf]
        %v1582 = vld [vmem:[#allocation2 + $0x58] sm:$0xf]
        %v1583 = vld [vmem:[#allocation2 + $0x5c] sm:$0xf]
        %v1584 = vld [vmem:[#allocation2 + $0x60] sm:$0xf]
        %v1585 = vld [vmem:[#allocation2 + $0x64] sm:$0xf]
        %v1586 = vld [vmem:[#allocation2 + $0x68] sm:$0xf]
        %v1587 = vld [vmem:[#allocation2 + $0x6c] sm:$0xf]
        %v1588 = vld [vmem:[#allocation2 + $0x70] sm:$0xf]
        %v1589 = vld [vmem:[#allocation2 + $0x74] sm:$0xf]
        %v1590 = vld [vmem:[#allocation2 + $0x78] sm:$0xf]
        %v1591 = vld [vmem:[#allocation2 + $0x7c] sm:$0xf]
        %v1600 = vunpack.c.l.b16 %v1560
        %v1601 = vunpack.c.l.b16 %v1561
        %v1602 = vunpack.c.l.b16 %v1562
        %v1603 = vunpack.c.l.b16 %v1563
        %v1604 = vunpack.c.l.b16 %v1564
        %v1605 = vunpack.c.l.b16 %v1565
        %v1606 = vunpack.c.l.b16 %v1566
        %v1607 = vunpack.c.l.b16 %v1567
        %v1608 = vpack.c.b16 %v1601, %v1600
        %v1609 = vpack.c.b16 %v1603, %v1602
        %v1610 = vpack.c.b16 %v1605, %v1604
        %v1611 = vpack.c.b16 %v1607, %v1606
        %vm1612 = vcmask 261120
        %v1614 = vsel %vm1612, %v1532, 0
        %v1617 = vsel %vm1612, %v1533, 0
        %v1620 = vsel %vm1612, %v1608, 0
        %v1623 = vsel %vm1612, %v1609, 0
        %v1626 = vsel %vm1612, %v1610, 0
        %v1629 = vsel %vm1612, %v1611, 0
        %1631 = vmatprep.subr.bf16.mxu0 0
        %1632 = vmatpush1.bf16.xpose.msra.mxu0 0
        %1633 = vmatprep.subr.bf16.mxu0 0
        %1634 = vmatpush1.bf16.xpose.msra.mxu0 0
        %1635 = vmatprep.subr.bf16.mxu0 0
        %1636 = vmatpush1.bf16.xpose.msra.mxu0 0
        %1637 = vmatprep.subr.bf16.mxu0 0
        %1638 = vmatpush1.bf16.xpose.msra.mxu0 0
        %1639 = vmatprep.subr.bf16.mxu0 0
        %1640 = vmatpush1.bf16.xpose.msra.mxu0 %v1629
        %1641 = vmatprep.subr.bf16.mxu0 0
        %1642 = vmatpush1.bf16.xpose.msra.mxu0 %v1626
        %1643 = vmatprep.subr.bf16.mxu0 0
        %1644 = vmatpush1.bf16.xpose.msra.mxu0 %v1623
        %1645 = vmatprep.subr.bf16.mxu0 0
        %1646 = vmatpush1.bf16.xpose.msra.mxu0 %v1620
        %1647 = vmatprep.subr.bf16.mxu0 0
        %1648 = vmatpush2.bf16.xpose.msra.mxu0 0
        %1649 = vmatprep.subr.bf16.mxu0 0
        %1650 = vmatpush2.bf16.xpose.msra.mxu0 0
        %1651 = vmatprep.subr.bf16.mxu0 0
        %1652 = vmatpush2.bf16.xpose.msra.mxu0 0
        %1653 = vmatprep.subr.bf16.mxu0 0
        %1654 = vmatpush2.bf16.xpose.msra.mxu0 0
        %1655 = vmatprep.subr.bf16.mxu0 0
        %1656 = vmatpush2.bf16.xpose.msra.mxu0 0
        %1657 = vmatprep.subr.bf16.mxu0 0
        %1658 = vmatpush2.bf16.xpose.msra.mxu0 0
        %1659 = vmatprep.subr.bf16.mxu0 0
        %1660 = vmatpush2.bf16.xpose.msra.mxu0 0
        %1661 = vmatprep.subr.bf16.mxu0 0
        %1662 = vmatpush2.bf16.xpose.msra.mxu0 0
        %1663 = vmatprep.mubr.bf16.mxu0 0
        %1664 = vmatmul.mubr.bf16.gmra.mxu0 %v1614
        %v1665 = vpop.f32.mrf.mxu0
        %v1666 = vadd.f32 %v1556, %v1665
        %v1667 = vpop.f32.mrf.mxu0
        %v1668 = vpop.f32.mrf.mxu0
        %v1669 = vadd.f32 %v1557, %v1668
        %v1670 = vpop.f32.mrf.mxu0
        %1671 = vmatprep.mubr.bf16.mxu0 0
        %1672 = vmatmul.mubr.bf16.gmra.mxu0 %v1617
        %v1673 = vpop.f32.mrf.mxu0
        %v1674 = vadd.f32 %v1558, %v1673
        %v1675 = vpop.f32.mrf.mxu0
        %v1676 = vpop.f32.mrf.mxu0
        %v1677 = vadd.f32 %v1559, %v1676
        %v1678 = vpop.f32.mrf.mxu0
        %1679 = vdwg.mxu0
        %v1688 = vunpack.c.l.b16 %v1568
        %v1689 = vunpack.c.l.b16 %v1569
        %v1690 = vunpack.c.l.b16 %v1570
        %v1691 = vunpack.c.l.b16 %v1571
        %v1692 = vunpack.c.l.b16 %v1572
        %v1693 = vunpack.c.l.b16 %v1573
        %v1694 = vunpack.c.l.b16 %v1574
        %v1695 = vunpack.c.l.b16 %v1575
        %v1696 = vpack.c.b16 %v1689, %v1688
        %v1697 = vpack.c.b16 %v1691, %v1690
        %v1698 = vpack.c.b16 %v1693, %v1692
        %v1699 = vpack.c.b16 %v1695, %v1694
        %v1701 = vsel %vm1612, %v1537, 0
        %v1704 = vsel %vm1612, %v1539, 0
        %v1707 = vsel %vm1612, %v1696, 0
        %v1710 = vsel %vm1612, %v1697, 0
        %v1713 = vsel %vm1612, %v1698, 0
        %v1716 = vsel %vm1612, %v1699, 0
        %1718 = vmatprep.subr.bf16.mxu0 0
        %1719 = vmatpush1.bf16.xpose.msra.mxu0 0
        %1720 = vmatprep.subr.bf16.mxu0 0
        %1721 = vmatpush1.bf16.xpose.msra.mxu0 0
        %1722 = vmatprep.subr.bf16.mxu0 0
        %1723 = vmatpush1.bf16.xpose.msra.mxu0 0
        %1724 = vmatprep.subr.bf16.mxu0 0
        %1725 = vmatpush1.bf16.xpose.msra.mxu0 0
        %1726 = vmatprep.subr.bf16.mxu0 0
        %1727 = vmatpush1.bf16.xpose.msra.mxu0 %v1716
        %1728 = vmatprep.subr.bf16.mxu0 0
        %1729 = vmatpush1.bf16.xpose.msra.mxu0 %v1713
        %1730 = vmatprep.subr.bf16.mxu0 0
        %1731 = vmatpush1.bf16.xpose.msra.mxu0 %v1710
        %1732 = vmatprep.subr.bf16.mxu0 0
        %1733 = vmatpush1.bf16.xpose.msra.mxu0 %v1707
        %1734 = vmatprep.subr.bf16.mxu0 0
        %1735 = vmatpush2.bf16.xpose.msra.mxu0 0
        %1736 = vmatprep.subr.bf16.mxu0 0
        %1737 = vmatpush2.bf16.xpose.msra.mxu0 0
        %1738 = vmatprep.subr.bf16.mxu0 0
        %1739 = vmatpush2.bf16.xpose.msra.mxu0 0
        %1740 = vmatprep.subr.bf16.mxu0 0
        %1741 = vmatpush2.bf16.xpose.msra.mxu0 0
        %1742 = vmatprep.subr.bf16.mxu0 0
        %1743 = vmatpush2.bf16.xpose.msra.mxu0 0
        %1744 = vmatprep.subr.bf16.mxu0 0
        %1745 = vmatpush2.bf16.xpose.msra.mxu0 0
        %1746 = vmatprep.subr.bf16.mxu0 0
        %1747 = vmatpush2.bf16.xpose.msra.mxu0 0
        %1748 = vmatprep.subr.bf16.mxu0 0
        %1749 = vmatpush2.bf16.xpose.msra.mxu0 0
        %1750 = vmatprep.mubr.bf16.mxu0 0
        %1751 = vmatmul.mubr.bf16.gmra.mxu0 %v1701
        %v1752 = vpop.f32.mrf.mxu0
        %v1753 = vadd.f32 %v1556, %v1752
        %v1754 = vpop.f32.mrf.mxu0
        %v1755 = vpop.f32.mrf.mxu0
        %v1756 = vadd.f32 %v1557, %v1755
        %v1757 = vpop.f32.mrf.mxu0
        %1758 = vmatprep.mubr.bf16.mxu0 0
        %1759 = vmatmul.mubr.bf16.gmra.mxu0 %v1704
        %v1760 = vpop.f32.mrf.mxu0
        %v1761 = vadd.f32 %v1558, %v1760
        %v1762 = vpop.f32.mrf.mxu0
        %v1763 = vpop.f32.mrf.mxu0
        %v1764 = vadd.f32 %v1559, %v1763
        %v1765 = vpop.f32.mrf.mxu0
        %1766 = vdwg.mxu0
        %v1775 = vunpack.c.l.b16 %v1576
        %v1776 = vunpack.c.l.b16 %v1577
        %v1777 = vunpack.c.l.b16 %v1578
        %v1778 = vunpack.c.l.b16 %v1579
        %v1779 = vunpack.c.l.b16 %v1580
        %v1780 = vunpack.c.l.b16 %v1581
        %v1781 = vunpack.c.l.b16 %v1582
        %v1782 = vunpack.c.l.b16 %v1583
        %v1783 = vpack.c.b16 %v1776, %v1775
        %v1784 = vpack.c.b16 %v1778, %v1777
        %v1785 = vpack.c.b16 %v1780, %v1779
        %v1786 = vpack.c.b16 %v1782, %v1781
        %v1788 = vsel %vm1612, %v1541, 0
        %v1791 = vsel %vm1612, %v1543, 0
        %v1794 = vsel %vm1612, %v1783, 0
        %v1797 = vsel %vm1612, %v1784, 0
        %v1800 = vsel %vm1612, %v1785, 0
        %v1803 = vsel %vm1612, %v1786, 0
        %1805 = vmatprep.subr.bf16.mxu0 0
        %1806 = vmatpush1.bf16.xpose.msra.mxu0 0
        %1807 = vmatprep.subr.bf16.mxu0 0
        %1808 = vmatpush1.bf16.xpose.msra.mxu0 0
        %1809 = vmatprep.subr.bf16.mxu0 0
        %1810 = vmatpush1.bf16.xpose.msra.mxu0 0
        %1811 = vmatprep.subr.bf16.mxu0 0
        %1812 = vmatpush1.bf16.xpose.msra.mxu0 0
        %1813 = vmatprep.subr.bf16.mxu0 0
        %1814 = vmatpush1.bf16.xpose.msra.mxu0 %v1803
        %1815 = vmatprep.subr.bf16.mxu0 0
        %1816 = vmatpush1.bf16.xpose.msra.mxu0 %v1800
        %1817 = vmatprep.subr.bf16.mxu0 0
        %1818 = vmatpush1.bf16.xpose.msra.mxu0 %v1797
        %1819 = vmatprep.subr.bf16.mxu0 0
        %1820 = vmatpush1.bf16.xpose.msra.mxu0 %v1794
        %1821 = vmatprep.subr.bf16.mxu0 0
        %1822 = vmatpush2.bf16.xpose.msra.mxu0 0
        %1823 = vmatprep.subr.bf16.mxu0 0
        %1824 = vmatpush2.bf16.xpose.msra.mxu0 0
        %1825 = vmatprep.subr.bf16.mxu0 0
        %1826 = vmatpush2.bf16.xpose.msra.mxu0 0
        %1827 = vmatprep.subr.bf16.mxu0 0
        %1828 = vmatpush2.bf16.xpose.msra.mxu0 0
        %1829 = vmatprep.subr.bf16.mxu0 0
        %1830 = vmatpush2.bf16.xpose.msra.mxu0 0
        %1831 = vmatprep.subr.bf16.mxu0 0
        %1832 = vmatpush2.bf16.xpose.msra.mxu0 0
        %1833 = vmatprep.subr.bf16.mxu0 0
        %1834 = vmatpush2.bf16.xpose.msra.mxu0 0
        %1835 = vmatprep.subr.bf16.mxu0 0
        %1836 = vmatpush2.bf16.xpose.msra.mxu0 0
        %1837 = vmatprep.mubr.bf16.mxu0 0
        %1838 = vmatmul.mubr.bf16.gmra.mxu0 %v1788
        %v1839 = vpop.f32.mrf.mxu0
        %v1840 = vadd.f32 %v1556, %v1839
        %v1841 = vpop.f32.mrf.mxu0
        %v1842 = vpop.f32.mrf.mxu0
        %v1843 = vadd.f32 %v1557, %v1842
        %v1844 = vpop.f32.mrf.mxu0
        %1845 = vmatprep.mubr.bf16.mxu0 0
        %1846 = vmatmul.mubr.bf16.gmra.mxu0 %v1791
        %v1847 = vpop.f32.mrf.mxu0
        %v1848 = vadd.f32 %v1558, %v1847
        %v1849 = vpop.f32.mrf.mxu0
        %v1850 = vpop.f32.mrf.mxu0
        %v1851 = vadd.f32 %v1559, %v1850
        %v1852 = vpop.f32.mrf.mxu0
        %1853 = vdwg.mxu0
        %v1862 = vunpack.c.l.b16 %v1584
        %v1863 = vunpack.c.l.b16 %v1585
        %v1864 = vunpack.c.l.b16 %v1586
        %v1865 = vunpack.c.l.b16 %v1587
        %v1866 = vunpack.c.l.b16 %v1588
        %v1867 = vunpack.c.l.b16 %v1589
        %v1868 = vunpack.c.l.b16 %v1590
        %v1869 = vunpack.c.l.b16 %v1591
        %v1870 = vpack.c.b16 %v1863, %v1862
        %v1871 = vpack.c.b16 %v1865, %v1864
        %v1872 = vpack.c.b16 %v1867, %v1866
        %v1873 = vpack.c.b16 %v1869, %v1868
        %v1875 = vsel %vm1612, %v1545, 0
        %v1878 = vsel %vm1612, %v1547, 0
        %v1881 = vsel %vm1612, %v1870, 0
        %v1884 = vsel %vm1612, %v1871, 0
        %v1887 = vsel %vm1612, %v1872, 0
        %v1890 = vsel %vm1612, %v1873, 0
        %1892 = vmatprep.subr.bf16.mxu0 0
        %1893 = vmatpush1.bf16.xpose.msra.mxu0 0
        %1894 = vmatprep.subr.bf16.mxu0 0
        %1895 = vmatpush1.bf16.xpose.msra.mxu0 0
        %1896 = vmatprep.subr.bf16.mxu0 0
        %1897 = vmatpush1.bf16.xpose.msra.mxu0 0
        %1898 = vmatprep.subr.bf16.mxu0 0
        %1899 = vmatpush1.bf16.xpose.msra.mxu0 0
        %1900 = vmatprep.subr.bf16.mxu0 0
        %1901 = vmatpush1.bf16.xpose.msra.mxu0 %v1890
        %1902 = vmatprep.subr.bf16.mxu0 0
        %1903 = vmatpush1.bf16.xpose.msra.mxu0 %v1887
        %1904 = vmatprep.subr.bf16.mxu0 0
        %1905 = vmatpush1.bf16.xpose.msra.mxu0 %v1884
        %1906 = vmatprep.subr.bf16.mxu0 0
        %1907 = vmatpush1.bf16.xpose.msra.mxu0 %v1881
        %1908 = vmatprep.subr.bf16.mxu0 0
        %1909 = vmatpush2.bf16.xpose.msra.mxu0 0
        %1910 = vmatprep.subr.bf16.mxu0 0
        %1911 = vmatpush2.bf16.xpose.msra.mxu0 0
        %1912 = vmatprep.subr.bf16.mxu0 0
        %1913 = vmatpush2.bf16.xpose.msra.mxu0 0
        %1914 = vmatprep.subr.bf16.mxu0 0
        %1915 = vmatpush2.bf16.xpose.msra.mxu0 0
        %1916 = vmatprep.subr.bf16.mxu0 0
        %1917 = vmatpush2.bf16.xpose.msra.mxu0 0
        %1918 = vmatprep.subr.bf16.mxu0 0
        %1919 = vmatpush2.bf16.xpose.msra.mxu0 0
        %1920 = vmatprep.subr.bf16.mxu0 0
        %1921 = vmatpush2.bf16.xpose.msra.mxu0 0
        %1922 = vmatprep.subr.bf16.mxu0 0
        %1923 = vmatpush2.bf16.xpose.msra.mxu0 0
        %1924 = vmatprep.mubr.bf16.mxu0 0
        %1925 = vmatmul.mubr.bf16.gmra.mxu0 %v1875
        %v1926 = vpop.f32.mrf.mxu0
        %v1927 = vadd.f32 %v1556, %v1926
        %v1928 = vpop.f32.mrf.mxu0
        %v1929 = vpop.f32.mrf.mxu0
        %v1930 = vadd.f32 %v1557, %v1929
        %v1931 = vpop.f32.mrf.mxu0
        %1932 = vmatprep.mubr.bf16.mxu0 0
        %1933 = vmatmul.mubr.bf16.gmra.mxu0 %v1878
        %v1934 = vpop.f32.mrf.mxu0
        %v1935 = vadd.f32 %v1558, %v1934
        %v1936 = vpop.f32.mrf.mxu0
        %v1937 = vpop.f32.mrf.mxu0
        %v1938 = vadd.f32 %v1559, %v1937
        %v1939 = vpop.f32.mrf.mxu0
        %1940 = vdwg.mxu0
        %vm1941 = vcmask 523264
        %v1942 = vsel %vm1941, %v1666, -inf
        %1943 = vmax.xlane.f32.xlu0 %v1942
        %v1944 = vpop.xlane.xlu0 %1943
        %v1945 = vsel %vm1941, %v1669, -inf
        %1946 = vmax.xlane.f32.xlu0 %v1945
        %v1947 = vpop.xlane.xlu0 %1946
        %v1948 = vsel %vm1941, %v1674, -inf
        %1949 = vmax.xlane.f32.xlu0 %v1948
        %v1950 = vpop.xlane.xlu0 %1949
        %v1951 = vsel %vm1941, %v1677, -inf
        %1952 = vmax.xlane.f32.xlu0 %v1951
        %v1953 = vpop.xlane.xlu0 %1952
        %v1954 = vsel %vm1941, %v1753, -inf
        %1955 = vmax.xlane.f32.xlu0 %v1954
        %v1956 = vpop.xlane.xlu0 %1955
        %v1957 = vsel %vm1941, %v1756, -inf
        %1958 = vmax.xlane.f32.xlu0 %v1957
        %v1959 = vpop.xlane.xlu0 %1958
        %v1960 = vsel %vm1941, %v1761, -inf
        %1961 = vmax.xlane.f32.xlu0 %v1960
        %v1962 = vpop.xlane.xlu0 %1961
        %v1963 = vsel %vm1941, %v1764, -inf
        %1964 = vmax.xlane.f32.xlu0 %v1963
        %v1965 = vpop.xlane.xlu0 %1964
        %v1966 = vsel %vm1941, %v1840, -inf
        %1967 = vmax.xlane.f32.xlu0 %v1966
        %v1968 = vpop.xlane.xlu0 %1967
        %v1969 = vsel %vm1941, %v1843, -inf
        %1970 = vmax.xlane.f32.xlu0 %v1969
        %v1971 = vpop.xlane.xlu0 %1970
        %v1972 = vsel %vm1941, %v1848, -inf
        %1973 = vmax.xlane.f32.xlu0 %v1972
        %v1974 = vpop.xlane.xlu0 %1973
        %v1975 = vsel %vm1941, %v1851, -inf
        %1976 = vmax.xlane.f32.xlu0 %v1975
        %v1977 = vpop.xlane.xlu0 %1976
        %v1978 = vsel %vm1941, %v1927, -inf
        %1979 = vmax.xlane.f32.xlu0 %v1978
        %v1980 = vpop.xlane.xlu0 %1979
        %v1981 = vsel %vm1941, %v1930, -inf
        %1982 = vmax.xlane.f32.xlu0 %v1981
        %v1983 = vpop.xlane.xlu0 %1982
        %v1984 = vsel %vm1941, %v1935, -inf
        %1985 = vmax.xlane.f32.xlu0 %v1984
        %v1986 = vpop.xlane.xlu0 %1985
        %v1987 = vsel %vm1941, %v1938, -inf
        %1988 = vmax.xlane.f32.xlu0 %v1987
        %v1989 = vpop.xlane.xlu0 %1988
        %v1990 = vsub.f32 %v1666, %v1944
        %v1991 = vsub.f32 %v1669, %v1947
        %v1992 = vsub.f32 %v1674, %v1950
        %v1993 = vsub.f32 %v1677, %v1953
        %v1994 = vsub.f32 %v1753, %v1956
        %v1995 = vsub.f32 %v1756, %v1959
        %v1996 = vsub.f32 %v1761, %v1962
        %v1997 = vsub.f32 %v1764, %v1965
        %v1998 = vsub.f32 %v1840, %v1968
        %v1999 = vsub.f32 %v1843, %v1971
        %v2000 = vsub.f32 %v1848, %v1974
        %v2001 = vsub.f32 %v1851, %v1977
        %v2002 = vsub.f32 %v1927, %v1980
        %v2003 = vsub.f32 %v1930, %v1983
        %v2004 = vsub.f32 %v1935, %v1986
        %v2005 = vsub.f32 %v1938, %v1989
        %v2006 = vmul.f32 %v1990, 1.442695
        %v2007 = vpow.pop %v2006
        %v2008 = vmul.f32 %v1991, 1.442695
        %v2009 = vpow.pop %v2008
        %v2010 = vmul.f32 %v1992, 1.442695
        %v2011 = vpow.pop %v2010
        %v2012 = vmul.f32 %v1993, 1.442695
        %v2013 = vpow.pop %v2012
        %v2014 = vmul.f32 %v1994, 1.442695
        %v2015 = vpow.pop %v2014
        %v2016 = vmul.f32 %v1995, 1.442695
        %v2017 = vpow.pop %v2016
        %v2018 = vmul.f32 %v1996, 1.442695
        %v2019 = vpow.pop %v2018
        %v2020 = vmul.f32 %v1997, 1.442695
        %v2021 = vpow.pop %v2020
        %v2022 = vmul.f32 %v1998, 1.442695
        %v2023 = vpow.pop %v2022
        %v2024 = vmul.f32 %v1999, 1.442695
        %v2025 = vpow.pop %v2024
        %v2026 = vmul.f32 %v2000, 1.442695
        %v2027 = vpow.pop %v2026
        %v2028 = vmul.f32 %v2001, 1.442695
        %v2029 = vpow.pop %v2028
        %v2030 = vmul.f32 %v2002, 1.442695
        %v2031 = vpow.pop %v2030
        %v2032 = vmul.f32 %v2003, 1.442695
        %v2033 = vpow.pop %v2032
        %v2034 = vmul.f32 %v2004, 1.442695
        %v2035 = vpow.pop %v2034
        %v2036 = vmul.f32 %v2005, 1.442695
        %v2037 = vpow.pop %v2036
        %v2038 = vsel %vm1941, %v2007, 0.0
        %2039 = vadd.xlane.f32.xlu0 %v2038
        %v2040 = vpop.xlane.xlu0 %2039
        %v2041 = vsel %vm1941, %v2009, 0.0
        %2042 = vadd.xlane.f32.xlu0 %v2041
        %v2043 = vpop.xlane.xlu0 %2042
        %v2044 = vsel %vm1941, %v2011, 0.0
        %2045 = vadd.xlane.f32.xlu0 %v2044
        %v2046 = vpop.xlane.xlu0 %2045
        %v2047 = vsel %vm1941, %v2013, 0.0
        %2048 = vadd.xlane.f32.xlu0 %v2047
        %v2049 = vpop.xlane.xlu0 %2048
        %v2050 = vsel %vm1941, %v2015, 0.0
        %2051 = vadd.xlane.f32.xlu0 %v2050
        %v2052 = vpop.xlane.xlu0 %2051
        %v2053 = vsel %vm1941, %v2017, 0.0
        %2054 = vadd.xlane.f32.xlu0 %v2053
        %v2055 = vpop.xlane.xlu0 %2054
        %v2056 = vsel %vm1941, %v2019, 0.0
        %2057 = vadd.xlane.f32.xlu0 %v2056
        %v2058 = vpop.xlane.xlu0 %2057
        %v2059 = vsel %vm1941, %v2021, 0.0
        %2060 = vadd.xlane.f32.xlu0 %v2059
        %v2061 = vpop.xlane.xlu0 %2060
        %v2062 = vsel %vm1941, %v2023, 0.0
        %2063 = vadd.xlane.f32.xlu0 %v2062
        %v2064 = vpop.xlane.xlu0 %2063
        %v2065 = vsel %vm1941, %v2025, 0.0
        %2066 = vadd.xlane.f32.xlu0 %v2065
        %v2067 = vpop.xlane.xlu0 %2066
        %v2068 = vsel %vm1941, %v2027, 0.0
        %2069 = vadd.xlane.f32.xlu0 %v2068
        %v2070 = vpop.xlane.xlu0 %2069
        %v2071 = vsel %vm1941, %v2029, 0.0
        %2072 = vadd.xlane.f32.xlu0 %v2071
        %v2073 = vpop.xlane.xlu0 %2072
        %v2074 = vsel %vm1941, %v2031, 0.0
        %2075 = vadd.xlane.f32.xlu0 %v2074
        %v2076 = vpop.xlane.xlu0 %2075
        %v2077 = vsel %vm1941, %v2033, 0.0
        %2078 = vadd.xlane.f32.xlu0 %v2077
        %v2079 = vpop.xlane.xlu0 %2078
        %v2080 = vsel %vm1941, %v2035, 0.0
        %2081 = vadd.xlane.f32.xlu0 %v2080
        %v2082 = vpop.xlane.xlu0 %2081
        %v2083 = vsel %vm1941, %v2037, 0.0
        %2084 = vadd.xlane.f32.xlu0 %v2083
        %v2085 = vpop.xlane.xlu0 %2084
        %v2086 = vpack.c.bf16 %v2009, %v2007
        %v2087 = vpack.c.bf16 %v2013, %v2011
        %v2088 = vpack.c.bf16 %v2017, %v2015
        %v2089 = vpack.c.bf16 %v2021, %v2019
        %v2090 = vpack.c.bf16 %v2025, %v2023
        %v2091 = vpack.c.bf16 %v2029, %v2027
        %v2092 = vpack.c.bf16 %v2033, %v2031
        %v2093 = vpack.c.bf16 %v2037, %v2035
        %v2094 = vld [vmem:[#allocation3] sm:$0xf]
        %v2095 = vld [vmem:[#allocation3 + $0x4] sm:$0xf]
        %v2096 = vld [vmem:[#allocation3 + $0x8] sm:$0xf]
        %v2097 = vld [vmem:[#allocation3 + $0xc] sm:$0xf]
        %v2098 = vld [vmem:[#allocation3 + $0x10] sm:$0xf]
        %v2099 = vld [vmem:[#allocation3 + $0x14] sm:$0xf]
        %v2100 = vld [vmem:[#allocation3 + $0x18] sm:$0xf]
        %v2101 = vld [vmem:[#allocation3 + $0x1c] sm:$0xf]
        %v2102 = vld [vmem:[#allocation3 + $0x20] sm:$0xf]
        %v2103 = vld [vmem:[#allocation3 + $0x24] sm:$0xf]
        %v2104 = vld [vmem:[#allocation3 + $0x28] sm:$0xf]
        %v2105 = vld [vmem:[#allocation3 + $0x2c] sm:$0xf]
        %v2106 = vld [vmem:[#allocation3 + $0x30] sm:$0xf]
        %v2107 = vld [vmem:[#allocation3 + $0x34] sm:$0xf]
        %v2108 = vld [vmem:[#allocation3 + $0x38] sm:$0xf]
        %v2109 = vld [vmem:[#allocation3 + $0x3c] sm:$0xf]
        %v2110 = vld [vmem:[#allocation3 + $0x40] sm:$0xf]
        %v2111 = vld [vmem:[#allocation3 + $0x44] sm:$0xf]
        %v2112 = vld [vmem:[#allocation3 + $0x48] sm:$0xf]
        %v2113 = vld [vmem:[#allocation3 + $0x4c] sm:$0xf]
        %v2114 = vld [vmem:[#allocation3 + $0x50] sm:$0xf]
        %v2115 = vld [vmem:[#allocation3 + $0x54] sm:$0xf]
        %v2116 = vld [vmem:[#allocation3 + $0x58] sm:$0xf]
        %v2117 = vld [vmem:[#allocation3 + $0x5c] sm:$0xf]
        %v2118 = vld [vmem:[#allocation3 + $0x60] sm:$0xf]
        %v2119 = vld [vmem:[#allocation3 + $0x64] sm:$0xf]
        %v2120 = vld [vmem:[#allocation3 + $0x68] sm:$0xf]
        %v2121 = vld [vmem:[#allocation3 + $0x6c] sm:$0xf]
        %v2122 = vld [vmem:[#allocation3 + $0x70] sm:$0xf]
        %v2123 = vld [vmem:[#allocation3 + $0x74] sm:$0xf]
        %v2124 = vld [vmem:[#allocation3 + $0x78] sm:$0xf]
        %v2125 = vld [vmem:[#allocation3 + $0x7c] sm:$0xf]
        %v2134 = vunpack.c.l.b16 %v2094
        %v2135 = vunpack.c.l.b16 %v2095
        %v2136 = vunpack.c.l.b16 %v2096
        %v2137 = vunpack.c.l.b16 %v2097
        %v2138 = vunpack.c.l.b16 %v2098
        %v2139 = vunpack.c.l.b16 %v2099
        %v2140 = vunpack.c.l.b16 %v2100
        %v2141 = vunpack.c.l.b16 %v2101
        %v2142 = vpack.c.b16 %v2135, %v2134
        %v2143 = vpack.c.b16 %v2137, %v2136
        %v2144 = vpack.c.b16 %v2139, %v2138
        %v2145 = vpack.c.b16 %v2141, %v2140
        %v2151 = vsel %vm1941, %v2086, 0
        %v2154 = vsel %vm1941, %v2087, 0
        %2156 = vmatprep.subr.bf16.mxu0 0
        %2157 = vmatpush1.bf16.msra.mxu0 0
        %2158 = vmatprep.subr.bf16.mxu0 0
        %2159 = vmatpush1.bf16.msra.mxu0 0
        %2160 = vmatprep.subr.bf16.mxu0 0
        %2161 = vmatpush1.bf16.msra.mxu0 0
        %2162 = vmatprep.subr.bf16.mxu0 0
        %2163 = vmatpush1.bf16.msra.mxu0 0
        %2164 = vmatprep.subr.bf16.mxu0 0
        %2165 = vmatpush1.bf16.msra.mxu0 %v2145
        %2166 = vmatprep.subr.bf16.mxu0 0
        %2167 = vmatpush1.bf16.msra.mxu0 %v2144
        %2168 = vmatprep.subr.bf16.mxu0 0
        %2169 = vmatpush1.bf16.msra.mxu0 %v2143
        %2170 = vmatprep.subr.bf16.mxu0 0
        %2171 = vmatpush1.bf16.msra.mxu0 %v2142
        %2172 = vmatprep.subr.bf16.mxu0 0
        %2173 = vmatpush2.bf16.msra.mxu0 0
        %2174 = vmatprep.subr.bf16.mxu0 0
        %2175 = vmatpush2.bf16.msra.mxu0 0
        %2176 = vmatprep.subr.bf16.mxu0 0
        %2177 = vmatpush2.bf16.msra.mxu0 0
        %2178 = vmatprep.subr.bf16.mxu0 0
        %2179 = vmatpush2.bf16.msra.mxu0 0
        %2180 = vmatprep.subr.bf16.mxu0 0
        %2181 = vmatpush2.bf16.msra.mxu0 0
        %2182 = vmatprep.subr.bf16.mxu0 0
        %2183 = vmatpush2.bf16.msra.mxu0 0
        %2184 = vmatprep.subr.bf16.mxu0 0
        %2185 = vmatpush2.bf16.msra.mxu0 0
        %2186 = vmatprep.subr.bf16.mxu0 0
        %2187 = vmatpush2.bf16.msra.mxu0 0
        %2188 = vmatprep.mubr.bf16.mxu0 0
        %2189 = vmatmul.mubr.bf16.gmra.mxu0 %v2151
        %v2190 = vpop.f32.mrf.mxu0
        %v2191 = vadd.f32 0.0, %v2190
        %v2192 = vpop.f32.mrf.mxu0
        %v2193 = vpop.f32.mrf.mxu0
        %v2194 = vadd.f32 0.0, %v2193
        %v2195 = vpop.f32.mrf.mxu0
        %2196 = vmatprep.mubr.bf16.mxu0 0
        %2197 = vmatmul.mubr.bf16.gmra.mxu0 %v2154
        %v2198 = vpop.f32.mrf.mxu0
        %v2199 = vadd.f32 0.0, %v2198
        %v2200 = vpop.f32.mrf.mxu0
        %v2201 = vpop.f32.mrf.mxu0
        %v2202 = vadd.f32 0.0, %v2201
        %v2203 = vpop.f32.mrf.mxu0
        %2204 = vdwg.mxu0
        %v2213 = vunpack.c.l.b16 %v2102
        %v2214 = vunpack.c.l.b16 %v2103
        %v2215 = vunpack.c.l.b16 %v2104
        %v2216 = vunpack.c.l.b16 %v2105
        %v2217 = vunpack.c.l.b16 %v2106
        %v2218 = vunpack.c.l.b16 %v2107
        %v2219 = vunpack.c.l.b16 %v2108
        %v2220 = vunpack.c.l.b16 %v2109
        %v2221 = vpack.c.b16 %v2214, %v2213
        %v2222 = vpack.c.b16 %v2216, %v2215
        %v2223 = vpack.c.b16 %v2218, %v2217
        %v2224 = vpack.c.b16 %v2220, %v2219
        %v2230 = vsel %vm1941, %v2088, 0
        %v2233 = vsel %vm1941, %v2089, 0
        %2235 = vmatprep.subr.bf16.mxu0 0
        %2236 = vmatpush1.bf16.msra.mxu0 0
        %2237 = vmatprep.subr.bf16.mxu0 0
        %2238 = vmatpush1.bf16.msra.mxu0 0
        %2239 = vmatprep.subr.bf16.mxu0 0
        %2240 = vmatpush1.bf16.msra.mxu0 0
        %2241 = vmatprep.subr.bf16.mxu0 0
        %2242 = vmatpush1.bf16.msra.mxu0 0
        %2243 = vmatprep.subr.bf16.mxu0 0
        %2244 = vmatpush1.bf16.msra.mxu0 %v2224
        %2245 = vmatprep.subr.bf16.mxu0 0
        %2246 = vmatpush1.bf16.msra.mxu0 %v2223
        %2247 = vmatprep.subr.bf16.mxu0 0
        %2248 = vmatpush1.bf16.msra.mxu0 %v2222
        %2249 = vmatprep.subr.bf16.mxu0 0
        %2250 = vmatpush1.bf16.msra.mxu0 %v2221
        %2251 = vmatprep.subr.bf16.mxu0 0
        %2252 = vmatpush2.bf16.msra.mxu0 0
        %2253 = vmatprep.subr.bf16.mxu0 0
        %2254 = vmatpush2.bf16.msra.mxu0 0
        %2255 = vmatprep.subr.bf16.mxu0 0
        %2256 = vmatpush2.bf16.msra.mxu0 0
        %2257 = vmatprep.subr.bf16.mxu0 0
        %2258 = vmatpush2.bf16.msra.mxu0 0
        %2259 = vmatprep.subr.bf16.mxu0 0
        %2260 = vmatpush2.bf16.msra.mxu0 0
        %2261 = vmatprep.subr.bf16.mxu0 0
        %2262 = vmatpush2.bf16.msra.mxu0 0
        %2263 = vmatprep.subr.bf16.mxu0 0
        %2264 = vmatpush2.bf16.msra.mxu0 0
        %2265 = vmatprep.subr.bf16.mxu0 0
        %2266 = vmatpush2.bf16.msra.mxu0 0
        %2267 = vmatprep.mubr.bf16.mxu0 0
        %2268 = vmatmul.mubr.bf16.gmra.mxu0 %v2230
        %v2269 = vpop.f32.mrf.mxu0
        %v2270 = vadd.f32 0.0, %v2269
        %v2271 = vpop.f32.mrf.mxu0
        %v2272 = vpop.f32.mrf.mxu0
        %v2273 = vadd.f32 0.0, %v2272
        %v2274 = vpop.f32.mrf.mxu0
        %2275 = vmatprep.mubr.bf16.mxu0 0
        %2276 = vmatmul.mubr.bf16.gmra.mxu0 %v2233
        %v2277 = vpop.f32.mrf.mxu0
        %v2278 = vadd.f32 0.0, %v2277
        %v2279 = vpop.f32.mrf.mxu0
        %v2280 = vpop.f32.mrf.mxu0
        %v2281 = vadd.f32 0.0, %v2280
        %v2282 = vpop.f32.mrf.mxu0
        %2283 = vdwg.mxu0
        %v2292 = vunpack.c.l.b16 %v2110
        %v2293 = vunpack.c.l.b16 %v2111
        %v2294 = vunpack.c.l.b16 %v2112
        %v2295 = vunpack.c.l.b16 %v2113
        %v2296 = vunpack.c.l.b16 %v2114
        %v2297 = vunpack.c.l.b16 %v2115
        %v2298 = vunpack.c.l.b16 %v2116
        %v2299 = vunpack.c.l.b16 %v2117
        %v2300 = vpack.c.b16 %v2293, %v2292
        %v2301 = vpack.c.b16 %v2295, %v2294
        %v2302 = vpack.c.b16 %v2297, %v2296
        %v2303 = vpack.c.b16 %v2299, %v2298
        %v2309 = vsel %vm1941, %v2090, 0
        %v2312 = vsel %vm1941, %v2091, 0
        %2314 = vmatprep.subr.bf16.mxu0 0
        %2315 = vmatpush1.bf16.msra.mxu0 0
        %2316 = vmatprep.subr.bf16.mxu0 0
        %2317 = vmatpush1.bf16.msra.mxu0 0
        %2318 = vmatprep.subr.bf16.mxu0 0
        %2319 = vmatpush1.bf16.msra.mxu0 0
        %2320 = vmatprep.subr.bf16.mxu0 0
        %2321 = vmatpush1.bf16.msra.mxu0 0
        %2322 = vmatprep.subr.bf16.mxu0 0
        %2323 = vmatpush1.bf16.msra.mxu0 %v2303
        %2324 = vmatprep.subr.bf16.mxu0 0
        %2325 = vmatpush1.bf16.msra.mxu0 %v2302
        %2326 = vmatprep.subr.bf16.mxu0 0
        %2327 = vmatpush1.bf16.msra.mxu0 %v2301
        %2328 = vmatprep.subr.bf16.mxu0 0
        %2329 = vmatpush1.bf16.msra.mxu0 %v2300
        %2330 = vmatprep.subr.bf16.mxu0 0
        %2331 = vmatpush2.bf16.msra.mxu0 0
        %2332 = vmatprep.subr.bf16.mxu0 0
        %2333 = vmatpush2.bf16.msra.mxu0 0
        %2334 = vmatprep.subr.bf16.mxu0 0
        %2335 = vmatpush2.bf16.msra.mxu0 0
        %2336 = vmatprep.subr.bf16.mxu0 0
        %2337 = vmatpush2.bf16.msra.mxu0 0
        %2338 = vmatprep.subr.bf16.mxu0 0
        %2339 = vmatpush2.bf16.msra.mxu0 0
        %2340 = vmatprep.subr.bf16.mxu0 0
        %2341 = vmatpush2.bf16.msra.mxu0 0
        %2342 = vmatprep.subr.bf16.mxu0 0
        %2343 = vmatpush2.bf16.msra.mxu0 0
        %2344 = vmatprep.subr.bf16.mxu0 0
        %2345 = vmatpush2.bf16.msra.mxu0 0
        %2346 = vmatprep.mubr.bf16.mxu0 0
        %2347 = vmatmul.mubr.bf16.gmra.mxu0 %v2309
        %v2348 = vpop.f32.mrf.mxu0
        %v2349 = vadd.f32 0.0, %v2348
        %v2350 = vpop.f32.mrf.mxu0
        %v2351 = vpop.f32.mrf.mxu0
        %v2352 = vadd.f32 0.0, %v2351
        %v2353 = vpop.f32.mrf.mxu0
        %2354 = vmatprep.mubr.bf16.mxu0 0
        %2355 = vmatmul.mubr.bf16.gmra.mxu0 %v2312
        %v2356 = vpop.f32.mrf.mxu0
        %v2357 = vadd.f32 0.0, %v2356
        %v2358 = vpop.f32.mrf.mxu0
        %v2359 = vpop.f32.mrf.mxu0
        %v2360 = vadd.f32 0.0, %v2359
        %v2361 = vpop.f32.mrf.mxu0
        %2362 = vdwg.mxu0
        %v2371 = vunpack.c.l.b16 %v2118
        %v2372 = vunpack.c.l.b16 %v2119
        %v2373 = vunpack.c.l.b16 %v2120
        %v2374 = vunpack.c.l.b16 %v2121
        %v2375 = vunpack.c.l.b16 %v2122
        %v2376 = vunpack.c.l.b16 %v2123
        %v2377 = vunpack.c.l.b16 %v2124
        %v2378 = vunpack.c.l.b16 %v2125
        %v2379 = vpack.c.b16 %v2372, %v2371
        %v2380 = vpack.c.b16 %v2374, %v2373
        %v2381 = vpack.c.b16 %v2376, %v2375
        %v2382 = vpack.c.b16 %v2378, %v2377
        %v2388 = vsel %vm1941, %v2092, 0
        %v2391 = vsel %vm1941, %v2093, 0
        %2393 = vmatprep.subr.bf16.mxu0 0
        %2394 = vmatpush1.bf16.msra.mxu0 0
        %2395 = vmatprep.subr.bf16.mxu0 0
        %2396 = vmatpush1.bf16.msra.mxu0 0
        %2397 = vmatprep.subr.bf16.mxu0 0
        %2398 = vmatpush1.bf16.msra.mxu0 0
        %2399 = vmatprep.subr.bf16.mxu0 0
        %2400 = vmatpush1.bf16.msra.mxu0 0
        %2401 = vmatprep.subr.bf16.mxu0 0
        %2402 = vmatpush1.bf16.msra.mxu0 %v2382
        %2403 = vmatprep.subr.bf16.mxu0 0
        %2404 = vmatpush1.bf16.msra.mxu0 %v2381
        %2405 = vmatprep.subr.bf16.mxu0 0
        %2406 = vmatpush1.bf16.msra.mxu0 %v2380
        %2407 = vmatprep.subr.bf16.mxu0 0
        %2408 = vmatpush1.bf16.msra.mxu0 %v2379
        %2409 = vmatprep.subr.bf16.mxu0 0
        %2410 = vmatpush2.bf16.msra.mxu0 0
        %2411 = vmatprep.subr.bf16.mxu0 0
        %2412 = vmatpush2.bf16.msra.mxu0 0
        %2413 = vmatprep.subr.bf16.mxu0 0
        %2414 = vmatpush2.bf16.msra.mxu0 0
        %2415 = vmatprep.subr.bf16.mxu0 0
        %2416 = vmatpush2.bf16.msra.mxu0 0
        %2417 = vmatprep.subr.bf16.mxu0 0
        %2418 = vmatpush2.bf16.msra.mxu0 0
        %2419 = vmatprep.subr.bf16.mxu0 0
        %2420 = vmatpush2.bf16.msra.mxu0 0
        %2421 = vmatprep.subr.bf16.mxu0 0
        %2422 = vmatpush2.bf16.msra.mxu0 0
        %2423 = vmatprep.subr.bf16.mxu0 0
        %2424 = vmatpush2.bf16.msra.mxu0 0
        %2425 = vmatprep.mubr.bf16.mxu0 0
        %2426 = vmatmul.mubr.bf16.gmra.mxu0 %v2388
        %v2427 = vpop.f32.mrf.mxu0
        %v2428 = vadd.f32 0.0, %v2427
        %v2429 = vpop.f32.mrf.mxu0
        %v2430 = vpop.f32.mrf.mxu0
        %v2431 = vadd.f32 0.0, %v2430
        %v2432 = vpop.f32.mrf.mxu0
        %2433 = vmatprep.mubr.bf16.mxu0 0
        %2434 = vmatmul.mubr.bf16.gmra.mxu0 %v2391
        %v2435 = vpop.f32.mrf.mxu0
        %v2436 = vadd.f32 0.0, %v2435
        %v2437 = vpop.f32.mrf.mxu0
        %v2438 = vpop.f32.mrf.mxu0
        %v2439 = vadd.f32 0.0, %v2438
        %v2440 = vpop.f32.mrf.mxu0
        %2441 = vdwg.mxu0
        %v2442 = vrcp.pop %v2040
        %v2443 = vrcp.pop %v2043
        %v2444 = vrcp.pop %v2046
        %v2445 = vrcp.pop %v2049
        %v2446 = vrcp.pop %v2052
        %v2447 = vrcp.pop %v2055
        %v2448 = vrcp.pop %v2058
        %v2449 = vrcp.pop %v2061
        %v2450 = vrcp.pop %v2064
        %v2451 = vrcp.pop %v2067
        %v2452 = vrcp.pop %v2070
        %v2453 = vrcp.pop %v2073
        %v2454 = vrcp.pop %v2076
        %v2455 = vrcp.pop %v2079
        %v2456 = vrcp.pop %v2082
        %v2457 = vrcp.pop %v2085
        %v2458 = vmul.f32 %v2191, %v2442
        %v2459 = vmul.f32 %v2194, %v2443
        %v2460 = vmul.f32 %v2199, %v2444
        %v2461 = vmul.f32 %v2202, %v2445
        %v2462 = vmul.f32 %v2270, %v2446
        %v2463 = vmul.f32 %v2273, %v2447
        %v2464 = vmul.f32 %v2278, %v2448
        %v2465 = vmul.f32 %v2281, %v2449
        %v2466 = vmul.f32 %v2349, %v2450
        %v2467 = vmul.f32 %v2352, %v2451
        %v2468 = vmul.f32 %v2357, %v2452
        %v2469 = vmul.f32 %v2360, %v2453
        %v2470 = vmul.f32 %v2428, %v2454
        %v2471 = vmul.f32 %v2431, %v2455
        %v2472 = vmul.f32 %v2436, %v2456
        %v2473 = vmul.f32 %v2439, %v2457
        %2478 = vrot.lane.b32.xlu0 %v2462, 32
        %v2479 = vpop.permute.xlu0 %2478
        %2480 = vrot.lane.b32.xlu0 %v2463, 32
        %v2481 = vpop.permute.xlu0 %2480
        %2482 = vrot.lane.b32.xlu0 %v2464, 32
        %v2483 = vpop.permute.xlu0 %2482
        %2484 = vrot.lane.b32.xlu0 %v2465, 32
        %v2485 = vpop.permute.xlu0 %2484
        %2494 = vrot.lane.b32.xlu0 %v2466, 64
        %v2495 = vpop.permute.xlu0 %2494
        %2496 = vrot.lane.b32.xlu0 %v2467, 64
        %v2497 = vpop.permute.xlu0 %2496
        %2498 = vrot.lane.b32.xlu0 %v2468, 64
        %v2499 = vpop.permute.xlu0 %2498
        %2500 = vrot.lane.b32.xlu0 %v2469, 64
        %v2501 = vpop.permute.xlu0 %2500
        %2510 = vrot.lane.b32.xlu0 %v2470, 96
        %v2511 = vpop.permute.xlu0 %2510
        %2512 = vrot.lane.b32.xlu0 %v2471, 96
        %v2513 = vpop.permute.xlu0 %2512
        %2514 = vrot.lane.b32.xlu0 %v2472, 96
        %v2515 = vpop.permute.xlu0 %2514
        %2516 = vrot.lane.b32.xlu0 %v2473, 96
        %v2517 = vpop.permute.xlu0 %2516
        %v2522 = vsel %vm1612, %v2458, %v2479
        %v2523 = vsel %vm1612, %v2459, %v2481
        %v2524 = vsel %vm1612, %v2460, %v2483
        %v2525 = vsel %vm1612, %v2461, %v2485
        %v2526 = vsel %vm1941, %v2522, %v2495
        %v2527 = vsel %vm1941, %v2523, %v2497
        %v2528 = vsel %vm1941, %v2524, %v2499
        %v2529 = vsel %vm1941, %v2525, %v2501
        %vm2530 = vcmask 785408
        %v2531 = vsel %vm2530, %v2526, %v2511
        %v2532 = vsel %vm2530, %v2527, %v2513
        %v2533 = vsel %vm2530, %v2528, %v2515
        %v2534 = vsel %vm2530, %v2529, %v2517
        %v2535 = vpack.c.bf16 %v2532, %v2531
        %v2536 = vpack.c.bf16 %v2534, %v2533
        %v2537 = vld [vmem:[#allocation15] sm:$0xf]
        %v2538 = vld [vmem:[#allocation15 + $0x4] sm:$0xf]
        %v2539 = vld [vmem:[#allocation15 + $0x8] sm:$0xf]
        %v2540 = vld [vmem:[#allocation15 + $0xc] sm:$0xf]
        %v2541 = vld [vmem:[#allocation15 + $0x10] sm:$0xf]
        %v2542 = vld [vmem:[#allocation15 + $0x14] sm:$0xf]
        %v2543 = vld [vmem:[#allocation15 + $0x18] sm:$0xf]
        %v2544 = vld [vmem:[#allocation15 + $0x1c] sm:$0xf]
        %v2545 = vld [vmem:[#allocation15 + $0x20] sm:$0xf]
        %v2546 = vld [vmem:[#allocation15 + $0x24] sm:$0xf]
        %v2547 = vld [vmem:[#allocation15 + $0x28] sm:$0xf]
        %v2548 = vld [vmem:[#allocation15 + $0x2c] sm:$0xf]
        %v2549 = vld [vmem:[#allocation15 + $0x30] sm:$0xf]
        %v2550 = vld [vmem:[#allocation15 + $0x34] sm:$0xf]
        %v2551 = vld [vmem:[#allocation15 + $0x38] sm:$0xf]
        %v2552 = vld [vmem:[#allocation15 + $0x3c] sm:$0xf]
        %v2553 = vld [vmem:[%s10] sm:$0x1]
        %v2555 = vlaneseq
        %v2556 = vshrl.u32 %v2555, 7
        %v2557 = vsub.s32 0, %v2556
        %v2558 = vrot.slane %v2553, %v2557
        %v2576 = vunpack.c.l.b16 %v2537
        %v2577 = vunpack.c.l.b16 %v2538
        %v2578 = vunpack.c.l.b16 %v2539
        %v2579 = vunpack.c.l.b16 %v2540
        %v2580 = vunpack.c.l.b16 %v2541
        %v2581 = vunpack.c.l.b16 %v2542
        %v2582 = vunpack.c.l.b16 %v2543
        %v2583 = vunpack.c.l.b16 %v2544
        %v2584 = vunpack.c.l.b16 %v2545
        %v2585 = vunpack.c.l.b16 %v2546
        %v2586 = vunpack.c.l.b16 %v2547
        %v2587 = vunpack.c.l.b16 %v2548
        %v2588 = vunpack.c.l.b16 %v2549
        %v2589 = vunpack.c.l.b16 %v2550
        %v2590 = vunpack.c.l.b16 %v2551
        %v2591 = vunpack.c.l.b16 %v2552
        %v2592 = vpack.c.b16 %v2577, %v2576
        %v2593 = vpack.c.b16 %v2579, %v2578
        %v2594 = vpack.c.b16 %v2581, %v2580
        %v2595 = vpack.c.b16 %v2583, %v2582
        %v2596 = vpack.c.b16 %v2585, %v2584
        %v2597 = vpack.c.b16 %v2587, %v2586
        %v2598 = vpack.c.b16 %v2589, %v2588
        %v2599 = vpack.c.b16 %v2591, %v2590
        %2608 = vmatprep.subr.bf16.mxu0 0
        %2609 = vmatpush1.bf16.msra.mxu0 %v2599
        %2610 = vmatprep.subr.bf16.mxu0 0
        %2611 = vmatpush1.bf16.msra.mxu0 %v2598
        %2612 = vmatprep.subr.bf16.mxu0 0
        %2613 = vmatpush1.bf16.msra.mxu0 %v2597
        %2614 = vmatprep.subr.bf16.mxu0 0
        %2615 = vmatpush1.bf16.msra.mxu0 %v2596
        %2616 = vmatprep.subr.bf16.mxu0 0
        %2617 = vmatpush1.bf16.msra.mxu0 %v2595
        %2618 = vmatprep.subr.bf16.mxu0 0
        %2619 = vmatpush1.bf16.msra.mxu0 %v2594
        %2620 = vmatprep.subr.bf16.mxu0 0
        %2621 = vmatpush1.bf16.msra.mxu0 %v2593
        %2622 = vmatprep.subr.bf16.mxu0 0
        %2623 = vmatpush1.bf16.msra.mxu0 %v2592
        %2624 = vmatprep.subr.bf16.mxu0 0
        %2625 = vmatpush2.bf16.msra.mxu0 0
        %2626 = vmatprep.subr.bf16.mxu0 0
        %2627 = vmatpush2.bf16.msra.mxu0 0
        %2628 = vmatprep.subr.bf16.mxu0 0
        %2629 = vmatpush2.bf16.msra.mxu0 0
        %2630 = vmatprep.subr.bf16.mxu0 0
        %2631 = vmatpush2.bf16.msra.mxu0 0
        %2632 = vmatprep.subr.bf16.mxu0 0
        %2633 = vmatpush2.bf16.msra.mxu0 0
        %2634 = vmatprep.subr.bf16.mxu0 0
        %2635 = vmatpush2.bf16.msra.mxu0 0
        %2636 = vmatprep.subr.bf16.mxu0 0
        %2637 = vmatpush2.bf16.msra.mxu0 0
        %2638 = vmatprep.subr.bf16.mxu0 0
        %2639 = vmatpush2.bf16.msra.mxu0 0
        %2640 = vmatprep.mubr.bf16.mxu0 0
        %2641 = vmatmul.mubr.bf16.gmra.mxu0 %v2535
        %v2642 = vpop.f32.mrf.mxu0
        %v2643 = vadd.f32 %v2558, %v2642
        %v2644 = vpop.f32.mrf.mxu0
        %v2645 = vpop.f32.mrf.mxu0
        %v2646 = vadd.f32 %v2558, %v2645
        %v2647 = vpop.f32.mrf.mxu0
        %2648 = vmatprep.mubr.bf16.mxu0 0
        %2649 = vmatmul.mubr.bf16.gmra.mxu0 %v2536
        %v2650 = vpop.f32.mrf.mxu0
        %v2651 = vadd.f32 %v2558, %v2650
        %v2652 = vpop.f32.mrf.mxu0
        %v2653 = vpop.f32.mrf.mxu0
        %v2654 = vadd.f32 %v2558, %v2653
        %v2655 = vpop.f32.mrf.mxu0
        %2656 = vdwg.mxu0
        %v2657 = vadd.f32 %v811, %v2643
        %v2658 = vadd.f32 %v812, %v2646
        %v2659 = vadd.f32 %v813, %v2651
        %v2660 = vadd.f32 %v814, %v2654
        %2661 = vadd.xlane.f32.xlu0 %v2657
        %v2662 = vpop.xlane.xlu0 %2661
        %2663 = vadd.xlane.f32.xlu0 %v2658
        %v2664 = vpop.xlane.xlu0 %2663
        %2665 = vadd.xlane.f32.xlu0 %v2659
        %v2666 = vpop.xlane.xlu0 %2665
        %2667 = vadd.xlane.f32.xlu0 %v2660
        %v2668 = vpop.xlane.xlu0 %2667
        %v2669 = vrcp.pop 128.0
        %v2670 = vmul.f32 %v2662, %v2669
        %v2671 = vmul.f32 %v2664, %v2669
        %v2672 = vmul.f32 %v2666, %v2669
        %v2673 = vmul.f32 %v2668, %v2669
        %v2674 = vmul.f32 %v2657, %v2657
        %v2675 = vmul.f32 %v2658, %v2658
        %v2676 = vmul.f32 %v2659, %v2659
        %v2677 = vmul.f32 %v2660, %v2660
        %2678 = vadd.xlane.f32.xlu0 %v2674
        %v2679 = vpop.xlane.xlu0 %2678
        %2680 = vadd.xlane.f32.xlu0 %v2675
        %v2681 = vpop.xlane.xlu0 %2680
        %2682 = vadd.xlane.f32.xlu0 %v2676
        %v2683 = vpop.xlane.xlu0 %2682
        %2684 = vadd.xlane.f32.xlu0 %v2677
        %v2685 = vpop.xlane.xlu0 %2684
        %v2686 = vmul.f32 %v2679, %v2669
        %v2687 = vmul.f32 %v2681, %v2669
        %v2688 = vmul.f32 %v2683, %v2669
        %v2689 = vmul.f32 %v2685, %v2669
        %v2690 = vsub.f32 %v2657, %v2670
        %v2691 = vsub.f32 %v2658, %v2671
        %v2692 = vsub.f32 %v2659, %v2672
        %v2693 = vsub.f32 %v2660, %v2673
        %v2694 = vmul.f32 %v2670, %v2670
        %v2695 = vmul.f32 %v2671, %v2671
        %v2696 = vmul.f32 %v2672, %v2672
        %v2697 = vmul.f32 %v2673, %v2673
        %v2698 = vsub.f32 %v2686, %v2694
        %v2699 = vsub.f32 %v2687, %v2695
        %v2700 = vsub.f32 %v2688, %v2696
        %v2701 = vsub.f32 %v2689, %v2697
        %v2702 = vadd.f32 %v2698, 1e-06
        %v2703 = vadd.f32 %v2699, 1e-06
        %v2704 = vadd.f32 %v2700, 1e-06
        %v2705 = vadd.f32 %v2701, 1e-06
        %v2706 = vrsqrt.pop %v2702
        %v2707 = vrsqrt.pop %v2703
        %v2708 = vrsqrt.pop %v2704
        %v2709 = vrsqrt.pop %v2705
        %v2710 = vmul.f32 %v2690, %v2706
        %v2711 = vmul.f32 %v2691, %v2707
        %v2712 = vmul.f32 %v2692, %v2708
        %v2713 = vmul.f32 %v2693, %v2709
        %v2714 = vld [vmem:[%s11] sm:$0x1]
        %v2716 = vlaneseq
        %v2717 = vshrl.u32 %v2716, 7
        %v2718 = vsub.s32 0, %v2717
        %v2719 = vrot.slane %v2714, %v2718
        %v2721 = vmul.f32 %v2710, %v2719
        %v2722 = vmul.f32 %v2711, %v2719
        %v2723 = vmul.f32 %v2712, %v2719
        %v2724 = vmul.f32 %v2713, %v2719
        %v2725 = vld [vmem:[%s12] sm:$0x1]
        %v2727 = vlaneseq
        %v2728 = vshrl.u32 %v2727, 7
        %v2729 = vsub.s32 0, %v2728
        %v2730 = vrot.slane %v2725, %v2729
        %v2732 = vadd.f32 %v2721, %v2730
        %v2733 = vadd.f32 %v2722, %v2730
        %v2734 = vadd.f32 %v2723, %v2730
        %v2735 = vadd.f32 %v2724, %v2730
        %v2736 = vpack.c.bf16 %v2733, %v2732
        %v2737 = vpack.c.bf16 %v2735, %v2734
        %v2738 = vld [vmem:[#allocation16] sm:$0xff]
        %v2739 = vld [vmem:[#allocation16 + $0x8] sm:$0xff]
        %v2740 = vld [vmem:[#allocation16 + $0x10] sm:$0xff]
        %v2741 = vld [vmem:[#allocation16 + $0x18] sm:$0xff]
        %v2742 = vld [vmem:[#allocation16 + $0x20] sm:$0xff]
        %v2743 = vld [vmem:[#allocation16 + $0x28] sm:$0xff]
        %v2744 = vld [vmem:[#allocation16 + $0x30] sm:$0xff]
        %v2745 = vld [vmem:[#allocation16 + $0x38] sm:$0xff]
        %v2746 = vld [vmem:[#allocation16 + $0x40] sm:$0xff]
        %v2747 = vld [vmem:[#allocation16 + $0x48] sm:$0xff]
        %v2748 = vld [vmem:[#allocation16 + $0x50] sm:$0xff]
        %v2749 = vld [vmem:[#allocation16 + $0x58] sm:$0xff]
        %v2750 = vld [vmem:[#allocation16 + $0x60] sm:$0xff]
        %v2751 = vld [vmem:[#allocation16 + $0x68] sm:$0xff]
        %v2752 = vld [vmem:[#allocation16 + $0x70] sm:$0xff]
        %v2753 = vld [vmem:[#allocation16 + $0x78] sm:$0xff]
        %v2754 = vld [vmem:[%s14] sm:$0x3]
        %v2756 = vlaneseq
        %v2757 = vshrl.u32 %v2756, 7
        %v2758 = vsub.s32 0, %v2757
        %v2759 = vrot.slane %v2754, %v2758
        %v2760 = vlaneseq
        %v2761 = vshrl.u32 %v2760, 7
        %v2762 = vsub.s32 1, %v2761
        %v2763 = vrot.slane %v2754, %v2762
        %v2782 = vunpack.c.l.b16 %v2738
        %v2783 = vunpack.c.h.b16 %v2738
        %v2784 = vunpack.c.l.b16 %v2739
        %v2785 = vunpack.c.h.b16 %v2739
        %v2786 = vunpack.c.l.b16 %v2740
        %v2787 = vunpack.c.h.b16 %v2740
        %v2788 = vunpack.c.l.b16 %v2741
        %v2789 = vunpack.c.h.b16 %v2741
        %v2790 = vunpack.c.l.b16 %v2742
        %v2791 = vunpack.c.h.b16 %v2742
        %v2792 = vunpack.c.l.b16 %v2743
        %v2793 = vunpack.c.h.b16 %v2743
        %v2794 = vunpack.c.l.b16 %v2744
        %v2795 = vunpack.c.h.b16 %v2744
        %v2796 = vunpack.c.l.b16 %v2745
        %v2797 = vunpack.c.h.b16 %v2745
        %v2798 = vunpack.c.l.b16 %v2746
        %v2799 = vunpack.c.h.b16 %v2746
        %v2800 = vunpack.c.l.b16 %v2747
        %v2801 = vunpack.c.h.b16 %v2747
        %v2802 = vunpack.c.l.b16 %v2748
        %v2803 = vunpack.c.h.b16 %v2748
        %v2804 = vunpack.c.l.b16 %v2749
        %v2805 = vunpack.c.h.b16 %v2749
        %v2806 = vunpack.c.l.b16 %v2750
        %v2807 = vunpack.c.h.b16 %v2750
        %v2808 = vunpack.c.l.b16 %v2751
        %v2809 = vunpack.c.h.b16 %v2751
        %v2810 = vunpack.c.l.b16 %v2752
        %v2811 = vunpack.c.h.b16 %v2752
        %v2812 = vunpack.c.l.b16 %v2753
        %v2813 = vunpack.c.h.b16 %v2753
        %v2814 = vpack.c.b16 %v2784, %v2782
        %v2815 = vpack.c.b16 %v2785, %v2783
        %v2816 = vpack.c.b16 %v2788, %v2786
        %v2817 = vpack.c.b16 %v2789, %v2787
        %v2818 = vpack.c.b16 %v2792, %v2790
        %v2819 = vpack.c.b16 %v2793, %v2791
        %v2820 = vpack.c.b16 %v2796, %v2794
        %v2821 = vpack.c.b16 %v2797, %v2795
        %v2822 = vpack.c.b16 %v2800, %v2798
        %v2823 = vpack.c.b16 %v2801, %v2799
        %v2824 = vpack.c.b16 %v2804, %v2802
        %v2825 = vpack.c.b16 %v2805, %v2803
        %v2826 = vpack.c.b16 %v2808, %v2806
        %v2827 = vpack.c.b16 %v2809, %v2807
        %v2828 = vpack.c.b16 %v2812, %v2810
        %v2829 = vpack.c.b16 %v2813, %v2811
        %2846 = vmatprep.subr.bf16.mxu0 %v2829
        %2847 = vmatpush1.bf16.msra.mxu0 %v2828
        %2848 = vmatprep.subr.bf16.mxu0 %v2827
        %2849 = vmatpush1.bf16.msra.mxu0 %v2826
        %2850 = vmatprep.subr.bf16.mxu0 %v2825
        %2851 = vmatpush1.bf16.msra.mxu0 %v2824
        %2852 = vmatprep.subr.bf16.mxu0 %v2823
        %2853 = vmatpush1.bf16.msra.mxu0 %v2822
        %2854 = vmatprep.subr.bf16.mxu0 %v2821
        %2855 = vmatpush1.bf16.msra.mxu0 %v2820
        %2856 = vmatprep.subr.bf16.mxu0 %v2819
        %2857 = vmatpush1.bf16.msra.mxu0 %v2818
        %2858 = vmatprep.subr.bf16.mxu0 %v2817
        %2859 = vmatpush1.bf16.msra.mxu0 %v2816
        %2860 = vmatprep.subr.bf16.mxu0 %v2815
        %2861 = vmatpush1.bf16.msra.mxu0 %v2814
        %2862 = vmatprep.subr.bf16.mxu0 0
        %2863 = vmatpush2.bf16.msra.mxu0 0
        %2864 = vmatprep.subr.bf16.mxu0 0
        %2865 = vmatpush2.bf16.msra.mxu0 0
        %2866 = vmatprep.subr.bf16.mxu0 0
        %2867 = vmatpush2.bf16.msra.mxu0 0
        %2868 = vmatprep.subr.bf16.mxu0 0
        %2869 = vmatpush2.bf16.msra.mxu0 0
        %2870 = vmatprep.subr.bf16.mxu0 0
        %2871 = vmatpush2.bf16.msra.mxu0 0
        %2872 = vmatprep.subr.bf16.mxu0 0
        %2873 = vmatpush2.bf16.msra.mxu0 0
        %2874 = vmatprep.subr.bf16.mxu0 0
        %2875 = vmatpush2.bf16.msra.mxu0 0
        %2876 = vmatprep.subr.bf16.mxu0 0
        %2877 = vmatpush2.bf16.msra.mxu0 0
        %2878 = vmatprep.mubr.bf16.mxu0 0
        %2879 = vmatmul.mubr.bf16.gmra.mxu0 %v2736
        %v2880 = vpop.f32.mrf.mxu0
        %v2881 = vadd.f32 %v2759, %v2880
        %v2882 = vpop.f32.mrf.mxu0
        %v2883 = vadd.f32 %v2763, %v2882
        %v2884 = vpop.f32.mrf.mxu0
        %v2885 = vadd.f32 %v2759, %v2884
        %v2886 = vpop.f32.mrf.mxu0
        %v2887 = vadd.f32 %v2763, %v2886
        %2888 = vmatprep.mubr.bf16.mxu0 0
        %2889 = vmatmul.mubr.bf16.gmra.mxu0 %v2737
        %v2890 = vpop.f32.mrf.mxu0
        %v2891 = vadd.f32 %v2759, %v2890
        %v2892 = vpop.f32.mrf.mxu0
        %v2893 = vadd.f32 %v2763, %v2892
        %v2894 = vpop.f32.mrf.mxu0
        %v2895 = vadd.f32 %v2759, %v2894
        %v2896 = vpop.f32.mrf.mxu0
        %v2897 = vadd.f32 %v2763, %v2896
        %2898 = vdwg.mxu0
        %v2899 = vmax.f32 %v2881, 0.0
        %v2900 = vmax.f32 %v2883, 0.0
        %v2901 = vmax.f32 %v2885, 0.0
        %v2902 = vmax.f32 %v2887, 0.0
        %v2903 = vmax.f32 %v2891, 0.0
        %v2904 = vmax.f32 %v2893, 0.0
        %v2905 = vmax.f32 %v2895, 0.0
        %v2906 = vmax.f32 %v2897, 0.0
        %v2907 = vpack.c.bf16 %v2901, %v2899
        %v2908 = vpack.c.bf16 %v2902, %v2900
        %v2909 = vpack.c.bf16 %v2905, %v2903
        %v2910 = vpack.c.bf16 %v2906, %v2904
        %v2911 = vld [vmem:[#allocation18] sm:$0xf]
        %v2912 = vld [vmem:[#allocation18 + $0x4] sm:$0xf]
        %v2913 = vld [vmem:[#allocation18 + $0x8] sm:$0xf]
        %v2914 = vld [vmem:[#allocation18 + $0xc] sm:$0xf]
        %v2915 = vld [vmem:[#allocation18 + $0x10] sm:$0xf]
        %v2916 = vld [vmem:[#allocation18 + $0x14] sm:$0xf]
        %v2917 = vld [vmem:[#allocation18 + $0x18] sm:$0xf]
        %v2918 = vld [vmem:[#allocation18 + $0x1c] sm:$0xf]
        %v2919 = vld [vmem:[#allocation18 + $0x20] sm:$0xf]
        %v2920 = vld [vmem:[#allocation18 + $0x24] sm:$0xf]
        %v2921 = vld [vmem:[#allocation18 + $0x28] sm:$0xf]
        %v2922 = vld [vmem:[#allocation18 + $0x2c] sm:$0xf]
        %v2923 = vld [vmem:[#allocation18 + $0x30] sm:$0xf]
        %v2924 = vld [vmem:[#allocation18 + $0x34] sm:$0xf]
        %v2925 = vld [vmem:[#allocation18 + $0x38] sm:$0xf]
        %v2926 = vld [vmem:[#allocation18 + $0x3c] sm:$0xf]
        %v2927 = vld [vmem:[#allocation18 + $0x40] sm:$0xf]
        %v2928 = vld [vmem:[#allocation18 + $0x44] sm:$0xf]
        %v2929 = vld [vmem:[#allocation18 + $0x48] sm:$0xf]
        %v2930 = vld [vmem:[#allocation18 + $0x4c] sm:$0xf]
        %v2931 = vld [vmem:[#allocation18 + $0x50] sm:$0xf]
        %v2932 = vld [vmem:[#allocation18 + $0x54] sm:$0xf]
        %v2933 = vld [vmem:[#allocation18 + $0x58] sm:$0xf]
        %v2934 = vld [vmem:[#allocation18 + $0x5c] sm:$0xf]
        %v2935 = vld [vmem:[#allocation18 + $0x60] sm:$0xf]
        %v2936 = vld [vmem:[#allocation18 + $0x64] sm:$0xf]
        %v2937 = vld [vmem:[#allocation18 + $0x68] sm:$0xf]
        %v2938 = vld [vmem:[#allocation18 + $0x6c] sm:$0xf]
        %v2939 = vld [vmem:[#allocation18 + $0x70] sm:$0xf]
        %v2940 = vld [vmem:[#allocation18 + $0x74] sm:$0xf]
        %v2941 = vld [vmem:[#allocation18 + $0x78] sm:$0xf]
        %v2942 = vld [vmem:[#allocation18 + $0x7c] sm:$0xf]
        %v2943 = vld [vmem:[%s16] sm:$0x1]
        %v2945 = vlaneseq
        %v2946 = vshrl.u32 %v2945, 7
        %v2947 = vsub.s32 0, %v2946
        %v2948 = vrot.slane %v2943, %v2947
        %v2982 = vunpack.c.l.b16 %v2911
        %v2983 = vunpack.c.l.b16 %v2912
        %v2984 = vunpack.c.l.b16 %v2913
        %v2985 = vunpack.c.l.b16 %v2914
        %v2986 = vunpack.c.l.b16 %v2915
        %v2987 = vunpack.c.l.b16 %v2916
        %v2988 = vunpack.c.l.b16 %v2917
        %v2989 = vunpack.c.l.b16 %v2918
        %v2990 = vunpack.c.l.b16 %v2919
        %v2991 = vunpack.c.l.b16 %v2920
        %v2992 = vunpack.c.l.b16 %v2921
        %v2993 = vunpack.c.l.b16 %v2922
        %v2994 = vunpack.c.l.b16 %v2923
        %v2995 = vunpack.c.l.b16 %v2924
        %v2996 = vunpack.c.l.b16 %v2925
        %v2997 = vunpack.c.l.b16 %v2926
        %v2998 = vunpack.c.l.b16 %v2927
        %v2999 = vunpack.c.l.b16 %v2928
        %v3000 = vunpack.c.l.b16 %v2929
        %v3001 = vunpack.c.l.b16 %v2930
        %v3002 = vunpack.c.l.b16 %v2931
        %v3003 = vunpack.c.l.b16 %v2932
        %v3004 = vunpack.c.l.b16 %v2933
        %v3005 = vunpack.c.l.b16 %v2934
        %v3006 = vunpack.c.l.b16 %v2935
        %v3007 = vunpack.c.l.b16 %v2936
        %v3008 = vunpack.c.l.b16 %v2937
        %v3009 = vunpack.c.l.b16 %v2938
        %v3010 = vunpack.c.l.b16 %v2939
        %v3011 = vunpack.c.l.b16 %v2940
        %v3012 = vunpack.c.l.b16 %v2941
        %v3013 = vunpack.c.l.b16 %v2942
        %v3014 = vpack.c.b16 %v2983, %v2982
        %v3015 = vpack.c.b16 %v2985, %v2984
        %v3016 = vpack.c.b16 %v2987, %v2986
        %v3017 = vpack.c.b16 %v2989, %v2988
        %v3018 = vpack.c.b16 %v2991, %v2990
        %v3019 = vpack.c.b16 %v2993, %v2992
        %v3020 = vpack.c.b16 %v2995, %v2994
        %v3021 = vpack.c.b16 %v2997, %v2996
        %v3022 = vpack.c.b16 %v2999, %v2998
        %v3023 = vpack.c.b16 %v3001, %v3000
        %v3024 = vpack.c.b16 %v3003, %v3002
        %v3025 = vpack.c.b16 %v3005, %v3004
        %v3026 = vpack.c.b16 %v3007, %v3006
        %v3027 = vpack.c.b16 %v3009, %v3008
        %v3028 = vpack.c.b16 %v3011, %v3010
        %v3029 = vpack.c.b16 %v3013, %v3012
        %3046 = vmatprep.subr.bf16.mxu0 0
        %3047 = vmatpush1.bf16.msra.mxu0 %v3021
        %3048 = vmatprep.subr.bf16.mxu0 0
        %3049 = vmatpush1.bf16.msra.mxu0 %v3020
        %3050 = vmatprep.subr.bf16.mxu0 0
        %3051 = vmatpush1.bf16.msra.mxu0 %v3019
        %3052 = vmatprep.subr.bf16.mxu0 0
        %3053 = vmatpush1.bf16.msra.mxu0 %v3018
        %3054 = vmatprep.subr.bf16.mxu0 0
        %3055 = vmatpush1.bf16.msra.mxu0 %v3017
        %3056 = vmatprep.subr.bf16.mxu0 0
        %3057 = vmatpush1.bf16.msra.mxu0 %v3016
        %3058 = vmatprep.subr.bf16.mxu0 0
        %3059 = vmatpush1.bf16.msra.mxu0 %v3015
        %3060 = vmatprep.subr.bf16.mxu0 0
        %3061 = vmatpush1.bf16.msra.mxu0 %v3014
        %3062 = vmatprep.subr.bf16.mxu0 0
        %3063 = vmatpush2.bf16.msra.mxu0 %v3029
        %3064 = vmatprep.subr.bf16.mxu0 0
        %3065 = vmatpush2.bf16.msra.mxu0 %v3028
        %3066 = vmatprep.subr.bf16.mxu0 0
        %3067 = vmatpush2.bf16.msra.mxu0 %v3027
        %3068 = vmatprep.subr.bf16.mxu0 0
        %3069 = vmatpush2.bf16.msra.mxu0 %v3026
        %3070 = vmatprep.subr.bf16.mxu0 0
        %3071 = vmatpush2.bf16.msra.mxu0 %v3025
        %3072 = vmatprep.subr.bf16.mxu0 0
        %3073 = vmatpush2.bf16.msra.mxu0 %v3024
        %3074 = vmatprep.subr.bf16.mxu0 0
        %3075 = vmatpush2.bf16.msra.mxu0 %v3023
        %3076 = vmatprep.subr.bf16.mxu0 0
        %3077 = vmatpush2.bf16.msra.mxu0 %v3022
        %3078 = vmatprep.mubr.bf16.mxu0 %v2908
        %3079 = vmatmul.mubr.bf16.gmra.mxu0 %v2907
        %v3080 = vpop.f32.mrf.mxu0
        %v3081 = vadd.f32 %v2948, %v3080
        %v3082 = vpop.f32.mrf.mxu0
        %v3083 = vpop.f32.mrf.mxu0
        %v3084 = vadd.f32 %v2948, %v3083
        %v3085 = vpop.f32.mrf.mxu0
        %3086 = vmatprep.mubr.bf16.mxu0 %v2910
        %3087 = vmatmul.mubr.bf16.gmra.mxu0 %v2909
        %v3088 = vpop.f32.mrf.mxu0
        %v3089 = vadd.f32 %v2948, %v3088
        %v3090 = vpop.f32.mrf.mxu0
        %v3091 = vpop.f32.mrf.mxu0
        %v3092 = vadd.f32 %v2948, %v3091
        %v3093 = vpop.f32.mrf.mxu0
        %3094 = vdwg.mxu0
        %v3095 = vadd.f32 %v2732, %v3081
        %v3096 = vadd.f32 %v2733, %v3084
        %v3097 = vadd.f32 %v2734, %v3089
        %v3098 = vadd.f32 %v2735, %v3092
        %3099 = vadd.xlane.f32.xlu0 %v3095
        %v3100 = vpop.xlane.xlu0 %3099
        %3101 = vadd.xlane.f32.xlu0 %v3096
        %v3102 = vpop.xlane.xlu0 %3101
        %3103 = vadd.xlane.f32.xlu0 %v3097
        %v3104 = vpop.xlane.xlu0 %3103
        %3105 = vadd.xlane.f32.xlu0 %v3098
        %v3106 = vpop.xlane.xlu0 %3105
        %v3107 = vmul.f32 %v3100, %v2669
        %v3108 = vmul.f32 %v3102, %v2669
        %v3109 = vmul.f32 %v3104, %v2669
        %v3110 = vmul.f32 %v3106, %v2669
        %v3111 = vmul.f32 %v3095, %v3095
        %v3112 = vmul.f32 %v3096, %v3096
        %v3113 = vmul.f32 %v3097, %v3097
        %v3114 = vmul.f32 %v3098, %v3098
        %3115 = vadd.xlane.f32.xlu0 %v3111
        %v3116 = vpop.xlane.xlu0 %3115
        %3117 = vadd.xlane.f32.xlu0 %v3112
        %v3118 = vpop.xlane.xlu0 %3117
        %3119 = vadd.xlane.f32.xlu0 %v3113
        %v3120 = vpop.xlane.xlu0 %3119
        %3121 = vadd.xlane.f32.xlu0 %v3114
        %v3122 = vpop.xlane.xlu0 %3121
        %v3123 = vmul.f32 %v3116, %v2669
        %v3124 = vmul.f32 %v3118, %v2669
        %v3125 = vmul.f32 %v3120, %v2669
        %v3126 = vmul.f32 %v3122, %v2669
        %v3127 = vsub.f32 %v3095, %v3107
        %v3128 = vsub.f32 %v3096, %v3108
        %v3129 = vsub.f32 %v3097, %v3109
        %v3130 = vsub.f32 %v3098, %v3110
        %v3131 = vmul.f32 %v3107, %v3107
        %v3132 = vmul.f32 %v3108, %v3108
        %v3133 = vmul.f32 %v3109, %v3109
        %v3134 = vmul.f32 %v3110, %v3110
        %v3135 = vsub.f32 %v3123, %v3131
        %v3136 = vsub.f32 %v3124, %v3132
        %v3137 = vsub.f32 %v3125, %v3133
        %v3138 = vsub.f32 %v3126, %v3134
        %v3139 = vadd.f32 %v3135, 1e-06
        %v3140 = vadd.f32 %v3136, 1e-06
        %v3141 = vadd.f32 %v3137, 1e-06
        %v3142 = vadd.f32 %v3138, 1e-06
        %v3143 = vrsqrt.pop %v3139
        %v3144 = vrsqrt.pop %v3140
        %v3145 = vrsqrt.pop %v3141
        %v3146 = vrsqrt.pop %v3142
        %v3147 = vmul.f32 %v3127, %v3143
        %v3148 = vmul.f32 %v3128, %v3144
        %v3149 = vmul.f32 %v3129, %v3145
        %v3150 = vmul.f32 %v3130, %v3146
        %v3151 = vld [vmem:[%s17] sm:$0x1]
        %v3153 = vlaneseq
        %v3154 = vshrl.u32 %v3153, 7
        %v3155 = vsub.s32 0, %v3154
        %v3156 = vrot.slane %v3151, %v3155
        %v3158 = vmul.f32 %v3147, %v3156
        %v3159 = vmul.f32 %v3148, %v3156
        %v3160 = vmul.f32 %v3149, %v3156
        %v3161 = vmul.f32 %v3150, %v3156
        %v3162 = vld [vmem:[%s18] sm:$0x1]
        %v3164 = vlaneseq
        %v3165 = vshrl.u32 %v3164, 7
        %v3166 = vsub.s32 0, %v3165
        %v3167 = vrot.slane %v3162, %v3166
        %v3169 = vadd.f32 %v3158, %v3167
        %v3170 = vadd.f32 %v3159, %v3167
        %v3171 = vadd.f32 %v3160, %v3167
        %v3172 = vadd.f32 %v3161, %v3167
        %3173 = vst [vmem:[%s806] sm:$0xff] %v3169
        %3174 = vst [vmem:[%s806 + $0x8] sm:$0xff] %v3170
        %3175 = vst [vmem:[%s806 + $0x10] sm:$0xff] %v3171
        %3176 = vst [vmem:[%s806 + $0x18] sm:$0xff] %v3172
        %s3177 = sand.u32 %s482, 1
        %s3178 = scalar_lea.sflag [#allocation6], %s3177
        %s3179 = sand.u32 %s482, 1
        %s3180 = smul.addr %s3179, 32
        %s3181 = scalar_lea.vmem [#allocation19], %s3180
        // Predicated region
        $region137: #{tpu_custom_call.1} parent=95 // pred_check
          %p3182 = pneg %p492
        $region138: #{tpu_custom_call.1} parent=95 // pred_check_branch
          %3184 = sbr.rel (%p3182) target = $region140
        $region139: #{tpu_custom_call.1} parent=95 // pred_region
          %s3185 = smul.u32 4, %s47
          %s3187 = ssub.s32 512, 512
          %3188 = vsyncadd %s3178, %s3187
          %s3189 = smul.addr %s46, 8
          %s3190 = sadd.s32 %s3185, %s3189
          %s3191 = smul.addr %s3190, 128
          %s3192 = scalar_lea.hbm %s19, %s3191
          %s3193 = sshll.u32 %s3181, 4
          %s3194 = int_to_ptr.vmem [resolvable:$true] %s3193
          %3199 = dma.vmem_to_hbm [thread:$0]  %s3194, 512, %s3192, %s3178, 128, 128, 8
        $region140: #{tpu_custom_call.1} parent=95 // pred_fallthru
          _
      $region96: #{tpu_custom_call.1} parent=5 // pred_fallthru
        _
      %p3200 = scmp.le.s32.totalorder 2, %s37
      // Predicated region
      $region141: #{tpu_custom_call.1} parent=5 // pred_check
        %p3201 = pneg %p3200
      $region142: #{tpu_custom_call.1} parent=5 // pred_check_branch
        %3203 = sbr.rel (%p3201) target = $region144
      $region143: #{tpu_custom_call.1} parent=5 // pred_region
        %s3204 = ssub.s32 %s37, 2
        // Predicated region
        $region145: #{tpu_custom_call.1} parent=143 // pred_check
          %p3205 = pneg %p498
        $region146: #{tpu_custom_call.1} parent=143 // pred_check_branch
          %3207 = sbr.rel (%p3205) target = $region148
        $region147: #{tpu_custom_call.1} parent=143 // pred_region
          %s3208 = sand.u32 %s483, 1
          %s3209 = scalar_lea.sflag [#allocation6], %s3208
          %s3210 = sand.u32 %s483, 1
          %s3211 = smul.addr %s3210, 32
          %s3212 = scalar_lea.vmem [#allocation19], %s3211
          %3213 = dma.done %s3209, 512
        $region148: #{tpu_custom_call.1} parent=143 // pred_fallthru
          _
      $region144: #{tpu_custom_call.1} parent=5 // pred_fallthru
        _
    $region6: #{tpu_custom_call.1} parent=1 // loop_footer
      %s41 = sadd.s32 1, %s37
    $region7: #{tpu_custom_call.1} parent=1 // loop_footer_branch
      %36 = sbr.rel target = $region3
    $region8: #{tpu_custom_call.1} parent=1 // loop_exit
      _
    %3214 = vsyncpa [#allocation5], 1
    %s3215 = scalar_lea.sflag [#allocation5], 1
    %3216 = vsyncpa %s3215, 1
    %3217 = vsyncpa [#allocation8], 1
    %s3218 = scalar_lea.sflag [#allocation8], 1
    %3219 = vsyncpa %s3218, 1
    %3220 = vsyncpa [#allocation11], 1
    %3221 = vsyncpa [#allocation14], 1
    %3222 = vsyncpa [#allocation17], 1
    %3223 = vsyncpa [#allocation6], 1
    %s3224 = scalar_lea.sflag [#allocation6], 1
    %3225 = vsyncpa %s3224, 1

</llo_original>
